<compile_context>
chip_gen: v6e
topology: v6e:2x2x1
jax: 0.10.0
libtpu: 0.0.40
codegen_flags: <defaults>
</compile_context>

<pallas_src>
import functools

import numpy as np
import jax
import jax.numpy as jnp
from jax import lax
from jax.experimental import pallas as pl
from jax.experimental.pallas import tpu as pltpu

LANE = 128        # TPU lane width; every matmul output N dim is padded to this.
TILE_M = 512      # rows per grid step for the conv GEMMs.
HEAD_TILE_M = 256 # rows per grid step for the fused FC+head kernel (K=6272).

CONV_CFG = (
    # (kernel, stride, out_channels)
    (8, 4, 32),   # Conv2d(in, 32, kernel_size=8, stride=4)
    (4, 2, 64),   # Conv2d(32, 64, kernel_size=4, stride=2)
    (3, 1, 64),   # Conv2d(64, 64, kernel_size=3, stride=1)
)
FLAT_C, FLAT_HW = 64, 7   # nn.Flatten() feeds Linear(64*7*7, hidden)


def _round_up(x, m):
    return (x + m - 1) // m * m


# ----------------------------------------------------------------------------
# Pallas kernels
# ----------------------------------------------------------------------------
def _matmul_bias_relu_kernel(x_ref, w_ref, b_ref, o_ref):
    """o = relu(x @ w + b).  bf16 MXU operands, f32 accumulation / epilogue."""
    acc = jnp.dot(x_ref[...], w_ref[...], preferred_element_type=jnp.float32)
    acc = jnp.maximum(acc + b_ref[...], 0.0)
    o_ref[...] = acc.astype(o_ref.dtype)


def matmul_bias_relu(x, w, b, *, out_dtype=jnp.bfloat16, tile_m=TILE_M):
    """M-tiled GEMM.  x:(M,K) bf16 streamed, w:(K,Npad) bf16 resident, b:(1,Npad) f32."""
    m, k = x.shape
    n = w.shape[1]
    tm = m if m <= tile_m else tile_m          # full-M block when the array is small
    grid = (pl.cdiv(m, tm),)
    return pl.pallas_call(
        _matmul_bias_relu_kernel,
        out_shape=jax.ShapeDtypeStruct((m, n), out_dtype),
        grid=grid,
        in_specs=[
            pl.BlockSpec((tm, k), lambda i: (i, 0)),   # activations: pipelined M tiles
            pl.BlockSpec((k, n), lambda i: (0, 0)),    # weight: resident across grid
            pl.BlockSpec((1, n), lambda i: (0, 0)),    # bias: resident
        ],
        out_specs=pl.BlockSpec((tm, n), lambda i: (i, 0)),
        compiler_params=pltpu.CompilerParams(dimension_semantics=("parallel",)),
    )(x, w, b)


def _fc_head_kernel(h_ref, wfc_ref, bfc_ref, wh_ref, bh_ref, out_ref, *, n_actions):
    """Fused base-FC (+ReLU) + actor/critic head + Categorical log_softmax/entropy.

    Output columns: [0, A) = log_softmax(logits), col A = value, col A+1 = entropy.
    """
    # FC: (TM, 6272) @ (6272, Hp) + b -> ReLU   (f32 accumulation, f32 epilogue)
    feat = jnp.dot(h_ref[...], wfc_ref[...], preferred_element_type=jnp.float32)
    feat = jnp.maximum(feat + bfc_ref[...], 0.0)
    # Head: actor|critic concatenated along N: cols [0,A) = logits, col A = value.
    head = jnp.dot(feat.astype(wh_ref.dtype), wh_ref[...],
                   preferred_element_type=jnp.float32) + bh_ref[...]
    tm, npad = head.shape
    col = lax.broadcasted_iota(jnp.int32, (tm, npad), 1)
    is_logit = col < n_actions
    value = jnp.sum(jnp.where(col == n_actions, head, 0.0), axis=-1, keepdims=True)

    # log-softmax / softmax / entropy over the real action columns only
    # (padded columns masked to a huge negative -> exp() underflows to exactly 0).
    logits = jnp.where(is_logit, head, -1e30)
    m = jnp.max(logits, axis=-1, keepdims=True)
    z = logits - m
    ez = jnp.exp(z)
    s = jnp.sum(ez, axis=-1, keepdims=True)
    logp = z - jnp.log(s)
    p = ez * pl.reciprocal(s, approx=True)          # divide on the otherwise-idle EUP
    ent = -jnp.sum(jnp.where(is_logit, p * logp, 0.0), axis=-1, keepdims=True)

    out_ref[...] = (jnp.where(is_logit, logp, 0.0)
                    + jnp.where(col == n_actions, value, 0.0)
                    + jnp.where(col == n_actions + 1, ent, 0.0))


def pallas_fc_head(h, wfc, bfc, wh, bh, *, n_actions, tile_m=HEAD_TILE_M):
    m, k = h.shape
    hp = wfc.shape[1]
    npad = wh.shape[1]
    tm = m if m <= tile_m else tile_m
    grid = (pl.cdiv(m, tm),)
    kernel = functools.partial(_fc_head_kernel, n_actions=n_actions)
    return pl.pallas_call(
        kernel,
        out_shape=jax.ShapeDtypeStruct((m, npad), jnp.float32),
        grid=grid,
        in_specs=[
            pl.BlockSpec((tm, k), lambda i: (i, 0)),     # activations: pipelined M tiles
            pl.BlockSpec((k, hp), lambda i: (0, 0)),     # FC weight: resident
            pl.BlockSpec((1, hp), lambda i: (0, 0)),
            pl.BlockSpec((hp, npad), lambda i: (0, 0)),  # fused actor|critic weight
            pl.BlockSpec((1, npad), lambda i: (0, 0)),
        ],
        out_specs=pl.BlockSpec((tm, npad), lambda i: (i, 0)),
        compiler_params=pltpu.CompilerParams(dimension_semantics=("parallel",)),
    )(h, wfc, bfc, wh, bh)


# ----------------------------------------------------------------------------
# Glue: im2col (data movement), parameter setup, forward wrapper
# ----------------------------------------------------------------------------
def conv2d_pallas(x_nhwc, w_mat, b_mat, ksize, stride, oc, *, keep_padded=False):
    """PyTorch-semantics valid conv: patch extraction (XLA) + Pallas GEMM (MACs)."""
    bsz, h, w, c = x_nhwc.shape
    oh = (h - ksize) // stride + 1
    ow = (w - ksize) // stride + 1
    # Patch feature order is (C, kh, kw), matching w.reshape(OC, C*k*k).
    patches = lax.conv_general_dilated_patches(
        x_nhwc, filter_shape=(ksize, ksize), window_strides=(stride, stride),
        padding="VALID", dimension_numbers=("NHWC", "HWIO", "NHWC"))
    patches = patches.reshape(bsz * oh * ow, c * ksize * ksize)
    y = matmul_bias_relu(patches, w_mat, b_mat)          # (M, Npad) bf16
    if keep_padded:
        return y.reshape(bsz, oh, ow, -1)                # padded channels stay zero
    return y[:, :oc].reshape(bsz, oh, ow, oc)


def init_params(key, in_channels, n_actions, hidden_size):
    # Deterministic synthetic init (stand-in for orthogonal layer_init; shapes match
    # the PyTorch module: conv (OC, IC, k, k), linear (out, in)).
    ks = jax.random.split(key, 6)

    def w_init(k, shape, std):
        fan_in = int(np.prod(shape[1:]))
        return (std / np.sqrt(fan_in)) * jax.random.normal(k, shape, jnp.float32)

    s2 = float(np.sqrt(2.0))
    return {
        "w1": w_init(ks[0], (32, in_channels, 8, 8), s2), "b1": jnp.zeros((32,), jnp.float32),
        "w2": w_init(ks[1], (64, 32, 4, 4), s2),          "b2": jnp.zeros((64,), jnp.float32),
        "w3": w_init(ks[2], (64, 64, 3, 3), s2),          "b3": jnp.zeros((64,), jnp.float32),
        "wfc": w_init(ks[3], (hidden_size, FLAT_C * FLAT_HW * FLAT_HW), s2),
        "bfc": jnp.zeros((hidden_size,), jnp.float32),
        "wa": w_init(ks[4], (n_actions, hidden_size), 0.01), "ba": jnp.zeros((n_actions,), jnp.float32),
        "wc": w_init(ks[5], (1, hidden_size), 1.0),          "bc": jnp.zeros((1,), jnp.float32),
    }


def prepare_params(p, n_actions, hidden_size):
    """One-time conversion to padded bf16 matmul operands (f32 biases)."""
    def conv_mats(w, b):
        oc, ic, kh, kw = w.shape
        k = ic * kh * kw
        npad = _round_up(oc, LANE)
        wm = jnp.pad(w.reshape(oc, k).T, ((0, 0), (0, npad - oc))).astype(jnp.bfloat16)
        bm = jnp.pad(b, (0, npad - oc)).astype(jnp.float32).reshape(1, npad)
        return {"w": wm, "b": bm}

    hp = _round_up(hidden_size, LANE)

    # FC weight: PyTorch flatten order is (C, h, w); the last conv output we feed is
    # NHWC with channels padded to 128 -> permute/pad the weight rows ONCE so the
    # activation needs no runtime transpose/slice (free reshape straight to the GEMM).
    cpad = _round_up(FLAT_C, LANE)
    wfc_r = p["wfc"].reshape(hidden_size, FLAT_C, FLAT_HW, FLAT_HW)
    wfc_r = jnp.transpose(wfc_r, (0, 2, 3, 1))                        # (H, h, w, C)
    wfc_r = jnp.pad(wfc_r, ((0, 0), (0, 0), (0, 0), (0, cpad - FLAT_C)))
    wfc_r = wfc_r.reshape(hidden_size, FLAT_HW * FLAT_HW * cpad).T    # (6272, H)
    wfc = jnp.pad(wfc_r, ((0, 0), (0, hp - hidden_size))).astype(jnp.bfloat16)
    bfc = jnp.pad(p["bfc"], (0, hp - hidden_size)).astype(jnp.float32).reshape(1, hp)

    npad = _round_up(n_actions + 2, LANE)                 # +1 value col, +1 entropy col
    wh = jnp.concatenate([p["wa"].T, p["wc"].T], axis=1)  # (H, A+1)
    wh = jnp.pad(wh, ((0, hp - hidden_size), (0, npad - (n_actions + 1)))).astype(jnp.bfloat16)
    bh = jnp.concatenate([p["ba"], p["bc"]])              # (A+1,)
    bh = jnp.pad(bh, (0, npad - (n_actions + 1))).astype(jnp.float32).reshape(1, npad)

    return {
        "conv": tuple(conv_mats(p[f"w{i}"], p[f"b{i}"]) for i in (1, 2, 3)),
        "wfc": wfc, "bfc": bfc, "wh": wh, "bh": bh,
    }


def ppo_forward(prep, x, key, action=None, *, n_actions):
    """Mirror of PPONetwork.forward: returns (action, log_prob, entropy, value)."""
    bsz = x.shape[0]
    h = x.transpose(0, 2, 3, 1).astype(jnp.bfloat16)          # NCHW -> NHWC, bf16 operands
    n_convs = len(CONV_CFG)
    for li, ((k, s, oc), layer) in enumerate(zip(CONV_CFG, prep["conv"])):
        last = li == n_convs - 1
        h = conv2d_pallas(h, layer["w"], layer["b"], k, s, oc, keep_padded=last)
    # Last conv kept padded 128-channel NHWC layout; the FC weight rows were permuted
    # to match, so this reshape is free (no transpose, no slice, no HBM copy).
    h = h.reshape(bsz, -1)                                    # (B, 7*7*128) bf16

    out = pallas_fc_head(h, prep["wfc"], prep["bfc"], prep["wh"], prep["bh"],
                         n_actions=n_actions)
    logp = out[:, :n_actions]                                 # (B, A) log_softmax(logits)
    value = out[:, n_actions:n_actions + 1]                   # (B, 1) critic
    entropy = out[:, n_actions + 1]                           # (B,)

    if action is None:
        # torch.distributions.Categorical(logits=...).sample(); log-probs are a constant
        # shift of the logits so gumbel-max sampling is unchanged.  (Different RNG
        # stream than torch, same distribution.)
        action = jax.random.categorical(key, logp, axis=-1)
    log_prob = jnp.take_along_axis(logp, action[:, None].astype(jnp.int32), axis=-1)[:, 0]
    return action, log_prob, entropy, value


# ----------------------------------------------------------------------------
if __name__ == "__main__":
    key = jax.random.PRNGKey(0)
    k_param, k_obs, k_sample = jax.random.split(key, 3)

    batch, in_channels, n_actions, hidden_size = 2, 4, 3, 64   # Freeway: 3 actions
    # Spatial 84x84 is dictated by the module's Flatten -> Linear(64*7*7, hidden).
    x = jax.random.uniform(k_obs, (batch, in_channels, 84, 84), jnp.float32)

    params = init_params(k_param, in_channels, n_actions, hidden_size)
    prep = prepare_params(params, n_actions, hidden_size)

    fwd = jax.jit(functools.partial(ppo_forward, n_actions=n_actions))
    action, log_prob, entropy, value = fwd(prep, x, k_sample)
    jax.block_until_ready((action, log_prob, entropy, value))

    assert action.shape == (batch,)
    assert log_prob.shape == (batch,)
    assert entropy.shape == (batch,)
    assert value.shape == (batch, 1)
    # Internal consistency: the in-kernel softmax must be a valid distribution.
    _, lp_all, ent_chk, _ = fwd(prep, x, k_sample, jnp.zeros((batch,), jnp.int32))
    assert bool(jnp.all(jnp.isfinite(value))) and bool(jnp.all(jnp.isfinite(lp_all)))
    assert bool(jnp.all(ent_chk >= -1e-3)) and bool(jnp.all(ent_chk <= np.log(n_actions) + 1e-3))
    print("KERNEL_OK")
</pallas_src>

<mosaic_0001>
module attributes {stable_mosaic.version = 11 : i64} {
  func.func @_matmul_bias_relu_kernel(%arg0: i32, %arg1: memref<512x256xbf16, #tpu.memory_space<vmem>>, %arg2: memref<256x128xbf16, #tpu.memory_space<vmem>>, %arg3: memref<1x128xf32, #tpu.memory_space<vmem>>, %arg4: memref<512x128xbf16, #tpu.memory_space<vmem>>) attributes {dimension_semantics = [#tpu.dimension_semantics<parallel>], iteration_bounds = array<i64: 2>, scalar_prefetch = 0 : i64, scratch_operands = 0 : i64, tpu.core_type = #tpu.core_type<tc>, window_params = [{transform_indices = @transform_0, window_bounds = array<i64: 512, 256>}, {pipeline_mode = #tpu.pipeline_mode<synchronous>, transform_indices = @transform_1, window_bounds = array<i64: 256, 128>}, {pipeline_mode = #tpu.pipeline_mode<synchronous>, transform_indices = @transform_2, window_bounds = array<i64: 1, 128>}, {transform_indices = @transform_3, window_bounds = array<i64: 512, 128>}]} {
    %c0 = arith.constant 0 : index
    %c0_0 = arith.constant 0 : index
    %0 = vector.load %arg1[%c0, %c0_0] : memref<512x256xbf16, #tpu.memory_space<vmem>>, vector<512x256xbf16>
    %c0_1 = arith.constant 0 : index
    %c0_2 = arith.constant 0 : index
    %1 = vector.load %arg2[%c0_1, %c0_2] : memref<256x128xbf16, #tpu.memory_space<vmem>>, vector<256x128xbf16>
    %cst = arith.constant dense<0.000000e+00> : vector<512x128xf32>
    %2 = tpu.matmul %0, %1, %cst {dimension_numbers = #tpu.dot_dimension_numbers<[1], [0], [0], [1], [0, 0, 1, 1], [], []>} : vector<512x256xbf16>, vector<256x128xbf16>, vector<512x128xf32> -> vector<512x128xf32>
    %c0_3 = arith.constant 0 : index
    %c0_4 = arith.constant 0 : index
    %3 = vector.load %arg3[%c0_3, %c0_4] : memref<1x128xf32, #tpu.memory_space<vmem>>, vector<1x128xf32>
    %4 = vector.broadcast %3 : vector<1x128xf32> to vector<512x128xf32>
    %5 = arith.addf %2, %4 : vector<512x128xf32>
    %cst_5 = arith.constant 0.000000e+00 : f32
    %6 = vector.broadcast %cst_5 : f32 to vector<512x128xf32>
    %7 = arith.maximumf %5, %6 : vector<512x128xf32>
    %8 = arith.truncf %7 : vector<512x128xf32> to vector<512x128xbf16>
    %c0_6 = arith.constant 0 : index
    %c0_7 = arith.constant 0 : index
    %9 = vector.load %arg4[%c0_6, %c0_7] : memref<512x128xbf16, #tpu.memory_space<vmem>>, vector<512x128xbf16>
    tpu.vector_store %arg4[%c0_6, %c0_7], %8 {strides = array<i32>} : memref<512x128xbf16, #tpu.memory_space<vmem>>, vector<512x128xbf16>,
    return
  }
  func.func @transform_0(%arg0: i32) -> (i32, i32) {
    %c0_i32 = arith.constant 0 : i32
    %c0_i32_0 = arith.constant 0 : i32
    return %arg0, %c0_i32 : i32, i32
  }
  func.func @transform_1(%arg0: i32) -> (i32, i32) {
    %c0_i32 = arith.constant 0 : i32
    %c0_i32_0 = arith.constant 0 : i32
    %c0_i32_1 = arith.constant 0 : i32
    return %c0_i32, %c0_i32_0 : i32, i32
  }
  func.func @transform_2(%arg0: i32) -> (i32, i32) {
    %c0_i32 = arith.constant 0 : i32
    %c0_i32_0 = arith.constant 0 : i32
    %c0_i32_1 = arith.constant 0 : i32
    return %c0_i32, %c0_i32_0 : i32, i32
  }
  func.func @transform_3(%arg0: i32) -> (i32, i32) {
    %c0_i32 = arith.constant 0 : i32
    %c0_i32_0 = arith.constant 0 : i32
    return %arg0, %c0_i32 : i32, i32
  }
}

module attributes {stable_mosaic.version = 11 : i64} {
  func.func @_matmul_bias_relu_kernel(%arg0: i32, %arg1: memref<162x512xbf16, #tpu.memory_space<vmem>>, %arg2: memref<512x128xbf16, #tpu.memory_space<vmem>>, %arg3: memref<1x128xf32, #tpu.memory_space<vmem>>, %arg4: memref<162x128xbf16, #tpu.memory_space<vmem>>) attributes {dimension_semantics = [#tpu.dimension_semantics<parallel>], iteration_bounds = array<i64: 1>, scalar_prefetch = 0 : i64, scratch_operands = 0 : i64, tpu.core_type = #tpu.core_type<tc>, window_params = [{transform_indices = @transform_0, window_bounds = array<i64: 162, 512>}, {pipeline_mode = #tpu.pipeline_mode<synchronous>, transform_indices = @transform_1, window_bounds = array<i64: 512, 128>}, {pipeline_mode = #tpu.pipeline_mode<synchronous>, transform_indices = @transform_2, window_bounds = array<i64: 1, 128>}, {transform_indices = @transform_3, window_bounds = array<i64: 162, 128>}]} {
    %c0 = arith.constant 0 : index
    %c0_0 = arith.constant 0 : index
    %0 = vector.load %arg1[%c0, %c0_0] : memref<162x512xbf16, #tpu.memory_space<vmem>>, vector<162x512xbf16>
    %c0_1 = arith.constant 0 : index
    %c0_2 = arith.constant 0 : index
    %1 = vector.load %arg2[%c0_1, %c0_2] : memref<512x128xbf16, #tpu.memory_space<vmem>>, vector<512x128xbf16>
    %cst = arith.constant dense<0.000000e+00> : vector<162x128xf32>
    %2 = tpu.matmul %0, %1, %cst {dimension_numbers = #tpu.dot_dimension_numbers<[1], [0], [0], [1], [0, 0, 1, 1], [], []>} : vector<162x512xbf16>, vector<512x128xbf16>, vector<162x128xf32> -> vector<162x128xf32>
    %c0_3 = arith.constant 0 : index
    %c0_4 = arith.constant 0 : index
    %3 = vector.load %arg3[%c0_3, %c0_4] : memref<1x128xf32, #tpu.memory_space<vmem>>, vector<1x128xf32>
    %4 = vector.broadcast %3 : vector<1x128xf32> to vector<162x128xf32>
    %5 = arith.addf %2, %4 : vector<162x128xf32>
    %cst_5 = arith.constant 0.000000e+00 : f32
    %6 = vector.broadcast %cst_5 : f32 to vector<162x128xf32>
    %7 = arith.maximumf %5, %6 : vector<162x128xf32>
    %8 = arith.truncf %7 : vector<162x128xf32> to vector<162x128xbf16>
    %c0_6 = arith.constant 0 : index
    %c0_7 = arith.constant 0 : index
    %9 = vector.load %arg4[%c0_6, %c0_7] : memref<162x128xbf16, #tpu.memory_space<vmem>>, vector<162x128xbf16>
    tpu.vector_store %arg4[%c0_6, %c0_7], %8 {strides = array<i32>} : memref<162x128xbf16, #tpu.memory_space<vmem>>, vector<162x128xbf16>,
    return
  }
  func.func @transform_0(%arg0: i32) -> (i32, i32) {
    %c0_i32 = arith.constant 0 : i32
    %c0_i32_0 = arith.constant 0 : i32
    return %arg0, %c0_i32 : i32, i32
  }
  func.func @transform_1(%arg0: i32) -> (i32, i32) {
    %c0_i32 = arith.constant 0 : i32
    %c0_i32_0 = arith.constant 0 : i32
    %c0_i32_1 = arith.constant 0 : i32
    return %c0_i32, %c0_i32_0 : i32, i32
  }
  func.func @transform_2(%arg0: i32) -> (i32, i32) {
    %c0_i32 = arith.constant 0 : i32
    %c0_i32_0 = arith.constant 0 : i32
    %c0_i32_1 = arith.constant 0 : i32
    return %c0_i32, %c0_i32_0 : i32, i32
  }
  func.func @transform_3(%arg0: i32) -> (i32, i32) {
    %c0_i32 = arith.constant 0 : i32
    %c0_i32_0 = arith.constant 0 : i32
    return %arg0, %c0_i32 : i32, i32
  }
}

module attributes {stable_mosaic.version = 11 : i64} {
  func.func @_matmul_bias_relu_kernel(%arg0: i32, %arg1: memref<98x576xbf16, #tpu.memory_space<vmem>>, %arg2: memref<576x128xbf16, #tpu.memory_space<vmem>>, %arg3: memref<1x128xf32, #tpu.memory_space<vmem>>, %arg4: memref<98x128xbf16, #tpu.memory_space<vmem>>) attributes {dimension_semantics = [#tpu.dimension_semantics<parallel>], iteration_bounds = array<i64: 1>, scalar_prefetch = 0 : i64, scratch_operands = 0 : i64, tpu.core_type = #tpu.core_type<tc>, window_params = [{transform_indices = @transform_0, window_bounds = array<i64: 98, 576>}, {pipeline_mode = #tpu.pipeline_mode<synchronous>, transform_indices = @transform_1, window_bounds = array<i64: 576, 128>}, {pipeline_mode = #tpu.pipeline_mode<synchronous>, transform_indices = @transform_2, window_bounds = array<i64: 1, 128>}, {transform_indices = @transform_3, window_bounds = array<i64: 98, 128>}]} {
    %c0 = arith.constant 0 : index
    %c0_0 = arith.constant 0 : index
    %0 = vector.load %arg1[%c0, %c0_0] : memref<98x576xbf16, #tpu.memory_space<vmem>>, vector<98x576xbf16>
    %c0_1 = arith.constant 0 : index
    %c0_2 = arith.constant 0 : index
    %1 = vector.load %arg2[%c0_1, %c0_2] : memref<576x128xbf16, #tpu.memory_space<vmem>>, vector<576x128xbf16>
    %cst = arith.constant dense<0.000000e+00> : vector<98x128xf32>
    %2 = tpu.matmul %0, %1, %cst {dimension_numbers = #tpu.dot_dimension_numbers<[1], [0], [0], [1], [0, 0, 1, 1], [], []>} : vector<98x576xbf16>, vector<576x128xbf16>, vector<98x128xf32> -> vector<98x128xf32>
    %c0_3 = arith.constant 0 : index
    %c0_4 = arith.constant 0 : index
    %3 = vector.load %arg3[%c0_3, %c0_4] : memref<1x128xf32, #tpu.memory_space<vmem>>, vector<1x128xf32>
    %4 = vector.broadcast %3 : vector<1x128xf32> to vector<98x128xf32>
    %5 = arith.addf %2, %4 : vector<98x128xf32>
    %cst_5 = arith.constant 0.000000e+00 : f32
    %6 = vector.broadcast %cst_5 : f32 to vector<98x128xf32>
    %7 = arith.maximumf %5, %6 : vector<98x128xf32>
    %8 = arith.truncf %7 : vector<98x128xf32> to vector<98x128xbf16>
    %c0_6 = arith.constant 0 : index
    %c0_7 = arith.constant 0 : index
    %9 = vector.load %arg4[%c0_6, %c0_7] : memref<98x128xbf16, #tpu.memory_space<vmem>>, vector<98x128xbf16>
    tpu.vector_store %arg4[%c0_6, %c0_7], %8 {strides = array<i32>} : memref<98x128xbf16, #tpu.memory_space<vmem>>, vector<98x128xbf16>,
    return
  }
  func.func @transform_0(%arg0: i32) -> (i32, i32) {
    %c0_i32 = arith.constant 0 : i32
    %c0_i32_0 = arith.constant 0 : i32
    return %arg0, %c0_i32 : i32, i32
  }
  func.func @transform_1(%arg0: i32) -> (i32, i32) {
    %c0_i32 = arith.constant 0 : i32
    %c0_i32_0 = arith.constant 0 : i32
    %c0_i32_1 = arith.constant 0 : i32
    return %c0_i32, %c0_i32_0 : i32, i32
  }
  func.func @transform_2(%arg0: i32) -> (i32, i32) {
    %c0_i32 = arith.constant 0 : i32
    %c0_i32_0 = arith.constant 0 : i32
    %c0_i32_1 = arith.constant 0 : i32
    return %c0_i32, %c0_i32_0 : i32, i32
  }
  func.func @transform_3(%arg0: i32) -> (i32, i32) {
    %c0_i32 = arith.constant 0 : i32
    %c0_i32_0 = arith.constant 0 : i32
    return %arg0, %c0_i32 : i32, i32
  }
}

module attributes {stable_mosaic.version = 11 : i64} {
  func.func @_fc_head_kernel(%arg0: i32, %arg1: memref<2x6272xbf16, #tpu.memory_space<vmem>>, %arg2: memref<6272x128xbf16, #tpu.memory_space<vmem>>, %arg3: memref<1x128xf32, #tpu.memory_space<vmem>>, %arg4: memref<128x128xbf16, #tpu.memory_space<vmem>>, %arg5: memref<1x128xf32, #tpu.memory_space<vmem>>, %arg6: memref<2x128xf32, #tpu.memory_space<vmem>>) attributes {dimension_semantics = [#tpu.dimension_semantics<parallel>], iteration_bounds = array<i64: 1>, scalar_prefetch = 0 : i64, scratch_operands = 0 : i64, tpu.core_type = #tpu.core_type<tc>, window_params = [{transform_indices = @transform_0, window_bounds = array<i64: 2, 6272>}, {pipeline_mode = #tpu.pipeline_mode<synchronous>, transform_indices = @transform_1, window_bounds = array<i64: 6272, 128>}, {pipeline_mode = #tpu.pipeline_mode<synchronous>, transform_indices = @transform_2, window_bounds = array<i64: 1, 128>}, {pipeline_mode = #tpu.pipeline_mode<synchronous>, transform_indices = @transform_3, window_bounds = array<i64: 128, 128>}, {pipeline_mode = #tpu.pipeline_mode<synchronous>, transform_indices = @transform_4, window_bounds = array<i64: 1, 128>}, {transform_indices = @transform_5, window_bounds = array<i64: 2, 128>}]} {
    %c0 = arith.constant 0 : index
    %c0_0 = arith.constant 0 : index
    %0 = vector.load %arg1[%c0, %c0_0] : memref<2x6272xbf16, #tpu.memory_space<vmem>>, vector<2x6272xbf16>
    %c0_1 = arith.constant 0 : index
    %c0_2 = arith.constant 0 : index
    %1 = vector.load %arg2[%c0_1, %c0_2] : memref<6272x128xbf16, #tpu.memory_space<vmem>>, vector<6272x128xbf16>
    %cst = arith.constant dense<0.000000e+00> : vector<2x128xf32>
    %2 = tpu.matmul %0, %1, %cst {dimension_numbers = #tpu.dot_dimension_numbers<[1], [0], [0], [1], [0, 0, 1, 1], [], []>} : vector<2x6272xbf16>, vector<6272x128xbf16>, vector<2x128xf32> -> vector<2x128xf32>
    %c0_3 = arith.constant 0 : index
    %c0_4 = arith.constant 0 : index
    %3 = vector.load %arg3[%c0_3, %c0_4] : memref<1x128xf32, #tpu.memory_space<vmem>>, vector<1x128xf32>
    %4 = vector.broadcast %3 : vector<1x128xf32> to vector<2x128xf32>
    %5 = arith.addf %2, %4 : vector<2x128xf32>
    %cst_5 = arith.constant 0.000000e+00 : f32
    %6 = vector.broadcast %cst_5 : f32 to vector<2x128xf32>
    %7 = arith.maximumf %5, %6 : vector<2x128xf32>
    %8 = arith.truncf %7 : vector<2x128xf32> to vector<2x128xbf16>
    %c0_6 = arith.constant 0 : index
    %c0_7 = arith.constant 0 : index
    %9 = vector.load %arg4[%c0_6, %c0_7] : memref<128x128xbf16, #tpu.memory_space<vmem>>, vector<128x128xbf16>
    %cst_8 = arith.constant dense<0.000000e+00> : vector<2x128xf32>
    %10 = tpu.matmul %8, %9, %cst_8 {dimension_numbers = #tpu.dot_dimension_numbers<[1], [0], [0], [1], [0, 0, 1, 1], [], []>} : vector<2x128xbf16>, vector<128x128xbf16>, vector<2x128xf32> -> vector<2x128xf32>
    %c0_9 = arith.constant 0 : index
    %c0_10 = arith.constant 0 : index
    %11 = vector.load %arg5[%c0_9, %c0_10] : memref<1x128xf32, #tpu.memory_space<vmem>>, vector<1x128xf32>
    %12 = vector.broadcast %11 : vector<1x128xf32> to vector<2x128xf32>
    %13 = arith.addf %10, %12 : vector<2x128xf32>
    %14 = tpu.iota {dimensions = array<i32: 1>} : vector<2x128xi32>
    %c3_i32 = arith.constant 3 : i32
    %15 = vector.broadcast %c3_i32 : i32 to vector<2x128xi32>
    %16 = arith.cmpi slt, %14, %15 : vector<2x128xi32>
    %c3_i32_11 = arith.constant 3 : i32
    %17 = vector.broadcast %c3_i32_11 : i32 to vector<2x128xi32>
    %18 = arith.cmpi eq, %14, %17 : vector<2x128xi32>
    %cst_12 = arith.constant 0.000000e+00 : f32
    %19 = vector.broadcast %cst_12 : f32 to vector<2x128xf32>
    %20 = arith.select %18, %13, %19 : vector<2x128xi1>, vector<2x128xf32>
    %cst_13 = arith.constant dense<0.000000e+00> : vector<2xf32>
    %21 = vector.multi_reduction <add>, %20, %cst_13 [1] : vector<2x128xf32> to vector<2xf32>
    %22 = vector.shape_cast %21 : vector<2xf32> to vector<2x1xf32>
    %cst_14 = arith.constant -1.000000e+30 : f32
    %23 = vector.broadcast %cst_14 : f32 to vector<2x128xf32>
    %24 = arith.select %16, %13, %23 : vector<2x128xi1>, vector<2x128xf32>
    %cst_15 = arith.constant dense<0xFF800000> : vector<2xf32>
    %25 = vector.multi_reduction <maximumf>, %24, %cst_15 [1] : vector<2x128xf32> to vector<2xf32>
    %26 = vector.shape_cast %25 : vector<2xf32> to vector<2x1xf32>
    %27 = vector.broadcast %26 : vector<2x1xf32> to vector<2x128xf32>
    %28 = arith.subf %24, %27 : vector<2x128xf32>
    %29 = math.exp %28 : vector<2x128xf32>
    %cst_16 = arith.constant dense<0.000000e+00> : vector<2xf32>
    %30 = vector.multi_reduction <add>, %29, %cst_16 [1] : vector<2x128xf32> to vector<2xf32>
    %31 = vector.shape_cast %30 : vector<2xf32> to vector<2x1xf32>
    %32 = math.log %31 : vector<2x1xf32>
    %33 = vector.broadcast %32 : vector<2x1xf32> to vector<2x128xf32>
    %34 = arith.subf %28, %33 : vector<2x128xf32>
    %35 = tpu.reciprocal %31 {approx = true} : vector<2x1xf32> -> vector<2x1xf32>
    %36 = vector.broadcast %35 : vector<2x1xf32> to vector<2x128xf32>
    %37 = arith.mulf %29, %36 : vector<2x128xf32>
    %38 = arith.mulf %37, %34 : vector<2x128xf32>
    %cst_17 = arith.constant 0.000000e+00 : f32
    %39 = vector.broadcast %cst_17 : f32 to vector<2x128xf32>
    %40 = arith.select %16, %38, %39 : vector<2x128xi1>, vector<2x128xf32>
    %cst_18 = arith.constant dense<0.000000e+00> : vector<2xf32>
    %41 = vector.multi_reduction <add>, %40, %cst_18 [1] : vector<2x128xf32> to vector<2xf32>
    %42 = vector.shape_cast %41 : vector<2xf32> to vector<2x1xf32>
    %cst_19 = arith.constant 0.000000e+00 : f32
    %43 = vector.broadcast %cst_19 : f32 to vector<2x1xf32>
    %44 = arith.subf %43, %42 : vector<2x1xf32>
    %cst_20 = arith.constant 0.000000e+00 : f32
    %45 = vector.broadcast %cst_20 : f32 to vector<2x128xf32>
    %46 = arith.select %16, %34, %45 : vector<2x128xi1>, vector<2x128xf32>
    %c3_i32_21 = arith.constant 3 : i32
    %47 = vector.broadcast %c3_i32_21 : i32 to vector<2x128xi32>
    %48 = arith.cmpi eq, %14, %47 : vector<2x128xi32>
    %cst_22 = arith.constant 0.000000e+00 : f32
    %49 = vector.shape_cast %22 : vector<2x1xf32> to vector<2x1xf32>
    %50 = vector.broadcast %49 : vector<2x1xf32> to vector<2x128xf32>
    %51 = vector.broadcast %cst_22 : f32 to vector<2x128xf32>
    %52 = arith.select %48, %50, %51 : vector<2x128xi1>, vector<2x128xf32>
    %53 = arith.addf %46, %52 : vector<2x128xf32>
    %c4_i32 = arith.constant 4 : i32
    %54 = vector.broadcast %c4_i32 : i32 to vector<2x128xi32>
    %55 = arith.cmpi eq, %14, %54 : vector<2x128xi32>
    %cst_23 = arith.constant 0.000000e+00 : f32
    %56 = vector.shape_cast %44 : vector<2x1xf32> to vector<2x1xf32>
    %57 = vector.broadcast %56 : vector<2x1xf32> to vector<2x128xf32>
    %58 = vector.broadcast %cst_23 : f32 to vector<2x128xf32>
    %59 = arith.select %55, %57, %58 : vector<2x128xi1>, vector<2x128xf32>
    %60 = arith.addf %53, %59 : vector<2x128xf32>
    %c0_24 = arith.constant 0 : index
    %c0_25 = arith.constant 0 : index
    %61 = vector.load %arg6[%c0_24, %c0_25] : memref<2x128xf32, #tpu.memory_space<vmem>>, vector<2x128xf32>
    tpu.vector_store %arg6[%c0_24, %c0_25], %60 {strides = array<i32>} : memref<2x128xf32, #tpu.memory_space<vmem>>, vector<2x128xf32>,
    return
  }
  func.func @transform_0(%arg0: i32) -> (i32, i32) {
    %c0_i32 = arith.constant 0 : i32
    %c0_i32_0 = arith.constant 0 : i32
    return %arg0, %c0_i32 : i32, i32
  }
  func.func @transform_1(%arg0: i32) -> (i32, i32) {
    %c0_i32 = arith.constant 0 : i32
    %c0_i32_0 = arith.constant 0 : i32
    %c0_i32_1 = arith.constant 0 : i32
    return %c0_i32, %c0_i32_0 : i32, i32
  }
  func.func @transform_2(%arg0: i32) -> (i32, i32) {
    %c0_i32 = arith.constant 0 : i32
    %c0_i32_0 = arith.constant 0 : i32
    %c0_i32_1 = arith.constant 0 : i32
    return %c0_i32, %c0_i32_0 : i32, i32
  }
  func.func @transform_3(%arg0: i32) -> (i32, i32) {
    %c0_i32 = arith.constant 0 : i32
    %c0_i32_0 = arith.constant 0 : i32
    %c0_i32_1 = arith.constant 0 : i32
    return %c0_i32, %c0_i32_0 : i32, i32
  }
  func.func @transform_4(%arg0: i32) -> (i32, i32) {
    %c0_i32 = arith.constant 0 : i32
    %c0_i32_0 = arith.constant 0 : i32
    %c0_i32_1 = arith.constant 0 : i32
    return %c0_i32, %c0_i32_0 : i32, i32
  }
  func.func @transform_5(%arg0: i32) -> (i32, i32) {
    %c0_i32 = arith.constant 0 : i32
    %c0_i32_0 = arith.constant 0 : i32
    return %arg0, %c0_i32 : i32, i32
  }
}

</mosaic_0001>

<llo_original>
// kernel: ppo_forward.4
$region0: #{ppo_forward.4}
  #allocation0 [shape = 'u32[]', space=smem, size = 0x4, offset = 0x4, fixed_abs, tag = 'smem constant byte address 0x4 - core index']
  #allocation1 [shape = 'u32[144,128]{1,0:T(1,128)}', space=vmem, size = 0x12000, scoped, tag = 'internal scratch']
  %s0 = inlined_call_operand.vmem [shape: bf16[800,256], index: 0, kind: input, shape index: {}]
  %s1 = inlined_call_operand.vmem [shape: bf16[256,128], index: 1, kind: input, shape index: {}]
  %s2 = inlined_call_operand.vmem [shape: f32[1,128], index: 2, kind: input, shape index: {}]
  %s3 = inlined_call_operand.vmem [shape: bf16[800,128], index: 3, kind: output, shape index: {}]
  %s4 = sld [smem:[#allocation0]]
  $region89: #{ppo_forward.4} parent=0
    _
  %s6 = ssub.s32 1, %s4
  %s7 = scalar_select 0, %s6, %s4
  $region1: #{ppo_forward.4} parent=0
    #allocation2 [shape = 'u8[262144]{0}', space=vmem, size = 0x40000, scoped, tag = 'output window, operand 0']
    loop: start=0, step=1, limit=4
    $region2: #{ppo_forward.4} parent=1 // loop_pre_header
      _
    $region3: #{ppo_forward.4} parent=1 // loop_header
      %s9 = sphi 0, %s13
      %p10 = scmp.ge.s32.totalorder %s9, 4
      %s19 = sphi 0, %s21
      %s22 = sphi 0, %s19
      %s23 = sphi 0, %s22
      %s39 = sphi 0, %s23
      %s43 = sphi 0, %s43
      %s45 = sphi 0, %s43
      %s46 = sphi 0, %s45
      %s60 = sphi 0, %s46
      %s64 = sphi 0, %s64
      %s66 = sphi 0, %s64
      %s67 = sphi 0, %s66
      %s81 = sphi 0, %s67
      %s87 = sphi 0, %s89
      %s90 = sphi 0, %s87
      %s91 = sphi 0, %s90
      %s107 = sphi 0, %s91
    $region4: #{ppo_forward.4} parent=1 // loop_header_branch
      %12 = sbr.rel (%p10) target = $region8
    $region5: #{ppo_forward.4} parent=1 // loop_body
      %s14 = ssub.s32 %s9, 1
      %s15 = ssub.s32 %s9, 2
      %s16 = sadd.s32 %s9, 1
      %s17 = ssub.s32 %s9, %s16
      %p18 = scmp.eq.s32.totalorder %s17, 0
      %s20 = sadd.s32 %s19, 1
      %s21 = scalar_select %p18, %s19, %s20
      %p24 = pneg %p18
      %p25 = scmp.eq.s32.totalorder %s9, 1
      %p26 = por %p24, %p25
      %p27 = scmp.ne.s32.totalorder %s19, %s22
      %p28 = scmp.eq.s32.totalorder %s9, 0
      %p29 = por %p27, %p28
      %p30 = scmp.ne.s32.totalorder %s19, %s22
      %p31 = scmp.eq.s32.totalorder %s14, 1
      %p32 = por %p30, %p31
      %p33 = scmp.ne.s32.totalorder %s22, %s23
      %p34 = scmp.eq.s32.totalorder %s14, 0
      %p35 = por %p33, %p34
      %p36 = scmp.ne.s32.totalorder %s22, %s23
      %p37 = scmp.eq.s32.totalorder %s15, 1
      %p38 = por %p36, %p37
      %p40 = scmp.ne.s32.totalorder %s23, %s39
      %p41 = scmp.eq.s32.totalorder %s15, 0
      %p42 = por %p40, %p41
      %s44 = sadd.s32 %s43, 1
      %p47 = scmp.eq.s32.totalorder %s9, 1
      %p48 = scmp.ne.s32.totalorder %s43, %s45
      %p49 = scmp.eq.s32.totalorder %s9, 0
      %p50 = por %p48, %p49
      %p51 = scmp.ne.s32.totalorder %s43, %s45
      %p52 = scmp.eq.s32.totalorder %s14, 1
      %p53 = por %p51, %p52
      %p54 = scmp.ne.s32.totalorder %s45, %s46
      %p55 = scmp.eq.s32.totalorder %s14, 0
      %p56 = por %p54, %p55
      %p57 = scmp.ne.s32.totalorder %s45, %s46
      %p58 = scmp.eq.s32.totalorder %s15, 1
      %p59 = por %p57, %p58
      %p61 = scmp.ne.s32.totalorder %s46, %s60
      %p62 = scmp.eq.s32.totalorder %s15, 0
      %p63 = por %p61, %p62
      %s65 = sadd.s32 %s64, 1
      %p68 = scmp.eq.s32.totalorder %s9, 1
      %p69 = scmp.ne.s32.totalorder %s64, %s66
      %p70 = scmp.eq.s32.totalorder %s9, 0
      %p71 = por %p69, %p70
      %p72 = scmp.ne.s32.totalorder %s64, %s66
      %p73 = scmp.eq.s32.totalorder %s14, 1
      %p74 = por %p72, %p73
      %p75 = scmp.ne.s32.totalorder %s66, %s67
      %p76 = scmp.eq.s32.totalorder %s14, 0
      %p77 = por %p75, %p76
      %p78 = scmp.ne.s32.totalorder %s66, %s67
      %p79 = scmp.eq.s32.totalorder %s15, 1
      %p80 = por %p78, %p79
      %p82 = scmp.ne.s32.totalorder %s67, %s81
      %p83 = scmp.eq.s32.totalorder %s15, 0
      %p84 = por %p82, %p83
      %s85 = ssub.s32 %s9, %s16
      %p86 = scmp.eq.s32.totalorder %s85, 0
      %s88 = sadd.s32 %s87, 1
      %s89 = scalar_select %p86, %s87, %s88
      %p92 = pneg %p86
      %p93 = scmp.eq.s32.totalorder %s9, 1
      %p94 = por %p92, %p93
      %p95 = scmp.ne.s32.totalorder %s87, %s90
      %p96 = scmp.eq.s32.totalorder %s9, 0
      %p97 = por %p95, %p96
      %p98 = scmp.ne.s32.totalorder %s87, %s90
      %p99 = scmp.eq.s32.totalorder %s14, 1
      %p100 = por %p98, %p99
      %p101 = scmp.ne.s32.totalorder %s90, %s91
      %p102 = scmp.eq.s32.totalorder %s14, 0
      %p103 = por %p101, %p102
      %p104 = scmp.ne.s32.totalorder %s90, %s91
      %p105 = scmp.eq.s32.totalorder %s15, 1
      %p106 = por %p104, %p105
      %p108 = scmp.ne.s32.totalorder %s91, %s107
      %p109 = scmp.eq.s32.totalorder %s15, 0
      %p110 = por %p108, %p109
      %p111 = scmp.le.s32.totalorder 1, %s9
      %p112 = scmp.lt.s32.totalorder %s9, 3
      %p113 = pnand %p111, %p112
      %p114 = pneg %p113
      // Predicated region
      $region9: #{ppo_forward.4} parent=5 // pred_check
        _
      $region10: #{ppo_forward.4} parent=5 // pred_check_branch
        %116 = sbr.rel (%p113) target = $region12
      $region11: #{ppo_forward.4} parent=5 // pred_region
        %s117 = ssub.s32 %s9, 1
        // Predicated region
        $region13: #{ppo_forward.4} parent=11 // pred_check
          %p118 = pneg %p56
        $region14: #{ppo_forward.4} parent=11 // pred_check_branch
          %120 = sbr.rel (%p118) target = $region16
        $region15: #{ppo_forward.4} parent=11 // pred_region
          _
        $region16: #{ppo_forward.4} parent=11 // pred_fallthru
          _
        // Predicated region
        $region17: #{ppo_forward.4} parent=11 // pred_check
          %p121 = pneg %p77
        $region18: #{ppo_forward.4} parent=11 // pred_check_branch
          %123 = sbr.rel (%p121) target = $region20
        $region19: #{ppo_forward.4} parent=11 // pred_region
          _
        $region20: #{ppo_forward.4} parent=11 // pred_fallthru
          _
      $region12: #{ppo_forward.4} parent=5 // pred_fallthru
        _
      %p124 = scmp.lt.s32.totalorder %s9, 2
      // Predicated region
      $region21: #{ppo_forward.4} parent=5 // pred_check
        %p125 = pneg %p124
      $region22: #{ppo_forward.4} parent=5 // pred_check_branch
        %127 = sbr.rel (%p125) target = $region24
      $region23: #{ppo_forward.4} parent=5 // pred_region
        // Predicated region
        $region25: #{ppo_forward.4} parent=23 // pred_check
          %p128 = pneg %p29
        $region26: #{ppo_forward.4} parent=23 // pred_check_branch
          %130 = sbr.rel (%p128) target = $region28
        $region27: #{ppo_forward.4} parent=23 // pred_region
          %s131 = smul.u32 64, %s9
          %s132 = ssub.s32 100, %s131
          %p133 = scmp.lt.s32.totalorder %s132, 64
          %s134 = scalar_select %p133, %s132, 64
          %s135 = smul.u32 64, %s134
          %s136 = smul.u32 %s135, 2
          %p137 = scmp.lt.s32.totalorder %s131, 99
          %s138 = scalar_select %p137, %s131, 99
          %s139 = smul.addr %s138, 2
          %s140 = smul.addr %s139, 4
          %s141 = scalar_lea.vmem %s0, %s140
          %s142 = smul.u32 64, %s9
          %s143 = ssub.s32 100, %s142
          %p144 = scmp.lt.s32.totalorder %s143, 64
          %s145 = scalar_select %p144, %s143, 64
          %s146 = smul.u32 64, %s145
          %s147 = smul.u32 %s146, 2
        $region28: #{ppo_forward.4} parent=23 // pred_fallthru
          _
      $region24: #{ppo_forward.4} parent=5 // pred_fallthru
        _
      %p148 = scmp.le.s32.totalorder 1, %s9
      %p149 = scmp.lt.s32.totalorder %s9, 3
      %p150 = pnand %p148, %p149
      %p151 = pneg %p150
      // Predicated region
      $region29: #{ppo_forward.4} parent=5 // pred_check
        _
      $region30: #{ppo_forward.4} parent=5 // pred_check_branch
        %153 = sbr.rel (%p150) target = $region32
      $region31: #{ppo_forward.4} parent=5 // pred_region
        %s154 = ssub.s32 %s9, 1
        %s155 = smul.u32 64, %s14
        %s156 = ssub.s32 100, %s155
        %p157 = scmp.lt.s32.totalorder %s156, 64
        %s158 = scalar_select %p157, %s156, 64
        %s159 = smul.u32 64, %s158
        %s160 = smul.u32 %s159, 2
        %p161 = scmp.lt.s32.totalorder %s155, 99
        %s162 = scalar_select %p161, %s155, 99
        %s163 = smul.addr %s162, 2
        %s164 = smul.addr %s163, 4
        %s165 = scalar_lea.vmem %s0, %s164
        %p166 = pneg %p35
        %p167 = pneg %p32
        %p168 = pneg %p56
        %p169 = pneg %p53
        %p170 = pneg %p77
        %p171 = pneg %p74
        %p172 = pneg %p103
        %p173 = pneg %p100
        %s174 = sand.u32 %s90, 1
        %s175 = sand.u32 %s90, 1
        %s176 = smul.addr %s175, 256
        %s177 = scalar_lea.vmem [#allocation2], %s176
        %s178 = smul.u32 64, %s14
        %s179 = ssub.s32 100, %s178
        %p180 = scmp.lt.s32.totalorder %s179, 64
        %s181 = scalar_select %p180, %s179, 64
        %s182 = smul.u32 64, %s181
        %s183 = smul.u32 %s182, 2
        %p184 = scmp.lt.s32.totalorder %s178, 99
        %s185 = scalar_select %p184, %s178, 99
        %s186 = smul.addr %s185, 2
        %s187 = smul.addr %s186, 4
        %s188 = scalar_lea.vmem %s0, %s187
        %s189 = smul.u32 64, %s14
        %s190 = ssub.s32 100, %s189
        %p191 = scmp.lt.s32.totalorder %s190, 64
        %s192 = scalar_select %p191, %s190, 64
        %s193 = smul.u32 64, %s192
        %s194 = smul.u32 %s193, 2
        %s195 = smul.u32 64, %s14
        %s196 = ssub.s32 100, %s195
        %p197 = scmp.lt.s32.totalorder %s196, 64
        %s198 = scalar_select %p197, %s196, 64
        %s199 = smul.u32 64, %s198
        %v201 = vld [vmem:[%s188] sm:$0xff]
        %v202 = vld [vmem:[%s188 + $0x8] sm:$0xff]
        %v203 = vld [vmem:[%s188 + $0x10] sm:$0xff]
        %v204 = vld [vmem:[%s188 + $0x18] sm:$0xff]
        %v205 = vld [vmem:[%s188 + $0x20] sm:$0xff]
        %v206 = vld [vmem:[%s188 + $0x28] sm:$0xff]
        %v207 = vld [vmem:[%s188 + $0x30] sm:$0xff]
        %v208 = vld [vmem:[%s188 + $0x38] sm:$0xff]
        %v209 = vld [vmem:[%s188 + $0x40] sm:$0xff]
        %v210 = vld [vmem:[%s188 + $0x48] sm:$0xff]
        %v211 = vld [vmem:[%s188 + $0x50] sm:$0xff]
        %v212 = vld [vmem:[%s188 + $0x58] sm:$0xff]
        %v213 = vld [vmem:[%s188 + $0x60] sm:$0xff]
        %v214 = vld [vmem:[%s188 + $0x68] sm:$0xff]
        %v215 = vld [vmem:[%s188 + $0x70] sm:$0xff]
        %v216 = vld [vmem:[%s188 + $0x78] sm:$0xff]
        %v217 = vld [vmem:[%s188 + $0x80] sm:$0xff]
        %v218 = vld [vmem:[%s188 + $0x88] sm:$0xff]
        %v219 = vld [vmem:[%s188 + $0x90] sm:$0xff]
        %v220 = vld [vmem:[%s188 + $0x98] sm:$0xff]
        %v221 = vld [vmem:[%s188 + $0xa0] sm:$0xff]
        %v222 = vld [vmem:[%s188 + $0xa8] sm:$0xff]
        %v223 = vld [vmem:[%s188 + $0xb0] sm:$0xff]
        %v224 = vld [vmem:[%s188 + $0xb8] sm:$0xff]
        %v225 = vld [vmem:[%s188 + $0xc0] sm:$0xff]
        %v226 = vld [vmem:[%s188 + $0xc8] sm:$0xff]
        %v227 = vld [vmem:[%s188 + $0xd0] sm:$0xff]
        %v228 = vld [vmem:[%s188 + $0xd8] sm:$0xff]
        %v229 = vld [vmem:[%s188 + $0xe0] sm:$0xff]
        %v230 = vld [vmem:[%s188 + $0xe8] sm:$0xff]
        %v231 = vld [vmem:[%s188 + $0xf0] sm:$0xff]
        %v232 = vld [vmem:[%s188 + $0xf8] sm:$0xff]
        %v233 = vld [vmem:[%s188 + $0x100] sm:$0xff]
        %v234 = vld [vmem:[%s188 + $0x108] sm:$0xff]
        %v235 = vld [vmem:[%s188 + $0x110] sm:$0xff]
        %v236 = vld [vmem:[%s188 + $0x118] sm:$0xff]
        %v237 = vld [vmem:[%s188 + $0x120] sm:$0xff]
        %v238 = vld [vmem:[%s188 + $0x128] sm:$0xff]
        %v239 = vld [vmem:[%s188 + $0x130] sm:$0xff]
        %v240 = vld [vmem:[%s188 + $0x138] sm:$0xff]
        %v241 = vld [vmem:[%s188 + $0x140] sm:$0xff]
        %v242 = vld [vmem:[%s188 + $0x148] sm:$0xff]
        %v243 = vld [vmem:[%s188 + $0x150] sm:$0xff]
        %v244 = vld [vmem:[%s188 + $0x158] sm:$0xff]
        %v245 = vld [vmem:[%s188 + $0x160] sm:$0xff]
        %v246 = vld [vmem:[%s188 + $0x168] sm:$0xff]
        %v247 = vld [vmem:[%s188 + $0x170] sm:$0xff]
        %v248 = vld [vmem:[%s188 + $0x178] sm:$0xff]
        %v249 = vld [vmem:[%s188 + $0x180] sm:$0xff]
        %v250 = vld [vmem:[%s188 + $0x188] sm:$0xff]
        %v251 = vld [vmem:[%s188 + $0x190] sm:$0xff]
        %v252 = vld [vmem:[%s188 + $0x198] sm:$0xff]
        %v253 = vld [vmem:[%s188 + $0x1a0] sm:$0xff]
        %v254 = vld [vmem:[%s188 + $0x1a8] sm:$0xff]
        %v255 = vld [vmem:[%s188 + $0x1b0] sm:$0xff]
        %v256 = vld [vmem:[%s188 + $0x1b8] sm:$0xff]
        %v257 = vld [vmem:[%s188 + $0x1c0] sm:$0xff]
        %v258 = vld [vmem:[%s188 + $0x1c8] sm:$0xff]
        %v259 = vld [vmem:[%s188 + $0x1d0] sm:$0xff]
        %v260 = vld [vmem:[%s188 + $0x1d8] sm:$0xff]
        %v261 = vld [vmem:[%s188 + $0x1e0] sm:$0xff]
        %v262 = vld [vmem:[%s188 + $0x1e8] sm:$0xff]
        %v263 = vld [vmem:[%s188 + $0x1f0] sm:$0xff]
        %v264 = vld [vmem:[%s188 + $0x1f8] sm:$0xff]
        %v265 = vld [vmem:[%s1] sm:$0xf]
        %v266 = vld [vmem:[%s1 + $0x4] sm:$0xf]
        %v267 = vld [vmem:[%s1 + $0x8] sm:$0xf]
        %v268 = vld [vmem:[%s1 + $0xc] sm:$0xf]
        %v269 = vld [vmem:[%s1 + $0x10] sm:$0xf]
        %v270 = vld [vmem:[%s1 + $0x14] sm:$0xf]
        %v271 = vld [vmem:[%s1 + $0x18] sm:$0xf]
        %v272 = vld [vmem:[%s1 + $0x1c] sm:$0xf]
        %v273 = vld [vmem:[%s1 + $0x20] sm:$0xf]
        %v274 = vld [vmem:[%s1 + $0x24] sm:$0xf]
        %v275 = vld [vmem:[%s1 + $0x28] sm:$0xf]
        %v276 = vld [vmem:[%s1 + $0x2c] sm:$0xf]
        %v277 = vld [vmem:[%s1 + $0x30] sm:$0xf]
        %v278 = vld [vmem:[%s1 + $0x34] sm:$0xf]
        %v279 = vld [vmem:[%s1 + $0x38] sm:$0xf]
        %v280 = vld [vmem:[%s1 + $0x3c] sm:$0xf]
        %v281 = vld [vmem:[%s1 + $0x40] sm:$0xf]
        %v282 = vld [vmem:[%s1 + $0x44] sm:$0xf]
        %v283 = vld [vmem:[%s1 + $0x48] sm:$0xf]
        %v284 = vld [vmem:[%s1 + $0x4c] sm:$0xf]
        %v285 = vld [vmem:[%s1 + $0x50] sm:$0xf]
        %v286 = vld [vmem:[%s1 + $0x54] sm:$0xf]
        %v287 = vld [vmem:[%s1 + $0x58] sm:$0xf]
        %v288 = vld [vmem:[%s1 + $0x5c] sm:$0xf]
        %v289 = vld [vmem:[%s1 + $0x60] sm:$0xf]
        %v290 = vld [vmem:[%s1 + $0x64] sm:$0xf]
        %v291 = vld [vmem:[%s1 + $0x68] sm:$0xf]
        %v292 = vld [vmem:[%s1 + $0x6c] sm:$0xf]
        %v293 = vld [vmem:[%s1 + $0x70] sm:$0xf]
        %v294 = vld [vmem:[%s1 + $0x74] sm:$0xf]
        %v295 = vld [vmem:[%s1 + $0x78] sm:$0xf]
        %v296 = vld [vmem:[%s1 + $0x7c] sm:$0xf]
        %v297 = vld [vmem:[%s2] sm:$0x1]
        %v299 = vlaneseq
        %v300 = vshrl.u32 %v299, 7
        %v301 = vsub.s32 0, %v300
        %v302 = vrot.slane %v297, %v301
        %v368 = vunpack.c.l.b16 %v201
        %v369 = vunpack.c.h.b16 %v201
        %v370 = vunpack.c.l.b16 %v202
        %v371 = vunpack.c.h.b16 %v202
        %v372 = vunpack.c.l.b16 %v203
        %v373 = vunpack.c.h.b16 %v203
        %v374 = vunpack.c.l.b16 %v204
        %v375 = vunpack.c.h.b16 %v204
        %v376 = vunpack.c.l.b16 %v205
        %v377 = vunpack.c.h.b16 %v205
        %v378 = vunpack.c.l.b16 %v206
        %v379 = vunpack.c.h.b16 %v206
        %v380 = vunpack.c.l.b16 %v207
        %v381 = vunpack.c.h.b16 %v207
        %v382 = vunpack.c.l.b16 %v208
        %v383 = vunpack.c.h.b16 %v208
        %v384 = vunpack.c.l.b16 %v209
        %v385 = vunpack.c.h.b16 %v209
        %v386 = vunpack.c.l.b16 %v210
        %v387 = vunpack.c.h.b16 %v210
        %v388 = vunpack.c.l.b16 %v211
        %v389 = vunpack.c.h.b16 %v211
        %v390 = vunpack.c.l.b16 %v212
        %v391 = vunpack.c.h.b16 %v212
        %v392 = vunpack.c.l.b16 %v213
        %v393 = vunpack.c.h.b16 %v213
        %v394 = vunpack.c.l.b16 %v214
        %v395 = vunpack.c.h.b16 %v214
        %v396 = vunpack.c.l.b16 %v215
        %v397 = vunpack.c.h.b16 %v215
        %v398 = vunpack.c.l.b16 %v216
        %v399 = vunpack.c.h.b16 %v216
        %v400 = vunpack.c.l.b16 %v217
        %v401 = vunpack.c.h.b16 %v217
        %v402 = vunpack.c.l.b16 %v218
        %v403 = vunpack.c.h.b16 %v218
        %v404 = vunpack.c.l.b16 %v219
        %v405 = vunpack.c.h.b16 %v219
        %v406 = vunpack.c.l.b16 %v220
        %v407 = vunpack.c.h.b16 %v220
        %v408 = vunpack.c.l.b16 %v221
        %v409 = vunpack.c.h.b16 %v221
        %v410 = vunpack.c.l.b16 %v222
        %v411 = vunpack.c.h.b16 %v222
        %v412 = vunpack.c.l.b16 %v223
        %v413 = vunpack.c.h.b16 %v223
        %v414 = vunpack.c.l.b16 %v224
        %v415 = vunpack.c.h.b16 %v224
        %v416 = vunpack.c.l.b16 %v225
        %v417 = vunpack.c.h.b16 %v225
        %v418 = vunpack.c.l.b16 %v226
        %v419 = vunpack.c.h.b16 %v226
        %v420 = vunpack.c.l.b16 %v227
        %v421 = vunpack.c.h.b16 %v227
        %v422 = vunpack.c.l.b16 %v228
        %v423 = vunpack.c.h.b16 %v228
        %v424 = vunpack.c.l.b16 %v229
        %v425 = vunpack.c.h.b16 %v229
        %v426 = vunpack.c.l.b16 %v230
        %v427 = vunpack.c.h.b16 %v230
        %v428 = vunpack.c.l.b16 %v231
        %v429 = vunpack.c.h.b16 %v231
        %v430 = vunpack.c.l.b16 %v232
        %v431 = vunpack.c.h.b16 %v232
        %v432 = vunpack.c.l.b16 %v233
        %v433 = vunpack.c.h.b16 %v233
        %v434 = vunpack.c.l.b16 %v234
        %v435 = vunpack.c.h.b16 %v234
        %v436 = vunpack.c.l.b16 %v235
        %v437 = vunpack.c.h.b16 %v235
        %v438 = vunpack.c.l.b16 %v236
        %v439 = vunpack.c.h.b16 %v236
        %v440 = vunpack.c.l.b16 %v237
        %v441 = vunpack.c.h.b16 %v237
        %v442 = vunpack.c.l.b16 %v238
        %v443 = vunpack.c.h.b16 %v238
        %v444 = vunpack.c.l.b16 %v239
        %v445 = vunpack.c.h.b16 %v239
        %v446 = vunpack.c.l.b16 %v240
        %v447 = vunpack.c.h.b16 %v240
        %v448 = vunpack.c.l.b16 %v241
        %v449 = vunpack.c.h.b16 %v241
        %v450 = vunpack.c.l.b16 %v242
        %v451 = vunpack.c.h.b16 %v242
        %v452 = vunpack.c.l.b16 %v243
        %v453 = vunpack.c.h.b16 %v243
        %v454 = vunpack.c.l.b16 %v244
        %v455 = vunpack.c.h.b16 %v244
        %v456 = vunpack.c.l.b16 %v245
        %v457 = vunpack.c.h.b16 %v245
        %v458 = vunpack.c.l.b16 %v246
        %v459 = vunpack.c.h.b16 %v246
        %v460 = vunpack.c.l.b16 %v247
        %v461 = vunpack.c.h.b16 %v247
        %v462 = vunpack.c.l.b16 %v248
        %v463 = vunpack.c.h.b16 %v248
        %v464 = vunpack.c.l.b16 %v249
        %v465 = vunpack.c.h.b16 %v249
        %v466 = vunpack.c.l.b16 %v250
        %v467 = vunpack.c.h.b16 %v250
        %v468 = vunpack.c.l.b16 %v251
        %v469 = vunpack.c.h.b16 %v251
        %v470 = vunpack.c.l.b16 %v252
        %v471 = vunpack.c.h.b16 %v252
        %v472 = vunpack.c.l.b16 %v253
        %v473 = vunpack.c.h.b16 %v253
        %v474 = vunpack.c.l.b16 %v254
        %v475 = vunpack.c.h.b16 %v254
        %v476 = vunpack.c.l.b16 %v255
        %v477 = vunpack.c.h.b16 %v255
        %v478 = vunpack.c.l.b16 %v256
        %v479 = vunpack.c.h.b16 %v256
        %v480 = vunpack.c.l.b16 %v257
        %v481 = vunpack.c.h.b16 %v257
        %v482 = vunpack.c.l.b16 %v258
        %v483 = vunpack.c.h.b16 %v258
        %v484 = vunpack.c.l.b16 %v259
        %v485 = vunpack.c.h.b16 %v259
        %v486 = vunpack.c.l.b16 %v260
        %v487 = vunpack.c.h.b16 %v260
        %v488 = vunpack.c.l.b16 %v261
        %v489 = vunpack.c.h.b16 %v261
        %v490 = vunpack.c.l.b16 %v262
        %v491 = vunpack.c.h.b16 %v262
        %v492 = vunpack.c.l.b16 %v263
        %v493 = vunpack.c.h.b16 %v263
        %v494 = vunpack.c.l.b16 %v264
        %v495 = vunpack.c.h.b16 %v264
        %v496 = vpack.c.b16 %v370, %v368
        %v497 = vpack.c.b16 %v371, %v369
        %v498 = vpack.c.b16 %v374, %v372
        %v499 = vpack.c.b16 %v375, %v373
        %v500 = vpack.c.b16 %v378, %v376
        %v501 = vpack.c.b16 %v379, %v377
        %v502 = vpack.c.b16 %v382, %v380
        %v503 = vpack.c.b16 %v383, %v381
        %v504 = vpack.c.b16 %v386, %v384
        %v505 = vpack.c.b16 %v387, %v385
        %v506 = vpack.c.b16 %v390, %v388
        %v507 = vpack.c.b16 %v391, %v389
        %v508 = vpack.c.b16 %v394, %v392
        %v509 = vpack.c.b16 %v395, %v393
        %v510 = vpack.c.b16 %v398, %v396
        %v511 = vpack.c.b16 %v399, %v397
        %v512 = vpack.c.b16 %v402, %v400
        %v513 = vpack.c.b16 %v403, %v401
        %v514 = vpack.c.b16 %v406, %v404
        %v515 = vpack.c.b16 %v407, %v405
        %v516 = vpack.c.b16 %v410, %v408
        %v517 = vpack.c.b16 %v411, %v409
        %v518 = vpack.c.b16 %v414, %v412
        %v519 = vpack.c.b16 %v415, %v413
        %v520 = vpack.c.b16 %v418, %v416
        %v521 = vpack.c.b16 %v419, %v417
        %v522 = vpack.c.b16 %v422, %v420
        %v523 = vpack.c.b16 %v423, %v421
        %v524 = vpack.c.b16 %v426, %v424
        %v525 = vpack.c.b16 %v427, %v425
        %v526 = vpack.c.b16 %v430, %v428
        %v527 = vpack.c.b16 %v431, %v429
        %v528 = vpack.c.b16 %v434, %v432
        %v529 = vpack.c.b16 %v435, %v433
        %v530 = vpack.c.b16 %v438, %v436
        %v531 = vpack.c.b16 %v439, %v437
        %v532 = vpack.c.b16 %v442, %v440
        %v533 = vpack.c.b16 %v443, %v441
        %v534 = vpack.c.b16 %v446, %v444
        %v535 = vpack.c.b16 %v447, %v445
        %v536 = vpack.c.b16 %v450, %v448
        %v537 = vpack.c.b16 %v451, %v449
        %v538 = vpack.c.b16 %v454, %v452
        %v539 = vpack.c.b16 %v455, %v453
        %v540 = vpack.c.b16 %v458, %v456
        %v541 = vpack.c.b16 %v459, %v457
        %v542 = vpack.c.b16 %v462, %v460
        %v543 = vpack.c.b16 %v463, %v461
        %v544 = vpack.c.b16 %v466, %v464
        %v545 = vpack.c.b16 %v467, %v465
        %v546 = vpack.c.b16 %v470, %v468
        %v547 = vpack.c.b16 %v471, %v469
        %v548 = vpack.c.b16 %v474, %v472
        %v549 = vpack.c.b16 %v475, %v473
        %v550 = vpack.c.b16 %v478, %v476
        %v551 = vpack.c.b16 %v479, %v477
        %v552 = vpack.c.b16 %v482, %v480
        %v553 = vpack.c.b16 %v483, %v481
        %v554 = vpack.c.b16 %v486, %v484
        %v555 = vpack.c.b16 %v487, %v485
        %v556 = vpack.c.b16 %v490, %v488
        %v557 = vpack.c.b16 %v491, %v489
        %v558 = vpack.c.b16 %v494, %v492
        %v559 = vpack.c.b16 %v495, %v493
        %v656 = vunpack.c.l.b16 %v265
        %v657 = vunpack.c.l.b16 %v266
        %v658 = vunpack.c.l.b16 %v267
        %v659 = vunpack.c.l.b16 %v268
        %v660 = vunpack.c.l.b16 %v269
        %v661 = vunpack.c.l.b16 %v270
        %v662 = vunpack.c.l.b16 %v271
        %v663 = vunpack.c.l.b16 %v272
        %v664 = vunpack.c.l.b16 %v273
        %v665 = vunpack.c.l.b16 %v274
        %v666 = vunpack.c.l.b16 %v275
        %v667 = vunpack.c.l.b16 %v276
        %v668 = vunpack.c.l.b16 %v277
        %v669 = vunpack.c.l.b16 %v278
        %v670 = vunpack.c.l.b16 %v279
        %v671 = vunpack.c.l.b16 %v280
        %v672 = vunpack.c.l.b16 %v281
        %v673 = vunpack.c.l.b16 %v282
        %v674 = vunpack.c.l.b16 %v283
        %v675 = vunpack.c.l.b16 %v284
        %v676 = vunpack.c.l.b16 %v285
        %v677 = vunpack.c.l.b16 %v286
        %v678 = vunpack.c.l.b16 %v287
        %v679 = vunpack.c.l.b16 %v288
        %v680 = vunpack.c.l.b16 %v289
        %v681 = vunpack.c.l.b16 %v290
        %v682 = vunpack.c.l.b16 %v291
        %v683 = vunpack.c.l.b16 %v292
        %v684 = vunpack.c.l.b16 %v293
        %v685 = vunpack.c.l.b16 %v294
        %v686 = vunpack.c.l.b16 %v295
        %v687 = vunpack.c.l.b16 %v296
        %v688 = vpack.c.b16 %v657, %v656
        %v689 = vpack.c.b16 %v659, %v658
        %v690 = vpack.c.b16 %v661, %v660
        %v691 = vpack.c.b16 %v663, %v662
        %v692 = vpack.c.b16 %v665, %v664
        %v693 = vpack.c.b16 %v667, %v666
        %v694 = vpack.c.b16 %v669, %v668
        %v695 = vpack.c.b16 %v671, %v670
        %v696 = vpack.c.b16 %v673, %v672
        %v697 = vpack.c.b16 %v675, %v674
        %v698 = vpack.c.b16 %v677, %v676
        %v699 = vpack.c.b16 %v679, %v678
        %v700 = vpack.c.b16 %v681, %v680
        %v701 = vpack.c.b16 %v683, %v682
        %v702 = vpack.c.b16 %v685, %v684
        %v703 = vpack.c.b16 %v687, %v686
        %720 = vmatprep.subr.bf16.mxu0 0
        %721 = vmatpush1.bf16.msra.mxu0 %v695
        %722 = vmatprep.subr.bf16.mxu0 0
        %723 = vmatpush1.bf16.msra.mxu0 %v694
        %724 = vmatprep.subr.bf16.mxu0 0
        %725 = vmatpush1.bf16.msra.mxu0 %v693
        %726 = vmatprep.subr.bf16.mxu0 0
        %727 = vmatpush1.bf16.msra.mxu0 %v692
        %728 = vmatprep.subr.bf16.mxu0 0
        %729 = vmatpush1.bf16.msra.mxu0 %v691
        %730 = vmatprep.subr.bf16.mxu0 0
        %731 = vmatpush1.bf16.msra.mxu0 %v690
        %732 = vmatprep.subr.bf16.mxu0 0
        %733 = vmatpush1.bf16.msra.mxu0 %v689
        %734 = vmatprep.subr.bf16.mxu0 0
        %735 = vmatpush1.bf16.msra.mxu0 %v688
        %736 = vmatprep.subr.bf16.mxu0 0
        %737 = vmatpush2.bf16.msra.mxu0 %v703
        %738 = vmatprep.subr.bf16.mxu0 0
        %739 = vmatpush2.bf16.msra.mxu0 %v702
        %740 = vmatprep.subr.bf16.mxu0 0
        %741 = vmatpush2.bf16.msra.mxu0 %v701
        %742 = vmatprep.subr.bf16.mxu0 0
        %743 = vmatpush2.bf16.msra.mxu0 %v700
        %744 = vmatprep.subr.bf16.mxu0 0
        %745 = vmatpush2.bf16.msra.mxu0 %v699
        %746 = vmatprep.subr.bf16.mxu0 0
        %747 = vmatpush2.bf16.msra.mxu0 %v698
        %748 = vmatprep.subr.bf16.mxu0 0
        %749 = vmatpush2.bf16.msra.mxu0 %v697
        %750 = vmatprep.subr.bf16.mxu0 0
        %751 = vmatpush2.bf16.msra.mxu0 %v696
        %752 = vmatprep.mubr.bf16.mxu0 %v497
        %753 = vmatmul.mubr.bf16.gmra.mxu0 %v496
        %v754 = vpop.f32.mrf.mxu0
        %v755 = vadd.f32 %v302, %v754
        %v756 = vpop.f32.mrf.mxu0
        %v757 = vpop.f32.mrf.mxu0
        %v758 = vadd.f32 %v302, %v757
        %v759 = vpop.f32.mrf.mxu0
        %760 = vmatprep.mubr.bf16.mxu0 %v499
        %761 = vmatmul.mubr.bf16.gmra.mxu0 %v498
        %v762 = vpop.f32.mrf.mxu0
        %v763 = vadd.f32 %v302, %v762
        %v764 = vpop.f32.mrf.mxu0
        %v765 = vpop.f32.mrf.mxu0
        %v766 = vadd.f32 %v302, %v765
        %v767 = vpop.f32.mrf.mxu0
        %768 = vmatprep.mubr.bf16.mxu0 %v501
        %769 = vmatmul.mubr.bf16.gmra.mxu0 %v500
        %v770 = vpop.f32.mrf.mxu0
        %v771 = vadd.f32 %v302, %v770
        %v772 = vpop.f32.mrf.mxu0
        %v773 = vpop.f32.mrf.mxu0
        %v774 = vadd.f32 %v302, %v773
        %v775 = vpop.f32.mrf.mxu0
        %776 = vmatprep.mubr.bf16.mxu0 %v503
        %777 = vmatmul.mubr.bf16.gmra.mxu0 %v502
        %v778 = vpop.f32.mrf.mxu0
        %v779 = vadd.f32 %v302, %v778
        %v780 = vpop.f32.mrf.mxu0
        %v781 = vpop.f32.mrf.mxu0
        %v782 = vadd.f32 %v302, %v781
        %v783 = vpop.f32.mrf.mxu0
        %784 = vmatprep.mubr.bf16.mxu0 %v505
        %785 = vmatmul.mubr.bf16.gmra.mxu0 %v504
        %v786 = vpop.f32.mrf.mxu0
        %v787 = vadd.f32 %v302, %v786
        %v788 = vpop.f32.mrf.mxu0
        %v789 = vpop.f32.mrf.mxu0
        %v790 = vadd.f32 %v302, %v789
        %v791 = vpop.f32.mrf.mxu0
        %792 = vmatprep.mubr.bf16.mxu0 %v507
        %793 = vmatmul.mubr.bf16.gmra.mxu0 %v506
        %v794 = vpop.f32.mrf.mxu0
        %v795 = vadd.f32 %v302, %v794
        %v796 = vpop.f32.mrf.mxu0
        %v797 = vpop.f32.mrf.mxu0
        %v798 = vadd.f32 %v302, %v797
        %v799 = vpop.f32.mrf.mxu0
        %800 = vmatprep.mubr.bf16.mxu0 %v509
        %801 = vmatmul.mubr.bf16.gmra.mxu0 %v508
        %v802 = vpop.f32.mrf.mxu0
        %v803 = vadd.f32 %v302, %v802
        %v804 = vpop.f32.mrf.mxu0
        %v805 = vpop.f32.mrf.mxu0
        %v806 = vadd.f32 %v302, %v805
        %v807 = vpop.f32.mrf.mxu0
        %808 = vmatprep.mubr.bf16.mxu0 %v511
        %809 = vmatmul.mubr.bf16.gmra.mxu0 %v510
        %v810 = vpop.f32.mrf.mxu0
        %v811 = vadd.f32 %v302, %v810
        %v812 = vpop.f32.mrf.mxu0
        %v813 = vpop.f32.mrf.mxu0
        %v814 = vadd.f32 %v302, %v813
        %v815 = vpop.f32.mrf.mxu0
        %816 = vmatprep.mubr.bf16.mxu0 %v513
        %817 = vmatmul.mubr.bf16.gmra.mxu0 %v512
        %v818 = vpop.f32.mrf.mxu0
        %v819 = vadd.f32 %v302, %v818
        %v820 = vpop.f32.mrf.mxu0
        %v821 = vpop.f32.mrf.mxu0
        %v822 = vadd.f32 %v302, %v821
        %v823 = vpop.f32.mrf.mxu0
        %824 = vmatprep.mubr.bf16.mxu0 %v515
        %825 = vmatmul.mubr.bf16.gmra.mxu0 %v514
        %v826 = vpop.f32.mrf.mxu0
        %v827 = vadd.f32 %v302, %v826
        %v828 = vpop.f32.mrf.mxu0
        %v829 = vpop.f32.mrf.mxu0
        %v830 = vadd.f32 %v302, %v829
        %v831 = vpop.f32.mrf.mxu0
        %832 = vmatprep.mubr.bf16.mxu0 %v517
        %833 = vmatmul.mubr.bf16.gmra.mxu0 %v516
        %v834 = vpop.f32.mrf.mxu0
        %v835 = vadd.f32 %v302, %v834
        %v836 = vpop.f32.mrf.mxu0
        %v837 = vpop.f32.mrf.mxu0
        %v838 = vadd.f32 %v302, %v837
        %v839 = vpop.f32.mrf.mxu0
        %840 = vmatprep.mubr.bf16.mxu0 %v519
        %841 = vmatmul.mubr.bf16.gmra.mxu0 %v518
        %v842 = vpop.f32.mrf.mxu0
        %v843 = vadd.f32 %v302, %v842
        %v844 = vpop.f32.mrf.mxu0
        %v845 = vpop.f32.mrf.mxu0
        %v846 = vadd.f32 %v302, %v845
        %v847 = vpop.f32.mrf.mxu0
        %848 = vmatprep.mubr.bf16.mxu0 %v521
        %849 = vmatmul.mubr.bf16.gmra.mxu0 %v520
        %v850 = vpop.f32.mrf.mxu0
        %v851 = vadd.f32 %v302, %v850
        %v852 = vpop.f32.mrf.mxu0
        %v853 = vpop.f32.mrf.mxu0
        %v854 = vadd.f32 %v302, %v853
        %v855 = vpop.f32.mrf.mxu0
        %856 = vmatprep.mubr.bf16.mxu0 %v523
        %857 = vmatmul.mubr.bf16.gmra.mxu0 %v522
        %v858 = vpop.f32.mrf.mxu0
        %v859 = vadd.f32 %v302, %v858
        %v860 = vpop.f32.mrf.mxu0
        %v861 = vpop.f32.mrf.mxu0
        %v862 = vadd.f32 %v302, %v861
        %v863 = vpop.f32.mrf.mxu0
        %864 = vmatprep.mubr.bf16.mxu0 %v525
        %865 = vmatmul.mubr.bf16.gmra.mxu0 %v524
        %v866 = vpop.f32.mrf.mxu0
        %v867 = vadd.f32 %v302, %v866
        %v868 = vpop.f32.mrf.mxu0
        %v869 = vpop.f32.mrf.mxu0
        %v870 = vadd.f32 %v302, %v869
        %v871 = vpop.f32.mrf.mxu0
        %872 = vmatprep.mubr.bf16.mxu0 %v527
        %873 = vmatmul.mubr.bf16.gmra.mxu0 %v526
        %v874 = vpop.f32.mrf.mxu0
        %v875 = vadd.f32 %v302, %v874
        %v876 = vpop.f32.mrf.mxu0
        %v877 = vpop.f32.mrf.mxu0
        %v878 = vadd.f32 %v302, %v877
        %v879 = vpop.f32.mrf.mxu0
        %880 = vmatprep.mubr.bf16.mxu0 %v529
        %881 = vmatmul.mubr.bf16.gmra.mxu0 %v528
        %v882 = vpop.f32.mrf.mxu0
        %v883 = vadd.f32 %v302, %v882
        %v884 = vpop.f32.mrf.mxu0
        %v885 = vpop.f32.mrf.mxu0
        %v886 = vadd.f32 %v302, %v885
        %v887 = vpop.f32.mrf.mxu0
        %888 = vmatprep.mubr.bf16.mxu0 %v531
        %889 = vmatmul.mubr.bf16.gmra.mxu0 %v530
        %v890 = vpop.f32.mrf.mxu0
        %v891 = vadd.f32 %v302, %v890
        %v892 = vpop.f32.mrf.mxu0
        %v893 = vpop.f32.mrf.mxu0
        %v894 = vadd.f32 %v302, %v893
        %v895 = vpop.f32.mrf.mxu0
        %896 = vmatprep.mubr.bf16.mxu0 %v533
        %897 = vmatmul.mubr.bf16.gmra.mxu0 %v532
        %v898 = vpop.f32.mrf.mxu0
        %v899 = vadd.f32 %v302, %v898
        %v900 = vpop.f32.mrf.mxu0
        %v901 = vpop.f32.mrf.mxu0
        %v902 = vadd.f32 %v302, %v901
        %v903 = vpop.f32.mrf.mxu0
        %904 = vmatprep.mubr.bf16.mxu0 %v535
        %905 = vmatmul.mubr.bf16.gmra.mxu0 %v534
        %v906 = vpop.f32.mrf.mxu0
        %v907 = vadd.f32 %v302, %v906
        %v908 = vpop.f32.mrf.mxu0
        %v909 = vpop.f32.mrf.mxu0
        %v910 = vadd.f32 %v302, %v909
        %v911 = vpop.f32.mrf.mxu0
        %912 = vmatprep.mubr.bf16.mxu0 %v537
        %913 = vmatmul.mubr.bf16.gmra.mxu0 %v536
        %v914 = vpop.f32.mrf.mxu0
        %v915 = vadd.f32 %v302, %v914
        %v916 = vpop.f32.mrf.mxu0
        %v917 = vpop.f32.mrf.mxu0
        %v918 = vadd.f32 %v302, %v917
        %v919 = vpop.f32.mrf.mxu0
        %920 = vmatprep.mubr.bf16.mxu0 %v539
        %921 = vmatmul.mubr.bf16.gmra.mxu0 %v538
        %v922 = vpop.f32.mrf.mxu0
        %v923 = vadd.f32 %v302, %v922
        %v924 = vpop.f32.mrf.mxu0
        %v925 = vpop.f32.mrf.mxu0
        %v926 = vadd.f32 %v302, %v925
        %v927 = vpop.f32.mrf.mxu0
        %928 = vmatprep.mubr.bf16.mxu0 %v541
        %929 = vmatmul.mubr.bf16.gmra.mxu0 %v540
        %v930 = vpop.f32.mrf.mxu0
        %v931 = vadd.f32 %v302, %v930
        %v932 = vpop.f32.mrf.mxu0
        %v933 = vpop.f32.mrf.mxu0
        %v934 = vadd.f32 %v302, %v933
        %v935 = vpop.f32.mrf.mxu0
        %936 = vmatprep.mubr.bf16.mxu0 %v543
        %937 = vmatmul.mubr.bf16.gmra.mxu0 %v542
        %v938 = vpop.f32.mrf.mxu0
        %v939 = vadd.f32 %v302, %v938
        %v940 = vpop.f32.mrf.mxu0
        %v941 = vpop.f32.mrf.mxu0
        %v942 = vadd.f32 %v302, %v941
        %v943 = vpop.f32.mrf.mxu0
        %944 = vmatprep.mubr.bf16.mxu0 %v545
        %945 = vmatmul.mubr.bf16.gmra.mxu0 %v544
        %v946 = vpop.f32.mrf.mxu0
        %v947 = vadd.f32 %v302, %v946
        %v948 = vpop.f32.mrf.mxu0
        %v949 = vpop.f32.mrf.mxu0
        %v950 = vadd.f32 %v302, %v949
        %v951 = vpop.f32.mrf.mxu0
        %952 = vmatprep.mubr.bf16.mxu0 %v547
        %953 = vmatmul.mubr.bf16.gmra.mxu0 %v546
        %v954 = vpop.f32.mrf.mxu0
        %v955 = vadd.f32 %v302, %v954
        %v956 = vpop.f32.mrf.mxu0
        %v957 = vpop.f32.mrf.mxu0
        %v958 = vadd.f32 %v302, %v957
        %v959 = vpop.f32.mrf.mxu0
        %960 = vmatprep.mubr.bf16.mxu0 %v549
        %961 = vmatmul.mubr.bf16.gmra.mxu0 %v548
        %v962 = vpop.f32.mrf.mxu0
        %v963 = vadd.f32 %v302, %v962
        %v964 = vpop.f32.mrf.mxu0
        %v965 = vpop.f32.mrf.mxu0
        %v966 = vadd.f32 %v302, %v965
        %v967 = vpop.f32.mrf.mxu0
        %968 = vmatprep.mubr.bf16.mxu0 %v551
        %969 = vmatmul.mubr.bf16.gmra.mxu0 %v550
        %v970 = vpop.f32.mrf.mxu0
        %v971 = vadd.f32 %v302, %v970
        %v972 = vpop.f32.mrf.mxu0
        %v973 = vpop.f32.mrf.mxu0
        %v974 = vadd.f32 %v302, %v973
        %v975 = vpop.f32.mrf.mxu0
        %976 = vmatprep.mubr.bf16.mxu0 %v553
        %977 = vmatmul.mubr.bf16.gmra.mxu0 %v552
        %v978 = vpop.f32.mrf.mxu0
        %v979 = vadd.f32 %v302, %v978
        %v980 = vpop.f32.mrf.mxu0
        %v981 = vpop.f32.mrf.mxu0
        %v982 = vadd.f32 %v302, %v981
        %v983 = vpop.f32.mrf.mxu0
        %984 = vmatprep.mubr.bf16.mxu0 %v555
        %985 = vmatmul.mubr.bf16.gmra.mxu0 %v554
        %v986 = vpop.f32.mrf.mxu0
        %v987 = vadd.f32 %v302, %v986
        %v988 = vpop.f32.mrf.mxu0
        %v989 = vpop.f32.mrf.mxu0
        %v990 = vadd.f32 %v302, %v989
        %v991 = vpop.f32.mrf.mxu0
        %992 = vmatprep.mubr.bf16.mxu0 %v557
        %993 = vmatmul.mubr.bf16.gmra.mxu0 %v556
        %v994 = vpop.f32.mrf.mxu0
        %v995 = vadd.f32 %v302, %v994
        %v996 = vpop.f32.mrf.mxu0
        %v997 = vpop.f32.mrf.mxu0
        %v998 = vadd.f32 %v302, %v997
        %v999 = vpop.f32.mrf.mxu0
        %1000 = vmatprep.mubr.bf16.mxu0 %v559
        %1001 = vmatmul.mubr.bf16.gmra.mxu0 %v558
        %v1002 = vpop.f32.mrf.mxu0
        %v1003 = vadd.f32 %v302, %v1002
        %v1004 = vpop.f32.mrf.mxu0
        %v1005 = vpop.f32.mrf.mxu0
        %v1006 = vadd.f32 %v302, %v1005
        %v1007 = vpop.f32.mrf.mxu0
        %1008 = vdwg.mxu0
        %v1009 = vmax.f32 %v755, 0.0
        %v1010 = vmax.f32 %v758, 0.0
        %v1011 = vmax.f32 %v763, 0.0
        %v1012 = vmax.f32 %v766, 0.0
        %v1013 = vmax.f32 %v771, 0.0
        %v1014 = vmax.f32 %v774, 0.0
        %v1015 = vmax.f32 %v779, 0.0
        %v1016 = vmax.f32 %v782, 0.0
        %v1017 = vmax.f32 %v787, 0.0
        %v1018 = vmax.f32 %v790, 0.0
        %v1019 = vmax.f32 %v795, 0.0
        %v1020 = vmax.f32 %v798, 0.0
        %v1021 = vmax.f32 %v803, 0.0
        %v1022 = vmax.f32 %v806, 0.0
        %v1023 = vmax.f32 %v811, 0.0
        %v1024 = vmax.f32 %v814, 0.0
        %v1025 = vmax.f32 %v819, 0.0
        %v1026 = vmax.f32 %v822, 0.0
        %v1027 = vmax.f32 %v827, 0.0
        %v1028 = vmax.f32 %v830, 0.0
        %v1029 = vmax.f32 %v835, 0.0
        %v1030 = vmax.f32 %v838, 0.0
        %v1031 = vmax.f32 %v843, 0.0
        %v1032 = vmax.f32 %v846, 0.0
        %v1033 = vmax.f32 %v851, 0.0
        %v1034 = vmax.f32 %v854, 0.0
        %v1035 = vmax.f32 %v859, 0.0
        %v1036 = vmax.f32 %v862, 0.0
        %v1037 = vmax.f32 %v867, 0.0
        %v1038 = vmax.f32 %v870, 0.0
        %v1039 = vmax.f32 %v875, 0.0
        %v1040 = vmax.f32 %v878, 0.0
        %v1041 = vmax.f32 %v883, 0.0
        %v1042 = vmax.f32 %v886, 0.0
        %v1043 = vmax.f32 %v891, 0.0
        %v1044 = vmax.f32 %v894, 0.0
        %v1045 = vmax.f32 %v899, 0.0
        %v1046 = vmax.f32 %v902, 0.0
        %v1047 = vmax.f32 %v907, 0.0
        %v1048 = vmax.f32 %v910, 0.0
        %v1049 = vmax.f32 %v915, 0.0
        %v1050 = vmax.f32 %v918, 0.0
        %v1051 = vmax.f32 %v923, 0.0
        %v1052 = vmax.f32 %v926, 0.0
        %v1053 = vmax.f32 %v931, 0.0
        %v1054 = vmax.f32 %v934, 0.0
        %v1055 = vmax.f32 %v939, 0.0
        %v1056 = vmax.f32 %v942, 0.0
        %v1057 = vmax.f32 %v947, 0.0
        %v1058 = vmax.f32 %v950, 0.0
        %v1059 = vmax.f32 %v955, 0.0
        %v1060 = vmax.f32 %v958, 0.0
        %v1061 = vmax.f32 %v963, 0.0
        %v1062 = vmax.f32 %v966, 0.0
        %v1063 = vmax.f32 %v971, 0.0
        %v1064 = vmax.f32 %v974, 0.0
        %v1065 = vmax.f32 %v979, 0.0
        %v1066 = vmax.f32 %v982, 0.0
        %v1067 = vmax.f32 %v987, 0.0
        %v1068 = vmax.f32 %v990, 0.0
        %v1069 = vmax.f32 %v995, 0.0
        %v1070 = vmax.f32 %v998, 0.0
        %v1071 = vmax.f32 %v1003, 0.0
        %v1072 = vmax.f32 %v1006, 0.0
        %v1073 = vpack.c.bf16 %v1010, %v1009
        %v1074 = vpack.c.bf16 %v1012, %v1011
        %v1075 = vpack.c.bf16 %v1014, %v1013
        %v1076 = vpack.c.bf16 %v1016, %v1015
        %v1077 = vpack.c.bf16 %v1018, %v1017
        %v1078 = vpack.c.bf16 %v1020, %v1019
        %v1079 = vpack.c.bf16 %v1022, %v1021
        %v1080 = vpack.c.bf16 %v1024, %v1023
        %v1081 = vpack.c.bf16 %v1026, %v1025
        %v1082 = vpack.c.bf16 %v1028, %v1027
        %v1083 = vpack.c.bf16 %v1030, %v1029
        %v1084 = vpack.c.bf16 %v1032, %v1031
        %v1085 = vpack.c.bf16 %v1034, %v1033
        %v1086 = vpack.c.bf16 %v1036, %v1035
        %v1087 = vpack.c.bf16 %v1038, %v1037
        %v1088 = vpack.c.bf16 %v1040, %v1039
        %v1089 = vpack.c.bf16 %v1042, %v1041
        %v1090 = vpack.c.bf16 %v1044, %v1043
        %v1091 = vpack.c.bf16 %v1046, %v1045
        %v1092 = vpack.c.bf16 %v1048, %v1047
        %v1093 = vpack.c.bf16 %v1050, %v1049
        %v1094 = vpack.c.bf16 %v1052, %v1051
        %v1095 = vpack.c.bf16 %v1054, %v1053
        %v1096 = vpack.c.bf16 %v1056, %v1055
        %v1097 = vpack.c.bf16 %v1058, %v1057
        %v1098 = vpack.c.bf16 %v1060, %v1059
        %v1099 = vpack.c.bf16 %v1062, %v1061
        %v1100 = vpack.c.bf16 %v1064, %v1063
        %v1101 = vpack.c.bf16 %v1066, %v1065
        %v1102 = vpack.c.bf16 %v1068, %v1067
        %v1103 = vpack.c.bf16 %v1070, %v1069
        %v1104 = vpack.c.bf16 %v1072, %v1071
        %v1137 = vunpack.c.l.b16 %v1073
        %v1138 = vunpack.c.h.b16 %v1073
        %v1139 = vunpack.c.l.b16 %v1074
        %v1140 = vunpack.c.h.b16 %v1074
        %v1141 = vunpack.c.l.b16 %v1075
        %v1142 = vunpack.c.h.b16 %v1075
        %v1143 = vunpack.c.l.b16 %v1076
        %v1144 = vunpack.c.h.b16 %v1076
        %v1145 = vunpack.c.l.b16 %v1077
        %v1146 = vunpack.c.h.b16 %v1077
        %v1147 = vunpack.c.l.b16 %v1078
        %v1148 = vunpack.c.h.b16 %v1078
        %v1149 = vunpack.c.l.b16 %v1079
        %v1150 = vunpack.c.h.b16 %v1079
        %v1151 = vunpack.c.l.b16 %v1080
        %v1152 = vunpack.c.h.b16 %v1080
        %v1153 = vunpack.c.l.b16 %v1081
        %v1154 = vunpack.c.h.b16 %v1081
        %v1155 = vunpack.c.l.b16 %v1082
        %v1156 = vunpack.c.h.b16 %v1082
        %v1157 = vunpack.c.l.b16 %v1083
        %v1158 = vunpack.c.h.b16 %v1083
        %v1159 = vunpack.c.l.b16 %v1084
        %v1160 = vunpack.c.h.b16 %v1084
        %v1161 = vunpack.c.l.b16 %v1085
        %v1162 = vunpack.c.h.b16 %v1085
        %v1163 = vunpack.c.l.b16 %v1086
        %v1164 = vunpack.c.h.b16 %v1086
        %v1165 = vunpack.c.l.b16 %v1087
        %v1166 = vunpack.c.h.b16 %v1087
        %v1167 = vunpack.c.l.b16 %v1088
        %v1168 = vunpack.c.h.b16 %v1088
        %v1169 = vunpack.c.l.b16 %v1089
        %v1170 = vunpack.c.h.b16 %v1089
        %v1171 = vunpack.c.l.b16 %v1090
        %v1172 = vunpack.c.h.b16 %v1090
        %v1173 = vunpack.c.l.b16 %v1091
        %v1174 = vunpack.c.h.b16 %v1091
        %v1175 = vunpack.c.l.b16 %v1092
        %v1176 = vunpack.c.h.b16 %v1092
        %v1177 = vunpack.c.l.b16 %v1093
        %v1178 = vunpack.c.h.b16 %v1093
        %v1179 = vunpack.c.l.b16 %v1094
        %v1180 = vunpack.c.h.b16 %v1094
        %v1181 = vunpack.c.l.b16 %v1095
        %v1182 = vunpack.c.h.b16 %v1095
        %v1183 = vunpack.c.l.b16 %v1096
        %v1184 = vunpack.c.h.b16 %v1096
        %v1185 = vunpack.c.l.b16 %v1097
        %v1186 = vunpack.c.h.b16 %v1097
        %v1187 = vunpack.c.l.b16 %v1098
        %v1188 = vunpack.c.h.b16 %v1098
        %v1189 = vunpack.c.l.b16 %v1099
        %v1190 = vunpack.c.h.b16 %v1099
        %v1191 = vunpack.c.l.b16 %v1100
        %v1192 = vunpack.c.h.b16 %v1100
        %v1193 = vunpack.c.l.b16 %v1101
        %v1194 = vunpack.c.h.b16 %v1101
        %v1195 = vunpack.c.l.b16 %v1102
        %v1196 = vunpack.c.h.b16 %v1102
        %v1197 = vunpack.c.l.b16 %v1103
        %v1198 = vunpack.c.h.b16 %v1103
        %v1199 = vunpack.c.l.b16 %v1104
        %v1200 = vunpack.c.h.b16 %v1104
        %v1201 = vpack.c.b16 %v1137, %v1137
        %v1202 = vpack.c.b16 %v1138, %v1138
        %v1203 = vpack.c.b16 %v1139, %v1139
        %v1204 = vpack.c.b16 %v1140, %v1140
        %v1205 = vpack.c.b16 %v1141, %v1141
        %v1206 = vpack.c.b16 %v1142, %v1142
        %v1207 = vpack.c.b16 %v1143, %v1143
        %v1208 = vpack.c.b16 %v1144, %v1144
        %v1209 = vpack.c.b16 %v1145, %v1145
        %v1210 = vpack.c.b16 %v1146, %v1146
        %v1211 = vpack.c.b16 %v1147, %v1147
        %v1212 = vpack.c.b16 %v1148, %v1148
        %v1213 = vpack.c.b16 %v1149, %v1149
        %v1214 = vpack.c.b16 %v1150, %v1150
        %v1215 = vpack.c.b16 %v1151, %v1151
        %v1216 = vpack.c.b16 %v1152, %v1152
        %v1217 = vpack.c.b16 %v1153, %v1153
        %v1218 = vpack.c.b16 %v1154, %v1154
        %v1219 = vpack.c.b16 %v1155, %v1155
        %v1220 = vpack.c.b16 %v1156, %v1156
        %v1221 = vpack.c.b16 %v1157, %v1157
        %v1222 = vpack.c.b16 %v1158, %v1158
        %v1223 = vpack.c.b16 %v1159, %v1159
        %v1224 = vpack.c.b16 %v1160, %v1160
        %v1225 = vpack.c.b16 %v1161, %v1161
        %v1226 = vpack.c.b16 %v1162, %v1162
        %v1227 = vpack.c.b16 %v1163, %v1163
        %v1228 = vpack.c.b16 %v1164, %v1164
        %v1229 = vpack.c.b16 %v1165, %v1165
        %v1230 = vpack.c.b16 %v1166, %v1166
        %v1231 = vpack.c.b16 %v1167, %v1167
        %v1232 = vpack.c.b16 %v1168, %v1168
        %v1233 = vpack.c.b16 %v1169, %v1169
        %v1234 = vpack.c.b16 %v1170, %v1170
        %v1235 = vpack.c.b16 %v1171, %v1171
        %v1236 = vpack.c.b16 %v1172, %v1172
        %v1237 = vpack.c.b16 %v1173, %v1173
        %v1238 = vpack.c.b16 %v1174, %v1174
        %v1239 = vpack.c.b16 %v1175, %v1175
        %v1240 = vpack.c.b16 %v1176, %v1176
        %v1241 = vpack.c.b16 %v1177, %v1177
        %v1242 = vpack.c.b16 %v1178, %v1178
        %v1243 = vpack.c.b16 %v1179, %v1179
        %v1244 = vpack.c.b16 %v1180, %v1180
        %v1245 = vpack.c.b16 %v1181, %v1181
        %v1246 = vpack.c.b16 %v1182, %v1182
        %v1247 = vpack.c.b16 %v1183, %v1183
        %v1248 = vpack.c.b16 %v1184, %v1184
        %v1249 = vpack.c.b16 %v1185, %v1185
        %v1250 = vpack.c.b16 %v1186, %v1186
        %v1251 = vpack.c.b16 %v1187, %v1187
        %v1252 = vpack.c.b16 %v1188, %v1188
        %v1253 = vpack.c.b16 %v1189, %v1189
        %v1254 = vpack.c.b16 %v1190, %v1190
        %v1255 = vpack.c.b16 %v1191, %v1191
        %v1256 = vpack.c.b16 %v1192, %v1192
        %v1257 = vpack.c.b16 %v1193, %v1193
        %v1258 = vpack.c.b16 %v1194, %v1194
        %v1259 = vpack.c.b16 %v1195, %v1195
        %v1260 = vpack.c.b16 %v1196, %v1196
        %v1261 = vpack.c.b16 %v1197, %v1197
        %v1262 = vpack.c.b16 %v1198, %v1198
        %v1263 = vpack.c.b16 %v1199, %v1199
        %v1264 = vpack.c.b16 %v1200, %v1200
        %1329 = vst [vmem:[%s177] sm:$0xf] %v1201
        %1330 = vst [vmem:[%s177 + $0x4] sm:$0xf] %v1202
        %1331 = vst [vmem:[%s177 + $0x8] sm:$0xf] %v1203
        %1332 = vst [vmem:[%s177 + $0xc] sm:$0xf] %v1204
        %1333 = vst [vmem:[%s177 + $0x10] sm:$0xf] %v1205
        %1334 = vst [vmem:[%s177 + $0x14] sm:$0xf] %v1206
        %1335 = vst [vmem:[%s177 + $0x18] sm:$0xf] %v1207
        %1336 = vst [vmem:[%s177 + $0x1c] sm:$0xf] %v1208
        %1337 = vst [vmem:[%s177 + $0x20] sm:$0xf] %v1209
        %1338 = vst [vmem:[%s177 + $0x24] sm:$0xf] %v1210
        %1339 = vst [vmem:[%s177 + $0x28] sm:$0xf] %v1211
        %1340 = vst [vmem:[%s177 + $0x2c] sm:$0xf] %v1212
        %1341 = vst [vmem:[%s177 + $0x30] sm:$0xf] %v1213
        %1342 = vst [vmem:[%s177 + $0x34] sm:$0xf] %v1214
        %1343 = vst [vmem:[%s177 + $0x38] sm:$0xf] %v1215
        %1344 = vst [vmem:[%s177 + $0x3c] sm:$0xf] %v1216
        %1345 = vst [vmem:[%s177 + $0x40] sm:$0xf] %v1217
        %1346 = vst [vmem:[%s177 + $0x44] sm:$0xf] %v1218
        %1347 = vst [vmem:[%s177 + $0x48] sm:$0xf] %v1219
        %1348 = vst [vmem:[%s177 + $0x4c] sm:$0xf] %v1220
        %1349 = vst [vmem:[%s177 + $0x50] sm:$0xf] %v1221
        %1350 = vst [vmem:[%s177 + $0x54] sm:$0xf] %v1222
        %1351 = vst [vmem:[%s177 + $0x58] sm:$0xf] %v1223
        %1352 = vst [vmem:[%s177 + $0x5c] sm:$0xf] %v1224
        %1353 = vst [vmem:[%s177 + $0x60] sm:$0xf] %v1225
        %1354 = vst [vmem:[%s177 + $0x64] sm:$0xf] %v1226
        %1355 = vst [vmem:[%s177 + $0x68] sm:$0xf] %v1227
        %1356 = vst [vmem:[%s177 + $0x6c] sm:$0xf] %v1228
        %1357 = vst [vmem:[%s177 + $0x70] sm:$0xf] %v1229
        %1358 = vst [vmem:[%s177 + $0x74] sm:$0xf] %v1230
        %1359 = vst [vmem:[%s177 + $0x78] sm:$0xf] %v1231
        %1360 = vst [vmem:[%s177 + $0x7c] sm:$0xf] %v1232
        %1361 = vst [vmem:[%s177 + $0x80] sm:$0xf] %v1233
        %1362 = vst [vmem:[%s177 + $0x84] sm:$0xf] %v1234
        %1363 = vst [vmem:[%s177 + $0x88] sm:$0xf] %v1235
        %1364 = vst [vmem:[%s177 + $0x8c] sm:$0xf] %v1236
        %1365 = vst [vmem:[%s177 + $0x90] sm:$0xf] %v1237
        %1366 = vst [vmem:[%s177 + $0x94] sm:$0xf] %v1238
        %1367 = vst [vmem:[%s177 + $0x98] sm:$0xf] %v1239
        %1368 = vst [vmem:[%s177 + $0x9c] sm:$0xf] %v1240
        %1369 = vst [vmem:[%s177 + $0xa0] sm:$0xf] %v1241
        %1370 = vst [vmem:[%s177 + $0xa4] sm:$0xf] %v1242
        %1371 = vst [vmem:[%s177 + $0xa8] sm:$0xf] %v1243
        %1372 = vst [vmem:[%s177 + $0xac] sm:$0xf] %v1244
        %1373 = vst [vmem:[%s177 + $0xb0] sm:$0xf] %v1245
        %1374 = vst [vmem:[%s177 + $0xb4] sm:$0xf] %v1246
        %1375 = vst [vmem:[%s177 + $0xb8] sm:$0xf] %v1247
        %1376 = vst [vmem:[%s177 + $0xbc] sm:$0xf] %v1248
        %1377 = vst [vmem:[%s177 + $0xc0] sm:$0xf] %v1249
        %1378 = vst [vmem:[%s177 + $0xc4] sm:$0xf] %v1250
        %1379 = vst [vmem:[%s177 + $0xc8] sm:$0xf] %v1251
        %1380 = vst [vmem:[%s177 + $0xcc] sm:$0xf] %v1252
        %1381 = vst [vmem:[%s177 + $0xd0] sm:$0xf] %v1253
        %1382 = vst [vmem:[%s177 + $0xd4] sm:$0xf] %v1254
        %1383 = vst [vmem:[%s177 + $0xd8] sm:$0xf] %v1255
        %1384 = vst [vmem:[%s177 + $0xdc] sm:$0xf] %v1256
        %1385 = vst [vmem:[%s177 + $0xe0] sm:$0xf] %v1257
        %1386 = vst [vmem:[%s177 + $0xe4] sm:$0xf] %v1258
        %1387 = vst [vmem:[%s177 + $0xe8] sm:$0xf] %v1259
        %1388 = vst [vmem:[%s177 + $0xec] sm:$0xf] %v1260
        %1389 = vst [vmem:[%s177 + $0xf0] sm:$0xf] %v1261
        %1390 = vst [vmem:[%s177 + $0xf4] sm:$0xf] %v1262
        %1391 = vst [vmem:[%s177 + $0xf8] sm:$0xf] %v1263
        %1392 = vst [vmem:[%s177 + $0xfc] sm:$0xf] %v1264
        %s1393 = sand.u32 %s90, 1
        %s1394 = sand.u32 %s90, 1
        %s1395 = smul.addr %s1394, 256
        %s1396 = scalar_lea.vmem [#allocation2], %s1395
        // Predicated region
        $region33: #{ppo_forward.4} parent=31 // pred_check
          %p1397 = pneg %p100
        $region34: #{ppo_forward.4} parent=31 // pred_check_branch
          %1399 = sbr.rel (%p1397) target = $region36
        $region35: #{ppo_forward.4} parent=31 // pred_region
          %s1400 = smul.u32 64, %s14
          %s1401 = ssub.s32 100, %s1400
          %p1402 = scmp.lt.s32.totalorder %s1401, 64
          %s1403 = scalar_select %p1402, %s1401, 64
          %s1404 = smul.u32 64, %s1403
          %p1405 = scmp.ne.s32.totalorder 0, %s1404
          %s1406 = smul.addr %s1400, 4
          %s1407 = scalar_lea.vmem %s3, %s1406
          // Predicated region
          $region37: #{ppo_forward.4} parent=35 // pred_check
            %p1408 = pneg %p1405
          $region38: #{ppo_forward.4} parent=35 // pred_check_branch
            %1410 = sbr.rel (%p1408) target = $region40
          $region39: #{ppo_forward.4} parent=35 // pred_region
            // Predicated region
            $region41: #{ppo_forward.4} parent=39 // pred_check
              _
            $region42: #{ppo_forward.4} parent=39 // pred_check_branch
              %1412 = sbr.rel target = $region44
            $region43: #{ppo_forward.4} parent=39 // pred_region
              // Predicated region
              $region63: #{ppo_forward.4} parent=43 // pred_check
                _
              $region64: #{ppo_forward.4} parent=43 // pred_check_branch
                %1588 = sbr.rel (0) target = $region66
              $region65: #{ppo_forward.4} parent=43 // pred_region
                %s1590 = ssub.s32 16, 1
                %s1591 = sshrl.u32 %s1403, 6
                // While loop
                $region67: #{ppo_forward.4} parent=65 // loop_pre_header
                  _
                $region68: #{ppo_forward.4} parent=65 // loop_header
                  %s1593 = sphi 0, %s1595
                  %p1594 = scmp.ge.s32.totalorder %s1593, %s1591
                  %s1598 = sphi 0, %s1731
                  %s1599 = sphi %s1396, %s1734
                  %s1600 = sphi %s1407, %s1735
                $region69: #{ppo_forward.4} parent=65 // loop_header_branch
                  %1597 = sbr.rel (%p1594) target = $region73
                $region70: #{ppo_forward.4} parent=65 // loop_body
                  %v1601 = vld [vmem:[%s1599] sm:%s1590]
                  %1602 = vst [vmem:[%s1600] sm:%s1590] %v1601
                  %v1603 = vld [vmem:[%s1599 + $0x4] sm:%s1590]
                  %1604 = vst [vmem:[%s1600 + $0x4] sm:%s1590] %v1603
                  %v1605 = vld [vmem:[%s1599 + $0x8] sm:%s1590]
                  %1606 = vst [vmem:[%s1600 + $0x8] sm:%s1590] %v1605
                  %v1607 = vld [vmem:[%s1599 + $0xc] sm:%s1590]
                  %1608 = vst [vmem:[%s1600 + $0xc] sm:%s1590] %v1607
                  %v1609 = vld [vmem:[%s1599 + $0x10] sm:%s1590]
                  %1610 = vst [vmem:[%s1600 + $0x10] sm:%s1590] %v1609
                  %v1611 = vld [vmem:[%s1599 + $0x14] sm:%s1590]
                  %1612 = vst [vmem:[%s1600 + $0x14] sm:%s1590] %v1611
                  %v1613 = vld [vmem:[%s1599 + $0x18] sm:%s1590]
                  %1614 = vst [vmem:[%s1600 + $0x18] sm:%s1590] %v1613
                  %v1615 = vld [vmem:[%s1599 + $0x1c] sm:%s1590]
                  %1616 = vst [vmem:[%s1600 + $0x1c] sm:%s1590] %v1615
                  %v1617 = vld [vmem:[%s1599 + $0x20] sm:%s1590]
                  %1618 = vst [vmem:[%s1600 + $0x20] sm:%s1590] %v1617
                  %v1619 = vld [vmem:[%s1599 + $0x24] sm:%s1590]
                  %1620 = vst [vmem:[%s1600 + $0x24] sm:%s1590] %v1619
                  %v1621 = vld [vmem:[%s1599 + $0x28] sm:%s1590]
                  %1622 = vst [vmem:[%s1600 + $0x28] sm:%s1590] %v1621
                  %v1623 = vld [vmem:[%s1599 + $0x2c] sm:%s1590]
                  %1624 = vst [vmem:[%s1600 + $0x2c] sm:%s1590] %v1623
                  %v1625 = vld [vmem:[%s1599 + $0x30] sm:%s1590]
                  %1626 = vst [vmem:[%s1600 + $0x30] sm:%s1590] %v1625
                  %v1627 = vld [vmem:[%s1599 + $0x34] sm:%s1590]
                  %1628 = vst [vmem:[%s1600 + $0x34] sm:%s1590] %v1627
                  %v1629 = vld [vmem:[%s1599 + $0x38] sm:%s1590]
                  %1630 = vst [vmem:[%s1600 + $0x38] sm:%s1590] %v1629
                  %v1631 = vld [vmem:[%s1599 + $0x3c] sm:%s1590]
                  %1632 = vst [vmem:[%s1600 + $0x3c] sm:%s1590] %v1631
                  %v1633 = vld [vmem:[%s1599 + $0x40] sm:%s1590]
                  %1634 = vst [vmem:[%s1600 + $0x40] sm:%s1590] %v1633
                  %v1635 = vld [vmem:[%s1599 + $0x44] sm:%s1590]
                  %1636 = vst [vmem:[%s1600 + $0x44] sm:%s1590] %v1635
                  %v1637 = vld [vmem:[%s1599 + $0x48] sm:%s1590]
                  %1638 = vst [vmem:[%s1600 + $0x48] sm:%s1590] %v1637
                  %v1639 = vld [vmem:[%s1599 + $0x4c] sm:%s1590]
                  %1640 = vst [vmem:[%s1600 + $0x4c] sm:%s1590] %v1639
                  %v1641 = vld [vmem:[%s1599 + $0x50] sm:%s1590]
                  %1642 = vst [vmem:[%s1600 + $0x50] sm:%s1590] %v1641
                  %v1643 = vld [vmem:[%s1599 + $0x54] sm:%s1590]
                  %1644 = vst [vmem:[%s1600 + $0x54] sm:%s1590] %v1643
                  %v1645 = vld [vmem:[%s1599 + $0x58] sm:%s1590]
                  %1646 = vst [vmem:[%s1600 + $0x58] sm:%s1590] %v1645
                  %v1647 = vld [vmem:[%s1599 + $0x5c] sm:%s1590]
                  %1648 = vst [vmem:[%s1600 + $0x5c] sm:%s1590] %v1647
                  %v1649 = vld [vmem:[%s1599 + $0x60] sm:%s1590]
                  %1650 = vst [vmem:[%s1600 + $0x60] sm:%s1590] %v1649
                  %v1651 = vld [vmem:[%s1599 + $0x64] sm:%s1590]
                  %1652 = vst [vmem:[%s1600 + $0x64] sm:%s1590] %v1651
                  %v1653 = vld [vmem:[%s1599 + $0x68] sm:%s1590]
                  %1654 = vst [vmem:[%s1600 + $0x68] sm:%s1590] %v1653
                  %v1655 = vld [vmem:[%s1599 + $0x6c] sm:%s1590]
                  %1656 = vst [vmem:[%s1600 + $0x6c] sm:%s1590] %v1655
                  %v1657 = vld [vmem:[%s1599 + $0x70] sm:%s1590]
                  %1658 = vst [vmem:[%s1600 + $0x70] sm:%s1590] %v1657
                  %v1659 = vld [vmem:[%s1599 + $0x74] sm:%s1590]
                  %1660 = vst [vmem:[%s1600 + $0x74] sm:%s1590] %v1659
                  %v1661 = vld [vmem:[%s1599 + $0x78] sm:%s1590]
                  %1662 = vst [vmem:[%s1600 + $0x78] sm:%s1590] %v1661
                  %v1663 = vld [vmem:[%s1599 + $0x7c] sm:%s1590]
                  %1664 = vst [vmem:[%s1600 + $0x7c] sm:%s1590] %v1663
                  %v1665 = vld [vmem:[%s1599 + $0x80] sm:%s1590]
                  %1666 = vst [vmem:[%s1600 + $0x80] sm:%s1590] %v1665
                  %v1667 = vld [vmem:[%s1599 + $0x84] sm:%s1590]
                  %1668 = vst [vmem:[%s1600 + $0x84] sm:%s1590] %v1667
                  %v1669 = vld [vmem:[%s1599 + $0x88] sm:%s1590]
                  %1670 = vst [vmem:[%s1600 + $0x88] sm:%s1590] %v1669
                  %v1671 = vld [vmem:[%s1599 + $0x8c] sm:%s1590]
                  %1672 = vst [vmem:[%s1600 + $0x8c] sm:%s1590] %v1671
                  %v1673 = vld [vmem:[%s1599 + $0x90] sm:%s1590]
                  %1674 = vst [vmem:[%s1600 + $0x90] sm:%s1590] %v1673
                  %v1675 = vld [vmem:[%s1599 + $0x94] sm:%s1590]
                  %1676 = vst [vmem:[%s1600 + $0x94] sm:%s1590] %v1675
                  %v1677 = vld [vmem:[%s1599 + $0x98] sm:%s1590]
                  %1678 = vst [vmem:[%s1600 + $0x98] sm:%s1590] %v1677
                  %v1679 = vld [vmem:[%s1599 + $0x9c] sm:%s1590]
                  %1680 = vst [vmem:[%s1600 + $0x9c] sm:%s1590] %v1679
                  %v1681 = vld [vmem:[%s1599 + $0xa0] sm:%s1590]
                  %1682 = vst [vmem:[%s1600 + $0xa0] sm:%s1590] %v1681
                  %v1683 = vld [vmem:[%s1599 + $0xa4] sm:%s1590]
                  %1684 = vst [vmem:[%s1600 + $0xa4] sm:%s1590] %v1683
                  %v1685 = vld [vmem:[%s1599 + $0xa8] sm:%s1590]
                  %1686 = vst [vmem:[%s1600 + $0xa8] sm:%s1590] %v1685
                  %v1687 = vld [vmem:[%s1599 + $0xac] sm:%s1590]
                  %1688 = vst [vmem:[%s1600 + $0xac] sm:%s1590] %v1687
                  %v1689 = vld [vmem:[%s1599 + $0xb0] sm:%s1590]
                  %1690 = vst [vmem:[%s1600 + $0xb0] sm:%s1590] %v1689
                  %v1691 = vld [vmem:[%s1599 + $0xb4] sm:%s1590]
                  %1692 = vst [vmem:[%s1600 + $0xb4] sm:%s1590] %v1691
                  %v1693 = vld [vmem:[%s1599 + $0xb8] sm:%s1590]
                  %1694 = vst [vmem:[%s1600 + $0xb8] sm:%s1590] %v1693
                  %v1695 = vld [vmem:[%s1599 + $0xbc] sm:%s1590]
                  %1696 = vst [vmem:[%s1600 + $0xbc] sm:%s1590] %v1695
                  %v1697 = vld [vmem:[%s1599 + $0xc0] sm:%s1590]
                  %1698 = vst [vmem:[%s1600 + $0xc0] sm:%s1590] %v1697
                  %v1699 = vld [vmem:[%s1599 + $0xc4] sm:%s1590]
                  %1700 = vst [vmem:[%s1600 + $0xc4] sm:%s1590] %v1699
                  %v1701 = vld [vmem:[%s1599 + $0xc8] sm:%s1590]
                  %1702 = vst [vmem:[%s1600 + $0xc8] sm:%s1590] %v1701
                  %v1703 = vld [vmem:[%s1599 + $0xcc] sm:%s1590]
                  %1704 = vst [vmem:[%s1600 + $0xcc] sm:%s1590] %v1703
                  %v1705 = vld [vmem:[%s1599 + $0xd0] sm:%s1590]
                  %1706 = vst [vmem:[%s1600 + $0xd0] sm:%s1590] %v1705
                  %v1707 = vld [vmem:[%s1599 + $0xd4] sm:%s1590]
                  %1708 = vst [vmem:[%s1600 + $0xd4] sm:%s1590] %v1707
                  %v1709 = vld [vmem:[%s1599 + $0xd8] sm:%s1590]
                  %1710 = vst [vmem:[%s1600 + $0xd8] sm:%s1590] %v1709
                  %v1711 = vld [vmem:[%s1599 + $0xdc] sm:%s1590]
                  %1712 = vst [vmem:[%s1600 + $0xdc] sm:%s1590] %v1711
                  %v1713 = vld [vmem:[%s1599 + $0xe0] sm:%s1590]
                  %1714 = vst [vmem:[%s1600 + $0xe0] sm:%s1590] %v1713
                  %v1715 = vld [vmem:[%s1599 + $0xe4] sm:%s1590]
                  %1716 = vst [vmem:[%s1600 + $0xe4] sm:%s1590] %v1715
                  %v1717 = vld [vmem:[%s1599 + $0xe8] sm:%s1590]
                  %1718 = vst [vmem:[%s1600 + $0xe8] sm:%s1590] %v1717
                  %v1719 = vld [vmem:[%s1599 + $0xec] sm:%s1590]
                  %1720 = vst [vmem:[%s1600 + $0xec] sm:%s1590] %v1719
                  %v1721 = vld [vmem:[%s1599 + $0xf0] sm:%s1590]
                  %1722 = vst [vmem:[%s1600 + $0xf0] sm:%s1590] %v1721
                  %v1723 = vld [vmem:[%s1599 + $0xf4] sm:%s1590]
                  %1724 = vst [vmem:[%s1600 + $0xf4] sm:%s1590] %v1723
                  %v1725 = vld [vmem:[%s1599 + $0xf8] sm:%s1590]
                  %1726 = vst [vmem:[%s1600 + $0xf8] sm:%s1590] %v1725
                  %v1727 = vld [vmem:[%s1599 + $0xfc] sm:%s1590]
                  %1728 = vst [vmem:[%s1600 + $0xfc] sm:%s1590] %v1727
                  %s1729 = sadd.s32 1, %s1598
                  %p1730 = scmp.ge.s32.totalorder %s1729, %s1591
                  %s1731 = scalar_select %p1730, 0, %s1729
                  %s1732 = smul.u32 %s1731, 256
                  %s1733 = smul.u32 %s1731, 256
                  %s1734 = scalar_lea.vmem %s1396, %s1732 [#allocation2]
                  %s1735 = scalar_lea.vmem %s1407, %s1733
                $region71: #{ppo_forward.4} parent=65 // loop_footer
                  %s1595 = sadd.s32 %s1593, 1
                $region72: #{ppo_forward.4} parent=65 // loop_footer_branch
                  %1592 = sbr.rel target = $region68
                $region73: #{ppo_forward.4} parent=65 // loop_exit
                  _
                %s1736 = sshrl.u32 %s1403, 6
                %s1737 = sand.u32 %s1403, 63
                %s1738 = smul.u32 %s1736, 64
                %s1739 = smul.u32 4, %s1738
                %s1740 = scalar_lea.vmem %s1396, %s1739 [#allocation2]
                %s1741 = smul.u32 4, %s1738
                %s1742 = scalar_lea.vmem %s1407, %s1741
                // While loop
                $region74: #{ppo_forward.4} parent=65 // loop_pre_header
                  _
                $region75: #{ppo_forward.4} parent=65 // loop_header
                  %s1744 = sphi 0, %s1746
                  %p1745 = scmp.ge.s32.totalorder %s1744, %s1737
                  %s1749 = sphi 0, %s1756
                  %s1750 = sphi %s1740, %s1759
                  %s1751 = sphi %s1742, %s1760
                $region76: #{ppo_forward.4} parent=65 // loop_header_branch
                  %1748 = sbr.rel (%p1745) target = $region80
                $region77: #{ppo_forward.4} parent=65 // loop_body
                  %v1752 = vld [vmem:[%s1750] sm:%s1590]
                  %1753 = vst [vmem:[%s1751] sm:%s1590] %v1752
                  %s1754 = sadd.s32 1, %s1749
                  %p1755 = scmp.ge.s32.totalorder %s1754, %s1737
                  %s1756 = scalar_select %p1755, 0, %s1754
                  %s1757 = smul.u32 %s1756, 4
                  %s1758 = smul.u32 %s1756, 4
                  %s1759 = scalar_lea.vmem %s1740, %s1757 [#allocation2]
                  %s1760 = scalar_lea.vmem %s1742, %s1758
                $region78: #{ppo_forward.4} parent=65 // loop_footer
                  %s1746 = sadd.s32 %s1744, 1
                $region79: #{ppo_forward.4} parent=65 // loop_footer_branch
                  %1743 = sbr.rel target = $region75
                $region80: #{ppo_forward.4} parent=65 // loop_exit
                  _
              $region66: #{ppo_forward.4} parent=43 // pred_fallthru
                _
            $region44: #{ppo_forward.4} parent=39 // pred_fallthru
              _
            // Predicated region
            $region45: #{ppo_forward.4} parent=39 // pred_check
              _
            $region46: #{ppo_forward.4} parent=39 // pred_check_branch
              %1414 = sbr.rel (0) target = $region48
            $region47: #{ppo_forward.4} parent=39 // pred_region
              %s1416 = ssub.s32 16, 1
              %s1417 = sshrl.u32 %s1403, 6
              // While loop
              $region49: #{ppo_forward.4} parent=47 // loop_pre_header
                _
              $region50: #{ppo_forward.4} parent=47 // loop_header
                %s1419 = sphi 0, %s1421
                %p1420 = scmp.ge.s32.totalorder %s1419, %s1417
                %s1424 = sphi 0, %s1557
                %s1425 = sphi %s1396, %s1560
                %s1426 = sphi %s1407, %s1561
              $region51: #{ppo_forward.4} parent=47 // loop_header_branch
                %1423 = sbr.rel (%p1420) target = $region55
              $region52: #{ppo_forward.4} parent=47 // loop_body
                %v1427 = vld [vmem:[%s1425] sm:%s1416]
                %1428 = vst [vmem:[%s1426] sm:%s1416] %v1427
                %v1429 = vld [vmem:[%s1425 + $0x4] sm:%s1416]
                %1430 = vst [vmem:[%s1426 + $0x4] sm:%s1416] %v1429
                %v1431 = vld [vmem:[%s1425 + $0x8] sm:%s1416]
                %1432 = vst [vmem:[%s1426 + $0x8] sm:%s1416] %v1431
                %v1433 = vld [vmem:[%s1425 + $0xc] sm:%s1416]
                %1434 = vst [vmem:[%s1426 + $0xc] sm:%s1416] %v1433
                %v1435 = vld [vmem:[%s1425 + $0x10] sm:%s1416]
                %1436 = vst [vmem:[%s1426 + $0x10] sm:%s1416] %v1435
                %v1437 = vld [vmem:[%s1425 + $0x14] sm:%s1416]
                %1438 = vst [vmem:[%s1426 + $0x14] sm:%s1416] %v1437
                %v1439 = vld [vmem:[%s1425 + $0x18] sm:%s1416]
                %1440 = vst [vmem:[%s1426 + $0x18] sm:%s1416] %v1439
                %v1441 = vld [vmem:[%s1425 + $0x1c] sm:%s1416]
                %1442 = vst [vmem:[%s1426 + $0x1c] sm:%s1416] %v1441
                %v1443 = vld [vmem:[%s1425 + $0x20] sm:%s1416]
                %1444 = vst [vmem:[%s1426 + $0x20] sm:%s1416] %v1443
                %v1445 = vld [vmem:[%s1425 + $0x24] sm:%s1416]
                %1446 = vst [vmem:[%s1426 + $0x24] sm:%s1416] %v1445
                %v1447 = vld [vmem:[%s1425 + $0x28] sm:%s1416]
                %1448 = vst [vmem:[%s1426 + $0x28] sm:%s1416] %v1447
                %v1449 = vld [vmem:[%s1425 + $0x2c] sm:%s1416]
                %1450 = vst [vmem:[%s1426 + $0x2c] sm:%s1416] %v1449
                %v1451 = vld [vmem:[%s1425 + $0x30] sm:%s1416]
                %1452 = vst [vmem:[%s1426 + $0x30] sm:%s1416] %v1451
                %v1453 = vld [vmem:[%s1425 + $0x34] sm:%s1416]
                %1454 = vst [vmem:[%s1426 + $0x34] sm:%s1416] %v1453
                %v1455 = vld [vmem:[%s1425 + $0x38] sm:%s1416]
                %1456 = vst [vmem:[%s1426 + $0x38] sm:%s1416] %v1455
                %v1457 = vld [vmem:[%s1425 + $0x3c] sm:%s1416]
                %1458 = vst [vmem:[%s1426 + $0x3c] sm:%s1416] %v1457
                %v1459 = vld [vmem:[%s1425 + $0x40] sm:%s1416]
                %1460 = vst [vmem:[%s1426 + $0x40] sm:%s1416] %v1459
                %v1461 = vld [vmem:[%s1425 + $0x44] sm:%s1416]
                %1462 = vst [vmem:[%s1426 + $0x44] sm:%s1416] %v1461
                %v1463 = vld [vmem:[%s1425 + $0x48] sm:%s1416]
                %1464 = vst [vmem:[%s1426 + $0x48] sm:%s1416] %v1463
                %v1465 = vld [vmem:[%s1425 + $0x4c] sm:%s1416]
                %1466 = vst [vmem:[%s1426 + $0x4c] sm:%s1416] %v1465
                %v1467 = vld [vmem:[%s1425 + $0x50] sm:%s1416]
                %1468 = vst [vmem:[%s1426 + $0x50] sm:%s1416] %v1467
                %v1469 = vld [vmem:[%s1425 + $0x54] sm:%s1416]
                %1470 = vst [vmem:[%s1426 + $0x54] sm:%s1416] %v1469
                %v1471 = vld [vmem:[%s1425 + $0x58] sm:%s1416]
                %1472 = vst [vmem:[%s1426 + $0x58] sm:%s1416] %v1471
                %v1473 = vld [vmem:[%s1425 + $0x5c] sm:%s1416]
                %1474 = vst [vmem:[%s1426 + $0x5c] sm:%s1416] %v1473
                %v1475 = vld [vmem:[%s1425 + $0x60] sm:%s1416]
                %1476 = vst [vmem:[%s1426 + $0x60] sm:%s1416] %v1475
                %v1477 = vld [vmem:[%s1425 + $0x64] sm:%s1416]
                %1478 = vst [vmem:[%s1426 + $0x64] sm:%s1416] %v1477
                %v1479 = vld [vmem:[%s1425 + $0x68] sm:%s1416]
                %1480 = vst [vmem:[%s1426 + $0x68] sm:%s1416] %v1479
                %v1481 = vld [vmem:[%s1425 + $0x6c] sm:%s1416]
                %1482 = vst [vmem:[%s1426 + $0x6c] sm:%s1416] %v1481
                %v1483 = vld [vmem:[%s1425 + $0x70] sm:%s1416]
                %1484 = vst [vmem:[%s1426 + $0x70] sm:%s1416] %v1483
                %v1485 = vld [vmem:[%s1425 + $0x74] sm:%s1416]
                %1486 = vst [vmem:[%s1426 + $0x74] sm:%s1416] %v1485
                %v1487 = vld [vmem:[%s1425 + $0x78] sm:%s1416]
                %1488 = vst [vmem:[%s1426 + $0x78] sm:%s1416] %v1487
                %v1489 = vld [vmem:[%s1425 + $0x7c] sm:%s1416]
                %1490 = vst [vmem:[%s1426 + $0x7c] sm:%s1416] %v1489
                %v1491 = vld [vmem:[%s1425 + $0x80] sm:%s1416]
                %1492 = vst [vmem:[%s1426 + $0x80] sm:%s1416] %v1491
                %v1493 = vld [vmem:[%s1425 + $0x84] sm:%s1416]
                %1494 = vst [vmem:[%s1426 + $0x84] sm:%s1416] %v1493
                %v1495 = vld [vmem:[%s1425 + $0x88] sm:%s1416]
                %1496 = vst [vmem:[%s1426 + $0x88] sm:%s1416] %v1495
                %v1497 = vld [vmem:[%s1425 + $0x8c] sm:%s1416]
                %1498 = vst [vmem:[%s1426 + $0x8c] sm:%s1416] %v1497
                %v1499 = vld [vmem:[%s1425 + $0x90] sm:%s1416]
                %1500 = vst [vmem:[%s1426 + $0x90] sm:%s1416] %v1499
                %v1501 = vld [vmem:[%s1425 + $0x94] sm:%s1416]
                %1502 = vst [vmem:[%s1426 + $0x94] sm:%s1416] %v1501
                %v1503 = vld [vmem:[%s1425 + $0x98] sm:%s1416]
                %1504 = vst [vmem:[%s1426 + $0x98] sm:%s1416] %v1503
                %v1505 = vld [vmem:[%s1425 + $0x9c] sm:%s1416]
                %1506 = vst [vmem:[%s1426 + $0x9c] sm:%s1416] %v1505
                %v1507 = vld [vmem:[%s1425 + $0xa0] sm:%s1416]
                %1508 = vst [vmem:[%s1426 + $0xa0] sm:%s1416] %v1507
                %v1509 = vld [vmem:[%s1425 + $0xa4] sm:%s1416]
                %1510 = vst [vmem:[%s1426 + $0xa4] sm:%s1416] %v1509
                %v1511 = vld [vmem:[%s1425 + $0xa8] sm:%s1416]
                %1512 = vst [vmem:[%s1426 + $0xa8] sm:%s1416] %v1511
                %v1513 = vld [vmem:[%s1425 + $0xac] sm:%s1416]
                %1514 = vst [vmem:[%s1426 + $0xac] sm:%s1416] %v1513
                %v1515 = vld [vmem:[%s1425 + $0xb0] sm:%s1416]
                %1516 = vst [vmem:[%s1426 + $0xb0] sm:%s1416] %v1515
                %v1517 = vld [vmem:[%s1425 + $0xb4] sm:%s1416]
                %1518 = vst [vmem:[%s1426 + $0xb4] sm:%s1416] %v1517
                %v1519 = vld [vmem:[%s1425 + $0xb8] sm:%s1416]
                %1520 = vst [vmem:[%s1426 + $0xb8] sm:%s1416] %v1519
                %v1521 = vld [vmem:[%s1425 + $0xbc] sm:%s1416]
                %1522 = vst [vmem:[%s1426 + $0xbc] sm:%s1416] %v1521
                %v1523 = vld [vmem:[%s1425 + $0xc0] sm:%s1416]
                %1524 = vst [vmem:[%s1426 + $0xc0] sm:%s1416] %v1523
                %v1525 = vld [vmem:[%s1425 + $0xc4] sm:%s1416]
                %1526 = vst [vmem:[%s1426 + $0xc4] sm:%s1416] %v1525
                %v1527 = vld [vmem:[%s1425 + $0xc8] sm:%s1416]
                %1528 = vst [vmem:[%s1426 + $0xc8] sm:%s1416] %v1527
                %v1529 = vld [vmem:[%s1425 + $0xcc] sm:%s1416]
                %1530 = vst [vmem:[%s1426 + $0xcc] sm:%s1416] %v1529
                %v1531 = vld [vmem:[%s1425 + $0xd0] sm:%s1416]
                %1532 = vst [vmem:[%s1426 + $0xd0] sm:%s1416] %v1531
                %v1533 = vld [vmem:[%s1425 + $0xd4] sm:%s1416]
                %1534 = vst [vmem:[%s1426 + $0xd4] sm:%s1416] %v1533
                %v1535 = vld [vmem:[%s1425 + $0xd8] sm:%s1416]
                %1536 = vst [vmem:[%s1426 + $0xd8] sm:%s1416] %v1535
                %v1537 = vld [vmem:[%s1425 + $0xdc] sm:%s1416]
                %1538 = vst [vmem:[%s1426 + $0xdc] sm:%s1416] %v1537
                %v1539 = vld [vmem:[%s1425 + $0xe0] sm:%s1416]
                %1540 = vst [vmem:[%s1426 + $0xe0] sm:%s1416] %v1539
                %v1541 = vld [vmem:[%s1425 + $0xe4] sm:%s1416]
                %1542 = vst [vmem:[%s1426 + $0xe4] sm:%s1416] %v1541
                %v1543 = vld [vmem:[%s1425 + $0xe8] sm:%s1416]
                %1544 = vst [vmem:[%s1426 + $0xe8] sm:%s1416] %v1543
                %v1545 = vld [vmem:[%s1425 + $0xec] sm:%s1416]
                %1546 = vst [vmem:[%s1426 + $0xec] sm:%s1416] %v1545
                %v1547 = vld [vmem:[%s1425 + $0xf0] sm:%s1416]
                %1548 = vst [vmem:[%s1426 + $0xf0] sm:%s1416] %v1547
                %v1549 = vld [vmem:[%s1425 + $0xf4] sm:%s1416]
                %1550 = vst [vmem:[%s1426 + $0xf4] sm:%s1416] %v1549
                %v1551 = vld [vmem:[%s1425 + $0xf8] sm:%s1416]
                %1552 = vst [vmem:[%s1426 + $0xf8] sm:%s1416] %v1551
                %v1553 = vld [vmem:[%s1425 + $0xfc] sm:%s1416]
                %1554 = vst [vmem:[%s1426 + $0xfc] sm:%s1416] %v1553
                %s1555 = sadd.s32 1, %s1424
                %p1556 = scmp.ge.s32.totalorder %s1555, %s1417
                %s1557 = scalar_select %p1556, 0, %s1555
                %s1558 = smul.u32 %s1557, 256
                %s1559 = smul.u32 %s1557, 256
                %s1560 = scalar_lea.vmem %s1396, %s1558 [#allocation2]
                %s1561 = scalar_lea.vmem %s1407, %s1559
              $region53: #{ppo_forward.4} parent=47 // loop_footer
                %s1421 = sadd.s32 %s1419, 1
              $region54: #{ppo_forward.4} parent=47 // loop_footer_branch
                %1418 = sbr.rel target = $region50
              $region55: #{ppo_forward.4} parent=47 // loop_exit
                _
              %s1562 = sshrl.u32 %s1403, 6
              %s1563 = sand.u32 %s1403, 63
              %s1564 = smul.u32 %s1562, 64
              %s1565 = smul.u32 4, %s1564
              %s1566 = scalar_lea.vmem %s1396, %s1565 [#allocation2]
              %s1567 = smul.u32 4, %s1564
              %s1568 = scalar_lea.vmem %s1407, %s1567
              // While loop
              $region56: #{ppo_forward.4} parent=47 // loop_pre_header
                _
              $region57: #{ppo_forward.4} parent=47 // loop_header
                %s1570 = sphi 0, %s1572
                %p1571 = scmp.ge.s32.totalorder %s1570, %s1563
                %s1575 = sphi 0, %s1582
                %s1576 = sphi %s1566, %s1585
                %s1577 = sphi %s1568, %s1586
              $region58: #{ppo_forward.4} parent=47 // loop_header_branch
                %1574 = sbr.rel (%p1571) target = $region62
              $region59: #{ppo_forward.4} parent=47 // loop_body
                %v1578 = vld [vmem:[%s1576] sm:%s1416]
                %1579 = vst [vmem:[%s1577] sm:%s1416] %v1578
                %s1580 = sadd.s32 1, %s1575
                %p1581 = scmp.ge.s32.totalorder %s1580, %s1563
                %s1582 = scalar_select %p1581, 0, %s1580
                %s1583 = smul.u32 %s1582, 4
                %s1584 = smul.u32 %s1582, 4
                %s1585 = scalar_lea.vmem %s1566, %s1583 [#allocation2]
                %s1586 = scalar_lea.vmem %s1568, %s1584
              $region60: #{ppo_forward.4} parent=47 // loop_footer
                %s1572 = sadd.s32 %s1570, 1
              $region61: #{ppo_forward.4} parent=47 // loop_footer_branch
                %1569 = sbr.rel target = $region57
              $region62: #{ppo_forward.4} parent=47 // loop_exit
                _
            $region48: #{ppo_forward.4} parent=39 // pred_fallthru
              _
          $region40: #{ppo_forward.4} parent=35 // pred_fallthru
            _
          %1761 = vnop
        $region36: #{ppo_forward.4} parent=31 // pred_fallthru
          _
      $region32: #{ppo_forward.4} parent=5 // pred_fallthru
        _
      %p1762 = scmp.le.s32.totalorder 2, %s9
      // Predicated region
      $region81: #{ppo_forward.4} parent=5 // pred_check
        %p1763 = pneg %p1762
      $region82: #{ppo_forward.4} parent=5 // pred_check_branch
        %1765 = sbr.rel (%p1763) target = $region84
      $region83: #{ppo_forward.4} parent=5 // pred_region
        %s1766 = ssub.s32 %s9, 2
        // Predicated region
        $region85: #{ppo_forward.4} parent=83 // pred_check
          %p1767 = pneg %p106
        $region86: #{ppo_forward.4} parent=83 // pred_check_branch
          %1769 = sbr.rel (%p1767) target = $region88
        $region87: #{ppo_forward.4} parent=83 // pred_region
          %s1770 = sand.u32 %s91, 1
          %s1771 = sand.u32 %s91, 1
          %s1772 = smul.addr %s1771, 256
          %s1773 = scalar_lea.vmem [#allocation2], %s1772
        $region88: #{ppo_forward.4} parent=83 // pred_fallthru
          _
      $region84: #{ppo_forward.4} parent=5 // pred_fallthru
        _
    $region6: #{ppo_forward.4} parent=1 // loop_footer
      %s13 = sadd.s32 1, %s9
    $region7: #{ppo_forward.4} parent=1 // loop_footer_branch
      %8 = sbr.rel target = $region3
    $region8: #{ppo_forward.4} parent=1 // loop_exit
      _

// kernel: ppo_forward.5
$region0: #{ppo_forward.5}
  #allocation0 [shape = 'u32[]', space=smem, size = 0x4, offset = 0x4, fixed_abs, tag = 'smem constant byte address 0x4 - core index']
  #allocation1 [shape = 'u32[144,128]{1,0:T(1,128)}', space=vmem, size = 0x12000, scoped, tag = 'internal scratch']
  %s0 = inlined_call_operand.vmem [shape: bf16[162,512], index: 0, kind: input, shape index: {}]
  %s1 = inlined_call_operand.vmem [shape: bf16[512,128], index: 1, kind: input, shape index: {}]
  %s2 = inlined_call_operand.vmem [shape: f32[1,128], index: 2, kind: input, shape index: {}]
  %s3 = inlined_call_operand.vmem [shape: bf16[162,128], index: 3, kind: output, shape index: {}]
  %s4 = sld [smem:[#allocation0]]
  $region22: #{ppo_forward.5} parent=0
    _
  %s6 = ssub.s32 1, %s4
  %s7 = scalar_select 0, %s6, %s4
  // Predicated region
  $region2: #{ppo_forward.5} parent=0 // pred_check
    _
  $region3: #{ppo_forward.5} parent=0 // pred_check_branch
    %9 = sbr.rel (0) target = $region5
  $region4: #{ppo_forward.5} parent=0 // pred_region
    _
  $region5: #{ppo_forward.5} parent=0 // pred_fallthru
    _
  // Predicated region
  $region6: #{ppo_forward.5} parent=0 // pred_check
    _
  $region7: #{ppo_forward.5} parent=0 // pred_check_branch
    %11 = sbr.rel (0) target = $region9
  $region8: #{ppo_forward.5} parent=0 // pred_region
    _
  $region9: #{ppo_forward.5} parent=0 // pred_fallthru
    _
  // Predicated region
  $region10: #{ppo_forward.5} parent=0 // pred_check
    _
  $region11: #{ppo_forward.5} parent=0 // pred_check_branch
    %13 = sbr.rel (0) target = $region13
  $region12: #{ppo_forward.5} parent=0 // pred_region
    _
  $region13: #{ppo_forward.5} parent=0 // pred_fallthru
    _
  %v15 = vld [vmem:[%s0] sm:$0xff]
  %v16 = vld [vmem:[%s0 + $0x8] sm:$0xff]
  %v17 = vld [vmem:[%s0 + $0x10] sm:$0xff]
  %v18 = vld [vmem:[%s0 + $0x18] sm:$0xff]
  %v19 = vld [vmem:[%s0 + $0x20] sm:$0xff]
  %v20 = vld [vmem:[%s0 + $0x28] sm:$0xff]
  %v21 = vld [vmem:[%s0 + $0x30] sm:$0xff]
  %v22 = vld [vmem:[%s0 + $0x38] sm:$0xff]
  %v23 = vld [vmem:[%s0 + $0x40] sm:$0xff]
  %v24 = vld [vmem:[%s0 + $0x48] sm:$0xff]
  %v25 = vld [vmem:[%s0 + $0x50] sm:$0xff]
  %v26 = vld [vmem:[%s0 + $0x58] sm:$0xff]
  %v27 = vld [vmem:[%s0 + $0x60] sm:$0xff]
  %v28 = vld [vmem:[%s0 + $0x68] sm:$0xff]
  %v29 = vld [vmem:[%s0 + $0x70] sm:$0xff]
  %v30 = vld [vmem:[%s0 + $0x78] sm:$0xff]
  %v31 = vld [vmem:[%s0 + $0x80] sm:$0xff]
  %v32 = vld [vmem:[%s0 + $0x88] sm:$0xff]
  %v33 = vld [vmem:[%s0 + $0x90] sm:$0xff]
  %v34 = vld [vmem:[%s0 + $0x98] sm:$0xff]
  %v35 = vld [vmem:[%s0 + $0xa0] sm:$0xff]
  %v36 = vld [vmem:[%s0 + $0xa8] sm:$0xff]
  %v37 = vld [vmem:[%s0 + $0xb0] sm:$0xff]
  %v38 = vld [vmem:[%s0 + $0xb8] sm:$0xff]
  %v39 = vld [vmem:[%s0 + $0xc0] sm:$0xff]
  %v40 = vld [vmem:[%s0 + $0xc8] sm:$0xff]
  %v41 = vld [vmem:[%s0 + $0xd0] sm:$0xff]
  %v42 = vld [vmem:[%s0 + $0xd8] sm:$0xff]
  %v43 = vld [vmem:[%s0 + $0xe0] sm:$0xff]
  %v44 = vld [vmem:[%s0 + $0xe8] sm:$0xff]
  %v45 = vld [vmem:[%s0 + $0xf0] sm:$0xff]
  %v46 = vld [vmem:[%s0 + $0xf8] sm:$0xff]
  %v47 = vld [vmem:[%s0 + $0x100] sm:$0xff]
  %v48 = vld [vmem:[%s0 + $0x108] sm:$0xff]
  %v49 = vld [vmem:[%s0 + $0x110] sm:$0xff]
  %v50 = vld [vmem:[%s0 + $0x118] sm:$0xff]
  %v51 = vld [vmem:[%s0 + $0x120] sm:$0xff]
  %v52 = vld [vmem:[%s0 + $0x128] sm:$0xff]
  %v53 = vld [vmem:[%s0 + $0x130] sm:$0xff]
  %v54 = vld [vmem:[%s0 + $0x138] sm:$0xff]
  %v55 = vld [vmem:[%s0 + $0x140] sm:$0x11]
  %v56 = vld [vmem:[%s0 + $0x148] sm:$0x11]
  %v57 = vld [vmem:[%s1] sm:$0xf]
  %v58 = vld [vmem:[%s1 + $0x4] sm:$0xf]
  %v59 = vld [vmem:[%s1 + $0x8] sm:$0xf]
  %v60 = vld [vmem:[%s1 + $0xc] sm:$0xf]
  %v61 = vld [vmem:[%s1 + $0x10] sm:$0xf]
  %v62 = vld [vmem:[%s1 + $0x14] sm:$0xf]
  %v63 = vld [vmem:[%s1 + $0x18] sm:$0xf]
  %v64 = vld [vmem:[%s1 + $0x1c] sm:$0xf]
  %v65 = vld [vmem:[%s1 + $0x20] sm:$0xf]
  %v66 = vld [vmem:[%s1 + $0x24] sm:$0xf]
  %v67 = vld [vmem:[%s1 + $0x28] sm:$0xf]
  %v68 = vld [vmem:[%s1 + $0x2c] sm:$0xf]
  %v69 = vld [vmem:[%s1 + $0x30] sm:$0xf]
  %v70 = vld [vmem:[%s1 + $0x34] sm:$0xf]
  %v71 = vld [vmem:[%s1 + $0x38] sm:$0xf]
  %v72 = vld [vmem:[%s1 + $0x3c] sm:$0xf]
  %v73 = vld [vmem:[%s1 + $0x40] sm:$0xf]
  %v74 = vld [vmem:[%s1 + $0x44] sm:$0xf]
  %v75 = vld [vmem:[%s1 + $0x48] sm:$0xf]
  %v76 = vld [vmem:[%s1 + $0x4c] sm:$0xf]
  %v77 = vld [vmem:[%s1 + $0x50] sm:$0xf]
  %v78 = vld [vmem:[%s1 + $0x54] sm:$0xf]
  %v79 = vld [vmem:[%s1 + $0x58] sm:$0xf]
  %v80 = vld [vmem:[%s1 + $0x5c] sm:$0xf]
  %v81 = vld [vmem:[%s1 + $0x60] sm:$0xf]
  %v82 = vld [vmem:[%s1 + $0x64] sm:$0xf]
  %v83 = vld [vmem:[%s1 + $0x68] sm:$0xf]
  %v84 = vld [vmem:[%s1 + $0x6c] sm:$0xf]
  %v85 = vld [vmem:[%s1 + $0x70] sm:$0xf]
  %v86 = vld [vmem:[%s1 + $0x74] sm:$0xf]
  %v87 = vld [vmem:[%s1 + $0x78] sm:$0xf]
  %v88 = vld [vmem:[%s1 + $0x7c] sm:$0xf]
  %v89 = vld [vmem:[%s1 + $0x80] sm:$0xf]
  %v90 = vld [vmem:[%s1 + $0x84] sm:$0xf]
  %v91 = vld [vmem:[%s1 + $0x88] sm:$0xf]
  %v92 = vld [vmem:[%s1 + $0x8c] sm:$0xf]
  %v93 = vld [vmem:[%s1 + $0x90] sm:$0xf]
  %v94 = vld [vmem:[%s1 + $0x94] sm:$0xf]
  %v95 = vld [vmem:[%s1 + $0x98] sm:$0xf]
  %v96 = vld [vmem:[%s1 + $0x9c] sm:$0xf]
  %v97 = vld [vmem:[%s1 + $0xa0] sm:$0xf]
  %v98 = vld [vmem:[%s1 + $0xa4] sm:$0xf]
  %v99 = vld [vmem:[%s1 + $0xa8] sm:$0xf]
  %v100 = vld [vmem:[%s1 + $0xac] sm:$0xf]
  %v101 = vld [vmem:[%s1 + $0xb0] sm:$0xf]
  %v102 = vld [vmem:[%s1 + $0xb4] sm:$0xf]
  %v103 = vld [vmem:[%s1 + $0xb8] sm:$0xf]
  %v104 = vld [vmem:[%s1 + $0xbc] sm:$0xf]
  %v105 = vld [vmem:[%s1 + $0xc0] sm:$0xf]
  %v106 = vld [vmem:[%s1 + $0xc4] sm:$0xf]
  %v107 = vld [vmem:[%s1 + $0xc8] sm:$0xf]
  %v108 = vld [vmem:[%s1 + $0xcc] sm:$0xf]
  %v109 = vld [vmem:[%s1 + $0xd0] sm:$0xf]
  %v110 = vld [vmem:[%s1 + $0xd4] sm:$0xf]
  %v111 = vld [vmem:[%s1 + $0xd8] sm:$0xf]
  %v112 = vld [vmem:[%s1 + $0xdc] sm:$0xf]
  %v113 = vld [vmem:[%s1 + $0xe0] sm:$0xf]
  %v114 = vld [vmem:[%s1 + $0xe4] sm:$0xf]
  %v115 = vld [vmem:[%s1 + $0xe8] sm:$0xf]
  %v116 = vld [vmem:[%s1 + $0xec] sm:$0xf]
  %v117 = vld [vmem:[%s1 + $0xf0] sm:$0xf]
  %v118 = vld [vmem:[%s1 + $0xf4] sm:$0xf]
  %v119 = vld [vmem:[%s1 + $0xf8] sm:$0xf]
  %v120 = vld [vmem:[%s1 + $0xfc] sm:$0xf]
  %v121 = vld [vmem:[%s2] sm:$0x1]
  %v123 = vlaneseq
  %v124 = vshrl.u32 %v123, 7
  %v125 = vsub.s32 0, %v124
  %v126 = vrot.slane %v121, %v125
  %v170 = vunpack.c.l.b16 %v15
  %v171 = vunpack.c.h.b16 %v15
  %v172 = vunpack.c.l.b16 %v16
  %v173 = vunpack.c.h.b16 %v16
  %v174 = vunpack.c.l.b16 %v17
  %v175 = vunpack.c.h.b16 %v17
  %v176 = vunpack.c.l.b16 %v18
  %v177 = vunpack.c.h.b16 %v18
  %v178 = vunpack.c.l.b16 %v19
  %v179 = vunpack.c.h.b16 %v19
  %v180 = vunpack.c.l.b16 %v20
  %v181 = vunpack.c.h.b16 %v20
  %v182 = vunpack.c.l.b16 %v21
  %v183 = vunpack.c.h.b16 %v21
  %v184 = vunpack.c.l.b16 %v22
  %v185 = vunpack.c.h.b16 %v22
  %v186 = vunpack.c.l.b16 %v23
  %v187 = vunpack.c.h.b16 %v23
  %v188 = vunpack.c.l.b16 %v24
  %v189 = vunpack.c.h.b16 %v24
  %v190 = vunpack.c.l.b16 %v25
  %v191 = vunpack.c.h.b16 %v25
  %v192 = vunpack.c.l.b16 %v26
  %v193 = vunpack.c.h.b16 %v26
  %v194 = vunpack.c.l.b16 %v27
  %v195 = vunpack.c.h.b16 %v27
  %v196 = vunpack.c.l.b16 %v28
  %v197 = vunpack.c.h.b16 %v28
  %v198 = vunpack.c.l.b16 %v29
  %v199 = vunpack.c.h.b16 %v29
  %v200 = vunpack.c.l.b16 %v30
  %v201 = vunpack.c.h.b16 %v30
  %v202 = vunpack.c.l.b16 %v31
  %v203 = vunpack.c.h.b16 %v31
  %v204 = vunpack.c.l.b16 %v32
  %v205 = vunpack.c.h.b16 %v32
  %v206 = vunpack.c.l.b16 %v33
  %v207 = vunpack.c.h.b16 %v33
  %v208 = vunpack.c.l.b16 %v34
  %v209 = vunpack.c.h.b16 %v34
  %v210 = vunpack.c.l.b16 %v35
  %v211 = vunpack.c.h.b16 %v35
  %v212 = vunpack.c.l.b16 %v36
  %v213 = vunpack.c.h.b16 %v36
  %v214 = vunpack.c.l.b16 %v37
  %v215 = vunpack.c.h.b16 %v37
  %v216 = vunpack.c.l.b16 %v38
  %v217 = vunpack.c.h.b16 %v38
  %v218 = vunpack.c.l.b16 %v39
  %v219 = vunpack.c.h.b16 %v39
  %v220 = vunpack.c.l.b16 %v40
  %v221 = vunpack.c.h.b16 %v40
  %v222 = vunpack.c.l.b16 %v41
  %v223 = vunpack.c.h.b16 %v41
  %v224 = vunpack.c.l.b16 %v42
  %v225 = vunpack.c.h.b16 %v42
  %v226 = vunpack.c.l.b16 %v43
  %v227 = vunpack.c.h.b16 %v43
  %v228 = vunpack.c.l.b16 %v44
  %v229 = vunpack.c.h.b16 %v44
  %v230 = vunpack.c.l.b16 %v45
  %v231 = vunpack.c.h.b16 %v45
  %v232 = vunpack.c.l.b16 %v46
  %v233 = vunpack.c.h.b16 %v46
  %v234 = vunpack.c.l.b16 %v47
  %v235 = vunpack.c.h.b16 %v47
  %v236 = vunpack.c.l.b16 %v48
  %v237 = vunpack.c.h.b16 %v48
  %v238 = vunpack.c.l.b16 %v49
  %v239 = vunpack.c.h.b16 %v49
  %v240 = vunpack.c.l.b16 %v50
  %v241 = vunpack.c.h.b16 %v50
  %v242 = vunpack.c.l.b16 %v51
  %v243 = vunpack.c.h.b16 %v51
  %v244 = vunpack.c.l.b16 %v52
  %v245 = vunpack.c.h.b16 %v52
  %v246 = vunpack.c.l.b16 %v53
  %v247 = vunpack.c.h.b16 %v53
  %v248 = vunpack.c.l.b16 %v54
  %v249 = vunpack.c.h.b16 %v54
  %v250 = vunpack.c.l.b16 %v55
  %v251 = vunpack.c.h.b16 %v55
  %v252 = vunpack.c.l.b16 %v56
  %v253 = vunpack.c.h.b16 %v56
  %v254 = vpack.c.b16 %v174, %v170
  %v255 = vpack.c.b16 %v175, %v171
  %v256 = vpack.c.b16 %v176, %v172
  %v257 = vpack.c.b16 %v177, %v173
  %v258 = vpack.c.b16 %v182, %v178
  %v259 = vpack.c.b16 %v183, %v179
  %v260 = vpack.c.b16 %v184, %v180
  %v261 = vpack.c.b16 %v185, %v181
  %v262 = vpack.c.b16 %v190, %v186
  %v263 = vpack.c.b16 %v191, %v187
  %v264 = vpack.c.b16 %v192, %v188
  %v265 = vpack.c.b16 %v193, %v189
  %v266 = vpack.c.b16 %v198, %v194
  %v267 = vpack.c.b16 %v199, %v195
  %v268 = vpack.c.b16 %v200, %v196
  %v269 = vpack.c.b16 %v201, %v197
  %v270 = vpack.c.b16 %v206, %v202
  %v271 = vpack.c.b16 %v207, %v203
  %v272 = vpack.c.b16 %v208, %v204
  %v273 = vpack.c.b16 %v209, %v205
  %v274 = vpack.c.b16 %v214, %v210
  %v275 = vpack.c.b16 %v215, %v211
  %v276 = vpack.c.b16 %v216, %v212
  %v277 = vpack.c.b16 %v217, %v213
  %v278 = vpack.c.b16 %v222, %v218
  %v279 = vpack.c.b16 %v223, %v219
  %v280 = vpack.c.b16 %v224, %v220
  %v281 = vpack.c.b16 %v225, %v221
  %v282 = vpack.c.b16 %v230, %v226
  %v283 = vpack.c.b16 %v231, %v227
  %v284 = vpack.c.b16 %v232, %v228
  %v285 = vpack.c.b16 %v233, %v229
  %v286 = vpack.c.b16 %v238, %v234
  %v287 = vpack.c.b16 %v239, %v235
  %v288 = vpack.c.b16 %v240, %v236
  %v289 = vpack.c.b16 %v241, %v237
  %v290 = vpack.c.b16 %v246, %v242
  %v291 = vpack.c.b16 %v247, %v243
  %v292 = vpack.c.b16 %v248, %v244
  %v293 = vpack.c.b16 %v249, %v245
  %v294 = vpack.c.b16 %v250, %v250
  %v295 = vpack.c.b16 %v251, %v251
  %v296 = vpack.c.b16 %v252, %v252
  %v297 = vpack.c.b16 %v253, %v253
  %v406 = vunpack.c.l.b16 %v57
  %v407 = vunpack.c.l.b16 %v58
  %v408 = vunpack.c.l.b16 %v59
  %v409 = vunpack.c.l.b16 %v60
  %v410 = vunpack.c.l.b16 %v61
  %v411 = vunpack.c.l.b16 %v62
  %v412 = vunpack.c.l.b16 %v63
  %v413 = vunpack.c.l.b16 %v64
  %v414 = vunpack.c.l.b16 %v65
  %v415 = vunpack.c.l.b16 %v66
  %v416 = vunpack.c.l.b16 %v67
  %v417 = vunpack.c.l.b16 %v68
  %v418 = vunpack.c.l.b16 %v69
  %v419 = vunpack.c.l.b16 %v70
  %v420 = vunpack.c.l.b16 %v71
  %v421 = vunpack.c.l.b16 %v72
  %v422 = vunpack.c.l.b16 %v73
  %v423 = vunpack.c.l.b16 %v74
  %v424 = vunpack.c.l.b16 %v75
  %v425 = vunpack.c.l.b16 %v76
  %v426 = vunpack.c.l.b16 %v77
  %v427 = vunpack.c.l.b16 %v78
  %v428 = vunpack.c.l.b16 %v79
  %v429 = vunpack.c.l.b16 %v80
  %v430 = vunpack.c.l.b16 %v81
  %v431 = vunpack.c.l.b16 %v82
  %v432 = vunpack.c.l.b16 %v83
  %v433 = vunpack.c.l.b16 %v84
  %v434 = vunpack.c.l.b16 %v85
  %v435 = vunpack.c.l.b16 %v86
  %v436 = vunpack.c.l.b16 %v87
  %v437 = vunpack.c.l.b16 %v88
  %v438 = vunpack.c.l.b16 %v89
  %v439 = vunpack.c.l.b16 %v90
  %v440 = vunpack.c.l.b16 %v91
  %v441 = vunpack.c.l.b16 %v92
  %v442 = vunpack.c.l.b16 %v93
  %v443 = vunpack.c.l.b16 %v94
  %v444 = vunpack.c.l.b16 %v95
  %v445 = vunpack.c.l.b16 %v96
  %v446 = vunpack.c.l.b16 %v97
  %v447 = vunpack.c.l.b16 %v98
  %v448 = vunpack.c.l.b16 %v99
  %v449 = vunpack.c.l.b16 %v100
  %v450 = vunpack.c.l.b16 %v101
  %v451 = vunpack.c.l.b16 %v102
  %v452 = vunpack.c.l.b16 %v103
  %v453 = vunpack.c.l.b16 %v104
  %v454 = vunpack.c.l.b16 %v105
  %v455 = vunpack.c.l.b16 %v106
  %v456 = vunpack.c.l.b16 %v107
  %v457 = vunpack.c.l.b16 %v108
  %v458 = vunpack.c.l.b16 %v109
  %v459 = vunpack.c.l.b16 %v110
  %v460 = vunpack.c.l.b16 %v111
  %v461 = vunpack.c.l.b16 %v112
  %v462 = vunpack.c.l.b16 %v113
  %v463 = vunpack.c.l.b16 %v114
  %v464 = vunpack.c.l.b16 %v115
  %v465 = vunpack.c.l.b16 %v116
  %v466 = vunpack.c.l.b16 %v117
  %v467 = vunpack.c.l.b16 %v118
  %v468 = vunpack.c.l.b16 %v119
  %v469 = vunpack.c.l.b16 %v120
  %v470 = vpack.c.b16 %v407, %v406
  %v471 = vpack.c.b16 %v409, %v408
  %v472 = vpack.c.b16 %v411, %v410
  %v473 = vpack.c.b16 %v413, %v412
  %v474 = vpack.c.b16 %v415, %v414
  %v475 = vpack.c.b16 %v417, %v416
  %v476 = vpack.c.b16 %v419, %v418
  %v477 = vpack.c.b16 %v421, %v420
  %v478 = vpack.c.b16 %v423, %v422
  %v479 = vpack.c.b16 %v425, %v424
  %v480 = vpack.c.b16 %v427, %v426
  %v481 = vpack.c.b16 %v429, %v428
  %v482 = vpack.c.b16 %v431, %v430
  %v483 = vpack.c.b16 %v433, %v432
  %v484 = vpack.c.b16 %v435, %v434
  %v485 = vpack.c.b16 %v437, %v436
  %v486 = vpack.c.b16 %v439, %v438
  %v487 = vpack.c.b16 %v441, %v440
  %v488 = vpack.c.b16 %v443, %v442
  %v489 = vpack.c.b16 %v445, %v444
  %v490 = vpack.c.b16 %v447, %v446
  %v491 = vpack.c.b16 %v449, %v448
  %v492 = vpack.c.b16 %v451, %v450
  %v493 = vpack.c.b16 %v453, %v452
  %v494 = vpack.c.b16 %v455, %v454
  %v495 = vpack.c.b16 %v457, %v456
  %v496 = vpack.c.b16 %v459, %v458
  %v497 = vpack.c.b16 %v461, %v460
  %v498 = vpack.c.b16 %v463, %v462
  %v499 = vpack.c.b16 %v465, %v464
  %v500 = vpack.c.b16 %v467, %v466
  %v501 = vpack.c.b16 %v469, %v468
  %534 = vmatprep.subr.bf16.mxu0 0
  %535 = vmatpush1.bf16.msra.mxu0 %v477
  %536 = vmatprep.subr.bf16.mxu0 0
  %537 = vmatpush1.bf16.msra.mxu0 %v476
  %538 = vmatprep.subr.bf16.mxu0 0
  %539 = vmatpush1.bf16.msra.mxu0 %v475
  %540 = vmatprep.subr.bf16.mxu0 0
  %541 = vmatpush1.bf16.msra.mxu0 %v474
  %542 = vmatprep.subr.bf16.mxu0 0
  %543 = vmatpush1.bf16.msra.mxu0 %v473
  %544 = vmatprep.subr.bf16.mxu0 0
  %545 = vmatpush1.bf16.msra.mxu0 %v472
  %546 = vmatprep.subr.bf16.mxu0 0
  %547 = vmatpush1.bf16.msra.mxu0 %v471
  %548 = vmatprep.subr.bf16.mxu0 0
  %549 = vmatpush1.bf16.msra.mxu0 %v470
  %550 = vmatprep.subr.bf16.mxu0 0
  %551 = vmatpush2.bf16.msra.mxu0 %v485
  %552 = vmatprep.subr.bf16.mxu0 0
  %553 = vmatpush2.bf16.msra.mxu0 %v484
  %554 = vmatprep.subr.bf16.mxu0 0
  %555 = vmatpush2.bf16.msra.mxu0 %v483
  %556 = vmatprep.subr.bf16.mxu0 0
  %557 = vmatpush2.bf16.msra.mxu0 %v482
  %558 = vmatprep.subr.bf16.mxu0 0
  %559 = vmatpush2.bf16.msra.mxu0 %v481
  %560 = vmatprep.subr.bf16.mxu0 0
  %561 = vmatpush2.bf16.msra.mxu0 %v480
  %562 = vmatprep.subr.bf16.mxu0 0
  %563 = vmatpush2.bf16.msra.mxu0 %v479
  %564 = vmatprep.subr.bf16.mxu0 0
  %565 = vmatpush2.bf16.msra.mxu0 %v478
  %566 = vmatprep.mubr.bf16.mxu0 %v255
  %567 = vmatmul.mubr.bf16.gmra.mxu0 %v254
  %v568 = vpop.f32.mrf.mxu0
  %v569 = vadd.f32 %v126, %v568
  %v570 = vpop.f32.mrf.mxu0
  %v571 = vpop.f32.mrf.mxu0
  %v572 = vadd.f32 %v126, %v571
  %v573 = vpop.f32.mrf.mxu0
  %574 = vmatprep.mubr.bf16.mxu0 %v259
  %575 = vmatmul.mubr.bf16.gmra.mxu0 %v258
  %v576 = vpop.f32.mrf.mxu0
  %v577 = vadd.f32 %v126, %v576
  %v578 = vpop.f32.mrf.mxu0
  %v579 = vpop.f32.mrf.mxu0
  %v580 = vadd.f32 %v126, %v579
  %v581 = vpop.f32.mrf.mxu0
  %582 = vmatprep.mubr.bf16.mxu0 %v263
  %583 = vmatmul.mubr.bf16.gmra.mxu0 %v262
  %v584 = vpop.f32.mrf.mxu0
  %v585 = vadd.f32 %v126, %v584
  %v586 = vpop.f32.mrf.mxu0
  %v587 = vpop.f32.mrf.mxu0
  %v588 = vadd.f32 %v126, %v587
  %v589 = vpop.f32.mrf.mxu0
  %590 = vmatprep.mubr.bf16.mxu0 %v267
  %591 = vmatmul.mubr.bf16.gmra.mxu0 %v266
  %v592 = vpop.f32.mrf.mxu0
  %v593 = vadd.f32 %v126, %v592
  %v594 = vpop.f32.mrf.mxu0
  %v595 = vpop.f32.mrf.mxu0
  %v596 = vadd.f32 %v126, %v595
  %v597 = vpop.f32.mrf.mxu0
  %598 = vmatprep.mubr.bf16.mxu0 %v271
  %599 = vmatmul.mubr.bf16.gmra.mxu0 %v270
  %v600 = vpop.f32.mrf.mxu0
  %v601 = vadd.f32 %v126, %v600
  %v602 = vpop.f32.mrf.mxu0
  %v603 = vpop.f32.mrf.mxu0
  %v604 = vadd.f32 %v126, %v603
  %v605 = vpop.f32.mrf.mxu0
  %606 = vmatprep.mubr.bf16.mxu0 %v275
  %607 = vmatmul.mubr.bf16.gmra.mxu0 %v274
  %v608 = vpop.f32.mrf.mxu0
  %v609 = vadd.f32 %v126, %v608
  %v610 = vpop.f32.mrf.mxu0
  %v611 = vpop.f32.mrf.mxu0
  %v612 = vadd.f32 %v126, %v611
  %v613 = vpop.f32.mrf.mxu0
  %614 = vmatprep.mubr.bf16.mxu0 %v279
  %615 = vmatmul.mubr.bf16.gmra.mxu0 %v278
  %v616 = vpop.f32.mrf.mxu0
  %v617 = vadd.f32 %v126, %v616
  %v618 = vpop.f32.mrf.mxu0
  %v619 = vpop.f32.mrf.mxu0
  %v620 = vadd.f32 %v126, %v619
  %v621 = vpop.f32.mrf.mxu0
  %622 = vmatprep.mubr.bf16.mxu0 %v283
  %623 = vmatmul.mubr.bf16.gmra.mxu0 %v282
  %v624 = vpop.f32.mrf.mxu0
  %v625 = vadd.f32 %v126, %v624
  %v626 = vpop.f32.mrf.mxu0
  %v627 = vpop.f32.mrf.mxu0
  %v628 = vadd.f32 %v126, %v627
  %v629 = vpop.f32.mrf.mxu0
  %630 = vmatprep.mubr.bf16.mxu0 %v287
  %631 = vmatmul.mubr.bf16.gmra.mxu0 %v286
  %v632 = vpop.f32.mrf.mxu0
  %v633 = vadd.f32 %v126, %v632
  %v634 = vpop.f32.mrf.mxu0
  %v635 = vpop.f32.mrf.mxu0
  %v636 = vadd.f32 %v126, %v635
  %v637 = vpop.f32.mrf.mxu0
  %638 = vmatprep.mubr.bf16.mxu0 %v291
  %639 = vmatmul.mubr.bf16.gmra.mxu0 %v290
  %v640 = vpop.f32.mrf.mxu0
  %v641 = vadd.f32 %v126, %v640
  %v642 = vpop.f32.mrf.mxu0
  %v643 = vpop.f32.mrf.mxu0
  %v644 = vadd.f32 %v126, %v643
  %v645 = vpop.f32.mrf.mxu0
  %646 = vmatprep.mubr.bf16.mxu0 %v295
  %647 = vmatmul.mubr.bf16.gmra.mxu0 %v294
  %v648 = vpop.f32.mrf.mxu0
  %v649 = vadd.f32 %v126, %v648
  %v650 = vpop.f32.mrf.mxu0
  %v651 = vpop.f32.mrf.mxu0
  %v652 = vpop.f32.mrf.mxu0
  %653 = vdwg.mxu0
  %654 = vmatprep.subr.bf16.mxu0 0
  %655 = vmatpush1.bf16.msra.mxu0 %v493
  %656 = vmatprep.subr.bf16.mxu0 0
  %657 = vmatpush1.bf16.msra.mxu0 %v492
  %658 = vmatprep.subr.bf16.mxu0 0
  %659 = vmatpush1.bf16.msra.mxu0 %v491
  %660 = vmatprep.subr.bf16.mxu0 0
  %661 = vmatpush1.bf16.msra.mxu0 %v490
  %662 = vmatprep.subr.bf16.mxu0 0
  %663 = vmatpush1.bf16.msra.mxu0 %v489
  %664 = vmatprep.subr.bf16.mxu0 0
  %665 = vmatpush1.bf16.msra.mxu0 %v488
  %666 = vmatprep.subr.bf16.mxu0 0
  %667 = vmatpush1.bf16.msra.mxu0 %v487
  %668 = vmatprep.subr.bf16.mxu0 0
  %669 = vmatpush1.bf16.msra.mxu0 %v486
  %670 = vmatprep.subr.bf16.mxu0 0
  %671 = vmatpush2.bf16.msra.mxu0 %v501
  %672 = vmatprep.subr.bf16.mxu0 0
  %673 = vmatpush2.bf16.msra.mxu0 %v500
  %674 = vmatprep.subr.bf16.mxu0 0
  %675 = vmatpush2.bf16.msra.mxu0 %v499
  %676 = vmatprep.subr.bf16.mxu0 0
  %677 = vmatpush2.bf16.msra.mxu0 %v498
  %678 = vmatprep.subr.bf16.mxu0 0
  %679 = vmatpush2.bf16.msra.mxu0 %v497
  %680 = vmatprep.subr.bf16.mxu0 0
  %681 = vmatpush2.bf16.msra.mxu0 %v496
  %682 = vmatprep.subr.bf16.mxu0 0
  %683 = vmatpush2.bf16.msra.mxu0 %v495
  %684 = vmatprep.subr.bf16.mxu0 0
  %685 = vmatpush2.bf16.msra.mxu0 %v494
  %686 = vmatprep.mubr.bf16.mxu0 %v257
  %687 = vmatmul.mubr.bf16.gmra.mxu0 %v256
  %v688 = vpop.f32.mrf.mxu0
  %v689 = vadd.f32 %v569, %v688
  %v690 = vpop.f32.mrf.mxu0
  %v691 = vpop.f32.mrf.mxu0
  %v692 = vadd.f32 %v572, %v691
  %v693 = vpop.f32.mrf.mxu0
  %694 = vmatprep.mubr.bf16.mxu0 %v261
  %695 = vmatmul.mubr.bf16.gmra.mxu0 %v260
  %v696 = vpop.f32.mrf.mxu0
  %v697 = vadd.f32 %v577, %v696
  %v698 = vpop.f32.mrf.mxu0
  %v699 = vpop.f32.mrf.mxu0
  %v700 = vadd.f32 %v580, %v699
  %v701 = vpop.f32.mrf.mxu0
  %702 = vmatprep.mubr.bf16.mxu0 %v265
  %703 = vmatmul.mubr.bf16.gmra.mxu0 %v264
  %v704 = vpop.f32.mrf.mxu0
  %v705 = vadd.f32 %v585, %v704
  %v706 = vpop.f32.mrf.mxu0
  %v707 = vpop.f32.mrf.mxu0
  %v708 = vadd.f32 %v588, %v707
  %v709 = vpop.f32.mrf.mxu0
  %710 = vmatprep.mubr.bf16.mxu0 %v269
  %711 = vmatmul.mubr.bf16.gmra.mxu0 %v268
  %v712 = vpop.f32.mrf.mxu0
  %v713 = vadd.f32 %v593, %v712
  %v714 = vpop.f32.mrf.mxu0
  %v715 = vpop.f32.mrf.mxu0
  %v716 = vadd.f32 %v596, %v715
  %v717 = vpop.f32.mrf.mxu0
  %718 = vmatprep.mubr.bf16.mxu0 %v273
  %719 = vmatmul.mubr.bf16.gmra.mxu0 %v272
  %v720 = vpop.f32.mrf.mxu0
  %v721 = vadd.f32 %v601, %v720
  %v722 = vpop.f32.mrf.mxu0
  %v723 = vpop.f32.mrf.mxu0
  %v724 = vadd.f32 %v604, %v723
  %v725 = vpop.f32.mrf.mxu0
  %726 = vmatprep.mubr.bf16.mxu0 %v277
  %727 = vmatmul.mubr.bf16.gmra.mxu0 %v276
  %v728 = vpop.f32.mrf.mxu0
  %v729 = vadd.f32 %v609, %v728
  %v730 = vpop.f32.mrf.mxu0
  %v731 = vpop.f32.mrf.mxu0
  %v732 = vadd.f32 %v612, %v731
  %v733 = vpop.f32.mrf.mxu0
  %734 = vmatprep.mubr.bf16.mxu0 %v281
  %735 = vmatmul.mubr.bf16.gmra.mxu0 %v280
  %v736 = vpop.f32.mrf.mxu0
  %v737 = vadd.f32 %v617, %v736
  %v738 = vpop.f32.mrf.mxu0
  %v739 = vpop.f32.mrf.mxu0
  %v740 = vadd.f32 %v620, %v739
  %v741 = vpop.f32.mrf.mxu0
  %742 = vmatprep.mubr.bf16.mxu0 %v285
  %743 = vmatmul.mubr.bf16.gmra.mxu0 %v284
  %v744 = vpop.f32.mrf.mxu0
  %v745 = vadd.f32 %v625, %v744
  %v746 = vpop.f32.mrf.mxu0
  %v747 = vpop.f32.mrf.mxu0
  %v748 = vadd.f32 %v628, %v747
  %v749 = vpop.f32.mrf.mxu0
  %750 = vmatprep.mubr.bf16.mxu0 %v289
  %751 = vmatmul.mubr.bf16.gmra.mxu0 %v288
  %v752 = vpop.f32.mrf.mxu0
  %v753 = vadd.f32 %v633, %v752
  %v754 = vpop.f32.mrf.mxu0
  %v755 = vpop.f32.mrf.mxu0
  %v756 = vadd.f32 %v636, %v755
  %v757 = vpop.f32.mrf.mxu0
  %758 = vmatprep.mubr.bf16.mxu0 %v293
  %759 = vmatmul.mubr.bf16.gmra.mxu0 %v292
  %v760 = vpop.f32.mrf.mxu0
  %v761 = vadd.f32 %v641, %v760
  %v762 = vpop.f32.mrf.mxu0
  %v763 = vpop.f32.mrf.mxu0
  %v764 = vadd.f32 %v644, %v763
  %v765 = vpop.f32.mrf.mxu0
  %766 = vmatprep.mubr.bf16.mxu0 %v297
  %767 = vmatmul.mubr.bf16.gmra.mxu0 %v296
  %v768 = vpop.f32.mrf.mxu0
  %v769 = vadd.f32 %v649, %v768
  %v770 = vpop.f32.mrf.mxu0
  %v771 = vpop.f32.mrf.mxu0
  %v772 = vpop.f32.mrf.mxu0
  %773 = vdwg.mxu0
  %v774 = vmax.f32 %v689, 0.0
  %v775 = vmax.f32 %v692, 0.0
  %v776 = vmax.f32 %v697, 0.0
  %v777 = vmax.f32 %v700, 0.0
  %v778 = vmax.f32 %v705, 0.0
  %v779 = vmax.f32 %v708, 0.0
  %v780 = vmax.f32 %v713, 0.0
  %v781 = vmax.f32 %v716, 0.0
  %v782 = vmax.f32 %v721, 0.0
  %v783 = vmax.f32 %v724, 0.0
  %v784 = vmax.f32 %v729, 0.0
  %v785 = vmax.f32 %v732, 0.0
  %v786 = vmax.f32 %v737, 0.0
  %v787 = vmax.f32 %v740, 0.0
  %v788 = vmax.f32 %v745, 0.0
  %v789 = vmax.f32 %v748, 0.0
  %v790 = vmax.f32 %v753, 0.0
  %v791 = vmax.f32 %v756, 0.0
  %v792 = vmax.f32 %v761, 0.0
  %v793 = vmax.f32 %v764, 0.0
  %v794 = vmax.f32 %v769, 0.0
  %v795 = vpack.c.bf16 %v775, %v774
  %v796 = vpack.c.bf16 %v777, %v776
  %v797 = vpack.c.bf16 %v779, %v778
  %v798 = vpack.c.bf16 %v781, %v780
  %v799 = vpack.c.bf16 %v783, %v782
  %v800 = vpack.c.bf16 %v785, %v784
  %v801 = vpack.c.bf16 %v787, %v786
  %v802 = vpack.c.bf16 %v789, %v788
  %v803 = vpack.c.bf16 %v791, %v790
  %v804 = vpack.c.bf16 %v793, %v792
  %v805 = vpack.c.bf16 %v794, %v794
  %v817 = vunpack.c.l.b16 %v795
  %v818 = vunpack.c.h.b16 %v795
  %v819 = vunpack.c.l.b16 %v796
  %v820 = vunpack.c.h.b16 %v796
  %v821 = vunpack.c.l.b16 %v797
  %v822 = vunpack.c.h.b16 %v797
  %v823 = vunpack.c.l.b16 %v798
  %v824 = vunpack.c.h.b16 %v798
  %v825 = vunpack.c.l.b16 %v799
  %v826 = vunpack.c.h.b16 %v799
  %v827 = vunpack.c.l.b16 %v800
  %v828 = vunpack.c.h.b16 %v800
  %v829 = vunpack.c.l.b16 %v801
  %v830 = vunpack.c.h.b16 %v801
  %v831 = vunpack.c.l.b16 %v802
  %v832 = vunpack.c.h.b16 %v802
  %v833 = vunpack.c.l.b16 %v803
  %v834 = vunpack.c.h.b16 %v803
  %v835 = vunpack.c.l.b16 %v804
  %v836 = vunpack.c.h.b16 %v804
  %v837 = vunpack.c.l.b16 %v805
  %v838 = vpack.c.b16 %v817, %v817
  %v839 = vpack.c.b16 %v818, %v818
  %v840 = vpack.c.b16 %v819, %v819
  %v841 = vpack.c.b16 %v820, %v820
  %v842 = vpack.c.b16 %v821, %v821
  %v843 = vpack.c.b16 %v822, %v822
  %v844 = vpack.c.b16 %v823, %v823
  %v845 = vpack.c.b16 %v824, %v824
  %v846 = vpack.c.b16 %v825, %v825
  %v847 = vpack.c.b16 %v826, %v826
  %v848 = vpack.c.b16 %v827, %v827
  %v849 = vpack.c.b16 %v828, %v828
  %v850 = vpack.c.b16 %v829, %v829
  %v851 = vpack.c.b16 %v830, %v830
  %v852 = vpack.c.b16 %v831, %v831
  %v853 = vpack.c.b16 %v832, %v832
  %v854 = vpack.c.b16 %v833, %v833
  %v855 = vpack.c.b16 %v834, %v834
  %v856 = vpack.c.b16 %v835, %v835
  %v857 = vpack.c.b16 %v836, %v836
  %v858 = vpack.c.b16 %v837, %v837
  %880 = vst [vmem:[%s3] sm:$0xf] %v838
  %881 = vst [vmem:[%s3 + $0x4] sm:$0xf] %v839
  %882 = vst [vmem:[%s3 + $0x8] sm:$0xf] %v840
  %883 = vst [vmem:[%s3 + $0xc] sm:$0xf] %v841
  %884 = vst [vmem:[%s3 + $0x10] sm:$0xf] %v842
  %885 = vst [vmem:[%s3 + $0x14] sm:$0xf] %v843
  %886 = vst [vmem:[%s3 + $0x18] sm:$0xf] %v844
  %887 = vst [vmem:[%s3 + $0x1c] sm:$0xf] %v845
  %888 = vst [vmem:[%s3 + $0x20] sm:$0xf] %v846
  %889 = vst [vmem:[%s3 + $0x24] sm:$0xf] %v847
  %890 = vst [vmem:[%s3 + $0x28] sm:$0xf] %v848
  %891 = vst [vmem:[%s3 + $0x2c] sm:$0xf] %v849
  %892 = vst [vmem:[%s3 + $0x30] sm:$0xf] %v850
  %893 = vst [vmem:[%s3 + $0x34] sm:$0xf] %v851
  %894 = vst [vmem:[%s3 + $0x38] sm:$0xf] %v852
  %895 = vst [vmem:[%s3 + $0x3c] sm:$0xf] %v853
  %896 = vst [vmem:[%s3 + $0x40] sm:$0xf] %v854
  %897 = vst [vmem:[%s3 + $0x44] sm:$0xf] %v855
  %898 = vst [vmem:[%s3 + $0x48] sm:$0xf] %v856
  %899 = vst [vmem:[%s3 + $0x4c] sm:$0xf] %v857
  %900 = vst [vmem:[%s3 + $0x50] sm:$0x1] %v858
  // Predicated region
  $region14: #{ppo_forward.5} parent=0 // pred_check
    _
  $region15: #{ppo_forward.5} parent=0 // pred_check_branch
    %902 = sbr.rel (0) target = $region17
  $region16: #{ppo_forward.5} parent=0 // pred_region
    _
  $region17: #{ppo_forward.5} parent=0 // pred_fallthru
    _
  // Predicated region
  $region18: #{ppo_forward.5} parent=0 // pred_check
    _
  $region19: #{ppo_forward.5} parent=0 // pred_check_branch
    %904 = sbr.rel (0) target = $region21
  $region20: #{ppo_forward.5} parent=0 // pred_region
    _
  $region21: #{ppo_forward.5} parent=0 // pred_fallthru
    _

// kernel: ppo_forward.6
$region0: #{ppo_forward.6}
  #allocation0 [shape = 'u32[]', space=smem, size = 0x4, offset = 0x4, fixed_abs, tag = 'smem constant byte address 0x4 - core index']
  #allocation1 [shape = 'u32[144,128]{1,0:T(1,128)}', space=vmem, size = 0x12000, scoped, tag = 'internal scratch']
  %s0 = inlined_call_operand.vmem [shape: bf16[98,576], index: 0, kind: input, shape index: {}]
  %s1 = inlined_call_operand.vmem [shape: bf16[576,128], index: 1, kind: input, shape index: {}]
  %s2 = inlined_call_operand.vmem [shape: f32[1,128], index: 2, kind: input, shape index: {}]
  %s3 = inlined_call_operand.vmem [shape: bf16[98,128], index: 3, kind: output, shape index: {}]
  %s4 = sld [smem:[#allocation0]]
  $region22: #{ppo_forward.6} parent=0
    _
  %s6 = ssub.s32 1, %s4
  %s7 = scalar_select 0, %s6, %s4
  // Predicated region
  $region2: #{ppo_forward.6} parent=0 // pred_check
    _
  $region3: #{ppo_forward.6} parent=0 // pred_check_branch
    %9 = sbr.rel (0) target = $region5
  $region4: #{ppo_forward.6} parent=0 // pred_region
    _
  $region5: #{ppo_forward.6} parent=0 // pred_fallthru
    _
  // Predicated region
  $region6: #{ppo_forward.6} parent=0 // pred_check
    _
  $region7: #{ppo_forward.6} parent=0 // pred_check_branch
    %11 = sbr.rel (0) target = $region9
  $region8: #{ppo_forward.6} parent=0 // pred_region
    _
  $region9: #{ppo_forward.6} parent=0 // pred_fallthru
    _
  // Predicated region
  $region10: #{ppo_forward.6} parent=0 // pred_check
    _
  $region11: #{ppo_forward.6} parent=0 // pred_check_branch
    %13 = sbr.rel (0) target = $region13
  $region12: #{ppo_forward.6} parent=0 // pred_region
    _
  $region13: #{ppo_forward.6} parent=0 // pred_fallthru
    _
  %v15 = vld [vmem:[%s0] sm:$0xff]
  %v16 = vld [vmem:[%s0 + $0x8] sm:$0xff]
  %v17 = vld [vmem:[%s0 + $0x10] sm:$0xf]
  %v18 = vld [vmem:[%s0 + $0x14] sm:$0xff]
  %v19 = vld [vmem:[%s0 + $0x1c] sm:$0xff]
  %v20 = vld [vmem:[%s0 + $0x24] sm:$0xf]
  %v21 = vld [vmem:[%s0 + $0x28] sm:$0xff]
  %v22 = vld [vmem:[%s0 + $0x30] sm:$0xff]
  %v23 = vld [vmem:[%s0 + $0x38] sm:$0xf]
  %v24 = vld [vmem:[%s0 + $0x3c] sm:$0xff]
  %v25 = vld [vmem:[%s0 + $0x44] sm:$0xff]
  %v26 = vld [vmem:[%s0 + $0x4c] sm:$0xf]
  %v27 = vld [vmem:[%s0 + $0x50] sm:$0xff]
  %v28 = vld [vmem:[%s0 + $0x58] sm:$0xff]
  %v29 = vld [vmem:[%s0 + $0x60] sm:$0xf]
  %v30 = vld [vmem:[%s0 + $0x64] sm:$0xff]
  %v31 = vld [vmem:[%s0 + $0x6c] sm:$0xff]
  %v32 = vld [vmem:[%s0 + $0x74] sm:$0xf]
  %v33 = vld [vmem:[%s0 + $0x78] sm:$0xff]
  %v34 = vld [vmem:[%s0 + $0x80] sm:$0xff]
  %v35 = vld [vmem:[%s0 + $0x88] sm:$0xf]
  %v36 = vld [vmem:[%s0 + $0x8c] sm:$0xff]
  %v37 = vld [vmem:[%s0 + $0x94] sm:$0xff]
  %v38 = vld [vmem:[%s0 + $0x9c] sm:$0xf]
  %v39 = vld [vmem:[%s0 + $0xa0] sm:$0xff]
  %v40 = vld [vmem:[%s0 + $0xa8] sm:$0xff]
  %v41 = vld [vmem:[%s0 + $0xb0] sm:$0xf]
  %v42 = vld [vmem:[%s0 + $0xb4] sm:$0xff]
  %v43 = vld [vmem:[%s0 + $0xbc] sm:$0xff]
  %v44 = vld [vmem:[%s0 + $0xc4] sm:$0xf]
  %v45 = vld [vmem:[%s0 + $0xc8] sm:$0xff]
  %v46 = vld [vmem:[%s0 + $0xd0] sm:$0xff]
  %v47 = vld [vmem:[%s0 + $0xd8] sm:$0xf]
  %v48 = vld [vmem:[%s0 + $0xdc] sm:$0xff]
  %v49 = vld [vmem:[%s0 + $0xe4] sm:$0xff]
  %v50 = vld [vmem:[%s0 + $0xec] sm:$0xf]
  %v51 = vld [vmem:[%s0 + $0xf0] sm:$0x11]
  %v52 = vld [vmem:[%s0 + $0xf8] sm:$0x11]
  %v53 = vld [vmem:[%s0 + $0x100] sm:$0x1]
  %v54 = vld [vmem:[%s1] sm:$0xf]
  %v55 = vld [vmem:[%s1 + $0x4] sm:$0xf]
  %v56 = vld [vmem:[%s1 + $0x8] sm:$0xf]
  %v57 = vld [vmem:[%s1 + $0xc] sm:$0xf]
  %v58 = vld [vmem:[%s1 + $0x10] sm:$0xf]
  %v59 = vld [vmem:[%s1 + $0x14] sm:$0xf]
  %v60 = vld [vmem:[%s1 + $0x18] sm:$0xf]
  %v61 = vld [vmem:[%s1 + $0x1c] sm:$0xf]
  %v62 = vld [vmem:[%s1 + $0x20] sm:$0xf]
  %v63 = vld [vmem:[%s1 + $0x24] sm:$0xf]
  %v64 = vld [vmem:[%s1 + $0x28] sm:$0xf]
  %v65 = vld [vmem:[%s1 + $0x2c] sm:$0xf]
  %v66 = vld [vmem:[%s1 + $0x30] sm:$0xf]
  %v67 = vld [vmem:[%s1 + $0x34] sm:$0xf]
  %v68 = vld [vmem:[%s1 + $0x38] sm:$0xf]
  %v69 = vld [vmem:[%s1 + $0x3c] sm:$0xf]
  %v70 = vld [vmem:[%s1 + $0x40] sm:$0xf]
  %v71 = vld [vmem:[%s1 + $0x44] sm:$0xf]
  %v72 = vld [vmem:[%s1 + $0x48] sm:$0xf]
  %v73 = vld [vmem:[%s1 + $0x4c] sm:$0xf]
  %v74 = vld [vmem:[%s1 + $0x50] sm:$0xf]
  %v75 = vld [vmem:[%s1 + $0x54] sm:$0xf]
  %v76 = vld [vmem:[%s1 + $0x58] sm:$0xf]
  %v77 = vld [vmem:[%s1 + $0x5c] sm:$0xf]
  %v78 = vld [vmem:[%s1 + $0x60] sm:$0xf]
  %v79 = vld [vmem:[%s1 + $0x64] sm:$0xf]
  %v80 = vld [vmem:[%s1 + $0x68] sm:$0xf]
  %v81 = vld [vmem:[%s1 + $0x6c] sm:$0xf]
  %v82 = vld [vmem:[%s1 + $0x70] sm:$0xf]
  %v83 = vld [vmem:[%s1 + $0x74] sm:$0xf]
  %v84 = vld [vmem:[%s1 + $0x78] sm:$0xf]
  %v85 = vld [vmem:[%s1 + $0x7c] sm:$0xf]
  %v86 = vld [vmem:[%s1 + $0x80] sm:$0xf]
  %v87 = vld [vmem:[%s1 + $0x84] sm:$0xf]
  %v88 = vld [vmem:[%s1 + $0x88] sm:$0xf]
  %v89 = vld [vmem:[%s1 + $0x8c] sm:$0xf]
  %v90 = vld [vmem:[%s1 + $0x90] sm:$0xf]
  %v91 = vld [vmem:[%s1 + $0x94] sm:$0xf]
  %v92 = vld [vmem:[%s1 + $0x98] sm:$0xf]
  %v93 = vld [vmem:[%s1 + $0x9c] sm:$0xf]
  %v94 = vld [vmem:[%s1 + $0xa0] sm:$0xf]
  %v95 = vld [vmem:[%s1 + $0xa4] sm:$0xf]
  %v96 = vld [vmem:[%s1 + $0xa8] sm:$0xf]
  %v97 = vld [vmem:[%s1 + $0xac] sm:$0xf]
  %v98 = vld [vmem:[%s1 + $0xb0] sm:$0xf]
  %v99 = vld [vmem:[%s1 + $0xb4] sm:$0xf]
  %v100 = vld [vmem:[%s1 + $0xb8] sm:$0xf]
  %v101 = vld [vmem:[%s1 + $0xbc] sm:$0xf]
  %v102 = vld [vmem:[%s1 + $0xc0] sm:$0xf]
  %v103 = vld [vmem:[%s1 + $0xc4] sm:$0xf]
  %v104 = vld [vmem:[%s1 + $0xc8] sm:$0xf]
  %v105 = vld [vmem:[%s1 + $0xcc] sm:$0xf]
  %v106 = vld [vmem:[%s1 + $0xd0] sm:$0xf]
  %v107 = vld [vmem:[%s1 + $0xd4] sm:$0xf]
  %v108 = vld [vmem:[%s1 + $0xd8] sm:$0xf]
  %v109 = vld [vmem:[%s1 + $0xdc] sm:$0xf]
  %v110 = vld [vmem:[%s1 + $0xe0] sm:$0xf]
  %v111 = vld [vmem:[%s1 + $0xe4] sm:$0xf]
  %v112 = vld [vmem:[%s1 + $0xe8] sm:$0xf]
  %v113 = vld [vmem:[%s1 + $0xec] sm:$0xf]
  %v114 = vld [vmem:[%s1 + $0xf0] sm:$0xf]
  %v115 = vld [vmem:[%s1 + $0xf4] sm:$0xf]
  %v116 = vld [vmem:[%s1 + $0xf8] sm:$0xf]
  %v117 = vld [vmem:[%s1 + $0xfc] sm:$0xf]
  %v118 = vld [vmem:[%s1 + $0x100] sm:$0xf]
  %v119 = vld [vmem:[%s1 + $0x104] sm:$0xf]
  %v120 = vld [vmem:[%s1 + $0x108] sm:$0xf]
  %v121 = vld [vmem:[%s1 + $0x10c] sm:$0xf]
  %v122 = vld [vmem:[%s1 + $0x110] sm:$0xf]
  %v123 = vld [vmem:[%s1 + $0x114] sm:$0xf]
  %v124 = vld [vmem:[%s1 + $0x118] sm:$0xf]
  %v125 = vld [vmem:[%s1 + $0x11c] sm:$0xf]
  %v126 = vld [vmem:[%s2] sm:$0x1]
  %v128 = vlaneseq
  %v129 = vshrl.u32 %v128, 7
  %v130 = vsub.s32 0, %v129
  %v131 = vrot.slane %v126, %v130
  %v172 = vunpack.c.l.b16 %v15
  %v173 = vunpack.c.h.b16 %v15
  %v174 = vunpack.c.l.b16 %v16
  %v175 = vunpack.c.h.b16 %v16
  %v176 = vunpack.c.l.b16 %v17
  %v177 = vunpack.c.l.b16 %v18
  %v178 = vunpack.c.h.b16 %v18
  %v179 = vunpack.c.l.b16 %v19
  %v180 = vunpack.c.h.b16 %v19
  %v181 = vunpack.c.l.b16 %v20
  %v182 = vunpack.c.l.b16 %v21
  %v183 = vunpack.c.h.b16 %v21
  %v184 = vunpack.c.l.b16 %v22
  %v185 = vunpack.c.h.b16 %v22
  %v186 = vunpack.c.l.b16 %v23
  %v187 = vunpack.c.l.b16 %v24
  %v188 = vunpack.c.h.b16 %v24
  %v189 = vunpack.c.l.b16 %v25
  %v190 = vunpack.c.h.b16 %v25
  %v191 = vunpack.c.l.b16 %v26
  %v192 = vunpack.c.l.b16 %v27
  %v193 = vunpack.c.h.b16 %v27
  %v194 = vunpack.c.l.b16 %v28
  %v195 = vunpack.c.h.b16 %v28
  %v196 = vunpack.c.l.b16 %v29
  %v197 = vunpack.c.l.b16 %v30
  %v198 = vunpack.c.h.b16 %v30
  %v199 = vunpack.c.l.b16 %v31
  %v200 = vunpack.c.h.b16 %v31
  %v201 = vunpack.c.l.b16 %v32
  %v202 = vunpack.c.l.b16 %v33
  %v203 = vunpack.c.h.b16 %v33
  %v204 = vunpack.c.l.b16 %v34
  %v205 = vunpack.c.h.b16 %v34
  %v206 = vunpack.c.l.b16 %v35
  %v207 = vunpack.c.l.b16 %v36
  %v208 = vunpack.c.h.b16 %v36
  %v209 = vunpack.c.l.b16 %v37
  %v210 = vunpack.c.h.b16 %v37
  %v211 = vunpack.c.l.b16 %v38
  %v212 = vunpack.c.l.b16 %v39
  %v213 = vunpack.c.h.b16 %v39
  %v214 = vunpack.c.l.b16 %v40
  %v215 = vunpack.c.h.b16 %v40
  %v216 = vunpack.c.l.b16 %v41
  %v217 = vunpack.c.l.b16 %v42
  %v218 = vunpack.c.h.b16 %v42
  %v219 = vunpack.c.l.b16 %v43
  %v220 = vunpack.c.h.b16 %v43
  %v221 = vunpack.c.l.b16 %v44
  %v222 = vunpack.c.l.b16 %v45
  %v223 = vunpack.c.h.b16 %v45
  %v224 = vunpack.c.l.b16 %v46
  %v225 = vunpack.c.h.b16 %v46
  %v226 = vunpack.c.l.b16 %v47
  %v227 = vunpack.c.l.b16 %v48
  %v228 = vunpack.c.h.b16 %v48
  %v229 = vunpack.c.l.b16 %v49
  %v230 = vunpack.c.h.b16 %v49
  %v231 = vunpack.c.l.b16 %v50
  %v232 = vunpack.c.l.b16 %v51
  %v233 = vunpack.c.h.b16 %v51
  %v234 = vunpack.c.l.b16 %v52
  %v235 = vunpack.c.h.b16 %v52
  %v236 = vunpack.c.l.b16 %v53
  %v237 = vpack.c.b16 %v177, %v172
  %v238 = vpack.c.b16 %v178, %v173
  %v239 = vpack.c.b16 %v179, %v174
  %v240 = vpack.c.b16 %v180, %v175
  %v241 = vpack.c.b16 %v181, %v176
  %v242 = vpack.c.b16 %v187, %v182
  %v243 = vpack.c.b16 %v188, %v183
  %v244 = vpack.c.b16 %v189, %v184
  %v245 = vpack.c.b16 %v190, %v185
  %v246 = vpack.c.b16 %v191, %v186
  %v247 = vpack.c.b16 %v197, %v192
  %v248 = vpack.c.b16 %v198, %v193
  %v249 = vpack.c.b16 %v199, %v194
  %v250 = vpack.c.b16 %v200, %v195
  %v251 = vpack.c.b16 %v201, %v196
  %v252 = vpack.c.b16 %v207, %v202
  %v253 = vpack.c.b16 %v208, %v203
  %v254 = vpack.c.b16 %v209, %v204
  %v255 = vpack.c.b16 %v210, %v205
  %v256 = vpack.c.b16 %v211, %v206
  %v257 = vpack.c.b16 %v217, %v212
  %v258 = vpack.c.b16 %v218, %v213
  %v259 = vpack.c.b16 %v219, %v214
  %v260 = vpack.c.b16 %v220, %v215
  %v261 = vpack.c.b16 %v221, %v216
  %v262 = vpack.c.b16 %v227, %v222
  %v263 = vpack.c.b16 %v228, %v223
  %v264 = vpack.c.b16 %v229, %v224
  %v265 = vpack.c.b16 %v230, %v225
  %v266 = vpack.c.b16 %v231, %v226
  %v267 = vpack.c.b16 %v232, %v232
  %v268 = vpack.c.b16 %v233, %v233
  %v269 = vpack.c.b16 %v234, %v234
  %v270 = vpack.c.b16 %v235, %v235
  %v271 = vpack.c.b16 %v236, %v236
  %v372 = vunpack.c.l.b16 %v54
  %v373 = vunpack.c.l.b16 %v55
  %v374 = vunpack.c.l.b16 %v56
  %v375 = vunpack.c.l.b16 %v57
  %v376 = vunpack.c.l.b16 %v58
  %v377 = vunpack.c.l.b16 %v59
  %v378 = vunpack.c.l.b16 %v60
  %v379 = vunpack.c.l.b16 %v61
  %v380 = vunpack.c.l.b16 %v62
  %v381 = vunpack.c.l.b16 %v63
  %v382 = vunpack.c.l.b16 %v64
  %v383 = vunpack.c.l.b16 %v65
  %v384 = vunpack.c.l.b16 %v66
  %v385 = vunpack.c.l.b16 %v67
  %v386 = vunpack.c.l.b16 %v68
  %v387 = vunpack.c.l.b16 %v69
  %v388 = vunpack.c.l.b16 %v70
  %v389 = vunpack.c.l.b16 %v71
  %v390 = vunpack.c.l.b16 %v72
  %v391 = vunpack.c.l.b16 %v73
  %v392 = vunpack.c.l.b16 %v74
  %v393 = vunpack.c.l.b16 %v75
  %v394 = vunpack.c.l.b16 %v76
  %v395 = vunpack.c.l.b16 %v77
  %v396 = vunpack.c.l.b16 %v78
  %v397 = vunpack.c.l.b16 %v79
  %v398 = vunpack.c.l.b16 %v80
  %v399 = vunpack.c.l.b16 %v81
  %v400 = vunpack.c.l.b16 %v82
  %v401 = vunpack.c.l.b16 %v83
  %v402 = vunpack.c.l.b16 %v84
  %v403 = vunpack.c.l.b16 %v85
  %v404 = vunpack.c.l.b16 %v86
  %v405 = vunpack.c.l.b16 %v87
  %v406 = vunpack.c.l.b16 %v88
  %v407 = vunpack.c.l.b16 %v89
  %v408 = vunpack.c.l.b16 %v90
  %v409 = vunpack.c.l.b16 %v91
  %v410 = vunpack.c.l.b16 %v92
  %v411 = vunpack.c.l.b16 %v93
  %v412 = vunpack.c.l.b16 %v94
  %v413 = vunpack.c.l.b16 %v95
  %v414 = vunpack.c.l.b16 %v96
  %v415 = vunpack.c.l.b16 %v97
  %v416 = vunpack.c.l.b16 %v98
  %v417 = vunpack.c.l.b16 %v99
  %v418 = vunpack.c.l.b16 %v100
  %v419 = vunpack.c.l.b16 %v101
  %v420 = vunpack.c.l.b16 %v102
  %v421 = vunpack.c.l.b16 %v103
  %v422 = vunpack.c.l.b16 %v104
  %v423 = vunpack.c.l.b16 %v105
  %v424 = vunpack.c.l.b16 %v106
  %v425 = vunpack.c.l.b16 %v107
  %v426 = vunpack.c.l.b16 %v108
  %v427 = vunpack.c.l.b16 %v109
  %v428 = vunpack.c.l.b16 %v110
  %v429 = vunpack.c.l.b16 %v111
  %v430 = vunpack.c.l.b16 %v112
  %v431 = vunpack.c.l.b16 %v113
  %v432 = vunpack.c.l.b16 %v114
  %v433 = vunpack.c.l.b16 %v115
  %v434 = vunpack.c.l.b16 %v116
  %v435 = vunpack.c.l.b16 %v117
  %v436 = vunpack.c.l.b16 %v118
  %v437 = vunpack.c.l.b16 %v119
  %v438 = vunpack.c.l.b16 %v120
  %v439 = vunpack.c.l.b16 %v121
  %v440 = vunpack.c.l.b16 %v122
  %v441 = vunpack.c.l.b16 %v123
  %v442 = vunpack.c.l.b16 %v124
  %v443 = vunpack.c.l.b16 %v125
  %v444 = vpack.c.b16 %v373, %v372
  %v445 = vpack.c.b16 %v375, %v374
  %v446 = vpack.c.b16 %v377, %v376
  %v447 = vpack.c.b16 %v379, %v378
  %v448 = vpack.c.b16 %v381, %v380
  %v449 = vpack.c.b16 %v383, %v382
  %v450 = vpack.c.b16 %v385, %v384
  %v451 = vpack.c.b16 %v387, %v386
  %v452 = vpack.c.b16 %v389, %v388
  %v453 = vpack.c.b16 %v391, %v390
  %v454 = vpack.c.b16 %v393, %v392
  %v455 = vpack.c.b16 %v395, %v394
  %v456 = vpack.c.b16 %v397, %v396
  %v457 = vpack.c.b16 %v399, %v398
  %v458 = vpack.c.b16 %v401, %v400
  %v459 = vpack.c.b16 %v403, %v402
  %v460 = vpack.c.b16 %v405, %v404
  %v461 = vpack.c.b16 %v407, %v406
  %v462 = vpack.c.b16 %v409, %v408
  %v463 = vpack.c.b16 %v411, %v410
  %v464 = vpack.c.b16 %v413, %v412
  %v465 = vpack.c.b16 %v415, %v414
  %v466 = vpack.c.b16 %v417, %v416
  %v467 = vpack.c.b16 %v419, %v418
  %v468 = vpack.c.b16 %v421, %v420
  %v469 = vpack.c.b16 %v423, %v422
  %v470 = vpack.c.b16 %v425, %v424
  %v471 = vpack.c.b16 %v427, %v426
  %v472 = vpack.c.b16 %v429, %v428
  %v473 = vpack.c.b16 %v431, %v430
  %v474 = vpack.c.b16 %v433, %v432
  %v475 = vpack.c.b16 %v435, %v434
  %v476 = vpack.c.b16 %v437, %v436
  %v477 = vpack.c.b16 %v439, %v438
  %v478 = vpack.c.b16 %v441, %v440
  %v479 = vpack.c.b16 %v443, %v442
  %vm516 = vcmask 523264
  %v518 = vsel %vm516, %v241, 0
  %v521 = vsel %vm516, %v246, 0
  %v524 = vsel %vm516, %v251, 0
  %v527 = vsel %vm516, %v256, 0
  %v530 = vsel %vm516, %v261, 0
  %v533 = vsel %vm516, %v266, 0
  %v536 = vsel %vm516, %v271, 0
  %538 = vmatprep.subr.bf16.mxu0 0
  %539 = vmatpush1.bf16.msra.mxu0 %v451
  %540 = vmatprep.subr.bf16.mxu0 0
  %541 = vmatpush1.bf16.msra.mxu0 %v450
  %542 = vmatprep.subr.bf16.mxu0 0
  %543 = vmatpush1.bf16.msra.mxu0 %v449
  %544 = vmatprep.subr.bf16.mxu0 0
  %545 = vmatpush1.bf16.msra.mxu0 %v448
  %546 = vmatprep.subr.bf16.mxu0 0
  %547 = vmatpush1.bf16.msra.mxu0 %v447
  %548 = vmatprep.subr.bf16.mxu0 0
  %549 = vmatpush1.bf16.msra.mxu0 %v446
  %550 = vmatprep.subr.bf16.mxu0 0
  %551 = vmatpush1.bf16.msra.mxu0 %v445
  %552 = vmatprep.subr.bf16.mxu0 0
  %553 = vmatpush1.bf16.msra.mxu0 %v444
  %554 = vmatprep.subr.bf16.mxu0 0
  %555 = vmatpush2.bf16.msra.mxu0 %v459
  %556 = vmatprep.subr.bf16.mxu0 0
  %557 = vmatpush2.bf16.msra.mxu0 %v458
  %558 = vmatprep.subr.bf16.mxu0 0
  %559 = vmatpush2.bf16.msra.mxu0 %v457
  %560 = vmatprep.subr.bf16.mxu0 0
  %561 = vmatpush2.bf16.msra.mxu0 %v456
  %562 = vmatprep.subr.bf16.mxu0 0
  %563 = vmatpush2.bf16.msra.mxu0 %v455
  %564 = vmatprep.subr.bf16.mxu0 0
  %565 = vmatpush2.bf16.msra.mxu0 %v454
  %566 = vmatprep.subr.bf16.mxu0 0
  %567 = vmatpush2.bf16.msra.mxu0 %v453
  %568 = vmatprep.subr.bf16.mxu0 0
  %569 = vmatpush2.bf16.msra.mxu0 %v452
  %570 = vmatprep.mubr.bf16.mxu0 %v238
  %571 = vmatmul.mubr.bf16.gmra.mxu0 %v237
  %v572 = vpop.f32.mrf.mxu0
  %v573 = vadd.f32 %v131, %v572
  %v574 = vpop.f32.mrf.mxu0
  %v575 = vpop.f32.mrf.mxu0
  %v576 = vadd.f32 %v131, %v575
  %v577 = vpop.f32.mrf.mxu0
  %578 = vmatprep.mubr.bf16.mxu0 %v243
  %579 = vmatmul.mubr.bf16.gmra.mxu0 %v242
  %v580 = vpop.f32.mrf.mxu0
  %v581 = vadd.f32 %v131, %v580
  %v582 = vpop.f32.mrf.mxu0
  %v583 = vpop.f32.mrf.mxu0
  %v584 = vadd.f32 %v131, %v583
  %v585 = vpop.f32.mrf.mxu0
  %586 = vmatprep.mubr.bf16.mxu0 %v248
  %587 = vmatmul.mubr.bf16.gmra.mxu0 %v247
  %v588 = vpop.f32.mrf.mxu0
  %v589 = vadd.f32 %v131, %v588
  %v590 = vpop.f32.mrf.mxu0
  %v591 = vpop.f32.mrf.mxu0
  %v592 = vadd.f32 %v131, %v591
  %v593 = vpop.f32.mrf.mxu0
  %594 = vmatprep.mubr.bf16.mxu0 %v253
  %595 = vmatmul.mubr.bf16.gmra.mxu0 %v252
  %v596 = vpop.f32.mrf.mxu0
  %v597 = vadd.f32 %v131, %v596
  %v598 = vpop.f32.mrf.mxu0
  %v599 = vpop.f32.mrf.mxu0
  %v600 = vadd.f32 %v131, %v599
  %v601 = vpop.f32.mrf.mxu0
  %602 = vmatprep.mubr.bf16.mxu0 %v258
  %603 = vmatmul.mubr.bf16.gmra.mxu0 %v257
  %v604 = vpop.f32.mrf.mxu0
  %v605 = vadd.f32 %v131, %v604
  %v606 = vpop.f32.mrf.mxu0
  %v607 = vpop.f32.mrf.mxu0
  %v608 = vadd.f32 %v131, %v607
  %v609 = vpop.f32.mrf.mxu0
  %610 = vmatprep.mubr.bf16.mxu0 %v263
  %611 = vmatmul.mubr.bf16.gmra.mxu0 %v262
  %v612 = vpop.f32.mrf.mxu0
  %v613 = vadd.f32 %v131, %v612
  %v614 = vpop.f32.mrf.mxu0
  %v615 = vpop.f32.mrf.mxu0
  %v616 = vadd.f32 %v131, %v615
  %v617 = vpop.f32.mrf.mxu0
  %618 = vmatprep.mubr.bf16.mxu0 %v268
  %619 = vmatmul.mubr.bf16.gmra.mxu0 %v267
  %v620 = vpop.f32.mrf.mxu0
  %v621 = vadd.f32 %v131, %v620
  %v622 = vpop.f32.mrf.mxu0
  %v623 = vpop.f32.mrf.mxu0
  %v624 = vpop.f32.mrf.mxu0
  %625 = vdwg.mxu0
  %626 = vmatprep.subr.bf16.mxu0 0
  %627 = vmatpush1.bf16.msra.mxu0 %v467
  %628 = vmatprep.subr.bf16.mxu0 0
  %629 = vmatpush1.bf16.msra.mxu0 %v466
  %630 = vmatprep.subr.bf16.mxu0 0
  %631 = vmatpush1.bf16.msra.mxu0 %v465
  %632 = vmatprep.subr.bf16.mxu0 0
  %633 = vmatpush1.bf16.msra.mxu0 %v464
  %634 = vmatprep.subr.bf16.mxu0 0
  %635 = vmatpush1.bf16.msra.mxu0 %v463
  %636 = vmatprep.subr.bf16.mxu0 0
  %637 = vmatpush1.bf16.msra.mxu0 %v462
  %638 = vmatprep.subr.bf16.mxu0 0
  %639 = vmatpush1.bf16.msra.mxu0 %v461
  %640 = vmatprep.subr.bf16.mxu0 0
  %641 = vmatpush1.bf16.msra.mxu0 %v460
  %642 = vmatprep.subr.bf16.mxu0 0
  %643 = vmatpush2.bf16.msra.mxu0 %v475
  %644 = vmatprep.subr.bf16.mxu0 0
  %645 = vmatpush2.bf16.msra.mxu0 %v474
  %646 = vmatprep.subr.bf16.mxu0 0
  %647 = vmatpush2.bf16.msra.mxu0 %v473
  %648 = vmatprep.subr.bf16.mxu0 0
  %649 = vmatpush2.bf16.msra.mxu0 %v472
  %650 = vmatprep.subr.bf16.mxu0 0
  %651 = vmatpush2.bf16.msra.mxu0 %v471
  %652 = vmatprep.subr.bf16.mxu0 0
  %653 = vmatpush2.bf16.msra.mxu0 %v470
  %654 = vmatprep.subr.bf16.mxu0 0
  %655 = vmatpush2.bf16.msra.mxu0 %v469
  %656 = vmatprep.subr.bf16.mxu0 0
  %657 = vmatpush2.bf16.msra.mxu0 %v468
  %658 = vmatprep.mubr.bf16.mxu0 %v240
  %659 = vmatmul.mubr.bf16.gmra.mxu0 %v239
  %v660 = vpop.f32.mrf.mxu0
  %v661 = vadd.f32 %v573, %v660
  %v662 = vpop.f32.mrf.mxu0
  %v663 = vpop.f32.mrf.mxu0
  %v664 = vadd.f32 %v576, %v663
  %v665 = vpop.f32.mrf.mxu0
  %666 = vmatprep.mubr.bf16.mxu0 %v245
  %667 = vmatmul.mubr.bf16.gmra.mxu0 %v244
  %v668 = vpop.f32.mrf.mxu0
  %v669 = vadd.f32 %v581, %v668
  %v670 = vpop.f32.mrf.mxu0
  %v671 = vpop.f32.mrf.mxu0
  %v672 = vadd.f32 %v584, %v671
  %v673 = vpop.f32.mrf.mxu0
  %674 = vmatprep.mubr.bf16.mxu0 %v250
  %675 = vmatmul.mubr.bf16.gmra.mxu0 %v249
  %v676 = vpop.f32.mrf.mxu0
  %v677 = vadd.f32 %v589, %v676
  %v678 = vpop.f32.mrf.mxu0
  %v679 = vpop.f32.mrf.mxu0
  %v680 = vadd.f32 %v592, %v679
  %v681 = vpop.f32.mrf.mxu0
  %682 = vmatprep.mubr.bf16.mxu0 %v255
  %683 = vmatmul.mubr.bf16.gmra.mxu0 %v254
  %v684 = vpop.f32.mrf.mxu0
  %v685 = vadd.f32 %v597, %v684
  %v686 = vpop.f32.mrf.mxu0
  %v687 = vpop.f32.mrf.mxu0
  %v688 = vadd.f32 %v600, %v687
  %v689 = vpop.f32.mrf.mxu0
  %690 = vmatprep.mubr.bf16.mxu0 %v260
  %691 = vmatmul.mubr.bf16.gmra.mxu0 %v259
  %v692 = vpop.f32.mrf.mxu0
  %v693 = vadd.f32 %v605, %v692
  %v694 = vpop.f32.mrf.mxu0
  %v695 = vpop.f32.mrf.mxu0
  %v696 = vadd.f32 %v608, %v695
  %v697 = vpop.f32.mrf.mxu0
  %698 = vmatprep.mubr.bf16.mxu0 %v265
  %699 = vmatmul.mubr.bf16.gmra.mxu0 %v264
  %v700 = vpop.f32.mrf.mxu0
  %v701 = vadd.f32 %v613, %v700
  %v702 = vpop.f32.mrf.mxu0
  %v703 = vpop.f32.mrf.mxu0
  %v704 = vadd.f32 %v616, %v703
  %v705 = vpop.f32.mrf.mxu0
  %706 = vmatprep.mubr.bf16.mxu0 %v270
  %707 = vmatmul.mubr.bf16.gmra.mxu0 %v269
  %v708 = vpop.f32.mrf.mxu0
  %v709 = vadd.f32 %v621, %v708
  %v710 = vpop.f32.mrf.mxu0
  %v711 = vpop.f32.mrf.mxu0
  %v712 = vpop.f32.mrf.mxu0
  %713 = vdwg.mxu0
  %714 = vmatprep.subr.bf16.mxu0 0
  %715 = vmatpush1.bf16.msra.mxu0 0
  %716 = vmatprep.subr.bf16.mxu0 0
  %717 = vmatpush1.bf16.msra.mxu0 0
  %718 = vmatprep.subr.bf16.mxu0 0
  %719 = vmatpush1.bf16.msra.mxu0 0
  %720 = vmatprep.subr.bf16.mxu0 0
  %721 = vmatpush1.bf16.msra.mxu0 0
  %722 = vmatprep.subr.bf16.mxu0 0
  %723 = vmatpush1.bf16.msra.mxu0 %v479
  %724 = vmatprep.subr.bf16.mxu0 0
  %725 = vmatpush1.bf16.msra.mxu0 %v478
  %726 = vmatprep.subr.bf16.mxu0 0
  %727 = vmatpush1.bf16.msra.mxu0 %v477
  %728 = vmatprep.subr.bf16.mxu0 0
  %729 = vmatpush1.bf16.msra.mxu0 %v476
  %730 = vmatprep.subr.bf16.mxu0 0
  %731 = vmatpush2.bf16.msra.mxu0 0
  %732 = vmatprep.subr.bf16.mxu0 0
  %733 = vmatpush2.bf16.msra.mxu0 0
  %734 = vmatprep.subr.bf16.mxu0 0
  %735 = vmatpush2.bf16.msra.mxu0 0
  %736 = vmatprep.subr.bf16.mxu0 0
  %737 = vmatpush2.bf16.msra.mxu0 0
  %738 = vmatprep.subr.bf16.mxu0 0
  %739 = vmatpush2.bf16.msra.mxu0 0
  %740 = vmatprep.subr.bf16.mxu0 0
  %741 = vmatpush2.bf16.msra.mxu0 0
  %742 = vmatprep.subr.bf16.mxu0 0
  %743 = vmatpush2.bf16.msra.mxu0 0
  %744 = vmatprep.subr.bf16.mxu0 0
  %745 = vmatpush2.bf16.msra.mxu0 0
  %746 = vmatprep.mubr.bf16.mxu0 0
  %747 = vmatmul.mubr.bf16.gmra.mxu0 %v518
  %v748 = vpop.f32.mrf.mxu0
  %v749 = vadd.f32 %v661, %v748
  %v750 = vpop.f32.mrf.mxu0
  %v751 = vpop.f32.mrf.mxu0
  %v752 = vadd.f32 %v664, %v751
  %v753 = vpop.f32.mrf.mxu0
  %754 = vmatprep.mubr.bf16.mxu0 0
  %755 = vmatmul.mubr.bf16.gmra.mxu0 %v521
  %v756 = vpop.f32.mrf.mxu0
  %v757 = vadd.f32 %v669, %v756
  %v758 = vpop.f32.mrf.mxu0
  %v759 = vpop.f32.mrf.mxu0
  %v760 = vadd.f32 %v672, %v759
  %v761 = vpop.f32.mrf.mxu0
  %762 = vmatprep.mubr.bf16.mxu0 0
  %763 = vmatmul.mubr.bf16.gmra.mxu0 %v524
  %v764 = vpop.f32.mrf.mxu0
  %v765 = vadd.f32 %v677, %v764
  %v766 = vpop.f32.mrf.mxu0
  %v767 = vpop.f32.mrf.mxu0
  %v768 = vadd.f32 %v680, %v767
  %v769 = vpop.f32.mrf.mxu0
  %770 = vmatprep.mubr.bf16.mxu0 0
  %771 = vmatmul.mubr.bf16.gmra.mxu0 %v527
  %v772 = vpop.f32.mrf.mxu0
  %v773 = vadd.f32 %v685, %v772
  %v774 = vpop.f32.mrf.mxu0
  %v775 = vpop.f32.mrf.mxu0
  %v776 = vadd.f32 %v688, %v775
  %v777 = vpop.f32.mrf.mxu0
  %778 = vmatprep.mubr.bf16.mxu0 0
  %779 = vmatmul.mubr.bf16.gmra.mxu0 %v530
  %v780 = vpop.f32.mrf.mxu0
  %v781 = vadd.f32 %v693, %v780
  %v782 = vpop.f32.mrf.mxu0
  %v783 = vpop.f32.mrf.mxu0
  %v784 = vadd.f32 %v696, %v783
  %v785 = vpop.f32.mrf.mxu0
  %786 = vmatprep.mubr.bf16.mxu0 0
  %787 = vmatmul.mubr.bf16.gmra.mxu0 %v533
  %v788 = vpop.f32.mrf.mxu0
  %v789 = vadd.f32 %v701, %v788
  %v790 = vpop.f32.mrf.mxu0
  %v791 = vpop.f32.mrf.mxu0
  %v792 = vadd.f32 %v704, %v791
  %v793 = vpop.f32.mrf.mxu0
  %794 = vmatprep.mubr.bf16.mxu0 0
  %795 = vmatmul.mubr.bf16.gmra.mxu0 %v536
  %v796 = vpop.f32.mrf.mxu0
  %v797 = vadd.f32 %v709, %v796
  %v798 = vpop.f32.mrf.mxu0
  %v799 = vpop.f32.mrf.mxu0
  %v800 = vpop.f32.mrf.mxu0
  %801 = vdwg.mxu0
  %v802 = vmax.f32 %v749, 0.0
  %v803 = vmax.f32 %v752, 0.0
  %v804 = vmax.f32 %v757, 0.0
  %v805 = vmax.f32 %v760, 0.0
  %v806 = vmax.f32 %v765, 0.0
  %v807 = vmax.f32 %v768, 0.0
  %v808 = vmax.f32 %v773, 0.0
  %v809 = vmax.f32 %v776, 0.0
  %v810 = vmax.f32 %v781, 0.0
  %v811 = vmax.f32 %v784, 0.0
  %v812 = vmax.f32 %v789, 0.0
  %v813 = vmax.f32 %v792, 0.0
  %v814 = vmax.f32 %v797, 0.0
  %v815 = vpack.c.bf16 %v803, %v802
  %v816 = vpack.c.bf16 %v805, %v804
  %v817 = vpack.c.bf16 %v807, %v806
  %v818 = vpack.c.bf16 %v809, %v808
  %v819 = vpack.c.bf16 %v811, %v810
  %v820 = vpack.c.bf16 %v813, %v812
  %v821 = vpack.c.bf16 %v814, %v814
  %v829 = vunpack.c.l.b16 %v815
  %v830 = vunpack.c.h.b16 %v815
  %v831 = vunpack.c.l.b16 %v816
  %v832 = vunpack.c.h.b16 %v816
  %v833 = vunpack.c.l.b16 %v817
  %v834 = vunpack.c.h.b16 %v817
  %v835 = vunpack.c.l.b16 %v818
  %v836 = vunpack.c.h.b16 %v818
  %v837 = vunpack.c.l.b16 %v819
  %v838 = vunpack.c.h.b16 %v819
  %v839 = vunpack.c.l.b16 %v820
  %v840 = vunpack.c.h.b16 %v820
  %v841 = vunpack.c.l.b16 %v821
  %v842 = vpack.c.b16 %v829, %v829
  %v843 = vpack.c.b16 %v830, %v830
  %v844 = vpack.c.b16 %v831, %v831
  %v845 = vpack.c.b16 %v832, %v832
  %v846 = vpack.c.b16 %v833, %v833
  %v847 = vpack.c.b16 %v834, %v834
  %v848 = vpack.c.b16 %v835, %v835
  %v849 = vpack.c.b16 %v836, %v836
  %v850 = vpack.c.b16 %v837, %v837
  %v851 = vpack.c.b16 %v838, %v838
  %v852 = vpack.c.b16 %v839, %v839
  %v853 = vpack.c.b16 %v840, %v840
  %v854 = vpack.c.b16 %v841, %v841
  %868 = vst [vmem:[%s3] sm:$0xf] %v842
  %869 = vst [vmem:[%s3 + $0x4] sm:$0xf] %v843
  %870 = vst [vmem:[%s3 + $0x8] sm:$0xf] %v844
  %871 = vst [vmem:[%s3 + $0xc] sm:$0xf] %v845
  %872 = vst [vmem:[%s3 + $0x10] sm:$0xf] %v846
  %873 = vst [vmem:[%s3 + $0x14] sm:$0xf] %v847
  %874 = vst [vmem:[%s3 + $0x18] sm:$0xf] %v848
  %875 = vst [vmem:[%s3 + $0x1c] sm:$0xf] %v849
  %876 = vst [vmem:[%s3 + $0x20] sm:$0xf] %v850
  %877 = vst [vmem:[%s3 + $0x24] sm:$0xf] %v851
  %878 = vst [vmem:[%s3 + $0x28] sm:$0xf] %v852
  %879 = vst [vmem:[%s3 + $0x2c] sm:$0xf] %v853
  %880 = vst [vmem:[%s3 + $0x30] sm:$0x1] %v854
  // Predicated region
  $region14: #{ppo_forward.6} parent=0 // pred_check
    _
  $region15: #{ppo_forward.6} parent=0 // pred_check_branch
    %882 = sbr.rel (0) target = $region17
  $region16: #{ppo_forward.6} parent=0 // pred_region
    _
  $region17: #{ppo_forward.6} parent=0 // pred_fallthru
    _
  // Predicated region
  $region18: #{ppo_forward.6} parent=0 // pred_check
    _
  $region19: #{ppo_forward.6} parent=0 // pred_check_branch
    %884 = sbr.rel (0) target = $region21
  $region20: #{ppo_forward.6} parent=0 // pred_region
    _
  $region21: #{ppo_forward.6} parent=0 // pred_fallthru
    _

// kernel: ppo_forward.7
$region0: #{ppo_forward.7}
  #allocation0 [shape = 'u32[]', space=smem, size = 0x4, offset = 0x4, fixed_abs, tag = 'smem constant byte address 0x4 - core index']
  #allocation1 [shape = 'u32[144,128]{1,0:T(1,128)}', space=vmem, size = 0x12000, scoped, tag = 'internal scratch']
  %s0 = inlined_call_operand.vmem [shape: bf16[2,6272], index: 0, kind: input, shape index: {}]
  %s1 = inlined_call_operand.vmem [shape: bf16[6272,128], index: 1, kind: input, shape index: {}]
  %s2 = inlined_call_operand.vmem [shape: f32[1,128], index: 2, kind: input, shape index: {}]
  %s3 = inlined_call_operand.vmem [shape: bf16[128,128], index: 3, kind: input, shape index: {}]
  %s4 = inlined_call_operand.vmem [shape: f32[1,128], index: 4, kind: input, shape index: {}]
  %s5 = inlined_call_operand.vmem [shape: f32[2,128], index: 5, kind: output, shape index: {}]
  %s6 = sld [smem:[#allocation0]]
  $region30: #{ppo_forward.7} parent=0
    _
  %s8 = ssub.s32 1, %s6
  %s9 = scalar_select 0, %s8, %s6
  // Predicated region
  $region2: #{ppo_forward.7} parent=0 // pred_check
    _
  $region3: #{ppo_forward.7} parent=0 // pred_check_branch
    %11 = sbr.rel (0) target = $region5
  $region4: #{ppo_forward.7} parent=0 // pred_region
    _
  $region5: #{ppo_forward.7} parent=0 // pred_fallthru
    _
  // Predicated region
  $region6: #{ppo_forward.7} parent=0 // pred_check
    _
  $region7: #{ppo_forward.7} parent=0 // pred_check_branch
    %13 = sbr.rel (0) target = $region9
  $region8: #{ppo_forward.7} parent=0 // pred_region
    _
  $region9: #{ppo_forward.7} parent=0 // pred_fallthru
    _
  // Predicated region
  $region10: #{ppo_forward.7} parent=0 // pred_check
    _
  $region11: #{ppo_forward.7} parent=0 // pred_check_branch
    %15 = sbr.rel (0) target = $region13
  $region12: #{ppo_forward.7} parent=0 // pred_region
    _
  $region13: #{ppo_forward.7} parent=0 // pred_fallthru
    _
  // Predicated region
  $region14: #{ppo_forward.7} parent=0 // pred_check
    _
  $region15: #{ppo_forward.7} parent=0 // pred_check_branch
    %17 = sbr.rel (0) target = $region17
  $region16: #{ppo_forward.7} parent=0 // pred_region
    _
  $region17: #{ppo_forward.7} parent=0 // pred_fallthru
    _
  // Predicated region
  $region18: #{ppo_forward.7} parent=0 // pred_check
    _
  $region19: #{ppo_forward.7} parent=0 // pred_check_branch
    %19 = sbr.rel (0) target = $region21
  $region20: #{ppo_forward.7} parent=0 // pred_region
    _
  $region21: #{ppo_forward.7} parent=0 // pred_fallthru
    _
  %v21 = vld [vmem:[%s0] sm:$0xff]
  %v22 = vld [vmem:[%s0 + $0x8] sm:$0xff]
  %v23 = vld [vmem:[%s0 + $0x10] sm:$0xff]
  %v24 = vld [vmem:[%s0 + $0x18] sm:$0xff]
  %v25 = vld [vmem:[%s0 + $0x20] sm:$0xff]
  %v26 = vld [vmem:[%s0 + $0x28] sm:$0xff]
  %v27 = vld [vmem:[%s0 + $0x30] sm:$0x1]
  %v28 = vld [vmem:[%s1] sm:$0xf]
  %v29 = vld [vmem:[%s1 + $0x4] sm:$0xf]
  %v30 = vld [vmem:[%s1 + $0x8] sm:$0xf]
  %v31 = vld [vmem:[%s1 + $0xc] sm:$0xf]
  %v32 = vld [vmem:[%s1 + $0x10] sm:$0xf]
  %v33 = vld [vmem:[%s1 + $0x14] sm:$0xf]
  %v34 = vld [vmem:[%s1 + $0x18] sm:$0xf]
  %v35 = vld [vmem:[%s1 + $0x1c] sm:$0xf]
  %v36 = vld [vmem:[%s1 + $0x20] sm:$0xf]
  %v37 = vld [vmem:[%s1 + $0x24] sm:$0xf]
  %v38 = vld [vmem:[%s1 + $0x28] sm:$0xf]
  %v39 = vld [vmem:[%s1 + $0x2c] sm:$0xf]
  %v40 = vld [vmem:[%s1 + $0x30] sm:$0xf]
  %v41 = vld [vmem:[%s1 + $0x34] sm:$0xf]
  %v42 = vld [vmem:[%s1 + $0x38] sm:$0xf]
  %v43 = vld [vmem:[%s1 + $0x3c] sm:$0xf]
  %v44 = vld [vmem:[%s1 + $0x40] sm:$0xf]
  %v45 = vld [vmem:[%s1 + $0x44] sm:$0xf]
  %v46 = vld [vmem:[%s1 + $0x48] sm:$0xf]
  %v47 = vld [vmem:[%s1 + $0x4c] sm:$0xf]
  %v48 = vld [vmem:[%s1 + $0x50] sm:$0xf]
  %v49 = vld [vmem:[%s1 + $0x54] sm:$0xf]
  %v50 = vld [vmem:[%s1 + $0x58] sm:$0xf]
  %v51 = vld [vmem:[%s1 + $0x5c] sm:$0xf]
  %v52 = vld [vmem:[%s1 + $0x60] sm:$0xf]
  %v53 = vld [vmem:[%s1 + $0x64] sm:$0xf]
  %v54 = vld [vmem:[%s1 + $0x68] sm:$0xf]
  %v55 = vld [vmem:[%s1 + $0x6c] sm:$0xf]
  %v56 = vld [vmem:[%s1 + $0x70] sm:$0xf]
  %v57 = vld [vmem:[%s1 + $0x74] sm:$0xf]
  %v58 = vld [vmem:[%s1 + $0x78] sm:$0xf]
  %v59 = vld [vmem:[%s1 + $0x7c] sm:$0xf]
  %v60 = vld [vmem:[%s1 + $0x80] sm:$0xf]
  %v61 = vld [vmem:[%s1 + $0x84] sm:$0xf]
  %v62 = vld [vmem:[%s1 + $0x88] sm:$0xf]
  %v63 = vld [vmem:[%s1 + $0x8c] sm:$0xf]
  %v64 = vld [vmem:[%s1 + $0x90] sm:$0xf]
  %v65 = vld [vmem:[%s1 + $0x94] sm:$0xf]
  %v66 = vld [vmem:[%s1 + $0x98] sm:$0xf]
  %v67 = vld [vmem:[%s1 + $0x9c] sm:$0xf]
  %v68 = vld [vmem:[%s1 + $0xa0] sm:$0xf]
  %v69 = vld [vmem:[%s1 + $0xa4] sm:$0xf]
  %v70 = vld [vmem:[%s1 + $0xa8] sm:$0xf]
  %v71 = vld [vmem:[%s1 + $0xac] sm:$0xf]
  %v72 = vld [vmem:[%s1 + $0xb0] sm:$0xf]
  %v73 = vld [vmem:[%s1 + $0xb4] sm:$0xf]
  %v74 = vld [vmem:[%s1 + $0xb8] sm:$0xf]
  %v75 = vld [vmem:[%s1 + $0xbc] sm:$0xf]
  %v76 = vld [vmem:[%s1 + $0xc0] sm:$0xf]
  %v77 = vld [vmem:[%s1 + $0xc4] sm:$0xf]
  %v78 = vld [vmem:[%s1 + $0xc8] sm:$0xf]
  %v79 = vld [vmem:[%s1 + $0xcc] sm:$0xf]
  %v80 = vld [vmem:[%s1 + $0xd0] sm:$0xf]
  %v81 = vld [vmem:[%s1 + $0xd4] sm:$0xf]
  %v82 = vld [vmem:[%s1 + $0xd8] sm:$0xf]
  %v83 = vld [vmem:[%s1 + $0xdc] sm:$0xf]
  %v84 = vld [vmem:[%s1 + $0xe0] sm:$0xf]
  %v85 = vld [vmem:[%s1 + $0xe4] sm:$0xf]
  %v86 = vld [vmem:[%s1 + $0xe8] sm:$0xf]
  %v87 = vld [vmem:[%s1 + $0xec] sm:$0xf]
  %v88 = vld [vmem:[%s1 + $0xf0] sm:$0xf]
  %v89 = vld [vmem:[%s1 + $0xf4] sm:$0xf]
  %v90 = vld [vmem:[%s1 + $0xf8] sm:$0xf]
  %v91 = vld [vmem:[%s1 + $0xfc] sm:$0xf]
  %v92 = vld [vmem:[%s1 + $0x100] sm:$0xf]
  %v93 = vld [vmem:[%s1 + $0x104] sm:$0xf]
  %v94 = vld [vmem:[%s1 + $0x108] sm:$0xf]
  %v95 = vld [vmem:[%s1 + $0x10c] sm:$0xf]
  %v96 = vld [vmem:[%s1 + $0x110] sm:$0xf]
  %v97 = vld [vmem:[%s1 + $0x114] sm:$0xf]
  %v98 = vld [vmem:[%s1 + $0x118] sm:$0xf]
  %v99 = vld [vmem:[%s1 + $0x11c] sm:$0xf]
  %v100 = vld [vmem:[%s1 + $0x120] sm:$0xf]
  %v101 = vld [vmem:[%s1 + $0x124] sm:$0xf]
  %v102 = vld [vmem:[%s1 + $0x128] sm:$0xf]
  %v103 = vld [vmem:[%s1 + $0x12c] sm:$0xf]
  %v104 = vld [vmem:[%s1 + $0x130] sm:$0xf]
  %v105 = vld [vmem:[%s1 + $0x134] sm:$0xf]
  %v106 = vld [vmem:[%s1 + $0x138] sm:$0xf]
  %v107 = vld [vmem:[%s1 + $0x13c] sm:$0xf]
  %v108 = vld [vmem:[%s1 + $0x140] sm:$0xf]
  %v109 = vld [vmem:[%s1 + $0x144] sm:$0xf]
  %v110 = vld [vmem:[%s1 + $0x148] sm:$0xf]
  %v111 = vld [vmem:[%s1 + $0x14c] sm:$0xf]
  %v112 = vld [vmem:[%s1 + $0x150] sm:$0xf]
  %v113 = vld [vmem:[%s1 + $0x154] sm:$0xf]
  %v114 = vld [vmem:[%s1 + $0x158] sm:$0xf]
  %v115 = vld [vmem:[%s1 + $0x15c] sm:$0xf]
  %v116 = vld [vmem:[%s1 + $0x160] sm:$0xf]
  %v117 = vld [vmem:[%s1 + $0x164] sm:$0xf]
  %v118 = vld [vmem:[%s1 + $0x168] sm:$0xf]
  %v119 = vld [vmem:[%s1 + $0x16c] sm:$0xf]
  %v120 = vld [vmem:[%s1 + $0x170] sm:$0xf]
  %v121 = vld [vmem:[%s1 + $0x174] sm:$0xf]
  %v122 = vld [vmem:[%s1 + $0x178] sm:$0xf]
  %v123 = vld [vmem:[%s1 + $0x17c] sm:$0xf]
  %v124 = vld [vmem:[%s1 + $0x180] sm:$0xf]
  %v125 = vld [vmem:[%s1 + $0x184] sm:$0xf]
  %v126 = vld [vmem:[%s1 + $0x188] sm:$0xf]
  %v127 = vld [vmem:[%s1 + $0x18c] sm:$0xf]
  %v128 = vld [vmem:[%s1 + $0x190] sm:$0xf]
  %v129 = vld [vmem:[%s1 + $0x194] sm:$0xf]
  %v130 = vld [vmem:[%s1 + $0x198] sm:$0xf]
  %v131 = vld [vmem:[%s1 + $0x19c] sm:$0xf]
  %v132 = vld [vmem:[%s1 + $0x1a0] sm:$0xf]
  %v133 = vld [vmem:[%s1 + $0x1a4] sm:$0xf]
  %v134 = vld [vmem:[%s1 + $0x1a8] sm:$0xf]
  %v135 = vld [vmem:[%s1 + $0x1ac] sm:$0xf]
  %v136 = vld [vmem:[%s1 + $0x1b0] sm:$0xf]
  %v137 = vld [vmem:[%s1 + $0x1b4] sm:$0xf]
  %v138 = vld [vmem:[%s1 + $0x1b8] sm:$0xf]
  %v139 = vld [vmem:[%s1 + $0x1bc] sm:$0xf]
  %v140 = vld [vmem:[%s1 + $0x1c0] sm:$0xf]
  %v141 = vld [vmem:[%s1 + $0x1c4] sm:$0xf]
  %v142 = vld [vmem:[%s1 + $0x1c8] sm:$0xf]
  %v143 = vld [vmem:[%s1 + $0x1cc] sm:$0xf]
  %v144 = vld [vmem:[%s1 + $0x1d0] sm:$0xf]
  %v145 = vld [vmem:[%s1 + $0x1d4] sm:$0xf]
  %v146 = vld [vmem:[%s1 + $0x1d8] sm:$0xf]
  %v147 = vld [vmem:[%s1 + $0x1dc] sm:$0xf]
  %v148 = vld [vmem:[%s1 + $0x1e0] sm:$0xf]
  %v149 = vld [vmem:[%s1 + $0x1e4] sm:$0xf]
  %v150 = vld [vmem:[%s1 + $0x1e8] sm:$0xf]
  %v151 = vld [vmem:[%s1 + $0x1ec] sm:$0xf]
  %v152 = vld [vmem:[%s1 + $0x1f0] sm:$0xf]
  %v153 = vld [vmem:[%s1 + $0x1f4] sm:$0xf]
  %v154 = vld [vmem:[%s1 + $0x1f8] sm:$0xf]
  %v155 = vld [vmem:[%s1 + $0x1fc] sm:$0xf]
  %v156 = vld [vmem:[%s1 + $0x200] sm:$0xf]
  %v157 = vld [vmem:[%s1 + $0x204] sm:$0xf]
  %v158 = vld [vmem:[%s1 + $0x208] sm:$0xf]
  %v159 = vld [vmem:[%s1 + $0x20c] sm:$0xf]
  %v160 = vld [vmem:[%s1 + $0x210] sm:$0xf]
  %v161 = vld [vmem:[%s1 + $0x214] sm:$0xf]
  %v162 = vld [vmem:[%s1 + $0x218] sm:$0xf]
  %v163 = vld [vmem:[%s1 + $0x21c] sm:$0xf]
  %v164 = vld [vmem:[%s1 + $0x220] sm:$0xf]
  %v165 = vld [vmem:[%s1 + $0x224] sm:$0xf]
  %v166 = vld [vmem:[%s1 + $0x228] sm:$0xf]
  %v167 = vld [vmem:[%s1 + $0x22c] sm:$0xf]
  %v168 = vld [vmem:[%s1 + $0x230] sm:$0xf]
  %v169 = vld [vmem:[%s1 + $0x234] sm:$0xf]
  %v170 = vld [vmem:[%s1 + $0x238] sm:$0xf]
  %v171 = vld [vmem:[%s1 + $0x23c] sm:$0xf]
  %v172 = vld [vmem:[%s1 + $0x240] sm:$0xf]
  %v173 = vld [vmem:[%s1 + $0x244] sm:$0xf]
  %v174 = vld [vmem:[%s1 + $0x248] sm:$0xf]
  %v175 = vld [vmem:[%s1 + $0x24c] sm:$0xf]
  %v176 = vld [vmem:[%s1 + $0x250] sm:$0xf]
  %v177 = vld [vmem:[%s1 + $0x254] sm:$0xf]
  %v178 = vld [vmem:[%s1 + $0x258] sm:$0xf]
  %v179 = vld [vmem:[%s1 + $0x25c] sm:$0xf]
  %v180 = vld [vmem:[%s1 + $0x260] sm:$0xf]
  %v181 = vld [vmem:[%s1 + $0x264] sm:$0xf]
  %v182 = vld [vmem:[%s1 + $0x268] sm:$0xf]
  %v183 = vld [vmem:[%s1 + $0x26c] sm:$0xf]
  %v184 = vld [vmem:[%s1 + $0x270] sm:$0xf]
  %v185 = vld [vmem:[%s1 + $0x274] sm:$0xf]
  %v186 = vld [vmem:[%s1 + $0x278] sm:$0xf]
  %v187 = vld [vmem:[%s1 + $0x27c] sm:$0xf]
  %v188 = vld [vmem:[%s1 + $0x280] sm:$0xf]
  %v189 = vld [vmem:[%s1 + $0x284] sm:$0xf]
  %v190 = vld [vmem:[%s1 + $0x288] sm:$0xf]
  %v191 = vld [vmem:[%s1 + $0x28c] sm:$0xf]
  %v192 = vld [vmem:[%s1 + $0x290] sm:$0xf]
  %v193 = vld [vmem:[%s1 + $0x294] sm:$0xf]
  %v194 = vld [vmem:[%s1 + $0x298] sm:$0xf]
  %v195 = vld [vmem:[%s1 + $0x29c] sm:$0xf]
  %v196 = vld [vmem:[%s1 + $0x2a0] sm:$0xf]
  %v197 = vld [vmem:[%s1 + $0x2a4] sm:$0xf]
  %v198 = vld [vmem:[%s1 + $0x2a8] sm:$0xf]
  %v199 = vld [vmem:[%s1 + $0x2ac] sm:$0xf]
  %v200 = vld [vmem:[%s1 + $0x2b0] sm:$0xf]
  %v201 = vld [vmem:[%s1 + $0x2b4] sm:$0xf]
  %v202 = vld [vmem:[%s1 + $0x2b8] sm:$0xf]
  %v203 = vld [vmem:[%s1 + $0x2bc] sm:$0xf]
  %v204 = vld [vmem:[%s1 + $0x2c0] sm:$0xf]
  %v205 = vld [vmem:[%s1 + $0x2c4] sm:$0xf]
  %v206 = vld [vmem:[%s1 + $0x2c8] sm:$0xf]
  %v207 = vld [vmem:[%s1 + $0x2cc] sm:$0xf]
  %v208 = vld [vmem:[%s1 + $0x2d0] sm:$0xf]
  %v209 = vld [vmem:[%s1 + $0x2d4] sm:$0xf]
  %v210 = vld [vmem:[%s1 + $0x2d8] sm:$0xf]
  %v211 = vld [vmem:[%s1 + $0x2dc] sm:$0xf]
  %v212 = vld [vmem:[%s1 + $0x2e0] sm:$0xf]
  %v213 = vld [vmem:[%s1 + $0x2e4] sm:$0xf]
  %v214 = vld [vmem:[%s1 + $0x2e8] sm:$0xf]
  %v215 = vld [vmem:[%s1 + $0x2ec] sm:$0xf]
  %v216 = vld [vmem:[%s1 + $0x2f0] sm:$0xf]
  %v217 = vld [vmem:[%s1 + $0x2f4] sm:$0xf]
  %v218 = vld [vmem:[%s1 + $0x2f8] sm:$0xf]
  %v219 = vld [vmem:[%s1 + $0x2fc] sm:$0xf]
  %v220 = vld [vmem:[%s1 + $0x300] sm:$0xf]
  %v221 = vld [vmem:[%s1 + $0x304] sm:$0xf]
  %v222 = vld [vmem:[%s1 + $0x308] sm:$0xf]
  %v223 = vld [vmem:[%s1 + $0x30c] sm:$0xf]
  %v224 = vld [vmem:[%s1 + $0x310] sm:$0xf]
  %v225 = vld [vmem:[%s1 + $0x314] sm:$0xf]
  %v226 = vld [vmem:[%s1 + $0x318] sm:$0xf]
  %v227 = vld [vmem:[%s1 + $0x31c] sm:$0xf]
  %v228 = vld [vmem:[%s1 + $0x320] sm:$0xf]
  %v229 = vld [vmem:[%s1 + $0x324] sm:$0xf]
  %v230 = vld [vmem:[%s1 + $0x328] sm:$0xf]
  %v231 = vld [vmem:[%s1 + $0x32c] sm:$0xf]
  %v232 = vld [vmem:[%s1 + $0x330] sm:$0xf]
  %v233 = vld [vmem:[%s1 + $0x334] sm:$0xf]
  %v234 = vld [vmem:[%s1 + $0x338] sm:$0xf]
  %v235 = vld [vmem:[%s1 + $0x33c] sm:$0xf]
  %v236 = vld [vmem:[%s1 + $0x340] sm:$0xf]
  %v237 = vld [vmem:[%s1 + $0x344] sm:$0xf]
  %v238 = vld [vmem:[%s1 + $0x348] sm:$0xf]
  %v239 = vld [vmem:[%s1 + $0x34c] sm:$0xf]
  %v240 = vld [vmem:[%s1 + $0x350] sm:$0xf]
  %v241 = vld [vmem:[%s1 + $0x354] sm:$0xf]
  %v242 = vld [vmem:[%s1 + $0x358] sm:$0xf]
  %v243 = vld [vmem:[%s1 + $0x35c] sm:$0xf]
  %v244 = vld [vmem:[%s1 + $0x360] sm:$0xf]
  %v245 = vld [vmem:[%s1 + $0x364] sm:$0xf]
  %v246 = vld [vmem:[%s1 + $0x368] sm:$0xf]
  %v247 = vld [vmem:[%s1 + $0x36c] sm:$0xf]
  %v248 = vld [vmem:[%s1 + $0x370] sm:$0xf]
  %v249 = vld [vmem:[%s1 + $0x374] sm:$0xf]
  %v250 = vld [vmem:[%s1 + $0x378] sm:$0xf]
  %v251 = vld [vmem:[%s1 + $0x37c] sm:$0xf]
  %v252 = vld [vmem:[%s1 + $0x380] sm:$0xf]
  %v253 = vld [vmem:[%s1 + $0x384] sm:$0xf]
  %v254 = vld [vmem:[%s1 + $0x388] sm:$0xf]
  %v255 = vld [vmem:[%s1 + $0x38c] sm:$0xf]
  %v256 = vld [vmem:[%s1 + $0x390] sm:$0xf]
  %v257 = vld [vmem:[%s1 + $0x394] sm:$0xf]
  %v258 = vld [vmem:[%s1 + $0x398] sm:$0xf]
  %v259 = vld [vmem:[%s1 + $0x39c] sm:$0xf]
  %v260 = vld [vmem:[%s1 + $0x3a0] sm:$0xf]
  %v261 = vld [vmem:[%s1 + $0x3a4] sm:$0xf]
  %v262 = vld [vmem:[%s1 + $0x3a8] sm:$0xf]
  %v263 = vld [vmem:[%s1 + $0x3ac] sm:$0xf]
  %v264 = vld [vmem:[%s1 + $0x3b0] sm:$0xf]
  %v265 = vld [vmem:[%s1 + $0x3b4] sm:$0xf]
  %v266 = vld [vmem:[%s1 + $0x3b8] sm:$0xf]
  %v267 = vld [vmem:[%s1 + $0x3bc] sm:$0xf]
  %v268 = vld [vmem:[%s1 + $0x3c0] sm:$0xf]
  %v269 = vld [vmem:[%s1 + $0x3c4] sm:$0xf]
  %v270 = vld [vmem:[%s1 + $0x3c8] sm:$0xf]
  %v271 = vld [vmem:[%s1 + $0x3cc] sm:$0xf]
  %v272 = vld [vmem:[%s1 + $0x3d0] sm:$0xf]
  %v273 = vld [vmem:[%s1 + $0x3d4] sm:$0xf]
  %v274 = vld [vmem:[%s1 + $0x3d8] sm:$0xf]
  %v275 = vld [vmem:[%s1 + $0x3dc] sm:$0xf]
  %v276 = vld [vmem:[%s1 + $0x3e0] sm:$0xf]
  %v277 = vld [vmem:[%s1 + $0x3e4] sm:$0xf]
  %v278 = vld [vmem:[%s1 + $0x3e8] sm:$0xf]
  %v279 = vld [vmem:[%s1 + $0x3ec] sm:$0xf]
  %v280 = vld [vmem:[%s1 + $0x3f0] sm:$0xf]
  %v281 = vld [vmem:[%s1 + $0x3f4] sm:$0xf]
  %v282 = vld [vmem:[%s1 + $0x3f8] sm:$0xf]
  %v283 = vld [vmem:[%s1 + $0x3fc] sm:$0xf]
  %v284 = vld [vmem:[%s1 + $0x400] sm:$0xf]
  %v285 = vld [vmem:[%s1 + $0x404] sm:$0xf]
  %v286 = vld [vmem:[%s1 + $0x408] sm:$0xf]
  %v287 = vld [vmem:[%s1 + $0x40c] sm:$0xf]
  %v288 = vld [vmem:[%s1 + $0x410] sm:$0xf]
  %v289 = vld [vmem:[%s1 + $0x414] sm:$0xf]
  %v290 = vld [vmem:[%s1 + $0x418] sm:$0xf]
  %v291 = vld [vmem:[%s1 + $0x41c] sm:$0xf]
  %v292 = vld [vmem:[%s1 + $0x420] sm:$0xf]
  %v293 = vld [vmem:[%s1 + $0x424] sm:$0xf]
  %v294 = vld [vmem:[%s1 + $0x428] sm:$0xf]
  %v295 = vld [vmem:[%s1 + $0x42c] sm:$0xf]
  %v296 = vld [vmem:[%s1 + $0x430] sm:$0xf]
  %v297 = vld [vmem:[%s1 + $0x434] sm:$0xf]
  %v298 = vld [vmem:[%s1 + $0x438] sm:$0xf]
  %v299 = vld [vmem:[%s1 + $0x43c] sm:$0xf]
  %v300 = vld [vmem:[%s1 + $0x440] sm:$0xf]
  %v301 = vld [vmem:[%s1 + $0x444] sm:$0xf]
  %v302 = vld [vmem:[%s1 + $0x448] sm:$0xf]
  %v303 = vld [vmem:[%s1 + $0x44c] sm:$0xf]
  %v304 = vld [vmem:[%s1 + $0x450] sm:$0xf]
  %v305 = vld [vmem:[%s1 + $0x454] sm:$0xf]
  %v306 = vld [vmem:[%s1 + $0x458] sm:$0xf]
  %v307 = vld [vmem:[%s1 + $0x45c] sm:$0xf]
  %v308 = vld [vmem:[%s1 + $0x460] sm:$0xf]
  %v309 = vld [vmem:[%s1 + $0x464] sm:$0xf]
  %v310 = vld [vmem:[%s1 + $0x468] sm:$0xf]
  %v311 = vld [vmem:[%s1 + $0x46c] sm:$0xf]
  %v312 = vld [vmem:[%s1 + $0x470] sm:$0xf]
  %v313 = vld [vmem:[%s1 + $0x474] sm:$0xf]
  %v314 = vld [vmem:[%s1 + $0x478] sm:$0xf]
  %v315 = vld [vmem:[%s1 + $0x47c] sm:$0xf]
  %v316 = vld [vmem:[%s1 + $0x480] sm:$0xf]
  %v317 = vld [vmem:[%s1 + $0x484] sm:$0xf]
  %v318 = vld [vmem:[%s1 + $0x488] sm:$0xf]
  %v319 = vld [vmem:[%s1 + $0x48c] sm:$0xf]
  %v320 = vld [vmem:[%s1 + $0x490] sm:$0xf]
  %v321 = vld [vmem:[%s1 + $0x494] sm:$0xf]
  %v322 = vld [vmem:[%s1 + $0x498] sm:$0xf]
  %v323 = vld [vmem:[%s1 + $0x49c] sm:$0xf]
  %v324 = vld [vmem:[%s1 + $0x4a0] sm:$0xf]
  %v325 = vld [vmem:[%s1 + $0x4a4] sm:$0xf]
  %v326 = vld [vmem:[%s1 + $0x4a8] sm:$0xf]
  %v327 = vld [vmem:[%s1 + $0x4ac] sm:$0xf]
  %v328 = vld [vmem:[%s1 + $0x4b0] sm:$0xf]
  %v329 = vld [vmem:[%s1 + $0x4b4] sm:$0xf]
  %v330 = vld [vmem:[%s1 + $0x4b8] sm:$0xf]
  %v331 = vld [vmem:[%s1 + $0x4bc] sm:$0xf]
  %v332 = vld [vmem:[%s1 + $0x4c0] sm:$0xf]
  %v333 = vld [vmem:[%s1 + $0x4c4] sm:$0xf]
  %v334 = vld [vmem:[%s1 + $0x4c8] sm:$0xf]
  %v335 = vld [vmem:[%s1 + $0x4cc] sm:$0xf]
  %v336 = vld [vmem:[%s1 + $0x4d0] sm:$0xf]
  %v337 = vld [vmem:[%s1 + $0x4d4] sm:$0xf]
  %v338 = vld [vmem:[%s1 + $0x4d8] sm:$0xf]
  %v339 = vld [vmem:[%s1 + $0x4dc] sm:$0xf]
  %v340 = vld [vmem:[%s1 + $0x4e0] sm:$0xf]
  %v341 = vld [vmem:[%s1 + $0x4e4] sm:$0xf]
  %v342 = vld [vmem:[%s1 + $0x4e8] sm:$0xf]
  %v343 = vld [vmem:[%s1 + $0x4ec] sm:$0xf]
  %v344 = vld [vmem:[%s1 + $0x4f0] sm:$0xf]
  %v345 = vld [vmem:[%s1 + $0x4f4] sm:$0xf]
  %v346 = vld [vmem:[%s1 + $0x4f8] sm:$0xf]
  %v347 = vld [vmem:[%s1 + $0x4fc] sm:$0xf]
  %v348 = vld [vmem:[%s1 + $0x500] sm:$0xf]
  %v349 = vld [vmem:[%s1 + $0x504] sm:$0xf]
  %v350 = vld [vmem:[%s1 + $0x508] sm:$0xf]
  %v351 = vld [vmem:[%s1 + $0x50c] sm:$0xf]
  %v352 = vld [vmem:[%s1 + $0x510] sm:$0xf]
  %v353 = vld [vmem:[%s1 + $0x514] sm:$0xf]
  %v354 = vld [vmem:[%s1 + $0x518] sm:$0xf]
  %v355 = vld [vmem:[%s1 + $0x51c] sm:$0xf]
  %v356 = vld [vmem:[%s1 + $0x520] sm:$0xf]
  %v357 = vld [vmem:[%s1 + $0x524] sm:$0xf]
  %v358 = vld [vmem:[%s1 + $0x528] sm:$0xf]
  %v359 = vld [vmem:[%s1 + $0x52c] sm:$0xf]
  %v360 = vld [vmem:[%s1 + $0x530] sm:$0xf]
  %v361 = vld [vmem:[%s1 + $0x534] sm:$0xf]
  %v362 = vld [vmem:[%s1 + $0x538] sm:$0xf]
  %v363 = vld [vmem:[%s1 + $0x53c] sm:$0xf]
  %v364 = vld [vmem:[%s1 + $0x540] sm:$0xf]
  %v365 = vld [vmem:[%s1 + $0x544] sm:$0xf]
  %v366 = vld [vmem:[%s1 + $0x548] sm:$0xf]
  %v367 = vld [vmem:[%s1 + $0x54c] sm:$0xf]
  %v368 = vld [vmem:[%s1 + $0x550] sm:$0xf]
  %v369 = vld [vmem:[%s1 + $0x554] sm:$0xf]
  %v370 = vld [vmem:[%s1 + $0x558] sm:$0xf]
  %v371 = vld [vmem:[%s1 + $0x55c] sm:$0xf]
  %v372 = vld [vmem:[%s1 + $0x560] sm:$0xf]
  %v373 = vld [vmem:[%s1 + $0x564] sm:$0xf]
  %v374 = vld [vmem:[%s1 + $0x568] sm:$0xf]
  %v375 = vld [vmem:[%s1 + $0x56c] sm:$0xf]
  %v376 = vld [vmem:[%s1 + $0x570] sm:$0xf]
  %v377 = vld [vmem:[%s1 + $0x574] sm:$0xf]
  %v378 = vld [vmem:[%s1 + $0x578] sm:$0xf]
  %v379 = vld [vmem:[%s1 + $0x57c] sm:$0xf]
  %v380 = vld [vmem:[%s1 + $0x580] sm:$0xf]
  %v381 = vld [vmem:[%s1 + $0x584] sm:$0xf]
  %v382 = vld [vmem:[%s1 + $0x588] sm:$0xf]
  %v383 = vld [vmem:[%s1 + $0x58c] sm:$0xf]
  %v384 = vld [vmem:[%s1 + $0x590] sm:$0xf]
  %v385 = vld [vmem:[%s1 + $0x594] sm:$0xf]
  %v386 = vld [vmem:[%s1 + $0x598] sm:$0xf]
  %v387 = vld [vmem:[%s1 + $0x59c] sm:$0xf]
  %v388 = vld [vmem:[%s1 + $0x5a0] sm:$0xf]
  %v389 = vld [vmem:[%s1 + $0x5a4] sm:$0xf]
  %v390 = vld [vmem:[%s1 + $0x5a8] sm:$0xf]
  %v391 = vld [vmem:[%s1 + $0x5ac] sm:$0xf]
  %v392 = vld [vmem:[%s1 + $0x5b0] sm:$0xf]
  %v393 = vld [vmem:[%s1 + $0x5b4] sm:$0xf]
  %v394 = vld [vmem:[%s1 + $0x5b8] sm:$0xf]
  %v395 = vld [vmem:[%s1 + $0x5bc] sm:$0xf]
  %v396 = vld [vmem:[%s1 + $0x5c0] sm:$0xf]
  %v397 = vld [vmem:[%s1 + $0x5c4] sm:$0xf]
  %v398 = vld [vmem:[%s1 + $0x5c8] sm:$0xf]
  %v399 = vld [vmem:[%s1 + $0x5cc] sm:$0xf]
  %v400 = vld [vmem:[%s1 + $0x5d0] sm:$0xf]
  %v401 = vld [vmem:[%s1 + $0x5d4] sm:$0xf]
  %v402 = vld [vmem:[%s1 + $0x5d8] sm:$0xf]
  %v403 = vld [vmem:[%s1 + $0x5dc] sm:$0xf]
  %v404 = vld [vmem:[%s1 + $0x5e0] sm:$0xf]
  %v405 = vld [vmem:[%s1 + $0x5e4] sm:$0xf]
  %v406 = vld [vmem:[%s1 + $0x5e8] sm:$0xf]
  %v407 = vld [vmem:[%s1 + $0x5ec] sm:$0xf]
  %v408 = vld [vmem:[%s1 + $0x5f0] sm:$0xf]
  %v409 = vld [vmem:[%s1 + $0x5f4] sm:$0xf]
  %v410 = vld [vmem:[%s1 + $0x5f8] sm:$0xf]
  %v411 = vld [vmem:[%s1 + $0x5fc] sm:$0xf]
  %v412 = vld [vmem:[%s1 + $0x600] sm:$0xf]
  %v413 = vld [vmem:[%s1 + $0x604] sm:$0xf]
  %v414 = vld [vmem:[%s1 + $0x608] sm:$0xf]
  %v415 = vld [vmem:[%s1 + $0x60c] sm:$0xf]
  %v416 = vld [vmem:[%s1 + $0x610] sm:$0xf]
  %v417 = vld [vmem:[%s1 + $0x614] sm:$0xf]
  %v418 = vld [vmem:[%s1 + $0x618] sm:$0xf]
  %v419 = vld [vmem:[%s1 + $0x61c] sm:$0xf]
  %v420 = vld [vmem:[%s1 + $0x620] sm:$0xf]
  %v421 = vld [vmem:[%s1 + $0x624] sm:$0xf]
  %v422 = vld [vmem:[%s1 + $0x628] sm:$0xf]
  %v423 = vld [vmem:[%s1 + $0x62c] sm:$0xf]
  %v424 = vld [vmem:[%s1 + $0x630] sm:$0xf]
  %v425 = vld [vmem:[%s1 + $0x634] sm:$0xf]
  %v426 = vld [vmem:[%s1 + $0x638] sm:$0xf]
  %v427 = vld [vmem:[%s1 + $0x63c] sm:$0xf]
  %v428 = vld [vmem:[%s1 + $0x640] sm:$0xf]
  %v429 = vld [vmem:[%s1 + $0x644] sm:$0xf]
  %v430 = vld [vmem:[%s1 + $0x648] sm:$0xf]
  %v431 = vld [vmem:[%s1 + $0x64c] sm:$0xf]
  %v432 = vld [vmem:[%s1 + $0x650] sm:$0xf]
  %v433 = vld [vmem:[%s1 + $0x654] sm:$0xf]
  %v434 = vld [vmem:[%s1 + $0x658] sm:$0xf]
  %v435 = vld [vmem:[%s1 + $0x65c] sm:$0xf]
  %v436 = vld [vmem:[%s1 + $0x660] sm:$0xf]
  %v437 = vld [vmem:[%s1 + $0x664] sm:$0xf]
  %v438 = vld [vmem:[%s1 + $0x668] sm:$0xf]
  %v439 = vld [vmem:[%s1 + $0x66c] sm:$0xf]
  %v440 = vld [vmem:[%s1 + $0x670] sm:$0xf]
  %v441 = vld [vmem:[%s1 + $0x674] sm:$0xf]
  %v442 = vld [vmem:[%s1 + $0x678] sm:$0xf]
  %v443 = vld [vmem:[%s1 + $0x67c] sm:$0xf]
  %v444 = vld [vmem:[%s1 + $0x680] sm:$0xf]
  %v445 = vld [vmem:[%s1 + $0x684] sm:$0xf]
  %v446 = vld [vmem:[%s1 + $0x688] sm:$0xf]
  %v447 = vld [vmem:[%s1 + $0x68c] sm:$0xf]
  %v448 = vld [vmem:[%s1 + $0x690] sm:$0xf]
  %v449 = vld [vmem:[%s1 + $0x694] sm:$0xf]
  %v450 = vld [vmem:[%s1 + $0x698] sm:$0xf]
  %v451 = vld [vmem:[%s1 + $0x69c] sm:$0xf]
  %v452 = vld [vmem:[%s1 + $0x6a0] sm:$0xf]
  %v453 = vld [vmem:[%s1 + $0x6a4] sm:$0xf]
  %v454 = vld [vmem:[%s1 + $0x6a8] sm:$0xf]
  %v455 = vld [vmem:[%s1 + $0x6ac] sm:$0xf]
  %v456 = vld [vmem:[%s1 + $0x6b0] sm:$0xf]
  %v457 = vld [vmem:[%s1 + $0x6b4] sm:$0xf]
  %v458 = vld [vmem:[%s1 + $0x6b8] sm:$0xf]
  %v459 = vld [vmem:[%s1 + $0x6bc] sm:$0xf]
  %v460 = vld [vmem:[%s1 + $0x6c0] sm:$0xf]
  %v461 = vld [vmem:[%s1 + $0x6c4] sm:$0xf]
  %v462 = vld [vmem:[%s1 + $0x6c8] sm:$0xf]
  %v463 = vld [vmem:[%s1 + $0x6cc] sm:$0xf]
  %v464 = vld [vmem:[%s1 + $0x6d0] sm:$0xf]
  %v465 = vld [vmem:[%s1 + $0x6d4] sm:$0xf]
  %v466 = vld [vmem:[%s1 + $0x6d8] sm:$0xf]
  %v467 = vld [vmem:[%s1 + $0x6dc] sm:$0xf]
  %v468 = vld [vmem:[%s1 + $0x6e0] sm:$0xf]
  %v469 = vld [vmem:[%s1 + $0x6e4] sm:$0xf]
  %v470 = vld [vmem:[%s1 + $0x6e8] sm:$0xf]
  %v471 = vld [vmem:[%s1 + $0x6ec] sm:$0xf]
  %v472 = vld [vmem:[%s1 + $0x6f0] sm:$0xf]
  %v473 = vld [vmem:[%s1 + $0x6f4] sm:$0xf]
  %v474 = vld [vmem:[%s1 + $0x6f8] sm:$0xf]
  %v475 = vld [vmem:[%s1 + $0x6fc] sm:$0xf]
  %v476 = vld [vmem:[%s1 + $0x700] sm:$0xf]
  %v477 = vld [vmem:[%s1 + $0x704] sm:$0xf]
  %v478 = vld [vmem:[%s1 + $0x708] sm:$0xf]
  %v479 = vld [vmem:[%s1 + $0x70c] sm:$0xf]
  %v480 = vld [vmem:[%s1 + $0x710] sm:$0xf]
  %v481 = vld [vmem:[%s1 + $0x714] sm:$0xf]
  %v482 = vld [vmem:[%s1 + $0x718] sm:$0xf]
  %v483 = vld [vmem:[%s1 + $0x71c] sm:$0xf]
  %v484 = vld [vmem:[%s1 + $0x720] sm:$0xf]
  %v485 = vld [vmem:[%s1 + $0x724] sm:$0xf]
  %v486 = vld [vmem:[%s1 + $0x728] sm:$0xf]
  %v487 = vld [vmem:[%s1 + $0x72c] sm:$0xf]
  %v488 = vld [vmem:[%s1 + $0x730] sm:$0xf]
  %v489 = vld [vmem:[%s1 + $0x734] sm:$0xf]
  %v490 = vld [vmem:[%s1 + $0x738] sm:$0xf]
  %v491 = vld [vmem:[%s1 + $0x73c] sm:$0xf]
  %v492 = vld [vmem:[%s1 + $0x740] sm:$0xf]
  %v493 = vld [vmem:[%s1 + $0x744] sm:$0xf]
  %v494 = vld [vmem:[%s1 + $0x748] sm:$0xf]
  %v495 = vld [vmem:[%s1 + $0x74c] sm:$0xf]
  %v496 = vld [vmem:[%s1 + $0x750] sm:$0xf]
  %v497 = vld [vmem:[%s1 + $0x754] sm:$0xf]
  %v498 = vld [vmem:[%s1 + $0x758] sm:$0xf]
  %v499 = vld [vmem:[%s1 + $0x75c] sm:$0xf]
  %v500 = vld [vmem:[%s1 + $0x760] sm:$0xf]
  %v501 = vld [vmem:[%s1 + $0x764] sm:$0xf]
  %v502 = vld [vmem:[%s1 + $0x768] sm:$0xf]
  %v503 = vld [vmem:[%s1 + $0x76c] sm:$0xf]
  %v504 = vld [vmem:[%s1 + $0x770] sm:$0xf]
  %v505 = vld [vmem:[%s1 + $0x774] sm:$0xf]
  %v506 = vld [vmem:[%s1 + $0x778] sm:$0xf]
  %v507 = vld [vmem:[%s1 + $0x77c] sm:$0xf]
  %v508 = vld [vmem:[%s1 + $0x780] sm:$0xf]
  %v509 = vld [vmem:[%s1 + $0x784] sm:$0xf]
  %v510 = vld [vmem:[%s1 + $0x788] sm:$0xf]
  %v511 = vld [vmem:[%s1 + $0x78c] sm:$0xf]
  %v512 = vld [vmem:[%s1 + $0x790] sm:$0xf]
  %v513 = vld [vmem:[%s1 + $0x794] sm:$0xf]
  %v514 = vld [vmem:[%s1 + $0x798] sm:$0xf]
  %v515 = vld [vmem:[%s1 + $0x79c] sm:$0xf]
  %v516 = vld [vmem:[%s1 + $0x7a0] sm:$0xf]
  %v517 = vld [vmem:[%s1 + $0x7a4] sm:$0xf]
  %v518 = vld [vmem:[%s1 + $0x7a8] sm:$0xf]
  %v519 = vld [vmem:[%s1 + $0x7ac] sm:$0xf]
  %v520 = vld [vmem:[%s1 + $0x7b0] sm:$0xf]
  %v521 = vld [vmem:[%s1 + $0x7b4] sm:$0xf]
  %v522 = vld [vmem:[%s1 + $0x7b8] sm:$0xf]
  %v523 = vld [vmem:[%s1 + $0x7bc] sm:$0xf]
  %v524 = vld [vmem:[%s1 + $0x7c0] sm:$0xf]
  %v525 = vld [vmem:[%s1 + $0x7c4] sm:$0xf]
  %v526 = vld [vmem:[%s1 + $0x7c8] sm:$0xf]
  %v527 = vld [vmem:[%s1 + $0x7cc] sm:$0xf]
  %v528 = vld [vmem:[%s1 + $0x7d0] sm:$0xf]
  %v529 = vld [vmem:[%s1 + $0x7d4] sm:$0xf]
  %v530 = vld [vmem:[%s1 + $0x7d8] sm:$0xf]
  %v531 = vld [vmem:[%s1 + $0x7dc] sm:$0xf]
  %v532 = vld [vmem:[%s1 + $0x7e0] sm:$0xf]
  %v533 = vld [vmem:[%s1 + $0x7e4] sm:$0xf]
  %v534 = vld [vmem:[%s1 + $0x7e8] sm:$0xf]
  %v535 = vld [vmem:[%s1 + $0x7ec] sm:$0xf]
  %v536 = vld [vmem:[%s1 + $0x7f0] sm:$0xf]
  %v537 = vld [vmem:[%s1 + $0x7f4] sm:$0xf]
  %v538 = vld [vmem:[%s1 + $0x7f8] sm:$0xf]
  %v539 = vld [vmem:[%s1 + $0x7fc] sm:$0xf]
  %v540 = vld [vmem:[%s1 + $0x800] sm:$0xf]
  %v541 = vld [vmem:[%s1 + $0x804] sm:$0xf]
  %v542 = vld [vmem:[%s1 + $0x808] sm:$0xf]
  %v543 = vld [vmem:[%s1 + $0x80c] sm:$0xf]
  %v544 = vld [vmem:[%s1 + $0x810] sm:$0xf]
  %v545 = vld [vmem:[%s1 + $0x814] sm:$0xf]
  %v546 = vld [vmem:[%s1 + $0x818] sm:$0xf]
  %v547 = vld [vmem:[%s1 + $0x81c] sm:$0xf]
  %v548 = vld [vmem:[%s1 + $0x820] sm:$0xf]
  %v549 = vld [vmem:[%s1 + $0x824] sm:$0xf]
  %v550 = vld [vmem:[%s1 + $0x828] sm:$0xf]
  %v551 = vld [vmem:[%s1 + $0x82c] sm:$0xf]
  %v552 = vld [vmem:[%s1 + $0x830] sm:$0xf]
  %v553 = vld [vmem:[%s1 + $0x834] sm:$0xf]
  %v554 = vld [vmem:[%s1 + $0x838] sm:$0xf]
  %v555 = vld [vmem:[%s1 + $0x83c] sm:$0xf]
  %v556 = vld [vmem:[%s1 + $0x840] sm:$0xf]
  %v557 = vld [vmem:[%s1 + $0x844] sm:$0xf]
  %v558 = vld [vmem:[%s1 + $0x848] sm:$0xf]
  %v559 = vld [vmem:[%s1 + $0x84c] sm:$0xf]
  %v560 = vld [vmem:[%s1 + $0x850] sm:$0xf]
  %v561 = vld [vmem:[%s1 + $0x854] sm:$0xf]
  %v562 = vld [vmem:[%s1 + $0x858] sm:$0xf]
  %v563 = vld [vmem:[%s1 + $0x85c] sm:$0xf]
  %v564 = vld [vmem:[%s1 + $0x860] sm:$0xf]
  %v565 = vld [vmem:[%s1 + $0x864] sm:$0xf]
  %v566 = vld [vmem:[%s1 + $0x868] sm:$0xf]
  %v567 = vld [vmem:[%s1 + $0x86c] sm:$0xf]
  %v568 = vld [vmem:[%s1 + $0x870] sm:$0xf]
  %v569 = vld [vmem:[%s1 + $0x874] sm:$0xf]
  %v570 = vld [vmem:[%s1 + $0x878] sm:$0xf]
  %v571 = vld [vmem:[%s1 + $0x87c] sm:$0xf]
  %v572 = vld [vmem:[%s1 + $0x880] sm:$0xf]
  %v573 = vld [vmem:[%s1 + $0x884] sm:$0xf]
  %v574 = vld [vmem:[%s1 + $0x888] sm:$0xf]
  %v575 = vld [vmem:[%s1 + $0x88c] sm:$0xf]
  %v576 = vld [vmem:[%s1 + $0x890] sm:$0xf]
  %v577 = vld [vmem:[%s1 + $0x894] sm:$0xf]
  %v578 = vld [vmem:[%s1 + $0x898] sm:$0xf]
  %v579 = vld [vmem:[%s1 + $0x89c] sm:$0xf]
  %v580 = vld [vmem:[%s1 + $0x8a0] sm:$0xf]
  %v581 = vld [vmem:[%s1 + $0x8a4] sm:$0xf]
  %v582 = vld [vmem:[%s1 + $0x8a8] sm:$0xf]
  %v583 = vld [vmem:[%s1 + $0x8ac] sm:$0xf]
  %v584 = vld [vmem:[%s1 + $0x8b0] sm:$0xf]
  %v585 = vld [vmem:[%s1 + $0x8b4] sm:$0xf]
  %v586 = vld [vmem:[%s1 + $0x8b8] sm:$0xf]
  %v587 = vld [vmem:[%s1 + $0x8bc] sm:$0xf]
  %v588 = vld [vmem:[%s1 + $0x8c0] sm:$0xf]
  %v589 = vld [vmem:[%s1 + $0x8c4] sm:$0xf]
  %v590 = vld [vmem:[%s1 + $0x8c8] sm:$0xf]
  %v591 = vld [vmem:[%s1 + $0x8cc] sm:$0xf]
  %v592 = vld [vmem:[%s1 + $0x8d0] sm:$0xf]
  %v593 = vld [vmem:[%s1 + $0x8d4] sm:$0xf]
  %v594 = vld [vmem:[%s1 + $0x8d8] sm:$0xf]
  %v595 = vld [vmem:[%s1 + $0x8dc] sm:$0xf]
  %v596 = vld [vmem:[%s1 + $0x8e0] sm:$0xf]
  %v597 = vld [vmem:[%s1 + $0x8e4] sm:$0xf]
  %v598 = vld [vmem:[%s1 + $0x8e8] sm:$0xf]
  %v599 = vld [vmem:[%s1 + $0x8ec] sm:$0xf]
  %v600 = vld [vmem:[%s1 + $0x8f0] sm:$0xf]
  %v601 = vld [vmem:[%s1 + $0x8f4] sm:$0xf]
  %v602 = vld [vmem:[%s1 + $0x8f8] sm:$0xf]
  %v603 = vld [vmem:[%s1 + $0x8fc] sm:$0xf]
  %v604 = vld [vmem:[%s1 + $0x900] sm:$0xf]
  %v605 = vld [vmem:[%s1 + $0x904] sm:$0xf]
  %v606 = vld [vmem:[%s1 + $0x908] sm:$0xf]
  %v607 = vld [vmem:[%s1 + $0x90c] sm:$0xf]
  %v608 = vld [vmem:[%s1 + $0x910] sm:$0xf]
  %v609 = vld [vmem:[%s1 + $0x914] sm:$0xf]
  %v610 = vld [vmem:[%s1 + $0x918] sm:$0xf]
  %v611 = vld [vmem:[%s1 + $0x91c] sm:$0xf]
  %v612 = vld [vmem:[%s1 + $0x920] sm:$0xf]
  %v613 = vld [vmem:[%s1 + $0x924] sm:$0xf]
  %v614 = vld [vmem:[%s1 + $0x928] sm:$0xf]
  %v615 = vld [vmem:[%s1 + $0x92c] sm:$0xf]
  %v616 = vld [vmem:[%s1 + $0x930] sm:$0xf]
  %v617 = vld [vmem:[%s1 + $0x934] sm:$0xf]
  %v618 = vld [vmem:[%s1 + $0x938] sm:$0xf]
  %v619 = vld [vmem:[%s1 + $0x93c] sm:$0xf]
  %v620 = vld [vmem:[%s1 + $0x940] sm:$0xf]
  %v621 = vld [vmem:[%s1 + $0x944] sm:$0xf]
  %v622 = vld [vmem:[%s1 + $0x948] sm:$0xf]
  %v623 = vld [vmem:[%s1 + $0x94c] sm:$0xf]
  %v624 = vld [vmem:[%s1 + $0x950] sm:$0xf]
  %v625 = vld [vmem:[%s1 + $0x954] sm:$0xf]
  %v626 = vld [vmem:[%s1 + $0x958] sm:$0xf]
  %v627 = vld [vmem:[%s1 + $0x95c] sm:$0xf]
  %v628 = vld [vmem:[%s1 + $0x960] sm:$0xf]
  %v629 = vld [vmem:[%s1 + $0x964] sm:$0xf]
  %v630 = vld [vmem:[%s1 + $0x968] sm:$0xf]
  %v631 = vld [vmem:[%s1 + $0x96c] sm:$0xf]
  %v632 = vld [vmem:[%s1 + $0x970] sm:$0xf]
  %v633 = vld [vmem:[%s1 + $0x974] sm:$0xf]
  %v634 = vld [vmem:[%s1 + $0x978] sm:$0xf]
  %v635 = vld [vmem:[%s1 + $0x97c] sm:$0xf]
  %v636 = vld [vmem:[%s1 + $0x980] sm:$0xf]
  %v637 = vld [vmem:[%s1 + $0x984] sm:$0xf]
  %v638 = vld [vmem:[%s1 + $0x988] sm:$0xf]
  %v639 = vld [vmem:[%s1 + $0x98c] sm:$0xf]
  %v640 = vld [vmem:[%s1 + $0x990] sm:$0xf]
  %v641 = vld [vmem:[%s1 + $0x994] sm:$0xf]
  %v642 = vld [vmem:[%s1 + $0x998] sm:$0xf]
  %v643 = vld [vmem:[%s1 + $0x99c] sm:$0xf]
  %v644 = vld [vmem:[%s1 + $0x9a0] sm:$0xf]
  %v645 = vld [vmem:[%s1 + $0x9a4] sm:$0xf]
  %v646 = vld [vmem:[%s1 + $0x9a8] sm:$0xf]
  %v647 = vld [vmem:[%s1 + $0x9ac] sm:$0xf]
  %v648 = vld [vmem:[%s1 + $0x9b0] sm:$0xf]
  %v649 = vld [vmem:[%s1 + $0x9b4] sm:$0xf]
  %v650 = vld [vmem:[%s1 + $0x9b8] sm:$0xf]
  %v651 = vld [vmem:[%s1 + $0x9bc] sm:$0xf]
  %v652 = vld [vmem:[%s1 + $0x9c0] sm:$0xf]
  %v653 = vld [vmem:[%s1 + $0x9c4] sm:$0xf]
  %v654 = vld [vmem:[%s1 + $0x9c8] sm:$0xf]
  %v655 = vld [vmem:[%s1 + $0x9cc] sm:$0xf]
  %v656 = vld [vmem:[%s1 + $0x9d0] sm:$0xf]
  %v657 = vld [vmem:[%s1 + $0x9d4] sm:$0xf]
  %v658 = vld [vmem:[%s1 + $0x9d8] sm:$0xf]
  %v659 = vld [vmem:[%s1 + $0x9dc] sm:$0xf]
  %v660 = vld [vmem:[%s1 + $0x9e0] sm:$0xf]
  %v661 = vld [vmem:[%s1 + $0x9e4] sm:$0xf]
  %v662 = vld [vmem:[%s1 + $0x9e8] sm:$0xf]
  %v663 = vld [vmem:[%s1 + $0x9ec] sm:$0xf]
  %v664 = vld [vmem:[%s1 + $0x9f0] sm:$0xf]
  %v665 = vld [vmem:[%s1 + $0x9f4] sm:$0xf]
  %v666 = vld [vmem:[%s1 + $0x9f8] sm:$0xf]
  %v667 = vld [vmem:[%s1 + $0x9fc] sm:$0xf]
  %v668 = vld [vmem:[%s1 + $0xa00] sm:$0xf]
  %v669 = vld [vmem:[%s1 + $0xa04] sm:$0xf]
  %v670 = vld [vmem:[%s1 + $0xa08] sm:$0xf]
  %v671 = vld [vmem:[%s1 + $0xa0c] sm:$0xf]
  %v672 = vld [vmem:[%s1 + $0xa10] sm:$0xf]
  %v673 = vld [vmem:[%s1 + $0xa14] sm:$0xf]
  %v674 = vld [vmem:[%s1 + $0xa18] sm:$0xf]
  %v675 = vld [vmem:[%s1 + $0xa1c] sm:$0xf]
  %v676 = vld [vmem:[%s1 + $0xa20] sm:$0xf]
  %v677 = vld [vmem:[%s1 + $0xa24] sm:$0xf]
  %v678 = vld [vmem:[%s1 + $0xa28] sm:$0xf]
  %v679 = vld [vmem:[%s1 + $0xa2c] sm:$0xf]
  %v680 = vld [vmem:[%s1 + $0xa30] sm:$0xf]
  %v681 = vld [vmem:[%s1 + $0xa34] sm:$0xf]
  %v682 = vld [vmem:[%s1 + $0xa38] sm:$0xf]
  %v683 = vld [vmem:[%s1 + $0xa3c] sm:$0xf]
  %v684 = vld [vmem:[%s1 + $0xa40] sm:$0xf]
  %v685 = vld [vmem:[%s1 + $0xa44] sm:$0xf]
  %v686 = vld [vmem:[%s1 + $0xa48] sm:$0xf]
  %v687 = vld [vmem:[%s1 + $0xa4c] sm:$0xf]
  %v688 = vld [vmem:[%s1 + $0xa50] sm:$0xf]
  %v689 = vld [vmem:[%s1 + $0xa54] sm:$0xf]
  %v690 = vld [vmem:[%s1 + $0xa58] sm:$0xf]
  %v691 = vld [vmem:[%s1 + $0xa5c] sm:$0xf]
  %v692 = vld [vmem:[%s1 + $0xa60] sm:$0xf]
  %v693 = vld [vmem:[%s1 + $0xa64] sm:$0xf]
  %v694 = vld [vmem:[%s1 + $0xa68] sm:$0xf]
  %v695 = vld [vmem:[%s1 + $0xa6c] sm:$0xf]
  %v696 = vld [vmem:[%s1 + $0xa70] sm:$0xf]
  %v697 = vld [vmem:[%s1 + $0xa74] sm:$0xf]
  %v698 = vld [vmem:[%s1 + $0xa78] sm:$0xf]
  %v699 = vld [vmem:[%s1 + $0xa7c] sm:$0xf]
  %v700 = vld [vmem:[%s1 + $0xa80] sm:$0xf]
  %v701 = vld [vmem:[%s1 + $0xa84] sm:$0xf]
  %v702 = vld [vmem:[%s1 + $0xa88] sm:$0xf]
  %v703 = vld [vmem:[%s1 + $0xa8c] sm:$0xf]
  %v704 = vld [vmem:[%s1 + $0xa90] sm:$0xf]
  %v705 = vld [vmem:[%s1 + $0xa94] sm:$0xf]
  %v706 = vld [vmem:[%s1 + $0xa98] sm:$0xf]
  %v707 = vld [vmem:[%s1 + $0xa9c] sm:$0xf]
  %v708 = vld [vmem:[%s1 + $0xaa0] sm:$0xf]
  %v709 = vld [vmem:[%s1 + $0xaa4] sm:$0xf]
  %v710 = vld [vmem:[%s1 + $0xaa8] sm:$0xf]
  %v711 = vld [vmem:[%s1 + $0xaac] sm:$0xf]
  %v712 = vld [vmem:[%s1 + $0xab0] sm:$0xf]
  %v713 = vld [vmem:[%s1 + $0xab4] sm:$0xf]
  %v714 = vld [vmem:[%s1 + $0xab8] sm:$0xf]
  %v715 = vld [vmem:[%s1 + $0xabc] sm:$0xf]
  %v716 = vld [vmem:[%s1 + $0xac0] sm:$0xf]
  %v717 = vld [vmem:[%s1 + $0xac4] sm:$0xf]
  %v718 = vld [vmem:[%s1 + $0xac8] sm:$0xf]
  %v719 = vld [vmem:[%s1 + $0xacc] sm:$0xf]
  %v720 = vld [vmem:[%s1 + $0xad0] sm:$0xf]
  %v721 = vld [vmem:[%s1 + $0xad4] sm:$0xf]
  %v722 = vld [vmem:[%s1 + $0xad8] sm:$0xf]
  %v723 = vld [vmem:[%s1 + $0xadc] sm:$0xf]
  %v724 = vld [vmem:[%s1 + $0xae0] sm:$0xf]
  %v725 = vld [vmem:[%s1 + $0xae4] sm:$0xf]
  %v726 = vld [vmem:[%s1 + $0xae8] sm:$0xf]
  %v727 = vld [vmem:[%s1 + $0xaec] sm:$0xf]
  %v728 = vld [vmem:[%s1 + $0xaf0] sm:$0xf]
  %v729 = vld [vmem:[%s1 + $0xaf4] sm:$0xf]
  %v730 = vld [vmem:[%s1 + $0xaf8] sm:$0xf]
  %v731 = vld [vmem:[%s1 + $0xafc] sm:$0xf]
  %v732 = vld [vmem:[%s1 + $0xb00] sm:$0xf]
  %v733 = vld [vmem:[%s1 + $0xb04] sm:$0xf]
  %v734 = vld [vmem:[%s1 + $0xb08] sm:$0xf]
  %v735 = vld [vmem:[%s1 + $0xb0c] sm:$0xf]
  %v736 = vld [vmem:[%s1 + $0xb10] sm:$0xf]
  %v737 = vld [vmem:[%s1 + $0xb14] sm:$0xf]
  %v738 = vld [vmem:[%s1 + $0xb18] sm:$0xf]
  %v739 = vld [vmem:[%s1 + $0xb1c] sm:$0xf]
  %v740 = vld [vmem:[%s1 + $0xb20] sm:$0xf]
  %v741 = vld [vmem:[%s1 + $0xb24] sm:$0xf]
  %v742 = vld [vmem:[%s1 + $0xb28] sm:$0xf]
  %v743 = vld [vmem:[%s1 + $0xb2c] sm:$0xf]
  %v744 = vld [vmem:[%s1 + $0xb30] sm:$0xf]
  %v745 = vld [vmem:[%s1 + $0xb34] sm:$0xf]
  %v746 = vld [vmem:[%s1 + $0xb38] sm:$0xf]
  %v747 = vld [vmem:[%s1 + $0xb3c] sm:$0xf]
  %v748 = vld [vmem:[%s1 + $0xb40] sm:$0xf]
  %v749 = vld [vmem:[%s1 + $0xb44] sm:$0xf]
  %v750 = vld [vmem:[%s1 + $0xb48] sm:$0xf]
  %v751 = vld [vmem:[%s1 + $0xb4c] sm:$0xf]
  %v752 = vld [vmem:[%s1 + $0xb50] sm:$0xf]
  %v753 = vld [vmem:[%s1 + $0xb54] sm:$0xf]
  %v754 = vld [vmem:[%s1 + $0xb58] sm:$0xf]
  %v755 = vld [vmem:[%s1 + $0xb5c] sm:$0xf]
  %v756 = vld [vmem:[%s1 + $0xb60] sm:$0xf]
  %v757 = vld [vmem:[%s1 + $0xb64] sm:$0xf]
  %v758 = vld [vmem:[%s1 + $0xb68] sm:$0xf]
  %v759 = vld [vmem:[%s1 + $0xb6c] sm:$0xf]
  %v760 = vld [vmem:[%s1 + $0xb70] sm:$0xf]
  %v761 = vld [vmem:[%s1 + $0xb74] sm:$0xf]
  %v762 = vld [vmem:[%s1 + $0xb78] sm:$0xf]
  %v763 = vld [vmem:[%s1 + $0xb7c] sm:$0xf]
  %v764 = vld [vmem:[%s1 + $0xb80] sm:$0xf]
  %v765 = vld [vmem:[%s1 + $0xb84] sm:$0xf]
  %v766 = vld [vmem:[%s1 + $0xb88] sm:$0xf]
  %v767 = vld [vmem:[%s1 + $0xb8c] sm:$0xf]
  %v768 = vld [vmem:[%s1 + $0xb90] sm:$0xf]
  %v769 = vld [vmem:[%s1 + $0xb94] sm:$0xf]
  %v770 = vld [vmem:[%s1 + $0xb98] sm:$0xf]
  %v771 = vld [vmem:[%s1 + $0xb9c] sm:$0xf]
  %v772 = vld [vmem:[%s1 + $0xba0] sm:$0xf]
  %v773 = vld [vmem:[%s1 + $0xba4] sm:$0xf]
  %v774 = vld [vmem:[%s1 + $0xba8] sm:$0xf]
  %v775 = vld [vmem:[%s1 + $0xbac] sm:$0xf]
  %v776 = vld [vmem:[%s1 + $0xbb0] sm:$0xf]
  %v777 = vld [vmem:[%s1 + $0xbb4] sm:$0xf]
  %v778 = vld [vmem:[%s1 + $0xbb8] sm:$0xf]
  %v779 = vld [vmem:[%s1 + $0xbbc] sm:$0xf]
  %v780 = vld [vmem:[%s1 + $0xbc0] sm:$0xf]
  %v781 = vld [vmem:[%s1 + $0xbc4] sm:$0xf]
  %v782 = vld [vmem:[%s1 + $0xbc8] sm:$0xf]
  %v783 = vld [vmem:[%s1 + $0xbcc] sm:$0xf]
  %v784 = vld [vmem:[%s1 + $0xbd0] sm:$0xf]
  %v785 = vld [vmem:[%s1 + $0xbd4] sm:$0xf]
  %v786 = vld [vmem:[%s1 + $0xbd8] sm:$0xf]
  %v787 = vld [vmem:[%s1 + $0xbdc] sm:$0xf]
  %v788 = vld [vmem:[%s1 + $0xbe0] sm:$0xf]
  %v789 = vld [vmem:[%s1 + $0xbe4] sm:$0xf]
  %v790 = vld [vmem:[%s1 + $0xbe8] sm:$0xf]
  %v791 = vld [vmem:[%s1 + $0xbec] sm:$0xf]
  %v792 = vld [vmem:[%s1 + $0xbf0] sm:$0xf]
  %v793 = vld [vmem:[%s1 + $0xbf4] sm:$0xf]
  %v794 = vld [vmem:[%s1 + $0xbf8] sm:$0xf]
  %v795 = vld [vmem:[%s1 + $0xbfc] sm:$0xf]
  %v796 = vld [vmem:[%s1 + $0xc00] sm:$0xf]
  %v797 = vld [vmem:[%s1 + $0xc04] sm:$0xf]
  %v798 = vld [vmem:[%s1 + $0xc08] sm:$0xf]
  %v799 = vld [vmem:[%s1 + $0xc0c] sm:$0xf]
  %v800 = vld [vmem:[%s1 + $0xc10] sm:$0xf]
  %v801 = vld [vmem:[%s1 + $0xc14] sm:$0xf]
  %v802 = vld [vmem:[%s1 + $0xc18] sm:$0xf]
  %v803 = vld [vmem:[%s1 + $0xc1c] sm:$0xf]
  %v804 = vld [vmem:[%s1 + $0xc20] sm:$0xf]
  %v805 = vld [vmem:[%s1 + $0xc24] sm:$0xf]
  %v806 = vld [vmem:[%s1 + $0xc28] sm:$0xf]
  %v807 = vld [vmem:[%s1 + $0xc2c] sm:$0xf]
  %v808 = vld [vmem:[%s1 + $0xc30] sm:$0xf]
  %v809 = vld [vmem:[%s1 + $0xc34] sm:$0xf]
  %v810 = vld [vmem:[%s1 + $0xc38] sm:$0xf]
  %v811 = vld [vmem:[%s1 + $0xc3c] sm:$0xf]
  %v812 = vld [vmem:[%s2] sm:$0x1]
  %v814 = vlaneseq
  %v815 = vshrl.u32 %v814, 7
  %v816 = vsub.s32 0, %v815
  %v817 = vrot.slane %v812, %v816
  %v826 = vcombine.high %v21, %v21
  %v828 = vunpack.c.l.s4 1966171168
  %v829 = vunpack.c.0.s8 %v828
  %v830 = vlaneseq
  %v831 = vshrl.u32 %v830, 7
  %v832 = vsub.s32 %v829, %v831
  %v833 = vrot.slane %v21, %v832
  %v835 = vunpack.c.l.s4 1966171168
  %v836 = vunpack.c.0.s8 %v835
  %v837 = vlaneseq
  %v838 = vshrl.u32 %v837, 7
  %v839 = vsub.s32 %v836, %v838
  %v840 = vrot.slane %v826, %v839
  %v841 = vcombine.high %v833, %v833
  %v842 = vcombine.high %v840, %v840
  %v844 = vunpack.c.l.s4 1966171168
  %v845 = vunpack.c.0.s8 %v844
  %v846 = vlaneseq
  %v847 = vshrl.u32 %v846, 7
  %v848 = vsub.s32 %v845, %v847
  %v849 = vrot.slane %v833, %v848
  %v851 = vunpack.c.l.s4 1966171168
  %v852 = vunpack.c.0.s8 %v851
  %v853 = vlaneseq
  %v854 = vshrl.u32 %v853, 7
  %v855 = vsub.s32 %v852, %v854
  %v856 = vrot.slane %v840, %v855
  %v858 = vunpack.c.l.s4 1966171168
  %v859 = vunpack.c.0.s8 %v858
  %v860 = vlaneseq
  %v861 = vshrl.u32 %v860, 7
  %v862 = vsub.s32 %v859, %v861
  %v863 = vrot.slane %v841, %v862
  %v865 = vunpack.c.l.s4 1966171168
  %v866 = vunpack.c.0.s8 %v865
  %v867 = vlaneseq
  %v868 = vshrl.u32 %v867, 7
  %v869 = vsub.s32 %v866, %v868
  %v870 = vrot.slane %v842, %v869
  %v871 = vcombine.high %v849, %v849
  %v872 = vcombine.high %v856, %v856
  %v873 = vcombine.high %v863, %v863
  %v874 = vcombine.high %v870, %v870
  %v875 = vcombine.high %v22, %v22
  %v877 = vunpack.c.l.s4 1966171168
  %v878 = vunpack.c.0.s8 %v877
  %v879 = vlaneseq
  %v880 = vshrl.u32 %v879, 7
  %v881 = vsub.s32 %v878, %v880
  %v882 = vrot.slane %v22, %v881
  %v884 = vunpack.c.l.s4 1966171168
  %v885 = vunpack.c.0.s8 %v884
  %v886 = vlaneseq
  %v887 = vshrl.u32 %v886, 7
  %v888 = vsub.s32 %v885, %v887
  %v889 = vrot.slane %v875, %v888
  %v890 = vcombine.high %v882, %v882
  %v891 = vcombine.high %v889, %v889
  %v893 = vunpack.c.l.s4 1966171168
  %v894 = vunpack.c.0.s8 %v893
  %v895 = vlaneseq
  %v896 = vshrl.u32 %v895, 7
  %v897 = vsub.s32 %v894, %v896
  %v898 = vrot.slane %v882, %v897
  %v900 = vunpack.c.l.s4 1966171168
  %v901 = vunpack.c.0.s8 %v900
  %v902 = vlaneseq
  %v903 = vshrl.u32 %v902, 7
  %v904 = vsub.s32 %v901, %v903
  %v905 = vrot.slane %v889, %v904
  %v907 = vunpack.c.l.s4 1966171168
  %v908 = vunpack.c.0.s8 %v907
  %v909 = vlaneseq
  %v910 = vshrl.u32 %v909, 7
  %v911 = vsub.s32 %v908, %v910
  %v912 = vrot.slane %v890, %v911
  %v914 = vunpack.c.l.s4 1966171168
  %v915 = vunpack.c.0.s8 %v914
  %v916 = vlaneseq
  %v917 = vshrl.u32 %v916, 7
  %v918 = vsub.s32 %v915, %v917
  %v919 = vrot.slane %v891, %v918
  %v920 = vcombine.high %v898, %v898
  %v921 = vcombine.high %v905, %v905
  %v922 = vcombine.high %v912, %v912
  %v923 = vcombine.high %v919, %v919
  %v924 = vcombine.high %v23, %v23
  %v926 = vunpack.c.l.s4 1966171168
  %v927 = vunpack.c.0.s8 %v926
  %v928 = vlaneseq
  %v929 = vshrl.u32 %v928, 7
  %v930 = vsub.s32 %v927, %v929
  %v931 = vrot.slane %v23, %v930
  %v933 = vunpack.c.l.s4 1966171168
  %v934 = vunpack.c.0.s8 %v933
  %v935 = vlaneseq
  %v936 = vshrl.u32 %v935, 7
  %v937 = vsub.s32 %v934, %v936
  %v938 = vrot.slane %v924, %v937
  %v939 = vcombine.high %v931, %v931
  %v940 = vcombine.high %v938, %v938
  %v942 = vunpack.c.l.s4 1966171168
  %v943 = vunpack.c.0.s8 %v942
  %v944 = vlaneseq
  %v945 = vshrl.u32 %v944, 7
  %v946 = vsub.s32 %v943, %v945
  %v947 = vrot.slane %v931, %v946
  %v949 = vunpack.c.l.s4 1966171168
  %v950 = vunpack.c.0.s8 %v949
  %v951 = vlaneseq
  %v952 = vshrl.u32 %v951, 7
  %v953 = vsub.s32 %v950, %v952
  %v954 = vrot.slane %v938, %v953
  %v956 = vunpack.c.l.s4 1966171168
  %v957 = vunpack.c.0.s8 %v956
  %v958 = vlaneseq
  %v959 = vshrl.u32 %v958, 7
  %v960 = vsub.s32 %v957, %v959
  %v961 = vrot.slane %v939, %v960
  %v963 = vunpack.c.l.s4 1966171168
  %v964 = vunpack.c.0.s8 %v963
  %v965 = vlaneseq
  %v966 = vshrl.u32 %v965, 7
  %v967 = vsub.s32 %v964, %v966
  %v968 = vrot.slane %v940, %v967
  %v969 = vcombine.high %v947, %v947
  %v970 = vcombine.high %v954, %v954
  %v971 = vcombine.high %v961, %v961
  %v972 = vcombine.high %v968, %v968
  %v973 = vcombine.high %v24, %v24
  %v975 = vunpack.c.l.s4 1966171168
  %v976 = vunpack.c.0.s8 %v975
  %v977 = vlaneseq
  %v978 = vshrl.u32 %v977, 7
  %v979 = vsub.s32 %v976, %v978
  %v980 = vrot.slane %v24, %v979
  %v982 = vunpack.c.l.s4 1966171168
  %v983 = vunpack.c.0.s8 %v982
  %v984 = vlaneseq
  %v985 = vshrl.u32 %v984, 7
  %v986 = vsub.s32 %v983, %v985
  %v987 = vrot.slane %v973, %v986
  %v988 = vcombine.high %v980, %v980
  %v989 = vcombine.high %v987, %v987
  %v991 = vunpack.c.l.s4 1966171168
  %v992 = vunpack.c.0.s8 %v991
  %v993 = vlaneseq
  %v994 = vshrl.u32 %v993, 7
  %v995 = vsub.s32 %v992, %v994
  %v996 = vrot.slane %v980, %v995
  %v998 = vunpack.c.l.s4 1966171168
  %v999 = vunpack.c.0.s8 %v998
  %v1000 = vlaneseq
  %v1001 = vshrl.u32 %v1000, 7
  %v1002 = vsub.s32 %v999, %v1001
  %v1003 = vrot.slane %v987, %v1002
  %v1005 = vunpack.c.l.s4 1966171168
  %v1006 = vunpack.c.0.s8 %v1005
  %v1007 = vlaneseq
  %v1008 = vshrl.u32 %v1007, 7
  %v1009 = vsub.s32 %v1006, %v1008
  %v1010 = vrot.slane %v988, %v1009
  %v1012 = vunpack.c.l.s4 1966171168
  %v1013 = vunpack.c.0.s8 %v1012
  %v1014 = vlaneseq
  %v1015 = vshrl.u32 %v1014, 7
  %v1016 = vsub.s32 %v1013, %v1015
  %v1017 = vrot.slane %v989, %v1016
  %v1018 = vcombine.high %v996, %v996
  %v1019 = vcombine.high %v1003, %v1003
  %v1020 = vcombine.high %v1010, %v1010
  %v1021 = vcombine.high %v1017, %v1017
  %v1022 = vcombine.high %v25, %v25
  %v1024 = vunpack.c.l.s4 1966171168
  %v1025 = vunpack.c.0.s8 %v1024
  %v1026 = vlaneseq
  %v1027 = vshrl.u32 %v1026, 7
  %v1028 = vsub.s32 %v1025, %v1027
  %v1029 = vrot.slane %v25, %v1028
  %v1031 = vunpack.c.l.s4 1966171168
  %v1032 = vunpack.c.0.s8 %v1031
  %v1033 = vlaneseq
  %v1034 = vshrl.u32 %v1033, 7
  %v1035 = vsub.s32 %v1032, %v1034
  %v1036 = vrot.slane %v1022, %v1035
  %v1037 = vcombine.high %v1029, %v1029
  %v1038 = vcombine.high %v1036, %v1036
  %v1040 = vunpack.c.l.s4 1966171168
  %v1041 = vunpack.c.0.s8 %v1040
  %v1042 = vlaneseq
  %v1043 = vshrl.u32 %v1042, 7
  %v1044 = vsub.s32 %v1041, %v1043
  %v1045 = vrot.slane %v1029, %v1044
  %v1047 = vunpack.c.l.s4 1966171168
  %v1048 = vunpack.c.0.s8 %v1047
  %v1049 = vlaneseq
  %v1050 = vshrl.u32 %v1049, 7
  %v1051 = vsub.s32 %v1048, %v1050
  %v1052 = vrot.slane %v1036, %v1051
  %v1054 = vunpack.c.l.s4 1966171168
  %v1055 = vunpack.c.0.s8 %v1054
  %v1056 = vlaneseq
  %v1057 = vshrl.u32 %v1056, 7
  %v1058 = vsub.s32 %v1055, %v1057
  %v1059 = vrot.slane %v1037, %v1058
  %v1061 = vunpack.c.l.s4 1966171168
  %v1062 = vunpack.c.0.s8 %v1061
  %v1063 = vlaneseq
  %v1064 = vshrl.u32 %v1063, 7
  %v1065 = vsub.s32 %v1062, %v1064
  %v1066 = vrot.slane %v1038, %v1065
  %v1067 = vcombine.high %v1045, %v1045
  %v1068 = vcombine.high %v1052, %v1052
  %v1069 = vcombine.high %v1059, %v1059
  %v1070 = vcombine.high %v1066, %v1066
  %v1071 = vcombine.high %v26, %v26
  %v1073 = vunpack.c.l.s4 1966171168
  %v1074 = vunpack.c.0.s8 %v1073
  %v1075 = vlaneseq
  %v1076 = vshrl.u32 %v1075, 7
  %v1077 = vsub.s32 %v1074, %v1076
  %v1078 = vrot.slane %v26, %v1077
  %v1080 = vunpack.c.l.s4 1966171168
  %v1081 = vunpack.c.0.s8 %v1080
  %v1082 = vlaneseq
  %v1083 = vshrl.u32 %v1082, 7
  %v1084 = vsub.s32 %v1081, %v1083
  %v1085 = vrot.slane %v1071, %v1084
  %v1086 = vcombine.high %v1078, %v1078
  %v1087 = vcombine.high %v1085, %v1085
  %v1089 = vunpack.c.l.s4 1966171168
  %v1090 = vunpack.c.0.s8 %v1089
  %v1091 = vlaneseq
  %v1092 = vshrl.u32 %v1091, 7
  %v1093 = vsub.s32 %v1090, %v1092
  %v1094 = vrot.slane %v1078, %v1093
  %v1096 = vunpack.c.l.s4 1966171168
  %v1097 = vunpack.c.0.s8 %v1096
  %v1098 = vlaneseq
  %v1099 = vshrl.u32 %v1098, 7
  %v1100 = vsub.s32 %v1097, %v1099
  %v1101 = vrot.slane %v1085, %v1100
  %v1103 = vunpack.c.l.s4 1966171168
  %v1104 = vunpack.c.0.s8 %v1103
  %v1105 = vlaneseq
  %v1106 = vshrl.u32 %v1105, 7
  %v1107 = vsub.s32 %v1104, %v1106
  %v1108 = vrot.slane %v1086, %v1107
  %v1110 = vunpack.c.l.s4 1966171168
  %v1111 = vunpack.c.0.s8 %v1110
  %v1112 = vlaneseq
  %v1113 = vshrl.u32 %v1112, 7
  %v1114 = vsub.s32 %v1111, %v1113
  %v1115 = vrot.slane %v1087, %v1114
  %v1116 = vcombine.high %v1094, %v1094
  %v1117 = vcombine.high %v1101, %v1101
  %v1118 = vcombine.high %v1108, %v1108
  %v1119 = vcombine.high %v1115, %v1115
  %v1121 = vunpack.c.l.s4 1966171168
  %v1122 = vunpack.c.0.s8 %v1121
  %v1123 = vlaneseq
  %v1124 = vshrl.u32 %v1123, 7
  %v1125 = vsub.s32 %v1122, %v1124
  %v1126 = vrot.slane %v27, %v1125
  %v1128 = vunpack.c.l.s4 1966171168
  %v1129 = vunpack.c.0.s8 %v1128
  %v1130 = vlaneseq
  %v1131 = vshrl.u32 %v1130, 7
  %v1132 = vsub.s32 %v1129, %v1131
  %v1133 = vrot.slane %v1126, %v1132
  %v1967 = vunpack.c.l.b16 %v28
  %v1968 = vunpack.c.l.b16 %v29
  %v1969 = vunpack.c.l.b16 %v30
  %v1970 = vunpack.c.l.b16 %v31
  %v1971 = vunpack.c.l.b16 %v32
  %v1972 = vunpack.c.l.b16 %v33
  %v1973 = vunpack.c.l.b16 %v34
  %v1974 = vunpack.c.l.b16 %v35
  %v1975 = vunpack.c.l.b16 %v36
  %v1976 = vunpack.c.l.b16 %v37
  %v1977 = vunpack.c.l.b16 %v38
  %v1978 = vunpack.c.l.b16 %v39
  %v1979 = vunpack.c.l.b16 %v40
  %v1980 = vunpack.c.l.b16 %v41
  %v1981 = vunpack.c.l.b16 %v42
  %v1982 = vunpack.c.l.b16 %v43
  %v1983 = vunpack.c.l.b16 %v44
  %v1984 = vunpack.c.l.b16 %v45
  %v1985 = vunpack.c.l.b16 %v46
  %v1986 = vunpack.c.l.b16 %v47
  %v1987 = vunpack.c.l.b16 %v48
  %v1988 = vunpack.c.l.b16 %v49
  %v1989 = vunpack.c.l.b16 %v50
  %v1990 = vunpack.c.l.b16 %v51
  %v1991 = vunpack.c.l.b16 %v52
  %v1992 = vunpack.c.l.b16 %v53
  %v1993 = vunpack.c.l.b16 %v54
  %v1994 = vunpack.c.l.b16 %v55
  %v1995 = vunpack.c.l.b16 %v56
  %v1996 = vunpack.c.l.b16 %v57
  %v1997 = vunpack.c.l.b16 %v58
  %v1998 = vunpack.c.l.b16 %v59
  %v1999 = vunpack.c.l.b16 %v60
  %v2000 = vunpack.c.l.b16 %v61
  %v2001 = vunpack.c.l.b16 %v62
  %v2002 = vunpack.c.l.b16 %v63
  %v2003 = vunpack.c.l.b16 %v64
  %v2004 = vunpack.c.l.b16 %v65
  %v2005 = vunpack.c.l.b16 %v66
  %v2006 = vunpack.c.l.b16 %v67
  %v2007 = vunpack.c.l.b16 %v68
  %v2008 = vunpack.c.l.b16 %v69
  %v2009 = vunpack.c.l.b16 %v70
  %v2010 = vunpack.c.l.b16 %v71
  %v2011 = vunpack.c.l.b16 %v72
  %v2012 = vunpack.c.l.b16 %v73
  %v2013 = vunpack.c.l.b16 %v74
  %v2014 = vunpack.c.l.b16 %v75
  %v2015 = vunpack.c.l.b16 %v76
  %v2016 = vunpack.c.l.b16 %v77
  %v2017 = vunpack.c.l.b16 %v78
  %v2018 = vunpack.c.l.b16 %v79
  %v2019 = vunpack.c.l.b16 %v80
  %v2020 = vunpack.c.l.b16 %v81
  %v2021 = vunpack.c.l.b16 %v82
  %v2022 = vunpack.c.l.b16 %v83
  %v2023 = vunpack.c.l.b16 %v84
  %v2024 = vunpack.c.l.b16 %v85
  %v2025 = vunpack.c.l.b16 %v86
  %v2026 = vunpack.c.l.b16 %v87
  %v2027 = vunpack.c.l.b16 %v88
  %v2028 = vunpack.c.l.b16 %v89
  %v2029 = vunpack.c.l.b16 %v90
  %v2030 = vunpack.c.l.b16 %v91
  %v2031 = vunpack.c.l.b16 %v92
  %v2032 = vunpack.c.l.b16 %v93
  %v2033 = vunpack.c.l.b16 %v94
  %v2034 = vunpack.c.l.b16 %v95
  %v2035 = vunpack.c.l.b16 %v96
  %v2036 = vunpack.c.l.b16 %v97
  %v2037 = vunpack.c.l.b16 %v98
  %v2038 = vunpack.c.l.b16 %v99
  %v2039 = vunpack.c.l.b16 %v100
  %v2040 = vunpack.c.l.b16 %v101
  %v2041 = vunpack.c.l.b16 %v102
  %v2042 = vunpack.c.l.b16 %v103
  %v2043 = vunpack.c.l.b16 %v104
  %v2044 = vunpack.c.l.b16 %v105
  %v2045 = vunpack.c.l.b16 %v106
  %v2046 = vunpack.c.l.b16 %v107
  %v2047 = vunpack.c.l.b16 %v108
  %v2048 = vunpack.c.l.b16 %v109
  %v2049 = vunpack.c.l.b16 %v110
  %v2050 = vunpack.c.l.b16 %v111
  %v2051 = vunpack.c.l.b16 %v112
  %v2052 = vunpack.c.l.b16 %v113
  %v2053 = vunpack.c.l.b16 %v114
  %v2054 = vunpack.c.l.b16 %v115
  %v2055 = vunpack.c.l.b16 %v116
  %v2056 = vunpack.c.l.b16 %v117
  %v2057 = vunpack.c.l.b16 %v118
  %v2058 = vunpack.c.l.b16 %v119
  %v2059 = vunpack.c.l.b16 %v120
  %v2060 = vunpack.c.l.b16 %v121
  %v2061 = vunpack.c.l.b16 %v122
  %v2062 = vunpack.c.l.b16 %v123
  %v2063 = vunpack.c.l.b16 %v124
  %v2064 = vunpack.c.l.b16 %v125
  %v2065 = vunpack.c.l.b16 %v126
  %v2066 = vunpack.c.l.b16 %v127
  %v2067 = vunpack.c.l.b16 %v128
  %v2068 = vunpack.c.l.b16 %v129
  %v2069 = vunpack.c.l.b16 %v130
  %v2070 = vunpack.c.l.b16 %v131
  %v2071 = vunpack.c.l.b16 %v132
  %v2072 = vunpack.c.l.b16 %v133
  %v2073 = vunpack.c.l.b16 %v134
  %v2074 = vunpack.c.l.b16 %v135
  %v2075 = vunpack.c.l.b16 %v136
  %v2076 = vunpack.c.l.b16 %v137
  %v2077 = vunpack.c.l.b16 %v138
  %v2078 = vunpack.c.l.b16 %v139
  %v2079 = vunpack.c.l.b16 %v140
  %v2080 = vunpack.c.l.b16 %v141
  %v2081 = vunpack.c.l.b16 %v142
  %v2082 = vunpack.c.l.b16 %v143
  %v2083 = vunpack.c.l.b16 %v144
  %v2084 = vunpack.c.l.b16 %v145
  %v2085 = vunpack.c.l.b16 %v146
  %v2086 = vunpack.c.l.b16 %v147
  %v2087 = vunpack.c.l.b16 %v148
  %v2088 = vunpack.c.l.b16 %v149
  %v2089 = vunpack.c.l.b16 %v150
  %v2090 = vunpack.c.l.b16 %v151
  %v2091 = vunpack.c.l.b16 %v152
  %v2092 = vunpack.c.l.b16 %v153
  %v2093 = vunpack.c.l.b16 %v154
  %v2094 = vunpack.c.l.b16 %v155
  %v2095 = vunpack.c.l.b16 %v156
  %v2096 = vunpack.c.l.b16 %v157
  %v2097 = vunpack.c.l.b16 %v158
  %v2098 = vunpack.c.l.b16 %v159
  %v2099 = vunpack.c.l.b16 %v160
  %v2100 = vunpack.c.l.b16 %v161
  %v2101 = vunpack.c.l.b16 %v162
  %v2102 = vunpack.c.l.b16 %v163
  %v2103 = vunpack.c.l.b16 %v164
  %v2104 = vunpack.c.l.b16 %v165
  %v2105 = vunpack.c.l.b16 %v166
  %v2106 = vunpack.c.l.b16 %v167
  %v2107 = vunpack.c.l.b16 %v168
  %v2108 = vunpack.c.l.b16 %v169
  %v2109 = vunpack.c.l.b16 %v170
  %v2110 = vunpack.c.l.b16 %v171
  %v2111 = vunpack.c.l.b16 %v172
  %v2112 = vunpack.c.l.b16 %v173
  %v2113 = vunpack.c.l.b16 %v174
  %v2114 = vunpack.c.l.b16 %v175
  %v2115 = vunpack.c.l.b16 %v176
  %v2116 = vunpack.c.l.b16 %v177
  %v2117 = vunpack.c.l.b16 %v178
  %v2118 = vunpack.c.l.b16 %v179
  %v2119 = vunpack.c.l.b16 %v180
  %v2120 = vunpack.c.l.b16 %v181
  %v2121 = vunpack.c.l.b16 %v182
  %v2122 = vunpack.c.l.b16 %v183
  %v2123 = vunpack.c.l.b16 %v184
  %v2124 = vunpack.c.l.b16 %v185
  %v2125 = vunpack.c.l.b16 %v186
  %v2126 = vunpack.c.l.b16 %v187
  %v2127 = vunpack.c.l.b16 %v188
  %v2128 = vunpack.c.l.b16 %v189
  %v2129 = vunpack.c.l.b16 %v190
  %v2130 = vunpack.c.l.b16 %v191
  %v2131 = vunpack.c.l.b16 %v192
  %v2132 = vunpack.c.l.b16 %v193
  %v2133 = vunpack.c.l.b16 %v194
  %v2134 = vunpack.c.l.b16 %v195
  %v2135 = vunpack.c.l.b16 %v196
  %v2136 = vunpack.c.l.b16 %v197
  %v2137 = vunpack.c.l.b16 %v198
  %v2138 = vunpack.c.l.b16 %v199
  %v2139 = vunpack.c.l.b16 %v200
  %v2140 = vunpack.c.l.b16 %v201
  %v2141 = vunpack.c.l.b16 %v202
  %v2142 = vunpack.c.l.b16 %v203
  %v2143 = vunpack.c.l.b16 %v204
  %v2144 = vunpack.c.l.b16 %v205
  %v2145 = vunpack.c.l.b16 %v206
  %v2146 = vunpack.c.l.b16 %v207
  %v2147 = vunpack.c.l.b16 %v208
  %v2148 = vunpack.c.l.b16 %v209
  %v2149 = vunpack.c.l.b16 %v210
  %v2150 = vunpack.c.l.b16 %v211
  %v2151 = vunpack.c.l.b16 %v212
  %v2152 = vunpack.c.l.b16 %v213
  %v2153 = vunpack.c.l.b16 %v214
  %v2154 = vunpack.c.l.b16 %v215
  %v2155 = vunpack.c.l.b16 %v216
  %v2156 = vunpack.c.l.b16 %v217
  %v2157 = vunpack.c.l.b16 %v218
  %v2158 = vunpack.c.l.b16 %v219
  %v2159 = vunpack.c.l.b16 %v220
  %v2160 = vunpack.c.l.b16 %v221
  %v2161 = vunpack.c.l.b16 %v222
  %v2162 = vunpack.c.l.b16 %v223
  %v2163 = vunpack.c.l.b16 %v224
  %v2164 = vunpack.c.l.b16 %v225
  %v2165 = vunpack.c.l.b16 %v226
  %v2166 = vunpack.c.l.b16 %v227
  %v2167 = vunpack.c.l.b16 %v228
  %v2168 = vunpack.c.l.b16 %v229
  %v2169 = vunpack.c.l.b16 %v230
  %v2170 = vunpack.c.l.b16 %v231
  %v2171 = vunpack.c.l.b16 %v232
  %v2172 = vunpack.c.l.b16 %v233
  %v2173 = vunpack.c.l.b16 %v234
  %v2174 = vunpack.c.l.b16 %v235
  %v2175 = vunpack.c.l.b16 %v236
  %v2176 = vunpack.c.l.b16 %v237
  %v2177 = vunpack.c.l.b16 %v238
  %v2178 = vunpack.c.l.b16 %v239
  %v2179 = vunpack.c.l.b16 %v240
  %v2180 = vunpack.c.l.b16 %v241
  %v2181 = vunpack.c.l.b16 %v242
  %v2182 = vunpack.c.l.b16 %v243
  %v2183 = vunpack.c.l.b16 %v244
  %v2184 = vunpack.c.l.b16 %v245
  %v2185 = vunpack.c.l.b16 %v246
  %v2186 = vunpack.c.l.b16 %v247
  %v2187 = vunpack.c.l.b16 %v248
  %v2188 = vunpack.c.l.b16 %v249
  %v2189 = vunpack.c.l.b16 %v250
  %v2190 = vunpack.c.l.b16 %v251
  %v2191 = vunpack.c.l.b16 %v252
  %v2192 = vunpack.c.l.b16 %v253
  %v2193 = vunpack.c.l.b16 %v254
  %v2194 = vunpack.c.l.b16 %v255
  %v2195 = vunpack.c.l.b16 %v256
  %v2196 = vunpack.c.l.b16 %v257
  %v2197 = vunpack.c.l.b16 %v258
  %v2198 = vunpack.c.l.b16 %v259
  %v2199 = vunpack.c.l.b16 %v260
  %v2200 = vunpack.c.l.b16 %v261
  %v2201 = vunpack.c.l.b16 %v262
  %v2202 = vunpack.c.l.b16 %v263
  %v2203 = vunpack.c.l.b16 %v264
  %v2204 = vunpack.c.l.b16 %v265
  %v2205 = vunpack.c.l.b16 %v266
  %v2206 = vunpack.c.l.b16 %v267
  %v2207 = vunpack.c.l.b16 %v268
  %v2208 = vunpack.c.l.b16 %v269
  %v2209 = vunpack.c.l.b16 %v270
  %v2210 = vunpack.c.l.b16 %v271
  %v2211 = vunpack.c.l.b16 %v272
  %v2212 = vunpack.c.l.b16 %v273
  %v2213 = vunpack.c.l.b16 %v274
  %v2214 = vunpack.c.l.b16 %v275
  %v2215 = vunpack.c.l.b16 %v276
  %v2216 = vunpack.c.l.b16 %v277
  %v2217 = vunpack.c.l.b16 %v278
  %v2218 = vunpack.c.l.b16 %v279
  %v2219 = vunpack.c.l.b16 %v280
  %v2220 = vunpack.c.l.b16 %v281
  %v2221 = vunpack.c.l.b16 %v282
  %v2222 = vunpack.c.l.b16 %v283
  %v2223 = vunpack.c.l.b16 %v284
  %v2224 = vunpack.c.l.b16 %v285
  %v2225 = vunpack.c.l.b16 %v286
  %v2226 = vunpack.c.l.b16 %v287
  %v2227 = vunpack.c.l.b16 %v288
  %v2228 = vunpack.c.l.b16 %v289
  %v2229 = vunpack.c.l.b16 %v290
  %v2230 = vunpack.c.l.b16 %v291
  %v2231 = vunpack.c.l.b16 %v292
  %v2232 = vunpack.c.l.b16 %v293
  %v2233 = vunpack.c.l.b16 %v294
  %v2234 = vunpack.c.l.b16 %v295
  %v2235 = vunpack.c.l.b16 %v296
  %v2236 = vunpack.c.l.b16 %v297
  %v2237 = vunpack.c.l.b16 %v298
  %v2238 = vunpack.c.l.b16 %v299
  %v2239 = vunpack.c.l.b16 %v300
  %v2240 = vunpack.c.l.b16 %v301
  %v2241 = vunpack.c.l.b16 %v302
  %v2242 = vunpack.c.l.b16 %v303
  %v2243 = vunpack.c.l.b16 %v304
  %v2244 = vunpack.c.l.b16 %v305
  %v2245 = vunpack.c.l.b16 %v306
  %v2246 = vunpack.c.l.b16 %v307
  %v2247 = vunpack.c.l.b16 %v308
  %v2248 = vunpack.c.l.b16 %v309
  %v2249 = vunpack.c.l.b16 %v310
  %v2250 = vunpack.c.l.b16 %v311
  %v2251 = vunpack.c.l.b16 %v312
  %v2252 = vunpack.c.l.b16 %v313
  %v2253 = vunpack.c.l.b16 %v314
  %v2254 = vunpack.c.l.b16 %v315
  %v2255 = vunpack.c.l.b16 %v316
  %v2256 = vunpack.c.l.b16 %v317
  %v2257 = vunpack.c.l.b16 %v318
  %v2258 = vunpack.c.l.b16 %v319
  %v2259 = vunpack.c.l.b16 %v320
  %v2260 = vunpack.c.l.b16 %v321
  %v2261 = vunpack.c.l.b16 %v322
  %v2262 = vunpack.c.l.b16 %v323
  %v2263 = vunpack.c.l.b16 %v324
  %v2264 = vunpack.c.l.b16 %v325
  %v2265 = vunpack.c.l.b16 %v326
  %v2266 = vunpack.c.l.b16 %v327
  %v2267 = vunpack.c.l.b16 %v328
  %v2268 = vunpack.c.l.b16 %v329
  %v2269 = vunpack.c.l.b16 %v330
  %v2270 = vunpack.c.l.b16 %v331
  %v2271 = vunpack.c.l.b16 %v332
  %v2272 = vunpack.c.l.b16 %v333
  %v2273 = vunpack.c.l.b16 %v334
  %v2274 = vunpack.c.l.b16 %v335
  %v2275 = vunpack.c.l.b16 %v336
  %v2276 = vunpack.c.l.b16 %v337
  %v2277 = vunpack.c.l.b16 %v338
  %v2278 = vunpack.c.l.b16 %v339
  %v2279 = vunpack.c.l.b16 %v340
  %v2280 = vunpack.c.l.b16 %v341
  %v2281 = vunpack.c.l.b16 %v342
  %v2282 = vunpack.c.l.b16 %v343
  %v2283 = vunpack.c.l.b16 %v344
  %v2284 = vunpack.c.l.b16 %v345
  %v2285 = vunpack.c.l.b16 %v346
  %v2286 = vunpack.c.l.b16 %v347
  %v2287 = vunpack.c.l.b16 %v348
  %v2288 = vunpack.c.l.b16 %v349
  %v2289 = vunpack.c.l.b16 %v350
  %v2290 = vunpack.c.l.b16 %v351
  %v2291 = vunpack.c.l.b16 %v352
  %v2292 = vunpack.c.l.b16 %v353
  %v2293 = vunpack.c.l.b16 %v354
  %v2294 = vunpack.c.l.b16 %v355
  %v2295 = vunpack.c.l.b16 %v356
  %v2296 = vunpack.c.l.b16 %v357
  %v2297 = vunpack.c.l.b16 %v358
  %v2298 = vunpack.c.l.b16 %v359
  %v2299 = vunpack.c.l.b16 %v360
  %v2300 = vunpack.c.l.b16 %v361
  %v2301 = vunpack.c.l.b16 %v362
  %v2302 = vunpack.c.l.b16 %v363
  %v2303 = vunpack.c.l.b16 %v364
  %v2304 = vunpack.c.l.b16 %v365
  %v2305 = vunpack.c.l.b16 %v366
  %v2306 = vunpack.c.l.b16 %v367
  %v2307 = vunpack.c.l.b16 %v368
  %v2308 = vunpack.c.l.b16 %v369
  %v2309 = vunpack.c.l.b16 %v370
  %v2310 = vunpack.c.l.b16 %v371
  %v2311 = vunpack.c.l.b16 %v372
  %v2312 = vunpack.c.l.b16 %v373
  %v2313 = vunpack.c.l.b16 %v374
  %v2314 = vunpack.c.l.b16 %v375
  %v2315 = vunpack.c.l.b16 %v376
  %v2316 = vunpack.c.l.b16 %v377
  %v2317 = vunpack.c.l.b16 %v378
  %v2318 = vunpack.c.l.b16 %v379
  %v2319 = vunpack.c.l.b16 %v380
  %v2320 = vunpack.c.l.b16 %v381
  %v2321 = vunpack.c.l.b16 %v382
  %v2322 = vunpack.c.l.b16 %v383
  %v2323 = vunpack.c.l.b16 %v384
  %v2324 = vunpack.c.l.b16 %v385
  %v2325 = vunpack.c.l.b16 %v386
  %v2326 = vunpack.c.l.b16 %v387
  %v2327 = vunpack.c.l.b16 %v388
  %v2328 = vunpack.c.l.b16 %v389
  %v2329 = vunpack.c.l.b16 %v390
  %v2330 = vunpack.c.l.b16 %v391
  %v2331 = vunpack.c.l.b16 %v392
  %v2332 = vunpack.c.l.b16 %v393
  %v2333 = vunpack.c.l.b16 %v394
  %v2334 = vunpack.c.l.b16 %v395
  %v2335 = vunpack.c.l.b16 %v396
  %v2336 = vunpack.c.l.b16 %v397
  %v2337 = vunpack.c.l.b16 %v398
  %v2338 = vunpack.c.l.b16 %v399
  %v2339 = vunpack.c.l.b16 %v400
  %v2340 = vunpack.c.l.b16 %v401
  %v2341 = vunpack.c.l.b16 %v402
  %v2342 = vunpack.c.l.b16 %v403
  %v2343 = vunpack.c.l.b16 %v404
  %v2344 = vunpack.c.l.b16 %v405
  %v2345 = vunpack.c.l.b16 %v406
  %v2346 = vunpack.c.l.b16 %v407
  %v2347 = vunpack.c.l.b16 %v408
  %v2348 = vunpack.c.l.b16 %v409
  %v2349 = vunpack.c.l.b16 %v410
  %v2350 = vunpack.c.l.b16 %v411
  %v2351 = vunpack.c.l.b16 %v412
  %v2352 = vunpack.c.l.b16 %v413
  %v2353 = vunpack.c.l.b16 %v414
  %v2354 = vunpack.c.l.b16 %v415
  %v2355 = vunpack.c.l.b16 %v416
  %v2356 = vunpack.c.l.b16 %v417
  %v2357 = vunpack.c.l.b16 %v418
  %v2358 = vunpack.c.l.b16 %v419
  %v2359 = vunpack.c.l.b16 %v420
  %v2360 = vunpack.c.l.b16 %v421
  %v2361 = vunpack.c.l.b16 %v422
  %v2362 = vunpack.c.l.b16 %v423
  %v2363 = vunpack.c.l.b16 %v424
  %v2364 = vunpack.c.l.b16 %v425
  %v2365 = vunpack.c.l.b16 %v426
  %v2366 = vunpack.c.l.b16 %v427
  %v2367 = vunpack.c.l.b16 %v428
  %v2368 = vunpack.c.l.b16 %v429
  %v2369 = vunpack.c.l.b16 %v430
  %v2370 = vunpack.c.l.b16 %v431
  %v2371 = vunpack.c.l.b16 %v432
  %v2372 = vunpack.c.l.b16 %v433
  %v2373 = vunpack.c.l.b16 %v434
  %v2374 = vunpack.c.l.b16 %v435
  %v2375 = vunpack.c.l.b16 %v436
  %v2376 = vunpack.c.l.b16 %v437
  %v2377 = vunpack.c.l.b16 %v438
  %v2378 = vunpack.c.l.b16 %v439
  %v2379 = vunpack.c.l.b16 %v440
  %v2380 = vunpack.c.l.b16 %v441
  %v2381 = vunpack.c.l.b16 %v442
  %v2382 = vunpack.c.l.b16 %v443
  %v2383 = vunpack.c.l.b16 %v444
  %v2384 = vunpack.c.l.b16 %v445
  %v2385 = vunpack.c.l.b16 %v446
  %v2386 = vunpack.c.l.b16 %v447
  %v2387 = vunpack.c.l.b16 %v448
  %v2388 = vunpack.c.l.b16 %v449
  %v2389 = vunpack.c.l.b16 %v450
  %v2390 = vunpack.c.l.b16 %v451
  %v2391 = vunpack.c.l.b16 %v452
  %v2392 = vunpack.c.l.b16 %v453
  %v2393 = vunpack.c.l.b16 %v454
  %v2394 = vunpack.c.l.b16 %v455
  %v2395 = vunpack.c.l.b16 %v456
  %v2396 = vunpack.c.l.b16 %v457
  %v2397 = vunpack.c.l.b16 %v458
  %v2398 = vunpack.c.l.b16 %v459
  %v2399 = vunpack.c.l.b16 %v460
  %v2400 = vunpack.c.l.b16 %v461
  %v2401 = vunpack.c.l.b16 %v462
  %v2402 = vunpack.c.l.b16 %v463
  %v2403 = vunpack.c.l.b16 %v464
  %v2404 = vunpack.c.l.b16 %v465
  %v2405 = vunpack.c.l.b16 %v466
  %v2406 = vunpack.c.l.b16 %v467
  %v2407 = vunpack.c.l.b16 %v468
  %v2408 = vunpack.c.l.b16 %v469
  %v2409 = vunpack.c.l.b16 %v470
  %v2410 = vunpack.c.l.b16 %v471
  %v2411 = vunpack.c.l.b16 %v472
  %v2412 = vunpack.c.l.b16 %v473
  %v2413 = vunpack.c.l.b16 %v474
  %v2414 = vunpack.c.l.b16 %v475
  %v2415 = vunpack.c.l.b16 %v476
  %v2416 = vunpack.c.l.b16 %v477
  %v2417 = vunpack.c.l.b16 %v478
  %v2418 = vunpack.c.l.b16 %v479
  %v2419 = vunpack.c.l.b16 %v480
  %v2420 = vunpack.c.l.b16 %v481
  %v2421 = vunpack.c.l.b16 %v482
  %v2422 = vunpack.c.l.b16 %v483
  %v2423 = vunpack.c.l.b16 %v484
  %v2424 = vunpack.c.l.b16 %v485
  %v2425 = vunpack.c.l.b16 %v486
  %v2426 = vunpack.c.l.b16 %v487
  %v2427 = vunpack.c.l.b16 %v488
  %v2428 = vunpack.c.l.b16 %v489
  %v2429 = vunpack.c.l.b16 %v490
  %v2430 = vunpack.c.l.b16 %v491
  %v2431 = vunpack.c.l.b16 %v492
  %v2432 = vunpack.c.l.b16 %v493
  %v2433 = vunpack.c.l.b16 %v494
  %v2434 = vunpack.c.l.b16 %v495
  %v2435 = vunpack.c.l.b16 %v496
  %v2436 = vunpack.c.l.b16 %v497
  %v2437 = vunpack.c.l.b16 %v498
  %v2438 = vunpack.c.l.b16 %v499
  %v2439 = vunpack.c.l.b16 %v500
  %v2440 = vunpack.c.l.b16 %v501
  %v2441 = vunpack.c.l.b16 %v502
  %v2442 = vunpack.c.l.b16 %v503
  %v2443 = vunpack.c.l.b16 %v504
  %v2444 = vunpack.c.l.b16 %v505
  %v2445 = vunpack.c.l.b16 %v506
  %v2446 = vunpack.c.l.b16 %v507
  %v2447 = vunpack.c.l.b16 %v508
  %v2448 = vunpack.c.l.b16 %v509
  %v2449 = vunpack.c.l.b16 %v510
  %v2450 = vunpack.c.l.b16 %v511
  %v2451 = vunpack.c.l.b16 %v512
  %v2452 = vunpack.c.l.b16 %v513
  %v2453 = vunpack.c.l.b16 %v514
  %v2454 = vunpack.c.l.b16 %v515
  %v2455 = vunpack.c.l.b16 %v516
  %v2456 = vunpack.c.l.b16 %v517
  %v2457 = vunpack.c.l.b16 %v518
  %v2458 = vunpack.c.l.b16 %v519
  %v2459 = vunpack.c.l.b16 %v520
  %v2460 = vunpack.c.l.b16 %v521
  %v2461 = vunpack.c.l.b16 %v522
  %v2462 = vunpack.c.l.b16 %v523
  %v2463 = vunpack.c.l.b16 %v524
  %v2464 = vunpack.c.l.b16 %v525
  %v2465 = vunpack.c.l.b16 %v526
  %v2466 = vunpack.c.l.b16 %v527
  %v2467 = vunpack.c.l.b16 %v528
  %v2468 = vunpack.c.l.b16 %v529
  %v2469 = vunpack.c.l.b16 %v530
  %v2470 = vunpack.c.l.b16 %v531
  %v2471 = vunpack.c.l.b16 %v532
  %v2472 = vunpack.c.l.b16 %v533
  %v2473 = vunpack.c.l.b16 %v534
  %v2474 = vunpack.c.l.b16 %v535
  %v2475 = vunpack.c.l.b16 %v536
  %v2476 = vunpack.c.l.b16 %v537
  %v2477 = vunpack.c.l.b16 %v538
  %v2478 = vunpack.c.l.b16 %v539
  %v2479 = vunpack.c.l.b16 %v540
  %v2480 = vunpack.c.l.b16 %v541
  %v2481 = vunpack.c.l.b16 %v542
  %v2482 = vunpack.c.l.b16 %v543
  %v2483 = vunpack.c.l.b16 %v544
  %v2484 = vunpack.c.l.b16 %v545
  %v2485 = vunpack.c.l.b16 %v546
  %v2486 = vunpack.c.l.b16 %v547
  %v2487 = vunpack.c.l.b16 %v548
  %v2488 = vunpack.c.l.b16 %v549
  %v2489 = vunpack.c.l.b16 %v550
  %v2490 = vunpack.c.l.b16 %v551
  %v2491 = vunpack.c.l.b16 %v552
  %v2492 = vunpack.c.l.b16 %v553
  %v2493 = vunpack.c.l.b16 %v554
  %v2494 = vunpack.c.l.b16 %v555
  %v2495 = vunpack.c.l.b16 %v556
  %v2496 = vunpack.c.l.b16 %v557
  %v2497 = vunpack.c.l.b16 %v558
  %v2498 = vunpack.c.l.b16 %v559
  %v2499 = vunpack.c.l.b16 %v560
  %v2500 = vunpack.c.l.b16 %v561
  %v2501 = vunpack.c.l.b16 %v562
  %v2502 = vunpack.c.l.b16 %v563
  %v2503 = vunpack.c.l.b16 %v564
  %v2504 = vunpack.c.l.b16 %v565
  %v2505 = vunpack.c.l.b16 %v566
  %v2506 = vunpack.c.l.b16 %v567
  %v2507 = vunpack.c.l.b16 %v568
  %v2508 = vunpack.c.l.b16 %v569
  %v2509 = vunpack.c.l.b16 %v570
  %v2510 = vunpack.c.l.b16 %v571
  %v2511 = vunpack.c.l.b16 %v572
  %v2512 = vunpack.c.l.b16 %v573
  %v2513 = vunpack.c.l.b16 %v574
  %v2514 = vunpack.c.l.b16 %v575
  %v2515 = vunpack.c.l.b16 %v576
  %v2516 = vunpack.c.l.b16 %v577
  %v2517 = vunpack.c.l.b16 %v578
  %v2518 = vunpack.c.l.b16 %v579
  %v2519 = vunpack.c.l.b16 %v580
  %v2520 = vunpack.c.l.b16 %v581
  %v2521 = vunpack.c.l.b16 %v582
  %v2522 = vunpack.c.l.b16 %v583
  %v2523 = vunpack.c.l.b16 %v584
  %v2524 = vunpack.c.l.b16 %v585
  %v2525 = vunpack.c.l.b16 %v586
  %v2526 = vunpack.c.l.b16 %v587
  %v2527 = vunpack.c.l.b16 %v588
  %v2528 = vunpack.c.l.b16 %v589
  %v2529 = vunpack.c.l.b16 %v590
  %v2530 = vunpack.c.l.b16 %v591
  %v2531 = vunpack.c.l.b16 %v592
  %v2532 = vunpack.c.l.b16 %v593
  %v2533 = vunpack.c.l.b16 %v594
  %v2534 = vunpack.c.l.b16 %v595
  %v2535 = vunpack.c.l.b16 %v596
  %v2536 = vunpack.c.l.b16 %v597
  %v2537 = vunpack.c.l.b16 %v598
  %v2538 = vunpack.c.l.b16 %v599
  %v2539 = vunpack.c.l.b16 %v600
  %v2540 = vunpack.c.l.b16 %v601
  %v2541 = vunpack.c.l.b16 %v602
  %v2542 = vunpack.c.l.b16 %v603
  %v2543 = vunpack.c.l.b16 %v604
  %v2544 = vunpack.c.l.b16 %v605
  %v2545 = vunpack.c.l.b16 %v606
  %v2546 = vunpack.c.l.b16 %v607
  %v2547 = vunpack.c.l.b16 %v608
  %v2548 = vunpack.c.l.b16 %v609
  %v2549 = vunpack.c.l.b16 %v610
  %v2550 = vunpack.c.l.b16 %v611
  %v2551 = vunpack.c.l.b16 %v612
  %v2552 = vunpack.c.l.b16 %v613
  %v2553 = vunpack.c.l.b16 %v614
  %v2554 = vunpack.c.l.b16 %v615
  %v2555 = vunpack.c.l.b16 %v616
  %v2556 = vunpack.c.l.b16 %v617
  %v2557 = vunpack.c.l.b16 %v618
  %v2558 = vunpack.c.l.b16 %v619
  %v2559 = vunpack.c.l.b16 %v620
  %v2560 = vunpack.c.l.b16 %v621
  %v2561 = vunpack.c.l.b16 %v622
  %v2562 = vunpack.c.l.b16 %v623
  %v2563 = vunpack.c.l.b16 %v624
  %v2564 = vunpack.c.l.b16 %v625
  %v2565 = vunpack.c.l.b16 %v626
  %v2566 = vunpack.c.l.b16 %v627
  %v2567 = vunpack.c.l.b16 %v628
  %v2568 = vunpack.c.l.b16 %v629
  %v2569 = vunpack.c.l.b16 %v630
  %v2570 = vunpack.c.l.b16 %v631
  %v2571 = vunpack.c.l.b16 %v632
  %v2572 = vunpack.c.l.b16 %v633
  %v2573 = vunpack.c.l.b16 %v634
  %v2574 = vunpack.c.l.b16 %v635
  %v2575 = vunpack.c.l.b16 %v636
  %v2576 = vunpack.c.l.b16 %v637
  %v2577 = vunpack.c.l.b16 %v638
  %v2578 = vunpack.c.l.b16 %v639
  %v2579 = vunpack.c.l.b16 %v640
  %v2580 = vunpack.c.l.b16 %v641
  %v2581 = vunpack.c.l.b16 %v642
  %v2582 = vunpack.c.l.b16 %v643
  %v2583 = vunpack.c.l.b16 %v644
  %v2584 = vunpack.c.l.b16 %v645
  %v2585 = vunpack.c.l.b16 %v646
  %v2586 = vunpack.c.l.b16 %v647
  %v2587 = vunpack.c.l.b16 %v648
  %v2588 = vunpack.c.l.b16 %v649
  %v2589 = vunpack.c.l.b16 %v650
  %v2590 = vunpack.c.l.b16 %v651
  %v2591 = vunpack.c.l.b16 %v652
  %v2592 = vunpack.c.l.b16 %v653
  %v2593 = vunpack.c.l.b16 %v654
  %v2594 = vunpack.c.l.b16 %v655
  %v2595 = vunpack.c.l.b16 %v656
  %v2596 = vunpack.c.l.b16 %v657
  %v2597 = vunpack.c.l.b16 %v658
  %v2598 = vunpack.c.l.b16 %v659
  %v2599 = vunpack.c.l.b16 %v660
  %v2600 = vunpack.c.l.b16 %v661
  %v2601 = vunpack.c.l.b16 %v662
  %v2602 = vunpack.c.l.b16 %v663
  %v2603 = vunpack.c.l.b16 %v664
  %v2604 = vunpack.c.l.b16 %v665
  %v2605 = vunpack.c.l.b16 %v666
  %v2606 = vunpack.c.l.b16 %v667
  %v2607 = vunpack.c.l.b16 %v668
  %v2608 = vunpack.c.l.b16 %v669
  %v2609 = vunpack.c.l.b16 %v670
  %v2610 = vunpack.c.l.b16 %v671
  %v2611 = vunpack.c.l.b16 %v672
  %v2612 = vunpack.c.l.b16 %v673
  %v2613 = vunpack.c.l.b16 %v674
  %v2614 = vunpack.c.l.b16 %v675
  %v2615 = vunpack.c.l.b16 %v676
  %v2616 = vunpack.c.l.b16 %v677
  %v2617 = vunpack.c.l.b16 %v678
  %v2618 = vunpack.c.l.b16 %v679
  %v2619 = vunpack.c.l.b16 %v680
  %v2620 = vunpack.c.l.b16 %v681
  %v2621 = vunpack.c.l.b16 %v682
  %v2622 = vunpack.c.l.b16 %v683
  %v2623 = vunpack.c.l.b16 %v684
  %v2624 = vunpack.c.l.b16 %v685
  %v2625 = vunpack.c.l.b16 %v686
  %v2626 = vunpack.c.l.b16 %v687
  %v2627 = vunpack.c.l.b16 %v688
  %v2628 = vunpack.c.l.b16 %v689
  %v2629 = vunpack.c.l.b16 %v690
  %v2630 = vunpack.c.l.b16 %v691
  %v2631 = vunpack.c.l.b16 %v692
  %v2632 = vunpack.c.l.b16 %v693
  %v2633 = vunpack.c.l.b16 %v694
  %v2634 = vunpack.c.l.b16 %v695
  %v2635 = vunpack.c.l.b16 %v696
  %v2636 = vunpack.c.l.b16 %v697
  %v2637 = vunpack.c.l.b16 %v698
  %v2638 = vunpack.c.l.b16 %v699
  %v2639 = vunpack.c.l.b16 %v700
  %v2640 = vunpack.c.l.b16 %v701
  %v2641 = vunpack.c.l.b16 %v702
  %v2642 = vunpack.c.l.b16 %v703
  %v2643 = vunpack.c.l.b16 %v704
  %v2644 = vunpack.c.l.b16 %v705
  %v2645 = vunpack.c.l.b16 %v706
  %v2646 = vunpack.c.l.b16 %v707
  %v2647 = vunpack.c.l.b16 %v708
  %v2648 = vunpack.c.l.b16 %v709
  %v2649 = vunpack.c.l.b16 %v710
  %v2650 = vunpack.c.l.b16 %v711
  %v2651 = vunpack.c.l.b16 %v712
  %v2652 = vunpack.c.l.b16 %v713
  %v2653 = vunpack.c.l.b16 %v714
  %v2654 = vunpack.c.l.b16 %v715
  %v2655 = vunpack.c.l.b16 %v716
  %v2656 = vunpack.c.l.b16 %v717
  %v2657 = vunpack.c.l.b16 %v718
  %v2658 = vunpack.c.l.b16 %v719
  %v2659 = vunpack.c.l.b16 %v720
  %v2660 = vunpack.c.l.b16 %v721
  %v2661 = vunpack.c.l.b16 %v722
  %v2662 = vunpack.c.l.b16 %v723
  %v2663 = vunpack.c.l.b16 %v724
  %v2664 = vunpack.c.l.b16 %v725
  %v2665 = vunpack.c.l.b16 %v726
  %v2666 = vunpack.c.l.b16 %v727
  %v2667 = vunpack.c.l.b16 %v728
  %v2668 = vunpack.c.l.b16 %v729
  %v2669 = vunpack.c.l.b16 %v730
  %v2670 = vunpack.c.l.b16 %v731
  %v2671 = vunpack.c.l.b16 %v732
  %v2672 = vunpack.c.l.b16 %v733
  %v2673 = vunpack.c.l.b16 %v734
  %v2674 = vunpack.c.l.b16 %v735
  %v2675 = vunpack.c.l.b16 %v736
  %v2676 = vunpack.c.l.b16 %v737
  %v2677 = vunpack.c.l.b16 %v738
  %v2678 = vunpack.c.l.b16 %v739
  %v2679 = vunpack.c.l.b16 %v740
  %v2680 = vunpack.c.l.b16 %v741
  %v2681 = vunpack.c.l.b16 %v742
  %v2682 = vunpack.c.l.b16 %v743
  %v2683 = vunpack.c.l.b16 %v744
  %v2684 = vunpack.c.l.b16 %v745
  %v2685 = vunpack.c.l.b16 %v746
  %v2686 = vunpack.c.l.b16 %v747
  %v2687 = vunpack.c.l.b16 %v748
  %v2688 = vunpack.c.l.b16 %v749
  %v2689 = vunpack.c.l.b16 %v750
  %v2690 = vunpack.c.l.b16 %v751
  %v2691 = vunpack.c.l.b16 %v752
  %v2692 = vunpack.c.l.b16 %v753
  %v2693 = vunpack.c.l.b16 %v754
  %v2694 = vunpack.c.l.b16 %v755
  %v2695 = vunpack.c.l.b16 %v756
  %v2696 = vunpack.c.l.b16 %v757
  %v2697 = vunpack.c.l.b16 %v758
  %v2698 = vunpack.c.l.b16 %v759
  %v2699 = vunpack.c.l.b16 %v760
  %v2700 = vunpack.c.l.b16 %v761
  %v2701 = vunpack.c.l.b16 %v762
  %v2702 = vunpack.c.l.b16 %v763
  %v2703 = vunpack.c.l.b16 %v764
  %v2704 = vunpack.c.l.b16 %v765
  %v2705 = vunpack.c.l.b16 %v766
  %v2706 = vunpack.c.l.b16 %v767
  %v2707 = vunpack.c.l.b16 %v768
  %v2708 = vunpack.c.l.b16 %v769
  %v2709 = vunpack.c.l.b16 %v770
  %v2710 = vunpack.c.l.b16 %v771
  %v2711 = vunpack.c.l.b16 %v772
  %v2712 = vunpack.c.l.b16 %v773
  %v2713 = vunpack.c.l.b16 %v774
  %v2714 = vunpack.c.l.b16 %v775
  %v2715 = vunpack.c.l.b16 %v776
  %v2716 = vunpack.c.l.b16 %v777
  %v2717 = vunpack.c.l.b16 %v778
  %v2718 = vunpack.c.l.b16 %v779
  %v2719 = vunpack.c.l.b16 %v780
  %v2720 = vunpack.c.l.b16 %v781
  %v2721 = vunpack.c.l.b16 %v782
  %v2722 = vunpack.c.l.b16 %v783
  %v2723 = vunpack.c.l.b16 %v784
  %v2724 = vunpack.c.l.b16 %v785
  %v2725 = vunpack.c.l.b16 %v786
  %v2726 = vunpack.c.l.b16 %v787
  %v2727 = vunpack.c.l.b16 %v788
  %v2728 = vunpack.c.l.b16 %v789
  %v2729 = vunpack.c.l.b16 %v790
  %v2730 = vunpack.c.l.b16 %v791
  %v2731 = vunpack.c.l.b16 %v792
  %v2732 = vunpack.c.l.b16 %v793
  %v2733 = vunpack.c.l.b16 %v794
  %v2734 = vunpack.c.l.b16 %v795
  %v2735 = vunpack.c.l.b16 %v796
  %v2736 = vunpack.c.l.b16 %v797
  %v2737 = vunpack.c.l.b16 %v798
  %v2738 = vunpack.c.l.b16 %v799
  %v2739 = vunpack.c.l.b16 %v800
  %v2740 = vunpack.c.l.b16 %v801
  %v2741 = vunpack.c.l.b16 %v802
  %v2742 = vunpack.c.l.b16 %v803
  %v2743 = vunpack.c.l.b16 %v804
  %v2744 = vunpack.c.l.b16 %v805
  %v2745 = vunpack.c.l.b16 %v806
  %v2746 = vunpack.c.l.b16 %v807
  %v2747 = vunpack.c.l.b16 %v808
  %v2748 = vunpack.c.l.b16 %v809
  %v2749 = vunpack.c.l.b16 %v810
  %v2750 = vunpack.c.l.b16 %v811
  %v2751 = vpack.c.b16 %v1968, %v1967
  %v2752 = vpack.c.b16 %v1970, %v1969
  %v2753 = vpack.c.b16 %v1972, %v1971
  %v2754 = vpack.c.b16 %v1974, %v1973
  %v2755 = vpack.c.b16 %v1976, %v1975
  %v2756 = vpack.c.b16 %v1978, %v1977
  %v2757 = vpack.c.b16 %v1980, %v1979
  %v2758 = vpack.c.b16 %v1982, %v1981
  %v2759 = vpack.c.b16 %v1984, %v1983
  %v2760 = vpack.c.b16 %v1986, %v1985
  %v2761 = vpack.c.b16 %v1988, %v1987
  %v2762 = vpack.c.b16 %v1990, %v1989
  %v2763 = vpack.c.b16 %v1992, %v1991
  %v2764 = vpack.c.b16 %v1994, %v1993
  %v2765 = vpack.c.b16 %v1996, %v1995
  %v2766 = vpack.c.b16 %v1998, %v1997
  %v2767 = vpack.c.b16 %v2000, %v1999
  %v2768 = vpack.c.b16 %v2002, %v2001
  %v2769 = vpack.c.b16 %v2004, %v2003
  %v2770 = vpack.c.b16 %v2006, %v2005
  %v2771 = vpack.c.b16 %v2008, %v2007
  %v2772 = vpack.c.b16 %v2010, %v2009
  %v2773 = vpack.c.b16 %v2012, %v2011
  %v2774 = vpack.c.b16 %v2014, %v2013
  %v2775 = vpack.c.b16 %v2016, %v2015
  %v2776 = vpack.c.b16 %v2018, %v2017
  %v2777 = vpack.c.b16 %v2020, %v2019
  %v2778 = vpack.c.b16 %v2022, %v2021
  %v2779 = vpack.c.b16 %v2024, %v2023
  %v2780 = vpack.c.b16 %v2026, %v2025
  %v2781 = vpack.c.b16 %v2028, %v2027
  %v2782 = vpack.c.b16 %v2030, %v2029
  %v2783 = vpack.c.b16 %v2032, %v2031
  %v2784 = vpack.c.b16 %v2034, %v2033
  %v2785 = vpack.c.b16 %v2036, %v2035
  %v2786 = vpack.c.b16 %v2038, %v2037
  %v2787 = vpack.c.b16 %v2040, %v2039
  %v2788 = vpack.c.b16 %v2042, %v2041
  %v2789 = vpack.c.b16 %v2044, %v2043
  %v2790 = vpack.c.b16 %v2046, %v2045
  %v2791 = vpack.c.b16 %v2048, %v2047
  %v2792 = vpack.c.b16 %v2050, %v2049
  %v2793 = vpack.c.b16 %v2052, %v2051
  %v2794 = vpack.c.b16 %v2054, %v2053
  %v2795 = vpack.c.b16 %v2056, %v2055
  %v2796 = vpack.c.b16 %v2058, %v2057
  %v2797 = vpack.c.b16 %v2060, %v2059
  %v2798 = vpack.c.b16 %v2062, %v2061
  %v2799 = vpack.c.b16 %v2064, %v2063
  %v2800 = vpack.c.b16 %v2066, %v2065
  %v2801 = vpack.c.b16 %v2068, %v2067
  %v2802 = vpack.c.b16 %v2070, %v2069
  %v2803 = vpack.c.b16 %v2072, %v2071
  %v2804 = vpack.c.b16 %v2074, %v2073
  %v2805 = vpack.c.b16 %v2076, %v2075
  %v2806 = vpack.c.b16 %v2078, %v2077
  %v2807 = vpack.c.b16 %v2080, %v2079
  %v2808 = vpack.c.b16 %v2082, %v2081
  %v2809 = vpack.c.b16 %v2084, %v2083
  %v2810 = vpack.c.b16 %v2086, %v2085
  %v2811 = vpack.c.b16 %v2088, %v2087
  %v2812 = vpack.c.b16 %v2090, %v2089
  %v2813 = vpack.c.b16 %v2092, %v2091
  %v2814 = vpack.c.b16 %v2094, %v2093
  %v2815 = vpack.c.b16 %v2096, %v2095
  %v2816 = vpack.c.b16 %v2098, %v2097
  %v2817 = vpack.c.b16 %v2100, %v2099
  %v2818 = vpack.c.b16 %v2102, %v2101
  %v2819 = vpack.c.b16 %v2104, %v2103
  %v2820 = vpack.c.b16 %v2106, %v2105
  %v2821 = vpack.c.b16 %v2108, %v2107
  %v2822 = vpack.c.b16 %v2110, %v2109
  %v2823 = vpack.c.b16 %v2112, %v2111
  %v2824 = vpack.c.b16 %v2114, %v2113
  %v2825 = vpack.c.b16 %v2116, %v2115
  %v2826 = vpack.c.b16 %v2118, %v2117
  %v2827 = vpack.c.b16 %v2120, %v2119
  %v2828 = vpack.c.b16 %v2122, %v2121
  %v2829 = vpack.c.b16 %v2124, %v2123
  %v2830 = vpack.c.b16 %v2126, %v2125
  %v2831 = vpack.c.b16 %v2128, %v2127
  %v2832 = vpack.c.b16 %v2130, %v2129
  %v2833 = vpack.c.b16 %v2132, %v2131
  %v2834 = vpack.c.b16 %v2134, %v2133
  %v2835 = vpack.c.b16 %v2136, %v2135
  %v2836 = vpack.c.b16 %v2138, %v2137
  %v2837 = vpack.c.b16 %v2140, %v2139
  %v2838 = vpack.c.b16 %v2142, %v2141
  %v2839 = vpack.c.b16 %v2144, %v2143
  %v2840 = vpack.c.b16 %v2146, %v2145
  %v2841 = vpack.c.b16 %v2148, %v2147
  %v2842 = vpack.c.b16 %v2150, %v2149
  %v2843 = vpack.c.b16 %v2152, %v2151
  %v2844 = vpack.c.b16 %v2154, %v2153
  %v2845 = vpack.c.b16 %v2156, %v2155
  %v2846 = vpack.c.b16 %v2158, %v2157
  %v2847 = vpack.c.b16 %v2160, %v2159
  %v2848 = vpack.c.b16 %v2162, %v2161
  %v2849 = vpack.c.b16 %v2164, %v2163
  %v2850 = vpack.c.b16 %v2166, %v2165
  %v2851 = vpack.c.b16 %v2168, %v2167
  %v2852 = vpack.c.b16 %v2170, %v2169
  %v2853 = vpack.c.b16 %v2172, %v2171
  %v2854 = vpack.c.b16 %v2174, %v2173
  %v2855 = vpack.c.b16 %v2176, %v2175
  %v2856 = vpack.c.b16 %v2178, %v2177
  %v2857 = vpack.c.b16 %v2180, %v2179
  %v2858 = vpack.c.b16 %v2182, %v2181
  %v2859 = vpack.c.b16 %v2184, %v2183
  %v2860 = vpack.c.b16 %v2186, %v2185
  %v2861 = vpack.c.b16 %v2188, %v2187
  %v2862 = vpack.c.b16 %v2190, %v2189
  %v2863 = vpack.c.b16 %v2192, %v2191
  %v2864 = vpack.c.b16 %v2194, %v2193
  %v2865 = vpack.c.b16 %v2196, %v2195
  %v2866 = vpack.c.b16 %v2198, %v2197
  %v2867 = vpack.c.b16 %v2200, %v2199
  %v2868 = vpack.c.b16 %v2202, %v2201
  %v2869 = vpack.c.b16 %v2204, %v2203
  %v2870 = vpack.c.b16 %v2206, %v2205
  %v2871 = vpack.c.b16 %v2208, %v2207
  %v2872 = vpack.c.b16 %v2210, %v2209
  %v2873 = vpack.c.b16 %v2212, %v2211
  %v2874 = vpack.c.b16 %v2214, %v2213
  %v2875 = vpack.c.b16 %v2216, %v2215
  %v2876 = vpack.c.b16 %v2218, %v2217
  %v2877 = vpack.c.b16 %v2220, %v2219
  %v2878 = vpack.c.b16 %v2222, %v2221
  %v2879 = vpack.c.b16 %v2224, %v2223
  %v2880 = vpack.c.b16 %v2226, %v2225
  %v2881 = vpack.c.b16 %v2228, %v2227
  %v2882 = vpack.c.b16 %v2230, %v2229
  %v2883 = vpack.c.b16 %v2232, %v2231
  %v2884 = vpack.c.b16 %v2234, %v2233
  %v2885 = vpack.c.b16 %v2236, %v2235
  %v2886 = vpack.c.b16 %v2238, %v2237
  %v2887 = vpack.c.b16 %v2240, %v2239
  %v2888 = vpack.c.b16 %v2242, %v2241
  %v2889 = vpack.c.b16 %v2244, %v2243
  %v2890 = vpack.c.b16 %v2246, %v2245
  %v2891 = vpack.c.b16 %v2248, %v2247
  %v2892 = vpack.c.b16 %v2250, %v2249
  %v2893 = vpack.c.b16 %v2252, %v2251
  %v2894 = vpack.c.b16 %v2254, %v2253
  %v2895 = vpack.c.b16 %v2256, %v2255
  %v2896 = vpack.c.b16 %v2258, %v2257
  %v2897 = vpack.c.b16 %v2260, %v2259
  %v2898 = vpack.c.b16 %v2262, %v2261
  %v2899 = vpack.c.b16 %v2264, %v2263
  %v2900 = vpack.c.b16 %v2266, %v2265
  %v2901 = vpack.c.b16 %v2268, %v2267
  %v2902 = vpack.c.b16 %v2270, %v2269
  %v2903 = vpack.c.b16 %v2272, %v2271
  %v2904 = vpack.c.b16 %v2274, %v2273
  %v2905 = vpack.c.b16 %v2276, %v2275
  %v2906 = vpack.c.b16 %v2278, %v2277
  %v2907 = vpack.c.b16 %v2280, %v2279
  %v2908 = vpack.c.b16 %v2282, %v2281
  %v2909 = vpack.c.b16 %v2284, %v2283
  %v2910 = vpack.c.b16 %v2286, %v2285
  %v2911 = vpack.c.b16 %v2288, %v2287
  %v2912 = vpack.c.b16 %v2290, %v2289
  %v2913 = vpack.c.b16 %v2292, %v2291
  %v2914 = vpack.c.b16 %v2294, %v2293
  %v2915 = vpack.c.b16 %v2296, %v2295
  %v2916 = vpack.c.b16 %v2298, %v2297
  %v2917 = vpack.c.b16 %v2300, %v2299
  %v2918 = vpack.c.b16 %v2302, %v2301
  %v2919 = vpack.c.b16 %v2304, %v2303
  %v2920 = vpack.c.b16 %v2306, %v2305
  %v2921 = vpack.c.b16 %v2308, %v2307
  %v2922 = vpack.c.b16 %v2310, %v2309
  %v2923 = vpack.c.b16 %v2312, %v2311
  %v2924 = vpack.c.b16 %v2314, %v2313
  %v2925 = vpack.c.b16 %v2316, %v2315
  %v2926 = vpack.c.b16 %v2318, %v2317
  %v2927 = vpack.c.b16 %v2320, %v2319
  %v2928 = vpack.c.b16 %v2322, %v2321
  %v2929 = vpack.c.b16 %v2324, %v2323
  %v2930 = vpack.c.b16 %v2326, %v2325
  %v2931 = vpack.c.b16 %v2328, %v2327
  %v2932 = vpack.c.b16 %v2330, %v2329
  %v2933 = vpack.c.b16 %v2332, %v2331
  %v2934 = vpack.c.b16 %v2334, %v2333
  %v2935 = vpack.c.b16 %v2336, %v2335
  %v2936 = vpack.c.b16 %v2338, %v2337
  %v2937 = vpack.c.b16 %v2340, %v2339
  %v2938 = vpack.c.b16 %v2342, %v2341
  %v2939 = vpack.c.b16 %v2344, %v2343
  %v2940 = vpack.c.b16 %v2346, %v2345
  %v2941 = vpack.c.b16 %v2348, %v2347
  %v2942 = vpack.c.b16 %v2350, %v2349
  %v2943 = vpack.c.b16 %v2352, %v2351
  %v2944 = vpack.c.b16 %v2354, %v2353
  %v2945 = vpack.c.b16 %v2356, %v2355
  %v2946 = vpack.c.b16 %v2358, %v2357
  %v2947 = vpack.c.b16 %v2360, %v2359
  %v2948 = vpack.c.b16 %v2362, %v2361
  %v2949 = vpack.c.b16 %v2364, %v2363
  %v2950 = vpack.c.b16 %v2366, %v2365
  %v2951 = vpack.c.b16 %v2368, %v2367
  %v2952 = vpack.c.b16 %v2370, %v2369
  %v2953 = vpack.c.b16 %v2372, %v2371
  %v2954 = vpack.c.b16 %v2374, %v2373
  %v2955 = vpack.c.b16 %v2376, %v2375
  %v2956 = vpack.c.b16 %v2378, %v2377
  %v2957 = vpack.c.b16 %v2380, %v2379
  %v2958 = vpack.c.b16 %v2382, %v2381
  %v2959 = vpack.c.b16 %v2384, %v2383
  %v2960 = vpack.c.b16 %v2386, %v2385
  %v2961 = vpack.c.b16 %v2388, %v2387
  %v2962 = vpack.c.b16 %v2390, %v2389
  %v2963 = vpack.c.b16 %v2392, %v2391
  %v2964 = vpack.c.b16 %v2394, %v2393
  %v2965 = vpack.c.b16 %v2396, %v2395
  %v2966 = vpack.c.b16 %v2398, %v2397
  %v2967 = vpack.c.b16 %v2400, %v2399
  %v2968 = vpack.c.b16 %v2402, %v2401
  %v2969 = vpack.c.b16 %v2404, %v2403
  %v2970 = vpack.c.b16 %v2406, %v2405
  %v2971 = vpack.c.b16 %v2408, %v2407
  %v2972 = vpack.c.b16 %v2410, %v2409
  %v2973 = vpack.c.b16 %v2412, %v2411
  %v2974 = vpack.c.b16 %v2414, %v2413
  %v2975 = vpack.c.b16 %v2416, %v2415
  %v2976 = vpack.c.b16 %v2418, %v2417
  %v2977 = vpack.c.b16 %v2420, %v2419
  %v2978 = vpack.c.b16 %v2422, %v2421
  %v2979 = vpack.c.b16 %v2424, %v2423
  %v2980 = vpack.c.b16 %v2426, %v2425
  %v2981 = vpack.c.b16 %v2428, %v2427
  %v2982 = vpack.c.b16 %v2430, %v2429
  %v2983 = vpack.c.b16 %v2432, %v2431
  %v2984 = vpack.c.b16 %v2434, %v2433
  %v2985 = vpack.c.b16 %v2436, %v2435
  %v2986 = vpack.c.b16 %v2438, %v2437
  %v2987 = vpack.c.b16 %v2440, %v2439
  %v2988 = vpack.c.b16 %v2442, %v2441
  %v2989 = vpack.c.b16 %v2444, %v2443
  %v2990 = vpack.c.b16 %v2446, %v2445
  %v2991 = vpack.c.b16 %v2448, %v2447
  %v2992 = vpack.c.b16 %v2450, %v2449
  %v2993 = vpack.c.b16 %v2452, %v2451
  %v2994 = vpack.c.b16 %v2454, %v2453
  %v2995 = vpack.c.b16 %v2456, %v2455
  %v2996 = vpack.c.b16 %v2458, %v2457
  %v2997 = vpack.c.b16 %v2460, %v2459
  %v2998 = vpack.c.b16 %v2462, %v2461
  %v2999 = vpack.c.b16 %v2464, %v2463
  %v3000 = vpack.c.b16 %v2466, %v2465
  %v3001 = vpack.c.b16 %v2468, %v2467
  %v3002 = vpack.c.b16 %v2470, %v2469
  %v3003 = vpack.c.b16 %v2472, %v2471
  %v3004 = vpack.c.b16 %v2474, %v2473
  %v3005 = vpack.c.b16 %v2476, %v2475
  %v3006 = vpack.c.b16 %v2478, %v2477
  %v3007 = vpack.c.b16 %v2480, %v2479
  %v3008 = vpack.c.b16 %v2482, %v2481
  %v3009 = vpack.c.b16 %v2484, %v2483
  %v3010 = vpack.c.b16 %v2486, %v2485
  %v3011 = vpack.c.b16 %v2488, %v2487
  %v3012 = vpack.c.b16 %v2490, %v2489
  %v3013 = vpack.c.b16 %v2492, %v2491
  %v3014 = vpack.c.b16 %v2494, %v2493
  %v3015 = vpack.c.b16 %v2496, %v2495
  %v3016 = vpack.c.b16 %v2498, %v2497
  %v3017 = vpack.c.b16 %v2500, %v2499
  %v3018 = vpack.c.b16 %v2502, %v2501
  %v3019 = vpack.c.b16 %v2504, %v2503
  %v3020 = vpack.c.b16 %v2506, %v2505
  %v3021 = vpack.c.b16 %v2508, %v2507
  %v3022 = vpack.c.b16 %v2510, %v2509
  %v3023 = vpack.c.b16 %v2512, %v2511
  %v3024 = vpack.c.b16 %v2514, %v2513
  %v3025 = vpack.c.b16 %v2516, %v2515
  %v3026 = vpack.c.b16 %v2518, %v2517
  %v3027 = vpack.c.b16 %v2520, %v2519
  %v3028 = vpack.c.b16 %v2522, %v2521
  %v3029 = vpack.c.b16 %v2524, %v2523
  %v3030 = vpack.c.b16 %v2526, %v2525
  %v3031 = vpack.c.b16 %v2528, %v2527
  %v3032 = vpack.c.b16 %v2530, %v2529
  %v3033 = vpack.c.b16 %v2532, %v2531
  %v3034 = vpack.c.b16 %v2534, %v2533
  %v3035 = vpack.c.b16 %v2536, %v2535
  %v3036 = vpack.c.b16 %v2538, %v2537
  %v3037 = vpack.c.b16 %v2540, %v2539
  %v3038 = vpack.c.b16 %v2542, %v2541
  %v3039 = vpack.c.b16 %v2544, %v2543
  %v3040 = vpack.c.b16 %v2546, %v2545
  %v3041 = vpack.c.b16 %v2548, %v2547
  %v3042 = vpack.c.b16 %v2550, %v2549
  %v3043 = vpack.c.b16 %v2552, %v2551
  %v3044 = vpack.c.b16 %v2554, %v2553
  %v3045 = vpack.c.b16 %v2556, %v2555
  %v3046 = vpack.c.b16 %v2558, %v2557
  %v3047 = vpack.c.b16 %v2560, %v2559
  %v3048 = vpack.c.b16 %v2562, %v2561
  %v3049 = vpack.c.b16 %v2564, %v2563
  %v3050 = vpack.c.b16 %v2566, %v2565
  %v3051 = vpack.c.b16 %v2568, %v2567
  %v3052 = vpack.c.b16 %v2570, %v2569
  %v3053 = vpack.c.b16 %v2572, %v2571
  %v3054 = vpack.c.b16 %v2574, %v2573
  %v3055 = vpack.c.b16 %v2576, %v2575
  %v3056 = vpack.c.b16 %v2578, %v2577
  %v3057 = vpack.c.b16 %v2580, %v2579
  %v3058 = vpack.c.b16 %v2582, %v2581
  %v3059 = vpack.c.b16 %v2584, %v2583
  %v3060 = vpack.c.b16 %v2586, %v2585
  %v3061 = vpack.c.b16 %v2588, %v2587
  %v3062 = vpack.c.b16 %v2590, %v2589
  %v3063 = vpack.c.b16 %v2592, %v2591
  %v3064 = vpack.c.b16 %v2594, %v2593
  %v3065 = vpack.c.b16 %v2596, %v2595
  %v3066 = vpack.c.b16 %v2598, %v2597
  %v3067 = vpack.c.b16 %v2600, %v2599
  %v3068 = vpack.c.b16 %v2602, %v2601
  %v3069 = vpack.c.b16 %v2604, %v2603
  %v3070 = vpack.c.b16 %v2606, %v2605
  %v3071 = vpack.c.b16 %v2608, %v2607
  %v3072 = vpack.c.b16 %v2610, %v2609
  %v3073 = vpack.c.b16 %v2612, %v2611
  %v3074 = vpack.c.b16 %v2614, %v2613
  %v3075 = vpack.c.b16 %v2616, %v2615
  %v3076 = vpack.c.b16 %v2618, %v2617
  %v3077 = vpack.c.b16 %v2620, %v2619
  %v3078 = vpack.c.b16 %v2622, %v2621
  %v3079 = vpack.c.b16 %v2624, %v2623
  %v3080 = vpack.c.b16 %v2626, %v2625
  %v3081 = vpack.c.b16 %v2628, %v2627
  %v3082 = vpack.c.b16 %v2630, %v2629
  %v3083 = vpack.c.b16 %v2632, %v2631
  %v3084 = vpack.c.b16 %v2634, %v2633
  %v3085 = vpack.c.b16 %v2636, %v2635
  %v3086 = vpack.c.b16 %v2638, %v2637
  %v3087 = vpack.c.b16 %v2640, %v2639
  %v3088 = vpack.c.b16 %v2642, %v2641
  %v3089 = vpack.c.b16 %v2644, %v2643
  %v3090 = vpack.c.b16 %v2646, %v2645
  %v3091 = vpack.c.b16 %v2648, %v2647
  %v3092 = vpack.c.b16 %v2650, %v2649
  %v3093 = vpack.c.b16 %v2652, %v2651
  %v3094 = vpack.c.b16 %v2654, %v2653
  %v3095 = vpack.c.b16 %v2656, %v2655
  %v3096 = vpack.c.b16 %v2658, %v2657
  %v3097 = vpack.c.b16 %v2660, %v2659
  %v3098 = vpack.c.b16 %v2662, %v2661
  %v3099 = vpack.c.b16 %v2664, %v2663
  %v3100 = vpack.c.b16 %v2666, %v2665
  %v3101 = vpack.c.b16 %v2668, %v2667
  %v3102 = vpack.c.b16 %v2670, %v2669
  %v3103 = vpack.c.b16 %v2672, %v2671
  %v3104 = vpack.c.b16 %v2674, %v2673
  %v3105 = vpack.c.b16 %v2676, %v2675
  %v3106 = vpack.c.b16 %v2678, %v2677
  %v3107 = vpack.c.b16 %v2680, %v2679
  %v3108 = vpack.c.b16 %v2682, %v2681
  %v3109 = vpack.c.b16 %v2684, %v2683
  %v3110 = vpack.c.b16 %v2686, %v2685
  %v3111 = vpack.c.b16 %v2688, %v2687
  %v3112 = vpack.c.b16 %v2690, %v2689
  %v3113 = vpack.c.b16 %v2692, %v2691
  %v3114 = vpack.c.b16 %v2694, %v2693
  %v3115 = vpack.c.b16 %v2696, %v2695
  %v3116 = vpack.c.b16 %v2698, %v2697
  %v3117 = vpack.c.b16 %v2700, %v2699
  %v3118 = vpack.c.b16 %v2702, %v2701
  %v3119 = vpack.c.b16 %v2704, %v2703
  %v3120 = vpack.c.b16 %v2706, %v2705
  %v3121 = vpack.c.b16 %v2708, %v2707
  %v3122 = vpack.c.b16 %v2710, %v2709
  %v3123 = vpack.c.b16 %v2712, %v2711
  %v3124 = vpack.c.b16 %v2714, %v2713
  %v3125 = vpack.c.b16 %v2716, %v2715
  %v3126 = vpack.c.b16 %v2718, %v2717
  %v3127 = vpack.c.b16 %v2720, %v2719
  %v3128 = vpack.c.b16 %v2722, %v2721
  %v3129 = vpack.c.b16 %v2724, %v2723
  %v3130 = vpack.c.b16 %v2726, %v2725
  %v3131 = vpack.c.b16 %v2728, %v2727
  %v3132 = vpack.c.b16 %v2730, %v2729
  %v3133 = vpack.c.b16 %v2732, %v2731
  %v3134 = vpack.c.b16 %v2734, %v2733
  %v3135 = vpack.c.b16 %v2736, %v2735
  %v3136 = vpack.c.b16 %v2738, %v2737
  %v3137 = vpack.c.b16 %v2740, %v2739
  %v3138 = vpack.c.b16 %v2742, %v2741
  %v3139 = vpack.c.b16 %v2744, %v2743
  %v3140 = vpack.c.b16 %v2746, %v2745
  %v3141 = vpack.c.b16 %v2748, %v2747
  %v3142 = vpack.c.b16 %v2750, %v2749
  %3535 = vmatprep.subr.bf16.mxu0 0
  %3536 = vmatpush1.bf16.msra.mxu0 %v2758
  %3537 = vmatprep.subr.bf16.mxu0 0
  %3538 = vmatpush1.bf16.msra.mxu0 %v2757
  %3539 = vmatprep.subr.bf16.mxu0 0
  %3540 = vmatpush1.bf16.msra.mxu0 %v2756
  %3541 = vmatprep.subr.bf16.mxu0 0
  %3542 = vmatpush1.bf16.msra.mxu0 %v2755
  %3543 = vmatprep.subr.bf16.mxu0 0
  %3544 = vmatpush1.bf16.msra.mxu0 %v2754
  %3545 = vmatprep.subr.bf16.mxu0 0
  %3546 = vmatpush1.bf16.msra.mxu0 %v2753
  %3547 = vmatprep.subr.bf16.mxu0 0
  %3548 = vmatpush1.bf16.msra.mxu0 %v2752
  %3549 = vmatprep.subr.bf16.mxu0 0
  %3550 = vmatpush1.bf16.msra.mxu0 %v2751
  %3551 = vmatprep.subr.bf16.mxu0 0
  %3552 = vmatpush2.bf16.msra.mxu0 %v2766
  %3553 = vmatprep.subr.bf16.mxu0 0
  %3554 = vmatpush2.bf16.msra.mxu0 %v2765
  %3555 = vmatprep.subr.bf16.mxu0 0
  %3556 = vmatpush2.bf16.msra.mxu0 %v2764
  %3557 = vmatprep.subr.bf16.mxu0 0
  %3558 = vmatpush2.bf16.msra.mxu0 %v2763
  %3559 = vmatprep.subr.bf16.mxu0 0
  %3560 = vmatpush2.bf16.msra.mxu0 %v2762
  %3561 = vmatprep.subr.bf16.mxu0 0
  %3562 = vmatpush2.bf16.msra.mxu0 %v2761
  %3563 = vmatprep.subr.bf16.mxu0 0
  %3564 = vmatpush2.bf16.msra.mxu0 %v2760
  %3565 = vmatprep.subr.bf16.mxu0 0
  %3566 = vmatpush2.bf16.msra.mxu0 %v2759
  %3567 = vmatprep.mubr.bf16.mxu0 %v863
  %3568 = vmatmul.mubr.bf16.gmra.mxu0 %v849
  %v3569 = vpop.f32.mrf.mxu0
  %v3570 = vadd.f32 %v817, %v3569
  %v3571 = vpop.f32.mrf.mxu0
  %v3572 = vpop.f32.mrf.mxu0
  %v3573 = vpop.f32.mrf.mxu0
  %3574 = vdwg.mxu0
  %3575 = vmatprep.subr.bf16.mxu0 0
  %3576 = vmatpush1.bf16.msra.mxu0 %v2774
  %3577 = vmatprep.subr.bf16.mxu0 0
  %3578 = vmatpush1.bf16.msra.mxu0 %v2773
  %3579 = vmatprep.subr.bf16.mxu0 0
  %3580 = vmatpush1.bf16.msra.mxu0 %v2772
  %3581 = vmatprep.subr.bf16.mxu0 0
  %3582 = vmatpush1.bf16.msra.mxu0 %v2771
  %3583 = vmatprep.subr.bf16.mxu0 0
  %3584 = vmatpush1.bf16.msra.mxu0 %v2770
  %3585 = vmatprep.subr.bf16.mxu0 0
  %3586 = vmatpush1.bf16.msra.mxu0 %v2769
  %3587 = vmatprep.subr.bf16.mxu0 0
  %3588 = vmatpush1.bf16.msra.mxu0 %v2768
  %3589 = vmatprep.subr.bf16.mxu0 0
  %3590 = vmatpush1.bf16.msra.mxu0 %v2767
  %3591 = vmatprep.subr.bf16.mxu0 0
  %3592 = vmatpush2.bf16.msra.mxu0 %v2782
  %3593 = vmatprep.subr.bf16.mxu0 0
  %3594 = vmatpush2.bf16.msra.mxu0 %v2781
  %3595 = vmatprep.subr.bf16.mxu0 0
  %3596 = vmatpush2.bf16.msra.mxu0 %v2780
  %3597 = vmatprep.subr.bf16.mxu0 0
  %3598 = vmatpush2.bf16.msra.mxu0 %v2779
  %3599 = vmatprep.subr.bf16.mxu0 0
  %3600 = vmatpush2.bf16.msra.mxu0 %v2778
  %3601 = vmatprep.subr.bf16.mxu0 0
  %3602 = vmatpush2.bf16.msra.mxu0 %v2777
  %3603 = vmatprep.subr.bf16.mxu0 0
  %3604 = vmatpush2.bf16.msra.mxu0 %v2776
  %3605 = vmatprep.subr.bf16.mxu0 0
  %3606 = vmatpush2.bf16.msra.mxu0 %v2775
  %3607 = vmatprep.mubr.bf16.mxu0 %v873
  %3608 = vmatmul.mubr.bf16.gmra.mxu0 %v871
  %v3609 = vpop.f32.mrf.mxu0
  %v3610 = vadd.f32 %v3570, %v3609
  %v3611 = vpop.f32.mrf.mxu0
  %v3612 = vpop.f32.mrf.mxu0
  %v3613 = vpop.f32.mrf.mxu0
  %3614 = vdwg.mxu0
  %3615 = vmatprep.subr.bf16.mxu0 0
  %3616 = vmatpush1.bf16.msra.mxu0 %v2790
  %3617 = vmatprep.subr.bf16.mxu0 0
  %3618 = vmatpush1.bf16.msra.mxu0 %v2789
  %3619 = vmatprep.subr.bf16.mxu0 0
  %3620 = vmatpush1.bf16.msra.mxu0 %v2788
  %3621 = vmatprep.subr.bf16.mxu0 0
  %3622 = vmatpush1.bf16.msra.mxu0 %v2787
  %3623 = vmatprep.subr.bf16.mxu0 0
  %3624 = vmatpush1.bf16.msra.mxu0 %v2786
  %3625 = vmatprep.subr.bf16.mxu0 0
  %3626 = vmatpush1.bf16.msra.mxu0 %v2785
  %3627 = vmatprep.subr.bf16.mxu0 0
  %3628 = vmatpush1.bf16.msra.mxu0 %v2784
  %3629 = vmatprep.subr.bf16.mxu0 0
  %3630 = vmatpush1.bf16.msra.mxu0 %v2783
  %3631 = vmatprep.subr.bf16.mxu0 0
  %3632 = vmatpush2.bf16.msra.mxu0 %v2798
  %3633 = vmatprep.subr.bf16.mxu0 0
  %3634 = vmatpush2.bf16.msra.mxu0 %v2797
  %3635 = vmatprep.subr.bf16.mxu0 0
  %3636 = vmatpush2.bf16.msra.mxu0 %v2796
  %3637 = vmatprep.subr.bf16.mxu0 0
  %3638 = vmatpush2.bf16.msra.mxu0 %v2795
  %3639 = vmatprep.subr.bf16.mxu0 0
  %3640 = vmatpush2.bf16.msra.mxu0 %v2794
  %3641 = vmatprep.subr.bf16.mxu0 0
  %3642 = vmatpush2.bf16.msra.mxu0 %v2793
  %3643 = vmatprep.subr.bf16.mxu0 0
  %3644 = vmatpush2.bf16.msra.mxu0 %v2792
  %3645 = vmatprep.subr.bf16.mxu0 0
  %3646 = vmatpush2.bf16.msra.mxu0 %v2791
  %3647 = vmatprep.mubr.bf16.mxu0 %v870
  %3648 = vmatmul.mubr.bf16.gmra.mxu0 %v856
  %v3649 = vpop.f32.mrf.mxu0
  %v3650 = vadd.f32 %v3610, %v3649
  %v3651 = vpop.f32.mrf.mxu0
  %v3652 = vpop.f32.mrf.mxu0
  %v3653 = vpop.f32.mrf.mxu0
  %3654 = vdwg.mxu0
  %3655 = vmatprep.subr.bf16.mxu0 0
  %3656 = vmatpush1.bf16.msra.mxu0 %v2806
  %3657 = vmatprep.subr.bf16.mxu0 0
  %3658 = vmatpush1.bf16.msra.mxu0 %v2805
  %3659 = vmatprep.subr.bf16.mxu0 0
  %3660 = vmatpush1.bf16.msra.mxu0 %v2804
  %3661 = vmatprep.subr.bf16.mxu0 0
  %3662 = vmatpush1.bf16.msra.mxu0 %v2803
  %3663 = vmatprep.subr.bf16.mxu0 0
  %3664 = vmatpush1.bf16.msra.mxu0 %v2802
  %3665 = vmatprep.subr.bf16.mxu0 0
  %3666 = vmatpush1.bf16.msra.mxu0 %v2801
  %3667 = vmatprep.subr.bf16.mxu0 0
  %3668 = vmatpush1.bf16.msra.mxu0 %v2800
  %3669 = vmatprep.subr.bf16.mxu0 0
  %3670 = vmatpush1.bf16.msra.mxu0 %v2799
  %3671 = vmatprep.subr.bf16.mxu0 0
  %3672 = vmatpush2.bf16.msra.mxu0 %v2814
  %3673 = vmatprep.subr.bf16.mxu0 0
  %3674 = vmatpush2.bf16.msra.mxu0 %v2813
  %3675 = vmatprep.subr.bf16.mxu0 0
  %3676 = vmatpush2.bf16.msra.mxu0 %v2812
  %3677 = vmatprep.subr.bf16.mxu0 0
  %3678 = vmatpush2.bf16.msra.mxu0 %v2811
  %3679 = vmatprep.subr.bf16.mxu0 0
  %3680 = vmatpush2.bf16.msra.mxu0 %v2810
  %3681 = vmatprep.subr.bf16.mxu0 0
  %3682 = vmatpush2.bf16.msra.mxu0 %v2809
  %3683 = vmatprep.subr.bf16.mxu0 0
  %3684 = vmatpush2.bf16.msra.mxu0 %v2808
  %3685 = vmatprep.subr.bf16.mxu0 0
  %3686 = vmatpush2.bf16.msra.mxu0 %v2807
  %3687 = vmatprep.mubr.bf16.mxu0 %v874
  %3688 = vmatmul.mubr.bf16.gmra.mxu0 %v872
  %v3689 = vpop.f32.mrf.mxu0
  %v3690 = vadd.f32 %v3650, %v3689
  %v3691 = vpop.f32.mrf.mxu0
  %v3692 = vpop.f32.mrf.mxu0
  %v3693 = vpop.f32.mrf.mxu0
  %3694 = vdwg.mxu0
  %3695 = vmatprep.subr.bf16.mxu0 0
  %3696 = vmatpush1.bf16.msra.mxu0 %v2822
  %3697 = vmatprep.subr.bf16.mxu0 0
  %3698 = vmatpush1.bf16.msra.mxu0 %v2821
  %3699 = vmatprep.subr.bf16.mxu0 0
  %3700 = vmatpush1.bf16.msra.mxu0 %v2820
  %3701 = vmatprep.subr.bf16.mxu0 0
  %3702 = vmatpush1.bf16.msra.mxu0 %v2819
  %3703 = vmatprep.subr.bf16.mxu0 0
  %3704 = vmatpush1.bf16.msra.mxu0 %v2818
  %3705 = vmatprep.subr.bf16.mxu0 0
  %3706 = vmatpush1.bf16.msra.mxu0 %v2817
  %3707 = vmatprep.subr.bf16.mxu0 0
  %3708 = vmatpush1.bf16.msra.mxu0 %v2816
  %3709 = vmatprep.subr.bf16.mxu0 0
  %3710 = vmatpush1.bf16.msra.mxu0 %v2815
  %3711 = vmatprep.subr.bf16.mxu0 0
  %3712 = vmatpush2.bf16.msra.mxu0 %v2830
  %3713 = vmatprep.subr.bf16.mxu0 0
  %3714 = vmatpush2.bf16.msra.mxu0 %v2829
  %3715 = vmatprep.subr.bf16.mxu0 0
  %3716 = vmatpush2.bf16.msra.mxu0 %v2828
  %3717 = vmatprep.subr.bf16.mxu0 0
  %3718 = vmatpush2.bf16.msra.mxu0 %v2827
  %3719 = vmatprep.subr.bf16.mxu0 0
  %3720 = vmatpush2.bf16.msra.mxu0 %v2826
  %3721 = vmatprep.subr.bf16.mxu0 0
  %3722 = vmatpush2.bf16.msra.mxu0 %v2825
  %3723 = vmatprep.subr.bf16.mxu0 0
  %3724 = vmatpush2.bf16.msra.mxu0 %v2824
  %3725 = vmatprep.subr.bf16.mxu0 0
  %3726 = vmatpush2.bf16.msra.mxu0 %v2823
  %3727 = vmatprep.mubr.bf16.mxu0 %v912
  %3728 = vmatmul.mubr.bf16.gmra.mxu0 %v898
  %v3729 = vpop.f32.mrf.mxu0
  %v3730 = vadd.f32 %v3690, %v3729
  %v3731 = vpop.f32.mrf.mxu0
  %v3732 = vpop.f32.mrf.mxu0
  %v3733 = vpop.f32.mrf.mxu0
  %3734 = vdwg.mxu0
  %3735 = vmatprep.subr.bf16.mxu0 0
  %3736 = vmatpush1.bf16.msra.mxu0 %v2838
  %3737 = vmatprep.subr.bf16.mxu0 0
  %3738 = vmatpush1.bf16.msra.mxu0 %v2837
  %3739 = vmatprep.subr.bf16.mxu0 0
  %3740 = vmatpush1.bf16.msra.mxu0 %v2836
  %3741 = vmatprep.subr.bf16.mxu0 0
  %3742 = vmatpush1.bf16.msra.mxu0 %v2835
  %3743 = vmatprep.subr.bf16.mxu0 0
  %3744 = vmatpush1.bf16.msra.mxu0 %v2834
  %3745 = vmatprep.subr.bf16.mxu0 0
  %3746 = vmatpush1.bf16.msra.mxu0 %v2833
  %3747 = vmatprep.subr.bf16.mxu0 0
  %3748 = vmatpush1.bf16.msra.mxu0 %v2832
  %3749 = vmatprep.subr.bf16.mxu0 0
  %3750 = vmatpush1.bf16.msra.mxu0 %v2831
  %3751 = vmatprep.subr.bf16.mxu0 0
  %3752 = vmatpush2.bf16.msra.mxu0 %v2846
  %3753 = vmatprep.subr.bf16.mxu0 0
  %3754 = vmatpush2.bf16.msra.mxu0 %v2845
  %3755 = vmatprep.subr.bf16.mxu0 0
  %3756 = vmatpush2.bf16.msra.mxu0 %v2844
  %3757 = vmatprep.subr.bf16.mxu0 0
  %3758 = vmatpush2.bf16.msra.mxu0 %v2843
  %3759 = vmatprep.subr.bf16.mxu0 0
  %3760 = vmatpush2.bf16.msra.mxu0 %v2842
  %3761 = vmatprep.subr.bf16.mxu0 0
  %3762 = vmatpush2.bf16.msra.mxu0 %v2841
  %3763 = vmatprep.subr.bf16.mxu0 0
  %3764 = vmatpush2.bf16.msra.mxu0 %v2840
  %3765 = vmatprep.subr.bf16.mxu0 0
  %3766 = vmatpush2.bf16.msra.mxu0 %v2839
  %3767 = vmatprep.mubr.bf16.mxu0 %v922
  %3768 = vmatmul.mubr.bf16.gmra.mxu0 %v920
  %v3769 = vpop.f32.mrf.mxu0
  %v3770 = vadd.f32 %v3730, %v3769
  %v3771 = vpop.f32.mrf.mxu0
  %v3772 = vpop.f32.mrf.mxu0
  %v3773 = vpop.f32.mrf.mxu0
  %3774 = vdwg.mxu0
  %3775 = vmatprep.subr.bf16.mxu0 0
  %3776 = vmatpush1.bf16.msra.mxu0 %v2854
  %3777 = vmatprep.subr.bf16.mxu0 0
  %3778 = vmatpush1.bf16.msra.mxu0 %v2853
  %3779 = vmatprep.subr.bf16.mxu0 0
  %3780 = vmatpush1.bf16.msra.mxu0 %v2852
  %3781 = vmatprep.subr.bf16.mxu0 0
  %3782 = vmatpush1.bf16.msra.mxu0 %v2851
  %3783 = vmatprep.subr.bf16.mxu0 0
  %3784 = vmatpush1.bf16.msra.mxu0 %v2850
  %3785 = vmatprep.subr.bf16.mxu0 0
  %3786 = vmatpush1.bf16.msra.mxu0 %v2849
  %3787 = vmatprep.subr.bf16.mxu0 0
  %3788 = vmatpush1.bf16.msra.mxu0 %v2848
  %3789 = vmatprep.subr.bf16.mxu0 0
  %3790 = vmatpush1.bf16.msra.mxu0 %v2847
  %3791 = vmatprep.subr.bf16.mxu0 0
  %3792 = vmatpush2.bf16.msra.mxu0 %v2862
  %3793 = vmatprep.subr.bf16.mxu0 0
  %3794 = vmatpush2.bf16.msra.mxu0 %v2861
  %3795 = vmatprep.subr.bf16.mxu0 0
  %3796 = vmatpush2.bf16.msra.mxu0 %v2860
  %3797 = vmatprep.subr.bf16.mxu0 0
  %3798 = vmatpush2.bf16.msra.mxu0 %v2859
  %3799 = vmatprep.subr.bf16.mxu0 0
  %3800 = vmatpush2.bf16.msra.mxu0 %v2858
  %3801 = vmatprep.subr.bf16.mxu0 0
  %3802 = vmatpush2.bf16.msra.mxu0 %v2857
  %3803 = vmatprep.subr.bf16.mxu0 0
  %3804 = vmatpush2.bf16.msra.mxu0 %v2856
  %3805 = vmatprep.subr.bf16.mxu0 0
  %3806 = vmatpush2.bf16.msra.mxu0 %v2855
  %3807 = vmatprep.mubr.bf16.mxu0 %v919
  %3808 = vmatmul.mubr.bf16.gmra.mxu0 %v905
  %v3809 = vpop.f32.mrf.mxu0
  %v3810 = vadd.f32 %v3770, %v3809
  %v3811 = vpop.f32.mrf.mxu0
  %v3812 = vpop.f32.mrf.mxu0
  %v3813 = vpop.f32.mrf.mxu0
  %3814 = vdwg.mxu0
  %3815 = vmatprep.subr.bf16.mxu0 0
  %3816 = vmatpush1.bf16.msra.mxu0 %v2870
  %3817 = vmatprep.subr.bf16.mxu0 0
  %3818 = vmatpush1.bf16.msra.mxu0 %v2869
  %3819 = vmatprep.subr.bf16.mxu0 0
  %3820 = vmatpush1.bf16.msra.mxu0 %v2868
  %3821 = vmatprep.subr.bf16.mxu0 0
  %3822 = vmatpush1.bf16.msra.mxu0 %v2867
  %3823 = vmatprep.subr.bf16.mxu0 0
  %3824 = vmatpush1.bf16.msra.mxu0 %v2866
  %3825 = vmatprep.subr.bf16.mxu0 0
  %3826 = vmatpush1.bf16.msra.mxu0 %v2865
  %3827 = vmatprep.subr.bf16.mxu0 0
  %3828 = vmatpush1.bf16.msra.mxu0 %v2864
  %3829 = vmatprep.subr.bf16.mxu0 0
  %3830 = vmatpush1.bf16.msra.mxu0 %v2863
  %3831 = vmatprep.subr.bf16.mxu0 0
  %3832 = vmatpush2.bf16.msra.mxu0 %v2878
  %3833 = vmatprep.subr.bf16.mxu0 0
  %3834 = vmatpush2.bf16.msra.mxu0 %v2877
  %3835 = vmatprep.subr.bf16.mxu0 0
  %3836 = vmatpush2.bf16.msra.mxu0 %v2876
  %3837 = vmatprep.subr.bf16.mxu0 0
  %3838 = vmatpush2.bf16.msra.mxu0 %v2875
  %3839 = vmatprep.subr.bf16.mxu0 0
  %3840 = vmatpush2.bf16.msra.mxu0 %v2874
  %3841 = vmatprep.subr.bf16.mxu0 0
  %3842 = vmatpush2.bf16.msra.mxu0 %v2873
  %3843 = vmatprep.subr.bf16.mxu0 0
  %3844 = vmatpush2.bf16.msra.mxu0 %v2872
  %3845 = vmatprep.subr.bf16.mxu0 0
  %3846 = vmatpush2.bf16.msra.mxu0 %v2871
  %3847 = vmatprep.mubr.bf16.mxu0 %v923
  %3848 = vmatmul.mubr.bf16.gmra.mxu0 %v921
  %v3849 = vpop.f32.mrf.mxu0
  %v3850 = vadd.f32 %v3810, %v3849
  %v3851 = vpop.f32.mrf.mxu0
  %v3852 = vpop.f32.mrf.mxu0
  %v3853 = vpop.f32.mrf.mxu0
  %3854 = vdwg.mxu0
  %3855 = vmatprep.subr.bf16.mxu0 0
  %3856 = vmatpush1.bf16.msra.mxu0 %v2886
  %3857 = vmatprep.subr.bf16.mxu0 0
  %3858 = vmatpush1.bf16.msra.mxu0 %v2885
  %3859 = vmatprep.subr.bf16.mxu0 0
  %3860 = vmatpush1.bf16.msra.mxu0 %v2884
  %3861 = vmatprep.subr.bf16.mxu0 0
  %3862 = vmatpush1.bf16.msra.mxu0 %v2883
  %3863 = vmatprep.subr.bf16.mxu0 0
  %3864 = vmatpush1.bf16.msra.mxu0 %v2882
  %3865 = vmatprep.subr.bf16.mxu0 0
  %3866 = vmatpush1.bf16.msra.mxu0 %v2881
  %3867 = vmatprep.subr.bf16.mxu0 0
  %3868 = vmatpush1.bf16.msra.mxu0 %v2880
  %3869 = vmatprep.subr.bf16.mxu0 0
  %3870 = vmatpush1.bf16.msra.mxu0 %v2879
  %3871 = vmatprep.subr.bf16.mxu0 0
  %3872 = vmatpush2.bf16.msra.mxu0 %v2894
  %3873 = vmatprep.subr.bf16.mxu0 0
  %3874 = vmatpush2.bf16.msra.mxu0 %v2893
  %3875 = vmatprep.subr.bf16.mxu0 0
  %3876 = vmatpush2.bf16.msra.mxu0 %v2892
  %3877 = vmatprep.subr.bf16.mxu0 0
  %3878 = vmatpush2.bf16.msra.mxu0 %v2891
  %3879 = vmatprep.subr.bf16.mxu0 0
  %3880 = vmatpush2.bf16.msra.mxu0 %v2890
  %3881 = vmatprep.subr.bf16.mxu0 0
  %3882 = vmatpush2.bf16.msra.mxu0 %v2889
  %3883 = vmatprep.subr.bf16.mxu0 0
  %3884 = vmatpush2.bf16.msra.mxu0 %v2888
  %3885 = vmatprep.subr.bf16.mxu0 0
  %3886 = vmatpush2.bf16.msra.mxu0 %v2887
  %3887 = vmatprep.mubr.bf16.mxu0 %v961
  %3888 = vmatmul.mubr.bf16.gmra.mxu0 %v947
  %v3889 = vpop.f32.mrf.mxu0
  %v3890 = vadd.f32 %v3850, %v3889
  %v3891 = vpop.f32.mrf.mxu0
  %v3892 = vpop.f32.mrf.mxu0
  %v3893 = vpop.f32.mrf.mxu0
  %3894 = vdwg.mxu0
  %3895 = vmatprep.subr.bf16.mxu0 0
  %3896 = vmatpush1.bf16.msra.mxu0 %v2902
  %3897 = vmatprep.subr.bf16.mxu0 0
  %3898 = vmatpush1.bf16.msra.mxu0 %v2901
  %3899 = vmatprep.subr.bf16.mxu0 0
  %3900 = vmatpush1.bf16.msra.mxu0 %v2900
  %3901 = vmatprep.subr.bf16.mxu0 0
  %3902 = vmatpush1.bf16.msra.mxu0 %v2899
  %3903 = vmatprep.subr.bf16.mxu0 0
  %3904 = vmatpush1.bf16.msra.mxu0 %v2898
  %3905 = vmatprep.subr.bf16.mxu0 0
  %3906 = vmatpush1.bf16.msra.mxu0 %v2897
  %3907 = vmatprep.subr.bf16.mxu0 0
  %3908 = vmatpush1.bf16.msra.mxu0 %v2896
  %3909 = vmatprep.subr.bf16.mxu0 0
  %3910 = vmatpush1.bf16.msra.mxu0 %v2895
  %3911 = vmatprep.subr.bf16.mxu0 0
  %3912 = vmatpush2.bf16.msra.mxu0 %v2910
  %3913 = vmatprep.subr.bf16.mxu0 0
  %3914 = vmatpush2.bf16.msra.mxu0 %v2909
  %3915 = vmatprep.subr.bf16.mxu0 0
  %3916 = vmatpush2.bf16.msra.mxu0 %v2908
  %3917 = vmatprep.subr.bf16.mxu0 0
  %3918 = vmatpush2.bf16.msra.mxu0 %v2907
  %3919 = vmatprep.subr.bf16.mxu0 0
  %3920 = vmatpush2.bf16.msra.mxu0 %v2906
  %3921 = vmatprep.subr.bf16.mxu0 0
  %3922 = vmatpush2.bf16.msra.mxu0 %v2905
  %3923 = vmatprep.subr.bf16.mxu0 0
  %3924 = vmatpush2.bf16.msra.mxu0 %v2904
  %3925 = vmatprep.subr.bf16.mxu0 0
  %3926 = vmatpush2.bf16.msra.mxu0 %v2903
  %3927 = vmatprep.mubr.bf16.mxu0 %v971
  %3928 = vmatmul.mubr.bf16.gmra.mxu0 %v969
  %v3929 = vpop.f32.mrf.mxu0
  %v3930 = vadd.f32 %v3890, %v3929
  %v3931 = vpop.f32.mrf.mxu0
  %v3932 = vpop.f32.mrf.mxu0
  %v3933 = vpop.f32.mrf.mxu0
  %3934 = vdwg.mxu0
  %3935 = vmatprep.subr.bf16.mxu0 0
  %3936 = vmatpush1.bf16.msra.mxu0 %v2918
  %3937 = vmatprep.subr.bf16.mxu0 0
  %3938 = vmatpush1.bf16.msra.mxu0 %v2917
  %3939 = vmatprep.subr.bf16.mxu0 0
  %3940 = vmatpush1.bf16.msra.mxu0 %v2916
  %3941 = vmatprep.subr.bf16.mxu0 0
  %3942 = vmatpush1.bf16.msra.mxu0 %v2915
  %3943 = vmatprep.subr.bf16.mxu0 0
  %3944 = vmatpush1.bf16.msra.mxu0 %v2914
  %3945 = vmatprep.subr.bf16.mxu0 0
  %3946 = vmatpush1.bf16.msra.mxu0 %v2913
  %3947 = vmatprep.subr.bf16.mxu0 0
  %3948 = vmatpush1.bf16.msra.mxu0 %v2912
  %3949 = vmatprep.subr.bf16.mxu0 0
  %3950 = vmatpush1.bf16.msra.mxu0 %v2911
  %3951 = vmatprep.subr.bf16.mxu0 0
  %3952 = vmatpush2.bf16.msra.mxu0 %v2926
  %3953 = vmatprep.subr.bf16.mxu0 0
  %3954 = vmatpush2.bf16.msra.mxu0 %v2925
  %3955 = vmatprep.subr.bf16.mxu0 0
  %3956 = vmatpush2.bf16.msra.mxu0 %v2924
  %3957 = vmatprep.subr.bf16.mxu0 0
  %3958 = vmatpush2.bf16.msra.mxu0 %v2923
  %3959 = vmatprep.subr.bf16.mxu0 0
  %3960 = vmatpush2.bf16.msra.mxu0 %v2922
  %3961 = vmatprep.subr.bf16.mxu0 0
  %3962 = vmatpush2.bf16.msra.mxu0 %v2921
  %3963 = vmatprep.subr.bf16.mxu0 0
  %3964 = vmatpush2.bf16.msra.mxu0 %v2920
  %3965 = vmatprep.subr.bf16.mxu0 0
  %3966 = vmatpush2.bf16.msra.mxu0 %v2919
  %3967 = vmatprep.mubr.bf16.mxu0 %v968
  %3968 = vmatmul.mubr.bf16.gmra.mxu0 %v954
  %v3969 = vpop.f32.mrf.mxu0
  %v3970 = vadd.f32 %v3930, %v3969
  %v3971 = vpop.f32.mrf.mxu0
  %v3972 = vpop.f32.mrf.mxu0
  %v3973 = vpop.f32.mrf.mxu0
  %3974 = vdwg.mxu0
  %3975 = vmatprep.subr.bf16.mxu0 0
  %3976 = vmatpush1.bf16.msra.mxu0 %v2934
  %3977 = vmatprep.subr.bf16.mxu0 0
  %3978 = vmatpush1.bf16.msra.mxu0 %v2933
  %3979 = vmatprep.subr.bf16.mxu0 0
  %3980 = vmatpush1.bf16.msra.mxu0 %v2932
  %3981 = vmatprep.subr.bf16.mxu0 0
  %3982 = vmatpush1.bf16.msra.mxu0 %v2931
  %3983 = vmatprep.subr.bf16.mxu0 0
  %3984 = vmatpush1.bf16.msra.mxu0 %v2930
  %3985 = vmatprep.subr.bf16.mxu0 0
  %3986 = vmatpush1.bf16.msra.mxu0 %v2929
  %3987 = vmatprep.subr.bf16.mxu0 0
  %3988 = vmatpush1.bf16.msra.mxu0 %v2928
  %3989 = vmatprep.subr.bf16.mxu0 0
  %3990 = vmatpush1.bf16.msra.mxu0 %v2927
  %3991 = vmatprep.subr.bf16.mxu0 0
  %3992 = vmatpush2.bf16.msra.mxu0 %v2942
  %3993 = vmatprep.subr.bf16.mxu0 0
  %3994 = vmatpush2.bf16.msra.mxu0 %v2941
  %3995 = vmatprep.subr.bf16.mxu0 0
  %3996 = vmatpush2.bf16.msra.mxu0 %v2940
  %3997 = vmatprep.subr.bf16.mxu0 0
  %3998 = vmatpush2.bf16.msra.mxu0 %v2939
  %3999 = vmatprep.subr.bf16.mxu0 0
  %4000 = vmatpush2.bf16.msra.mxu0 %v2938
  %4001 = vmatprep.subr.bf16.mxu0 0
  %4002 = vmatpush2.bf16.msra.mxu0 %v2937
  %4003 = vmatprep.subr.bf16.mxu0 0
  %4004 = vmatpush2.bf16.msra.mxu0 %v2936
  %4005 = vmatprep.subr.bf16.mxu0 0
  %4006 = vmatpush2.bf16.msra.mxu0 %v2935
  %4007 = vmatprep.mubr.bf16.mxu0 %v972
  %4008 = vmatmul.mubr.bf16.gmra.mxu0 %v970
  %v4009 = vpop.f32.mrf.mxu0
  %v4010 = vadd.f32 %v3970, %v4009
  %v4011 = vpop.f32.mrf.mxu0
  %v4012 = vpop.f32.mrf.mxu0
  %v4013 = vpop.f32.mrf.mxu0
  %4014 = vdwg.mxu0
  %4015 = vmatprep.subr.bf16.mxu0 0
  %4016 = vmatpush1.bf16.msra.mxu0 %v2950
  %4017 = vmatprep.subr.bf16.mxu0 0
  %4018 = vmatpush1.bf16.msra.mxu0 %v2949
  %4019 = vmatprep.subr.bf16.mxu0 0
  %4020 = vmatpush1.bf16.msra.mxu0 %v2948
  %4021 = vmatprep.subr.bf16.mxu0 0
  %4022 = vmatpush1.bf16.msra.mxu0 %v2947
  %4023 = vmatprep.subr.bf16.mxu0 0
  %4024 = vmatpush1.bf16.msra.mxu0 %v2946
  %4025 = vmatprep.subr.bf16.mxu0 0
  %4026 = vmatpush1.bf16.msra.mxu0 %v2945
  %4027 = vmatprep.subr.bf16.mxu0 0
  %4028 = vmatpush1.bf16.msra.mxu0 %v2944
  %4029 = vmatprep.subr.bf16.mxu0 0
  %4030 = vmatpush1.bf16.msra.mxu0 %v2943
  %4031 = vmatprep.subr.bf16.mxu0 0
  %4032 = vmatpush2.bf16.msra.mxu0 %v2958
  %4033 = vmatprep.subr.bf16.mxu0 0
  %4034 = vmatpush2.bf16.msra.mxu0 %v2957
  %4035 = vmatprep.subr.bf16.mxu0 0
  %4036 = vmatpush2.bf16.msra.mxu0 %v2956
  %4037 = vmatprep.subr.bf16.mxu0 0
  %4038 = vmatpush2.bf16.msra.mxu0 %v2955
  %4039 = vmatprep.subr.bf16.mxu0 0
  %4040 = vmatpush2.bf16.msra.mxu0 %v2954
  %4041 = vmatprep.subr.bf16.mxu0 0
  %4042 = vmatpush2.bf16.msra.mxu0 %v2953
  %4043 = vmatprep.subr.bf16.mxu0 0
  %4044 = vmatpush2.bf16.msra.mxu0 %v2952
  %4045 = vmatprep.subr.bf16.mxu0 0
  %4046 = vmatpush2.bf16.msra.mxu0 %v2951
  %4047 = vmatprep.mubr.bf16.mxu0 %v1010
  %4048 = vmatmul.mubr.bf16.gmra.mxu0 %v996
  %v4049 = vpop.f32.mrf.mxu0
  %v4050 = vadd.f32 %v4010, %v4049
  %v4051 = vpop.f32.mrf.mxu0
  %v4052 = vpop.f32.mrf.mxu0
  %v4053 = vpop.f32.mrf.mxu0
  %4054 = vdwg.mxu0
  %4055 = vmatprep.subr.bf16.mxu0 0
  %4056 = vmatpush1.bf16.msra.mxu0 %v2966
  %4057 = vmatprep.subr.bf16.mxu0 0
  %4058 = vmatpush1.bf16.msra.mxu0 %v2965
  %4059 = vmatprep.subr.bf16.mxu0 0
  %4060 = vmatpush1.bf16.msra.mxu0 %v2964
  %4061 = vmatprep.subr.bf16.mxu0 0
  %4062 = vmatpush1.bf16.msra.mxu0 %v2963
  %4063 = vmatprep.subr.bf16.mxu0 0
  %4064 = vmatpush1.bf16.msra.mxu0 %v2962
  %4065 = vmatprep.subr.bf16.mxu0 0
  %4066 = vmatpush1.bf16.msra.mxu0 %v2961
  %4067 = vmatprep.subr.bf16.mxu0 0
  %4068 = vmatpush1.bf16.msra.mxu0 %v2960
  %4069 = vmatprep.subr.bf16.mxu0 0
  %4070 = vmatpush1.bf16.msra.mxu0 %v2959
  %4071 = vmatprep.subr.bf16.mxu0 0
  %4072 = vmatpush2.bf16.msra.mxu0 %v2974
  %4073 = vmatprep.subr.bf16.mxu0 0
  %4074 = vmatpush2.bf16.msra.mxu0 %v2973
  %4075 = vmatprep.subr.bf16.mxu0 0
  %4076 = vmatpush2.bf16.msra.mxu0 %v2972
  %4077 = vmatprep.subr.bf16.mxu0 0
  %4078 = vmatpush2.bf16.msra.mxu0 %v2971
  %4079 = vmatprep.subr.bf16.mxu0 0
  %4080 = vmatpush2.bf16.msra.mxu0 %v2970
  %4081 = vmatprep.subr.bf16.mxu0 0
  %4082 = vmatpush2.bf16.msra.mxu0 %v2969
  %4083 = vmatprep.subr.bf16.mxu0 0
  %4084 = vmatpush2.bf16.msra.mxu0 %v2968
  %4085 = vmatprep.subr.bf16.mxu0 0
  %4086 = vmatpush2.bf16.msra.mxu0 %v2967
  %4087 = vmatprep.mubr.bf16.mxu0 %v1020
  %4088 = vmatmul.mubr.bf16.gmra.mxu0 %v1018
  %v4089 = vpop.f32.mrf.mxu0
  %v4090 = vadd.f32 %v4050, %v4089
  %v4091 = vpop.f32.mrf.mxu0
  %v4092 = vpop.f32.mrf.mxu0
  %v4093 = vpop.f32.mrf.mxu0
  %4094 = vdwg.mxu0
  %4095 = vmatprep.subr.bf16.mxu0 0
  %4096 = vmatpush1.bf16.msra.mxu0 %v2982
  %4097 = vmatprep.subr.bf16.mxu0 0
  %4098 = vmatpush1.bf16.msra.mxu0 %v2981
  %4099 = vmatprep.subr.bf16.mxu0 0
  %4100 = vmatpush1.bf16.msra.mxu0 %v2980
  %4101 = vmatprep.subr.bf16.mxu0 0
  %4102 = vmatpush1.bf16.msra.mxu0 %v2979
  %4103 = vmatprep.subr.bf16.mxu0 0
  %4104 = vmatpush1.bf16.msra.mxu0 %v2978
  %4105 = vmatprep.subr.bf16.mxu0 0
  %4106 = vmatpush1.bf16.msra.mxu0 %v2977
  %4107 = vmatprep.subr.bf16.mxu0 0
  %4108 = vmatpush1.bf16.msra.mxu0 %v2976
  %4109 = vmatprep.subr.bf16.mxu0 0
  %4110 = vmatpush1.bf16.msra.mxu0 %v2975
  %4111 = vmatprep.subr.bf16.mxu0 0
  %4112 = vmatpush2.bf16.msra.mxu0 %v2990
  %4113 = vmatprep.subr.bf16.mxu0 0
  %4114 = vmatpush2.bf16.msra.mxu0 %v2989
  %4115 = vmatprep.subr.bf16.mxu0 0
  %4116 = vmatpush2.bf16.msra.mxu0 %v2988
  %4117 = vmatprep.subr.bf16.mxu0 0
  %4118 = vmatpush2.bf16.msra.mxu0 %v2987
  %4119 = vmatprep.subr.bf16.mxu0 0
  %4120 = vmatpush2.bf16.msra.mxu0 %v2986
  %4121 = vmatprep.subr.bf16.mxu0 0
  %4122 = vmatpush2.bf16.msra.mxu0 %v2985
  %4123 = vmatprep.subr.bf16.mxu0 0
  %4124 = vmatpush2.bf16.msra.mxu0 %v2984
  %4125 = vmatprep.subr.bf16.mxu0 0
  %4126 = vmatpush2.bf16.msra.mxu0 %v2983
  %4127 = vmatprep.mubr.bf16.mxu0 %v1017
  %4128 = vmatmul.mubr.bf16.gmra.mxu0 %v1003
  %v4129 = vpop.f32.mrf.mxu0
  %v4130 = vadd.f32 %v4090, %v4129
  %v4131 = vpop.f32.mrf.mxu0
  %v4132 = vpop.f32.mrf.mxu0
  %v4133 = vpop.f32.mrf.mxu0
  %4134 = vdwg.mxu0
  %4135 = vmatprep.subr.bf16.mxu0 0
  %4136 = vmatpush1.bf16.msra.mxu0 %v2998
  %4137 = vmatprep.subr.bf16.mxu0 0
  %4138 = vmatpush1.bf16.msra.mxu0 %v2997
  %4139 = vmatprep.subr.bf16.mxu0 0
  %4140 = vmatpush1.bf16.msra.mxu0 %v2996
  %4141 = vmatprep.subr.bf16.mxu0 0
  %4142 = vmatpush1.bf16.msra.mxu0 %v2995
  %4143 = vmatprep.subr.bf16.mxu0 0
  %4144 = vmatpush1.bf16.msra.mxu0 %v2994
  %4145 = vmatprep.subr.bf16.mxu0 0
  %4146 = vmatpush1.bf16.msra.mxu0 %v2993
  %4147 = vmatprep.subr.bf16.mxu0 0
  %4148 = vmatpush1.bf16.msra.mxu0 %v2992
  %4149 = vmatprep.subr.bf16.mxu0 0
  %4150 = vmatpush1.bf16.msra.mxu0 %v2991
  %4151 = vmatprep.subr.bf16.mxu0 0
  %4152 = vmatpush2.bf16.msra.mxu0 %v3006
  %4153 = vmatprep.subr.bf16.mxu0 0
  %4154 = vmatpush2.bf16.msra.mxu0 %v3005
  %4155 = vmatprep.subr.bf16.mxu0 0
  %4156 = vmatpush2.bf16.msra.mxu0 %v3004
  %4157 = vmatprep.subr.bf16.mxu0 0
  %4158 = vmatpush2.bf16.msra.mxu0 %v3003
  %4159 = vmatprep.subr.bf16.mxu0 0
  %4160 = vmatpush2.bf16.msra.mxu0 %v3002
  %4161 = vmatprep.subr.bf16.mxu0 0
  %4162 = vmatpush2.bf16.msra.mxu0 %v3001
  %4163 = vmatprep.subr.bf16.mxu0 0
  %4164 = vmatpush2.bf16.msra.mxu0 %v3000
  %4165 = vmatprep.subr.bf16.mxu0 0
  %4166 = vmatpush2.bf16.msra.mxu0 %v2999
  %4167 = vmatprep.mubr.bf16.mxu0 %v1021
  %4168 = vmatmul.mubr.bf16.gmra.mxu0 %v1019
  %v4169 = vpop.f32.mrf.mxu0
  %v4170 = vadd.f32 %v4130, %v4169
  %v4171 = vpop.f32.mrf.mxu0
  %v4172 = vpop.f32.mrf.mxu0
  %v4173 = vpop.f32.mrf.mxu0
  %4174 = vdwg.mxu0
  %4175 = vmatprep.subr.bf16.mxu0 0
  %4176 = vmatpush1.bf16.msra.mxu0 %v3014
  %4177 = vmatprep.subr.bf16.mxu0 0
  %4178 = vmatpush1.bf16.msra.mxu0 %v3013
  %4179 = vmatprep.subr.bf16.mxu0 0
  %4180 = vmatpush1.bf16.msra.mxu0 %v3012
  %4181 = vmatprep.subr.bf16.mxu0 0
  %4182 = vmatpush1.bf16.msra.mxu0 %v3011
  %4183 = vmatprep.subr.bf16.mxu0 0
  %4184 = vmatpush1.bf16.msra.mxu0 %v3010
  %4185 = vmatprep.subr.bf16.mxu0 0
  %4186 = vmatpush1.bf16.msra.mxu0 %v3009
  %4187 = vmatprep.subr.bf16.mxu0 0
  %4188 = vmatpush1.bf16.msra.mxu0 %v3008
  %4189 = vmatprep.subr.bf16.mxu0 0
  %4190 = vmatpush1.bf16.msra.mxu0 %v3007
  %4191 = vmatprep.subr.bf16.mxu0 0
  %4192 = vmatpush2.bf16.msra.mxu0 %v3022
  %4193 = vmatprep.subr.bf16.mxu0 0
  %4194 = vmatpush2.bf16.msra.mxu0 %v3021
  %4195 = vmatprep.subr.bf16.mxu0 0
  %4196 = vmatpush2.bf16.msra.mxu0 %v3020
  %4197 = vmatprep.subr.bf16.mxu0 0
  %4198 = vmatpush2.bf16.msra.mxu0 %v3019
  %4199 = vmatprep.subr.bf16.mxu0 0
  %4200 = vmatpush2.bf16.msra.mxu0 %v3018
  %4201 = vmatprep.subr.bf16.mxu0 0
  %4202 = vmatpush2.bf16.msra.mxu0 %v3017
  %4203 = vmatprep.subr.bf16.mxu0 0
  %4204 = vmatpush2.bf16.msra.mxu0 %v3016
  %4205 = vmatprep.subr.bf16.mxu0 0
  %4206 = vmatpush2.bf16.msra.mxu0 %v3015
  %4207 = vmatprep.mubr.bf16.mxu0 %v1059
  %4208 = vmatmul.mubr.bf16.gmra.mxu0 %v1045
  %v4209 = vpop.f32.mrf.mxu0
  %v4210 = vadd.f32 %v4170, %v4209
  %v4211 = vpop.f32.mrf.mxu0
  %v4212 = vpop.f32.mrf.mxu0
  %v4213 = vpop.f32.mrf.mxu0
  %4214 = vdwg.mxu0
  %4215 = vmatprep.subr.bf16.mxu0 0
  %4216 = vmatpush1.bf16.msra.mxu0 %v3030
  %4217 = vmatprep.subr.bf16.mxu0 0
  %4218 = vmatpush1.bf16.msra.mxu0 %v3029
  %4219 = vmatprep.subr.bf16.mxu0 0
  %4220 = vmatpush1.bf16.msra.mxu0 %v3028
  %4221 = vmatprep.subr.bf16.mxu0 0
  %4222 = vmatpush1.bf16.msra.mxu0 %v3027
  %4223 = vmatprep.subr.bf16.mxu0 0
  %4224 = vmatpush1.bf16.msra.mxu0 %v3026
  %4225 = vmatprep.subr.bf16.mxu0 0
  %4226 = vmatpush1.bf16.msra.mxu0 %v3025
  %4227 = vmatprep.subr.bf16.mxu0 0
  %4228 = vmatpush1.bf16.msra.mxu0 %v3024
  %4229 = vmatprep.subr.bf16.mxu0 0
  %4230 = vmatpush1.bf16.msra.mxu0 %v3023
  %4231 = vmatprep.subr.bf16.mxu0 0
  %4232 = vmatpush2.bf16.msra.mxu0 %v3038
  %4233 = vmatprep.subr.bf16.mxu0 0
  %4234 = vmatpush2.bf16.msra.mxu0 %v3037
  %4235 = vmatprep.subr.bf16.mxu0 0
  %4236 = vmatpush2.bf16.msra.mxu0 %v3036
  %4237 = vmatprep.subr.bf16.mxu0 0
  %4238 = vmatpush2.bf16.msra.mxu0 %v3035
  %4239 = vmatprep.subr.bf16.mxu0 0
  %4240 = vmatpush2.bf16.msra.mxu0 %v3034
  %4241 = vmatprep.subr.bf16.mxu0 0
  %4242 = vmatpush2.bf16.msra.mxu0 %v3033
  %4243 = vmatprep.subr.bf16.mxu0 0
  %4244 = vmatpush2.bf16.msra.mxu0 %v3032
  %4245 = vmatprep.subr.bf16.mxu0 0
  %4246 = vmatpush2.bf16.msra.mxu0 %v3031
  %4247 = vmatprep.mubr.bf16.mxu0 %v1069
  %4248 = vmatmul.mubr.bf16.gmra.mxu0 %v1067
  %v4249 = vpop.f32.mrf.mxu0
  %v4250 = vadd.f32 %v4210, %v4249
  %v4251 = vpop.f32.mrf.mxu0
  %v4252 = vpop.f32.mrf.mxu0
  %v4253 = vpop.f32.mrf.mxu0
  %4254 = vdwg.mxu0
  %4255 = vmatprep.subr.bf16.mxu0 0
  %4256 = vmatpush1.bf16.msra.mxu0 %v3046
  %4257 = vmatprep.subr.bf16.mxu0 0
  %4258 = vmatpush1.bf16.msra.mxu0 %v3045
  %4259 = vmatprep.subr.bf16.mxu0 0
  %4260 = vmatpush1.bf16.msra.mxu0 %v3044
  %4261 = vmatprep.subr.bf16.mxu0 0
  %4262 = vmatpush1.bf16.msra.mxu0 %v3043
  %4263 = vmatprep.subr.bf16.mxu0 0
  %4264 = vmatpush1.bf16.msra.mxu0 %v3042
  %4265 = vmatprep.subr.bf16.mxu0 0
  %4266 = vmatpush1.bf16.msra.mxu0 %v3041
  %4267 = vmatprep.subr.bf16.mxu0 0
  %4268 = vmatpush1.bf16.msra.mxu0 %v3040
  %4269 = vmatprep.subr.bf16.mxu0 0
  %4270 = vmatpush1.bf16.msra.mxu0 %v3039
  %4271 = vmatprep.subr.bf16.mxu0 0
  %4272 = vmatpush2.bf16.msra.mxu0 %v3054
  %4273 = vmatprep.subr.bf16.mxu0 0
  %4274 = vmatpush2.bf16.msra.mxu0 %v3053
  %4275 = vmatprep.subr.bf16.mxu0 0
  %4276 = vmatpush2.bf16.msra.mxu0 %v3052
  %4277 = vmatprep.subr.bf16.mxu0 0
  %4278 = vmatpush2.bf16.msra.mxu0 %v3051
  %4279 = vmatprep.subr.bf16.mxu0 0
  %4280 = vmatpush2.bf16.msra.mxu0 %v3050
  %4281 = vmatprep.subr.bf16.mxu0 0
  %4282 = vmatpush2.bf16.msra.mxu0 %v3049
  %4283 = vmatprep.subr.bf16.mxu0 0
  %4284 = vmatpush2.bf16.msra.mxu0 %v3048
  %4285 = vmatprep.subr.bf16.mxu0 0
  %4286 = vmatpush2.bf16.msra.mxu0 %v3047
  %4287 = vmatprep.mubr.bf16.mxu0 %v1066
  %4288 = vmatmul.mubr.bf16.gmra.mxu0 %v1052
  %v4289 = vpop.f32.mrf.mxu0
  %v4290 = vadd.f32 %v4250, %v4289
  %v4291 = vpop.f32.mrf.mxu0
  %v4292 = vpop.f32.mrf.mxu0
  %v4293 = vpop.f32.mrf.mxu0
  %4294 = vdwg.mxu0
  %4295 = vmatprep.subr.bf16.mxu0 0
  %4296 = vmatpush1.bf16.msra.mxu0 %v3062
  %4297 = vmatprep.subr.bf16.mxu0 0
  %4298 = vmatpush1.bf16.msra.mxu0 %v3061
  %4299 = vmatprep.subr.bf16.mxu0 0
  %4300 = vmatpush1.bf16.msra.mxu0 %v3060
  %4301 = vmatprep.subr.bf16.mxu0 0
  %4302 = vmatpush1.bf16.msra.mxu0 %v3059
  %4303 = vmatprep.subr.bf16.mxu0 0
  %4304 = vmatpush1.bf16.msra.mxu0 %v3058
  %4305 = vmatprep.subr.bf16.mxu0 0
  %4306 = vmatpush1.bf16.msra.mxu0 %v3057
  %4307 = vmatprep.subr.bf16.mxu0 0
  %4308 = vmatpush1.bf16.msra.mxu0 %v3056
  %4309 = vmatprep.subr.bf16.mxu0 0
  %4310 = vmatpush1.bf16.msra.mxu0 %v3055
  %4311 = vmatprep.subr.bf16.mxu0 0
  %4312 = vmatpush2.bf16.msra.mxu0 %v3070
  %4313 = vmatprep.subr.bf16.mxu0 0
  %4314 = vmatpush2.bf16.msra.mxu0 %v3069
  %4315 = vmatprep.subr.bf16.mxu0 0
  %4316 = vmatpush2.bf16.msra.mxu0 %v3068
  %4317 = vmatprep.subr.bf16.mxu0 0
  %4318 = vmatpush2.bf16.msra.mxu0 %v3067
  %4319 = vmatprep.subr.bf16.mxu0 0
  %4320 = vmatpush2.bf16.msra.mxu0 %v3066
  %4321 = vmatprep.subr.bf16.mxu0 0
  %4322 = vmatpush2.bf16.msra.mxu0 %v3065
  %4323 = vmatprep.subr.bf16.mxu0 0
  %4324 = vmatpush2.bf16.msra.mxu0 %v3064
  %4325 = vmatprep.subr.bf16.mxu0 0
  %4326 = vmatpush2.bf16.msra.mxu0 %v3063
  %4327 = vmatprep.mubr.bf16.mxu0 %v1070
  %4328 = vmatmul.mubr.bf16.gmra.mxu0 %v1068
  %v4329 = vpop.f32.mrf.mxu0
  %v4330 = vadd.f32 %v4290, %v4329
  %v4331 = vpop.f32.mrf.mxu0
  %v4332 = vpop.f32.mrf.mxu0
  %v4333 = vpop.f32.mrf.mxu0
  %4334 = vdwg.mxu0
  %4335 = vmatprep.subr.bf16.mxu0 0
  %4336 = vmatpush1.bf16.msra.mxu0 %v3078
  %4337 = vmatprep.subr.bf16.mxu0 0
  %4338 = vmatpush1.bf16.msra.mxu0 %v3077
  %4339 = vmatprep.subr.bf16.mxu0 0
  %4340 = vmatpush1.bf16.msra.mxu0 %v3076
  %4341 = vmatprep.subr.bf16.mxu0 0
  %4342 = vmatpush1.bf16.msra.mxu0 %v3075
  %4343 = vmatprep.subr.bf16.mxu0 0
  %4344 = vmatpush1.bf16.msra.mxu0 %v3074
  %4345 = vmatprep.subr.bf16.mxu0 0
  %4346 = vmatpush1.bf16.msra.mxu0 %v3073
  %4347 = vmatprep.subr.bf16.mxu0 0
  %4348 = vmatpush1.bf16.msra.mxu0 %v3072
  %4349 = vmatprep.subr.bf16.mxu0 0
  %4350 = vmatpush1.bf16.msra.mxu0 %v3071
  %4351 = vmatprep.subr.bf16.mxu0 0
  %4352 = vmatpush2.bf16.msra.mxu0 %v3086
  %4353 = vmatprep.subr.bf16.mxu0 0
  %4354 = vmatpush2.bf16.msra.mxu0 %v3085
  %4355 = vmatprep.subr.bf16.mxu0 0
  %4356 = vmatpush2.bf16.msra.mxu0 %v3084
  %4357 = vmatprep.subr.bf16.mxu0 0
  %4358 = vmatpush2.bf16.msra.mxu0 %v3083
  %4359 = vmatprep.subr.bf16.mxu0 0
  %4360 = vmatpush2.bf16.msra.mxu0 %v3082
  %4361 = vmatprep.subr.bf16.mxu0 0
  %4362 = vmatpush2.bf16.msra.mxu0 %v3081
  %4363 = vmatprep.subr.bf16.mxu0 0
  %4364 = vmatpush2.bf16.msra.mxu0 %v3080
  %4365 = vmatprep.subr.bf16.mxu0 0
  %4366 = vmatpush2.bf16.msra.mxu0 %v3079
  %4367 = vmatprep.mubr.bf16.mxu0 %v1108
  %4368 = vmatmul.mubr.bf16.gmra.mxu0 %v1094
  %v4369 = vpop.f32.mrf.mxu0
  %v4370 = vadd.f32 %v4330, %v4369
  %v4371 = vpop.f32.mrf.mxu0
  %v4372 = vpop.f32.mrf.mxu0
  %v4373 = vpop.f32.mrf.mxu0
  %4374 = vdwg.mxu0
  %4375 = vmatprep.subr.bf16.mxu0 0
  %4376 = vmatpush1.bf16.msra.mxu0 %v3094
  %4377 = vmatprep.subr.bf16.mxu0 0
  %4378 = vmatpush1.bf16.msra.mxu0 %v3093
  %4379 = vmatprep.subr.bf16.mxu0 0
  %4380 = vmatpush1.bf16.msra.mxu0 %v3092
  %4381 = vmatprep.subr.bf16.mxu0 0
  %4382 = vmatpush1.bf16.msra.mxu0 %v3091
  %4383 = vmatprep.subr.bf16.mxu0 0
  %4384 = vmatpush1.bf16.msra.mxu0 %v3090
  %4385 = vmatprep.subr.bf16.mxu0 0
  %4386 = vmatpush1.bf16.msra.mxu0 %v3089
  %4387 = vmatprep.subr.bf16.mxu0 0
  %4388 = vmatpush1.bf16.msra.mxu0 %v3088
  %4389 = vmatprep.subr.bf16.mxu0 0
  %4390 = vmatpush1.bf16.msra.mxu0 %v3087
  %4391 = vmatprep.subr.bf16.mxu0 0
  %4392 = vmatpush2.bf16.msra.mxu0 %v3102
  %4393 = vmatprep.subr.bf16.mxu0 0
  %4394 = vmatpush2.bf16.msra.mxu0 %v3101
  %4395 = vmatprep.subr.bf16.mxu0 0
  %4396 = vmatpush2.bf16.msra.mxu0 %v3100
  %4397 = vmatprep.subr.bf16.mxu0 0
  %4398 = vmatpush2.bf16.msra.mxu0 %v3099
  %4399 = vmatprep.subr.bf16.mxu0 0
  %4400 = vmatpush2.bf16.msra.mxu0 %v3098
  %4401 = vmatprep.subr.bf16.mxu0 0
  %4402 = vmatpush2.bf16.msra.mxu0 %v3097
  %4403 = vmatprep.subr.bf16.mxu0 0
  %4404 = vmatpush2.bf16.msra.mxu0 %v3096
  %4405 = vmatprep.subr.bf16.mxu0 0
  %4406 = vmatpush2.bf16.msra.mxu0 %v3095
  %4407 = vmatprep.mubr.bf16.mxu0 %v1118
  %4408 = vmatmul.mubr.bf16.gmra.mxu0 %v1116
  %v4409 = vpop.f32.mrf.mxu0
  %v4410 = vadd.f32 %v4370, %v4409
  %v4411 = vpop.f32.mrf.mxu0
  %v4412 = vpop.f32.mrf.mxu0
  %v4413 = vpop.f32.mrf.mxu0
  %4414 = vdwg.mxu0
  %4415 = vmatprep.subr.bf16.mxu0 0
  %4416 = vmatpush1.bf16.msra.mxu0 %v3110
  %4417 = vmatprep.subr.bf16.mxu0 0
  %4418 = vmatpush1.bf16.msra.mxu0 %v3109
  %4419 = vmatprep.subr.bf16.mxu0 0
  %4420 = vmatpush1.bf16.msra.mxu0 %v3108
  %4421 = vmatprep.subr.bf16.mxu0 0
  %4422 = vmatpush1.bf16.msra.mxu0 %v3107
  %4423 = vmatprep.subr.bf16.mxu0 0
  %4424 = vmatpush1.bf16.msra.mxu0 %v3106
  %4425 = vmatprep.subr.bf16.mxu0 0
  %4426 = vmatpush1.bf16.msra.mxu0 %v3105
  %4427 = vmatprep.subr.bf16.mxu0 0
  %4428 = vmatpush1.bf16.msra.mxu0 %v3104
  %4429 = vmatprep.subr.bf16.mxu0 0
  %4430 = vmatpush1.bf16.msra.mxu0 %v3103
  %4431 = vmatprep.subr.bf16.mxu0 0
  %4432 = vmatpush2.bf16.msra.mxu0 %v3118
  %4433 = vmatprep.subr.bf16.mxu0 0
  %4434 = vmatpush2.bf16.msra.mxu0 %v3117
  %4435 = vmatprep.subr.bf16.mxu0 0
  %4436 = vmatpush2.bf16.msra.mxu0 %v3116
  %4437 = vmatprep.subr.bf16.mxu0 0
  %4438 = vmatpush2.bf16.msra.mxu0 %v3115
  %4439 = vmatprep.subr.bf16.mxu0 0
  %4440 = vmatpush2.bf16.msra.mxu0 %v3114
  %4441 = vmatprep.subr.bf16.mxu0 0
  %4442 = vmatpush2.bf16.msra.mxu0 %v3113
  %4443 = vmatprep.subr.bf16.mxu0 0
  %4444 = vmatpush2.bf16.msra.mxu0 %v3112
  %4445 = vmatprep.subr.bf16.mxu0 0
  %4446 = vmatpush2.bf16.msra.mxu0 %v3111
  %4447 = vmatprep.mubr.bf16.mxu0 %v1115
  %4448 = vmatmul.mubr.bf16.gmra.mxu0 %v1101
  %v4449 = vpop.f32.mrf.mxu0
  %v4450 = vadd.f32 %v4410, %v4449
  %v4451 = vpop.f32.mrf.mxu0
  %v4452 = vpop.f32.mrf.mxu0
  %v4453 = vpop.f32.mrf.mxu0
  %4454 = vdwg.mxu0
  %4455 = vmatprep.subr.bf16.mxu0 0
  %4456 = vmatpush1.bf16.msra.mxu0 %v3126
  %4457 = vmatprep.subr.bf16.mxu0 0
  %4458 = vmatpush1.bf16.msra.mxu0 %v3125
  %4459 = vmatprep.subr.bf16.mxu0 0
  %4460 = vmatpush1.bf16.msra.mxu0 %v3124
  %4461 = vmatprep.subr.bf16.mxu0 0
  %4462 = vmatpush1.bf16.msra.mxu0 %v3123
  %4463 = vmatprep.subr.bf16.mxu0 0
  %4464 = vmatpush1.bf16.msra.mxu0 %v3122
  %4465 = vmatprep.subr.bf16.mxu0 0
  %4466 = vmatpush1.bf16.msra.mxu0 %v3121
  %4467 = vmatprep.subr.bf16.mxu0 0
  %4468 = vmatpush1.bf16.msra.mxu0 %v3120
  %4469 = vmatprep.subr.bf16.mxu0 0
  %4470 = vmatpush1.bf16.msra.mxu0 %v3119
  %4471 = vmatprep.subr.bf16.mxu0 0
  %4472 = vmatpush2.bf16.msra.mxu0 %v3134
  %4473 = vmatprep.subr.bf16.mxu0 0
  %4474 = vmatpush2.bf16.msra.mxu0 %v3133
  %4475 = vmatprep.subr.bf16.mxu0 0
  %4476 = vmatpush2.bf16.msra.mxu0 %v3132
  %4477 = vmatprep.subr.bf16.mxu0 0
  %4478 = vmatpush2.bf16.msra.mxu0 %v3131
  %4479 = vmatprep.subr.bf16.mxu0 0
  %4480 = vmatpush2.bf16.msra.mxu0 %v3130
  %4481 = vmatprep.subr.bf16.mxu0 0
  %4482 = vmatpush2.bf16.msra.mxu0 %v3129
  %4483 = vmatprep.subr.bf16.mxu0 0
  %4484 = vmatpush2.bf16.msra.mxu0 %v3128
  %4485 = vmatprep.subr.bf16.mxu0 0
  %4486 = vmatpush2.bf16.msra.mxu0 %v3127
  %4487 = vmatprep.mubr.bf16.mxu0 %v1119
  %4488 = vmatmul.mubr.bf16.gmra.mxu0 %v1117
  %v4489 = vpop.f32.mrf.mxu0
  %v4490 = vadd.f32 %v4450, %v4489
  %v4491 = vpop.f32.mrf.mxu0
  %v4492 = vpop.f32.mrf.mxu0
  %v4493 = vpop.f32.mrf.mxu0
  %4494 = vdwg.mxu0
  %4495 = vmatprep.subr.bf16.mxu0 0
  %4496 = vmatpush1.bf16.msra.mxu0 %v3142
  %4497 = vmatprep.subr.bf16.mxu0 0
  %4498 = vmatpush1.bf16.msra.mxu0 %v3141
  %4499 = vmatprep.subr.bf16.mxu0 0
  %4500 = vmatpush1.bf16.msra.mxu0 %v3140
  %4501 = vmatprep.subr.bf16.mxu0 0
  %4502 = vmatpush1.bf16.msra.mxu0 %v3139
  %4503 = vmatprep.subr.bf16.mxu0 0
  %4504 = vmatpush1.bf16.msra.mxu0 %v3138
  %4505 = vmatprep.subr.bf16.mxu0 0
  %4506 = vmatpush1.bf16.msra.mxu0 %v3137
  %4507 = vmatprep.subr.bf16.mxu0 0
  %4508 = vmatpush1.bf16.msra.mxu0 %v3136
  %4509 = vmatprep.subr.bf16.mxu0 0
  %4510 = vmatpush1.bf16.msra.mxu0 %v3135
  %4511 = vmatprep.subr.bf16.mxu0 0
  %4512 = vmatpush2.bf16.msra.mxu0 0
  %4513 = vmatprep.subr.bf16.mxu0 0
  %4514 = vmatpush2.bf16.msra.mxu0 0
  %4515 = vmatprep.subr.bf16.mxu0 0
  %4516 = vmatpush2.bf16.msra.mxu0 0
  %4517 = vmatprep.subr.bf16.mxu0 0
  %4518 = vmatpush2.bf16.msra.mxu0 0
  %4519 = vmatprep.subr.bf16.mxu0 0
  %4520 = vmatpush2.bf16.msra.mxu0 0
  %4521 = vmatprep.subr.bf16.mxu0 0
  %4522 = vmatpush2.bf16.msra.mxu0 0
  %4523 = vmatprep.subr.bf16.mxu0 0
  %4524 = vmatpush2.bf16.msra.mxu0 0
  %4525 = vmatprep.subr.bf16.mxu0 0
  %4526 = vmatpush2.bf16.msra.mxu0 0
  %4527 = vmatprep.mubr.bf16.mxu0 0
  %4528 = vmatmul.mubr.bf16.gmra.mxu0 %v1133
  %v4529 = vpop.f32.mrf.mxu0
  %v4530 = vadd.f32 %v4490, %v4529
  %v4531 = vpop.f32.mrf.mxu0
  %v4532 = vpop.f32.mrf.mxu0
  %v4533 = vpop.f32.mrf.mxu0
  %4534 = vdwg.mxu0
  %v4535 = vmax.f32 %v4530, 0.0
  %v4536 = vpack.c.bf16 %v4535, %v4535
  %v4537 = vld [vmem:[%s3] sm:$0xf]
  %v4538 = vld [vmem:[%s3 + $0x4] sm:$0xf]
  %v4539 = vld [vmem:[%s3 + $0x8] sm:$0xf]
  %v4540 = vld [vmem:[%s3 + $0xc] sm:$0xf]
  %v4541 = vld [vmem:[%s3 + $0x10] sm:$0xf]
  %v4542 = vld [vmem:[%s3 + $0x14] sm:$0xf]
  %v4543 = vld [vmem:[%s3 + $0x18] sm:$0xf]
  %v4544 = vld [vmem:[%s3 + $0x1c] sm:$0xf]
  %v4545 = vld [vmem:[%s3 + $0x20] sm:$0xf]
  %v4546 = vld [vmem:[%s3 + $0x24] sm:$0xf]
  %v4547 = vld [vmem:[%s3 + $0x28] sm:$0xf]
  %v4548 = vld [vmem:[%s3 + $0x2c] sm:$0xf]
  %v4549 = vld [vmem:[%s3 + $0x30] sm:$0xf]
  %v4550 = vld [vmem:[%s3 + $0x34] sm:$0xf]
  %v4551 = vld [vmem:[%s3 + $0x38] sm:$0xf]
  %v4552 = vld [vmem:[%s3 + $0x3c] sm:$0xf]
  %v4553 = vld [vmem:[%s4] sm:$0x1]
  %v4555 = vlaneseq
  %v4556 = vshrl.u32 %v4555, 7
  %v4557 = vsub.s32 0, %v4556
  %v4558 = vrot.slane %v4553, %v4557
  %v4576 = vunpack.c.l.b16 %v4537
  %v4577 = vunpack.c.l.b16 %v4538
  %v4578 = vunpack.c.l.b16 %v4539
  %v4579 = vunpack.c.l.b16 %v4540
  %v4580 = vunpack.c.l.b16 %v4541
  %v4581 = vunpack.c.l.b16 %v4542
  %v4582 = vunpack.c.l.b16 %v4543
  %v4583 = vunpack.c.l.b16 %v4544
  %v4584 = vunpack.c.l.b16 %v4545
  %v4585 = vunpack.c.l.b16 %v4546
  %v4586 = vunpack.c.l.b16 %v4547
  %v4587 = vunpack.c.l.b16 %v4548
  %v4588 = vunpack.c.l.b16 %v4549
  %v4589 = vunpack.c.l.b16 %v4550
  %v4590 = vunpack.c.l.b16 %v4551
  %v4591 = vunpack.c.l.b16 %v4552
  %v4592 = vpack.c.b16 %v4577, %v4576
  %v4593 = vpack.c.b16 %v4579, %v4578
  %v4594 = vpack.c.b16 %v4581, %v4580
  %v4595 = vpack.c.b16 %v4583, %v4582
  %v4596 = vpack.c.b16 %v4585, %v4584
  %v4597 = vpack.c.b16 %v4587, %v4586
  %v4598 = vpack.c.b16 %v4589, %v4588
  %v4599 = vpack.c.b16 %v4591, %v4590
  %4608 = vmatprep.subr.bf16.mxu0 0
  %4609 = vmatpush1.bf16.msra.mxu0 %v4599
  %4610 = vmatprep.subr.bf16.mxu0 0
  %4611 = vmatpush1.bf16.msra.mxu0 %v4598
  %4612 = vmatprep.subr.bf16.mxu0 0
  %4613 = vmatpush1.bf16.msra.mxu0 %v4597
  %4614 = vmatprep.subr.bf16.mxu0 0
  %4615 = vmatpush1.bf16.msra.mxu0 %v4596
  %4616 = vmatprep.subr.bf16.mxu0 0
  %4617 = vmatpush1.bf16.msra.mxu0 %v4595
  %4618 = vmatprep.subr.bf16.mxu0 0
  %4619 = vmatpush1.bf16.msra.mxu0 %v4594
  %4620 = vmatprep.subr.bf16.mxu0 0
  %4621 = vmatpush1.bf16.msra.mxu0 %v4593
  %4622 = vmatprep.subr.bf16.mxu0 0
  %4623 = vmatpush1.bf16.msra.mxu0 %v4592
  %4624 = vmatprep.subr.bf16.mxu0 0
  %4625 = vmatpush2.bf16.msra.mxu0 0
  %4626 = vmatprep.subr.bf16.mxu0 0
  %4627 = vmatpush2.bf16.msra.mxu0 0
  %4628 = vmatprep.subr.bf16.mxu0 0
  %4629 = vmatpush2.bf16.msra.mxu0 0
  %4630 = vmatprep.subr.bf16.mxu0 0
  %4631 = vmatpush2.bf16.msra.mxu0 0
  %4632 = vmatprep.subr.bf16.mxu0 0
  %4633 = vmatpush2.bf16.msra.mxu0 0
  %4634 = vmatprep.subr.bf16.mxu0 0
  %4635 = vmatpush2.bf16.msra.mxu0 0
  %4636 = vmatprep.subr.bf16.mxu0 0
  %4637 = vmatpush2.bf16.msra.mxu0 0
  %4638 = vmatprep.subr.bf16.mxu0 0
  %4639 = vmatpush2.bf16.msra.mxu0 0
  %4640 = vmatprep.mubr.bf16.mxu0 0
  %4641 = vmatmul.mubr.bf16.gmra.mxu0 %v4536
  %v4642 = vpop.f32.mrf.mxu0
  %v4643 = vadd.f32 %v4558, %v4642
  %v4644 = vpop.f32.mrf.mxu0
  %v4645 = vpop.f32.mrf.mxu0
  %v4646 = vpop.f32.mrf.mxu0
  %4647 = vdwg.mxu0
  %v4648 = vlaneseq
  %v4649 = vand.u32 %v4648, 127
  %vm4650 = vcmp.lt.s32.totalorder %v4649, 3
  %vm4651 = vcmp.eq.s32.totalorder %v4649, 3
  %v4652 = vsel %vm4651, %v4643, 0.0
  %vm4653 = vcmask 1041408
  %v4654 = vsel %vm4653, %v4652, 0.0
  %4655 = vadd.xlane.f32.xlu0 %v4654
  %v4656 = vpop.xlane.xlu0 %4655
  %v4657 = vsel %vm4650, %v4643, -1e+30
  %v4658 = vsel %vm4653, %v4657, -inf
  %4659 = vmax.xlane.f32.xlu0 %v4658
  %v4660 = vpop.xlane.xlu0 %4659
  %v4661 = vsub.f32 %v4657, %v4660
  %v4662 = vmul.f32 %v4661, 1.442695
  %v4663 = vpow.pop %v4662
  %v4664 = vsel %vm4653, %v4663, 0.0
  %4665 = vadd.xlane.f32.xlu0 %v4664
  %v4666 = vpop.xlane.xlu0 %4665
  %v4667 = vlog2.pop %v4666
  %v4668 = vmul.f32 %v4667, 0.6931472
  %v4669 = vsub.f32 %v4661, %v4668
  %v4670 = vrcp.pop %v4666
  %v4671 = vmul.f32 %v4663, %v4670
  %v4672 = vmul.f32 %v4671, %v4669
  %v4673 = vsel %vm4650, %v4672, 0.0
  %v4674 = vsel %vm4653, %v4673, 0.0
  %4675 = vadd.xlane.f32.xlu0 %v4674
  %v4676 = vpop.xlane.xlu0 %4675
  %v4677 = vsub.f32 0.0, %v4676
  %v4678 = vsel %vm4650, %v4669, 0.0
  %v4679 = vsel %vm4651, %v4656, 0.0
  %v4680 = vadd.f32 %v4678, %v4679
  %vm4681 = vcmp.eq.s32.totalorder %v4649, 4
  %v4682 = vsel %vm4681, %v4677, 0.0
  %v4683 = vadd.f32 %v4680, %v4682
  %4684 = vst [vmem:[%s5] sm:$0x3] %v4683
  // Predicated region
  $region22: #{ppo_forward.7} parent=0 // pred_check
    _
  $region23: #{ppo_forward.7} parent=0 // pred_check_branch
    %4686 = sbr.rel (0) target = $region25
  $region24: #{ppo_forward.7} parent=0 // pred_region
    _
  $region25: #{ppo_forward.7} parent=0 // pred_fallthru
    _
  // Predicated region
  $region26: #{ppo_forward.7} parent=0 // pred_check
    _
  $region27: #{ppo_forward.7} parent=0 // pred_check_branch
    %4688 = sbr.rel (0) target = $region29
  $region28: #{ppo_forward.7} parent=0 // pred_region
    _
  $region29: #{ppo_forward.7} parent=0 // pred_fallthru
    _

</llo_original>
